<compile_context>
chip_gen: v7x
topology: tpu7x:2x2x1
jax: 0.10.0
libtpu: 0.0.40
codegen_flags: <defaults>
</compile_context>

<pallas_src>
import numpy as np
import jax
import jax.numpy as jnp
from jax import lax
from jax.experimental import pallas as pl
from jax.experimental.pallas import tpu as pltpu

_BN_EPS = 1e-5


def _inception_kernel(x_ref,
                      wf_ref, bf_ref,      # fused 1x1: [b1 stem | b2 stem | b4]
                      w1b_ref, b1b_ref,    # branch1 conv2 3x3 (BN folded)
                      w1c_ref, b1c_ref,    # branch1 conv3 3x3
                      w2b_ref, b2b_ref,    # branch2 conv2 3x3
                      w3_ref, b3_ref,      # branch3 1x1 (after max-pool)
                      o_ref):
    f32 = jnp.float32
    bf16 = jnp.bfloat16

    x = x_ref[0]                          # (H, W, Cin) f32
    H, W, Cin = x.shape
    HW = H * W
    oc3 = wf_ref.shape[1] // 3
    oc0 = w1b_ref.shape[2]
    oc1 = w2b_ref.shape[2]
    oc2 = w3_ref.shape[1]

    xf = x.reshape(HW, Cin)               # flattened spatial view

    # ---- boundary masks in flattened (h*W + w) row space, hoisted once ----
    i_idx = lax.broadcasted_iota(jnp.int32, (HW, 1), 0)
    cond_h_pos = i_idx < (H - 1) * W      # reading row h+1 is in-image
    cond_h_neg = i_idx >= W               # reading row h-1 is in-image
    if W & (W - 1) == 0:                  # avoid vector integer div/mod
        w_idx = jnp.bitwise_and(i_idx, W - 1)
    else:
        w_idx = i_idx - (i_idx // W) * W
    cond_w_pos = w_idx < (W - 1)          # reading col w+1 is in-image
    cond_w_neg = w_idx >= 1               # reading col w-1 is in-image
    tap_cond = {
        (-1, -1): jnp.logical_and(cond_h_neg, cond_w_neg),
        (-1, 0):  cond_h_neg,
        (-1, 1):  jnp.logical_and(cond_h_neg, cond_w_pos),
        (0, -1):  cond_w_neg,
        (0, 1):   cond_w_pos,
        (1, -1):  jnp.logical_and(cond_h_pos, cond_w_neg),
        (1, 0):   cond_h_pos,
        (1, 1):   jnp.logical_and(cond_h_pos, cond_w_pos),
    }

    def shift_rows(p, s, cond, fill):
        # out[i] = p[i + s] where cond holds, else `fill`.  The cyclic wrap of
        # the roll is always covered by `cond`.  Roll runs on the XLU, off the
        # VALU/load-store path (replaces pad-concat + strided-slice copies).
        rolled = pltpu.roll(p, (-s) % p.shape[0], axis=0)
        return jnp.where(cond, rolled, fill)

    def conv3x3(a_f32, w_ref, b_ref):
        # SAME 3x3 conv: 9 tap matmuls on the unshifted operand; each result is
        # shifted with roll + boundary mask.  bf16 operands, f32 accumulation.
        a = a_f32.astype(bf16)
        # centre tap initialises the accumulator (saves a zero-fill + add)
        acc = jnp.dot(a, w_ref[4], preferred_element_type=f32) + b_ref[...]
        for k in (0, 1, 2, 3, 5, 6, 7, 8):
            dh, dw = k // 3 - 1, k % 3 - 1
            p = jnp.dot(a, w_ref[k], preferred_element_type=f32)
            acc = acc + shift_rows(p, dh * W + dw, tap_cond[(dh, dw)], 0.0)
        return acc                         # (HW, Cout) f32

    # -------- fused 1x1 convs on x: branch1 stem | branch2 stem | branch4 --------
    xb = xf.astype(bf16)
    stem = jnp.dot(xb, wf_ref[...], preferred_element_type=f32) + bf_ref[...]
    t1 = jnp.maximum(stem[:, 0:oc3], 0.0)            # ReLU(BN(conv1x1)) - branch1
    t2 = jnp.maximum(stem[:, oc3:2 * oc3], 0.0)      # ReLU(BN(conv1x1)) - branch2
    br4 = stem[:, 2 * oc3:3 * oc3]                   # branch4: plain 1x1 conv

    # -------- branch1: 3x3 (BN folded) + ReLU, then 3x3 --------
    u1 = jnp.maximum(conv3x3(t1, w1b_ref, b1b_ref), 0.0)
    br1 = conv3x3(u1, w1c_ref, b1c_ref)

    # -------- branch2: 3x3 --------
    br2 = conv3x3(t2, w2b_ref, b2b_ref)

    # -------- branch3: separable 3x3 max-pool (s=1, p=1), then 1x1 --------
    # (Cin=4 here so the pool is negligible; with realistic Cin>=32 this
    #  flattened layout is also lane-reasonable.  For very small Cin a
    #  (H, W*Cin) lane-packed view would raise VPU lane utilisation.)
    neg = jnp.float32(-3.0e38)
    row_max = jnp.maximum(xf, jnp.maximum(shift_rows(xf, 1, cond_w_pos, neg),
                                          shift_rows(xf, -1, cond_w_neg, neg)))
    pooled = jnp.maximum(row_max,
                         jnp.maximum(shift_rows(row_max, W, cond_h_pos, neg),
                                     shift_rows(row_max, -W, cond_h_neg, neg)))
    br3 = jnp.dot(pooled.astype(bf16), w3_ref[...],
                  preferred_element_type=f32) + b3_ref[...]

    # -------- single fused output block (torch.cat order: b1|b2|b3|b4) --------
    c1 = oc0
    c2 = oc0 + oc1
    c3 = oc0 + oc1 + oc2
    o_ref[0, :, :, 0:c1] = br1.reshape(H, W, oc0)
    o_ref[0, :, :, c1:c2] = br2.reshape(H, W, oc1)
    o_ref[0, :, :, c2:c3] = br3.reshape(H, W, oc2)
    o_ref[0, :, :, c3:c3 + oc3] = br4.reshape(H, W, oc3)


# ----------------------------- parameter packing -----------------------------

def _fold_bn(w_hwio, b, gamma, beta, mean, var):
    s = gamma / jnp.sqrt(var + _BN_EPS)
    return w_hwio * s, b * s + (beta - mean * s)


def pack_params(p):
    """Fold eval-mode BatchNorm into the preceding convs and pack weights
    matmul-ready: 1x1 -> (Cin, Cout); 3x3 -> (9, Cin, Cout), tap k=(dh+1)*3+(dw+1).
    Matmul weights stored bf16 (f32 accumulation in-kernel); biases stay f32."""
    bf16, f32 = jnp.bfloat16, jnp.float32
    w1a, b1a = _fold_bn(p["b1c1_w"], p["b1c1_b"], *p["b1bn1"])
    w1b, b1b = _fold_bn(p["b1c2_w"], p["b1c2_b"], *p["b1bn2"])
    w1c, b1c = p["b1c3_w"], p["b1c3_b"]
    w2a, b2a = _fold_bn(p["b2c1_w"], p["b2c1_b"], *p["b2bn1"])
    w2b, b2b = p["b2c2_w"], p["b2c2_b"]
    w3, b3 = p["b3c1_w"], p["b3c1_b"]
    w4, b4 = p["b4c1_w"], p["b4c1_b"]

    def m2(w):   # (1,1,Cin,Cout) -> (Cin,Cout)
        return w.reshape(w.shape[2], w.shape[3])

    def m9(w):   # (3,3,Cin,Cout) -> (9,Cin,Cout)
        return w.reshape(9, w.shape[2], w.shape[3])

    wfused = jnp.concatenate([m2(w1a), m2(w2a), m2(w4)], axis=1).astype(bf16)
    bfused = jnp.concatenate([b1a, b2a, b4])[None, :].astype(f32)
    return (wfused, bfused,
            m9(w1b).astype(bf16), b1b[None, :].astype(f32),
            m9(w1c).astype(bf16), b1c[None, :].astype(f32),
            m9(w2b).astype(bf16), b2b[None, :].astype(f32),
            m2(w3).astype(bf16), b3[None, :].astype(f32))


# --------------------------------- wrappers ----------------------------------

def inception_a_nhwc(x_nhwc, packed):
    N, H, W, Cin = x_nhwc.shape
    oc3 = packed[0].shape[1] // 3
    oc0 = packed[2].shape[2]
    oc1 = packed[6].shape[2]
    oc2 = packed[8].shape[1]
    cout = oc0 + oc1 + oc2 + oc3

    def full_spec(a):
        nd = a.ndim
        return pl.BlockSpec(a.shape, lambda n, _nd=nd: (0,) * _nd)

    in_specs = [pl.BlockSpec((1, H, W, Cin), lambda n: (n, 0, 0, 0))]
    in_specs += [full_spec(a) for a in packed]
    out_specs = pl.BlockSpec((1, H, W, cout), lambda n: (n, 0, 0, 0))

    return pl.pallas_call(
        _inception_kernel,
        out_shape=jax.ShapeDtypeStruct((N, H, W, cout), jnp.float32),
        grid=(N,),
        in_specs=in_specs,
        out_specs=out_specs,
        compiler_params=pltpu.CompilerParams(
            dimension_semantics=("parallel",),
            # whole-image block + intermediates is only a few MiB at this size;
            # 32 MiB is explicit and safe on v5e / v6e / v7x.
            vmem_limit_bytes=32 * 1024 * 1024),
    )(x_nhwc.astype(jnp.float32), *packed)


def inception_a(x_nchw, params):
    # NOTE: these two transposes are a full HBM read+write each; keep the model
    # NHWC end-to-end to avoid them in production.
    packed = pack_params(params)
    x = jnp.transpose(x_nchw, (0, 2, 3, 1))
    y = inception_a_nhwc(x, packed)
    return jnp.transpose(y, (0, 3, 1, 2))


# ------------------------- init + pure-JAX reference -------------------------

def init_params(key, in_channels, out_channels):
    oc0, oc1, oc2, oc3 = out_channels
    keys = iter(jax.random.split(key, 40))

    def conv(cin, cout, k):
        fan_in = cin * k * k
        bound = 1.0 / np.sqrt(fan_in)
        w = jax.random.uniform(next(keys), (k, k, cin, cout), jnp.float32, -bound, bound)
        b = jax.random.uniform(next(keys), (cout,), jnp.float32, -bound, bound)
        return w, b

    def bn(c):
        g = jax.random.uniform(next(keys), (c,), jnp.float32, 0.5, 1.5)
        b = jax.random.uniform(next(keys), (c,), jnp.float32, -0.2, 0.2)
        m = jax.random.uniform(next(keys), (c,), jnp.float32, -0.2, 0.2)
        v = jax.random.uniform(next(keys), (c,), jnp.float32, 0.5, 1.5)
        return (g, b, m, v)

    p = {}
    p["b1c1_w"], p["b1c1_b"] = conv(in_channels, oc3, 1)
    p["b1bn1"] = bn(oc3)
    p["b1c2_w"], p["b1c2_b"] = conv(oc3, oc0, 3)
    p["b1bn2"] = bn(oc0)
    p["b1c3_w"], p["b1c3_b"] = conv(oc0, oc0, 3)
    p["b2c1_w"], p["b2c1_b"] = conv(in_channels, oc3, 1)
    p["b2bn1"] = bn(oc3)
    p["b2c2_w"], p["b2c2_b"] = conv(oc3, oc1, 3)
    p["b3c1_w"], p["b3c1_b"] = conv(in_channels, oc2, 1)
    p["b4c1_w"], p["b4c1_b"] = conv(in_channels, oc3, 1)
    return p


def reference(x_nchw, p):
    dn = ("NCHW", "HWIO", "NCHW")

    def conv(x, w, b, pad):
        y = lax.conv_general_dilated(x, w, (1, 1), pad, dimension_numbers=dn)
        return y + b.reshape(1, -1, 1, 1)

    def bn(x, gbmv):
        g, b, m, v = gbmv
        s = g / jnp.sqrt(v + _BN_EPS)
        return x * s.reshape(1, -1, 1, 1) + (b - m * s).reshape(1, -1, 1, 1)

    relu = lambda z: jnp.maximum(z, 0.0)
    same, none = [(1, 1), (1, 1)], [(0, 0), (0, 0)]

    t = relu(bn(conv(x_nchw, p["b1c1_w"], p["b1c1_b"], none), p["b1bn1"]))
    t = relu(bn(conv(t, p["b1c2_w"], p["b1c2_b"], same), p["b1bn2"]))
    br1 = conv(t, p["b1c3_w"], p["b1c3_b"], same)

    t = relu(bn(conv(x_nchw, p["b2c1_w"], p["b2c1_b"], none), p["b2bn1"]))
    br2 = conv(t, p["b2c2_w"], p["b2c2_b"], same)

    pooled = lax.reduce_window(x_nchw, -jnp.inf, lax.max,
                               (1, 1, 3, 3), (1, 1, 1, 1),
                               [(0, 0), (0, 0), (1, 1), (1, 1)])
    br3 = conv(pooled, p["b3c1_w"], p["b3c1_b"], none)

    br4 = conv(x_nchw, p["b4c1_w"], p["b4c1_b"], none)
    return jnp.concatenate([br1, br2, br3, br4], axis=1)


if __name__ == "__main__":
    key = jax.random.PRNGKey(0)
    kx, kp = jax.random.split(key)
    N, Cin, H, W = 2, 4, 16, 16
    out_channels = [64, 64, 64, 64]   # [oc0, oc1, oc2, oc3] -> 256 total (lane dense)
    x = jax.random.normal(kx, (N, Cin, H, W), jnp.float32)
    params = init_params(kp, Cin, out_channels)

    out = jax.block_until_ready(inception_a(x, params))
    ref = jax.block_until_ready(reference(x, params))

    assert out.shape == (N, sum(out_channels), H, W), out.shape
    err = float(np.max(np.abs(np.asarray(out) - np.asarray(ref))))
    # bf16 matmul operands with f32 accumulation -> slightly relaxed tolerance.
    assert np.allclose(np.asarray(out), np.asarray(ref), rtol=3e-2, atol=3e-2), err
    print("KERNEL_OK")
</pallas_src>

<mosaic_0001>
module attributes {stable_mosaic.version = 11 : i64} {
  func.func @_inception_kernel(%arg0: i32, %arg1: memref<1x16x16x4xf32, #tpu.memory_space<vmem>>, %arg2: memref<4x192xbf16, #tpu.memory_space<vmem>>, %arg3: memref<1x192xf32, #tpu.memory_space<vmem>>, %arg4: memref<9x64x64xbf16, #tpu.memory_space<vmem>>, %arg5: memref<1x64xf32, #tpu.memory_space<vmem>>, %arg6: memref<9x64x64xbf16, #tpu.memory_space<vmem>>, %arg7: memref<1x64xf32, #tpu.memory_space<vmem>>, %arg8: memref<9x64x64xbf16, #tpu.memory_space<vmem>>, %arg9: memref<1x64xf32, #tpu.memory_space<vmem>>, %arg10: memref<4x64xbf16, #tpu.memory_space<vmem>>, %arg11: memref<1x64xf32, #tpu.memory_space<vmem>>, %arg12: memref<1x16x16x256xf32, #tpu.memory_space<vmem>>) attributes {dimension_semantics = [#tpu.dimension_semantics<parallel>], iteration_bounds = array<i64: 2>, scalar_prefetch = 0 : i64, scratch_operands = 0 : i64, tpu.core_type = #tpu.core_type<tc>, window_params = [{transform_indices = @transform_0, window_bounds = array<i64: 1, 16, 16, 4>}, {pipeline_mode = #tpu.pipeline_mode<synchronous>, transform_indices = @transform_1, window_bounds = array<i64: 4, 192>}, {pipeline_mode = #tpu.pipeline_mode<synchronous>, transform_indices = @transform_2, window_bounds = array<i64: 1, 192>}, {pipeline_mode = #tpu.pipeline_mode<synchronous>, transform_indices = @transform_3, window_bounds = array<i64: 9, 64, 64>}, {pipeline_mode = #tpu.pipeline_mode<synchronous>, transform_indices = @transform_4, window_bounds = array<i64: 1, 64>}, {pipeline_mode = #tpu.pipeline_mode<synchronous>, transform_indices = @transform_5, window_bounds = array<i64: 9, 64, 64>}, {pipeline_mode = #tpu.pipeline_mode<synchronous>, transform_indices = @transform_6, window_bounds = array<i64: 1, 64>}, {pipeline_mode = #tpu.pipeline_mode<synchronous>, transform_indices = @transform_7, window_bounds = array<i64: 9, 64, 64>}, {pipeline_mode = #tpu.pipeline_mode<synchronous>, transform_indices = @transform_8, window_bounds = array<i64: 1, 64>}, {pipeline_mode = #tpu.pipeline_mode<synchronous>, transform_indices = @transform_9, window_bounds = array<i64: 4, 64>}, {pipeline_mode = #tpu.pipeline_mode<synchronous>, transform_indices = @transform_10, window_bounds = array<i64: 1, 64>}, {transform_indices = @transform_11, window_bounds = array<i64: 1, 16, 16, 256>}]} {
    %c0 = arith.constant 0 : index
    %c0_0 = arith.constant 0 : index
    %c0_1 = arith.constant 0 : index
    %c0_2 = arith.constant 0 : index
    %0 = vector.load %arg1[%c0, %c0_0, %c0_1, %c0_2] : memref<1x16x16x4xf32, #tpu.memory_space<vmem>>, vector<1x16x16x4xf32>
    %1 = vector.shape_cast %0 : vector<1x16x16x4xf32> to vector<16x16x4xf32>
    %2 = vector.shape_cast %1 : vector<16x16x4xf32> to vector<256x4xf32>
    %3 = tpu.iota {dimensions = array<i32: 0>} : vector<256x1xi32>
    %c240_i32 = arith.constant 240 : i32
    %4 = vector.broadcast %c240_i32 : i32 to vector<256x1xi32>
    %5 = arith.cmpi slt, %3, %4 : vector<256x1xi32>
    %c16_i32 = arith.constant 16 : i32
    %6 = vector.broadcast %c16_i32 : i32 to vector<256x1xi32>
    %7 = arith.cmpi sge, %3, %6 : vector<256x1xi32>
    %c15_i32 = arith.constant 15 : i32
    %8 = vector.broadcast %c15_i32 : i32 to vector<256x1xi32>
    %9 = arith.andi %3, %8 : vector<256x1xi32>
    %c15_i32_3 = arith.constant 15 : i32
    %10 = vector.broadcast %c15_i32_3 : i32 to vector<256x1xi32>
    %11 = arith.cmpi slt, %9, %10 : vector<256x1xi32>
    %c1_i32 = arith.constant 1 : i32
    %12 = vector.broadcast %c1_i32 : i32 to vector<256x1xi32>
    %13 = arith.cmpi sge, %9, %12 : vector<256x1xi32>
    %14 = arith.andi %7, %13 : vector<256x1xi1>
    %15 = arith.andi %7, %11 : vector<256x1xi1>
    %16 = arith.andi %5, %13 : vector<256x1xi1>
    %17 = arith.andi %5, %11 : vector<256x1xi1>
    %18 = arith.truncf %2 : vector<256x4xf32> to vector<256x4xbf16>
    %c0_4 = arith.constant 0 : index
    %c0_5 = arith.constant 0 : index
    %19 = vector.load %arg2[%c0_4, %c0_5] : memref<4x192xbf16, #tpu.memory_space<vmem>>, vector<4x192xbf16>
    %cst = arith.constant dense<0.000000e+00> : vector<256x192xf32>
    %20 = tpu.matmul %18, %19, %cst {dimension_numbers = #tpu.dot_dimension_numbers<[1], [0], [0], [1], [0, 0, 1, 1], [], []>} : vector<256x4xbf16>, vector<4x192xbf16>, vector<256x192xf32> -> vector<256x192xf32>
    %c0_6 = arith.constant 0 : index
    %c0_7 = arith.constant 0 : index
    %21 = vector.load %arg3[%c0_6, %c0_7] : memref<1x192xf32, #tpu.memory_space<vmem>>, vector<1x192xf32>
    %22 = vector.broadcast %21 : vector<1x192xf32> to vector<256x192xf32>
    %23 = arith.addf %20, %22 : vector<256x192xf32>
    %24 = vector.extract_strided_slice %23 {offsets = [0, 0], sizes = [256, 64], strides = [1, 1]} : vector<256x192xf32> to vector<256x64xf32>
    %cst_8 = arith.constant 0.000000e+00 : f32
    %25 = vector.broadcast %cst_8 : f32 to vector<256x64xf32>
    %26 = arith.maximumf %24, %25 : vector<256x64xf32>
    %27 = vector.extract_strided_slice %23 {offsets = [0, 64], sizes = [256, 64], strides = [1, 1]} : vector<256x192xf32> to vector<256x64xf32>
    %cst_9 = arith.constant 0.000000e+00 : f32
    %28 = vector.broadcast %cst_9 : f32 to vector<256x64xf32>
    %29 = arith.maximumf %27, %28 : vector<256x64xf32>
    %30 = vector.extract_strided_slice %23 {offsets = [0, 128], sizes = [256, 64], strides = [1, 1]} : vector<256x192xf32> to vector<256x64xf32>
    %31 = arith.truncf %26 : vector<256x64xf32> to vector<256x64xbf16>
    %c4 = arith.constant 4 : index
    %c0_10 = arith.constant 0 : index
    %c0_11 = arith.constant 0 : index
    %32 = vector.load %arg4[%c4, %c0_10, %c0_11] : memref<9x64x64xbf16, #tpu.memory_space<vmem>>, vector<1x64x64xbf16>
    %33 = vector.shape_cast %32 : vector<1x64x64xbf16> to vector<64x64xbf16>
    %cst_12 = arith.constant dense<0.000000e+00> : vector<256x64xf32>
    %34 = tpu.matmul %31, %33, %cst_12 {dimension_numbers = #tpu.dot_dimension_numbers<[1], [0], [0], [1], [0, 0, 1, 1], [], []>} : vector<256x64xbf16>, vector<64x64xbf16>, vector<256x64xf32> -> vector<256x64xf32>
    %c0_13 = arith.constant 0 : index
    %c0_14 = arith.constant 0 : index
    %35 = vector.load %arg5[%c0_13, %c0_14] : memref<1x64xf32, #tpu.memory_space<vmem>>, vector<1x64xf32>
    %36 = vector.broadcast %35 : vector<1x64xf32> to vector<256x64xf32>
    %37 = arith.addf %34, %36 : vector<256x64xf32>
    %c0_15 = arith.constant 0 : index
    %c0_16 = arith.constant 0 : index
    %c0_17 = arith.constant 0 : index
    %38 = vector.load %arg4[%c0_15, %c0_16, %c0_17] : memref<9x64x64xbf16, #tpu.memory_space<vmem>>, vector<1x64x64xbf16>
    %39 = vector.shape_cast %38 : vector<1x64x64xbf16> to vector<64x64xbf16>
    %cst_18 = arith.constant dense<0.000000e+00> : vector<256x64xf32>
    %40 = tpu.matmul %31, %39, %cst_18 {dimension_numbers = #tpu.dot_dimension_numbers<[1], [0], [0], [1], [0, 0, 1, 1], [], []>} : vector<256x64xbf16>, vector<64x64xbf16>, vector<256x64xf32> -> vector<256x64xf32>
    %c17_i32 = arith.constant 17 : i32
    %41 = tpu.dynamic_rotate %40 by %c17_i32 dim 0 : vector<256x64xf32>, i32 -> vector<256x64xf32>
    %cst_19 = arith.constant 0.000000e+00 : f32
    %42 = vector.shape_cast %14 : vector<256x1xi1> to vector<256x1xi1>
    %43 = vector.broadcast %42 : vector<256x1xi1> to vector<256x64xi1>
    %44 = vector.broadcast %cst_19 : f32 to vector<256x64xf32>
    %45 = arith.select %43, %41, %44 : vector<256x64xi1>, vector<256x64xf32>
    %46 = arith.addf %37, %45 : vector<256x64xf32>
    %c1 = arith.constant 1 : index
    %c0_20 = arith.constant 0 : index
    %c0_21 = arith.constant 0 : index
    %47 = vector.load %arg4[%c1, %c0_20, %c0_21] : memref<9x64x64xbf16, #tpu.memory_space<vmem>>, vector<1x64x64xbf16>
    %48 = vector.shape_cast %47 : vector<1x64x64xbf16> to vector<64x64xbf16>
    %cst_22 = arith.constant dense<0.000000e+00> : vector<256x64xf32>
    %49 = tpu.matmul %31, %48, %cst_22 {dimension_numbers = #tpu.dot_dimension_numbers<[1], [0], [0], [1], [0, 0, 1, 1], [], []>} : vector<256x64xbf16>, vector<64x64xbf16>, vector<256x64xf32> -> vector<256x64xf32>
    %c16_i32_23 = arith.constant 16 : i32
    %50 = tpu.dynamic_rotate %49 by %c16_i32_23 dim 0 : vector<256x64xf32>, i32 -> vector<256x64xf32>
    %cst_24 = arith.constant 0.000000e+00 : f32
    %51 = vector.shape_cast %7 : vector<256x1xi1> to vector<256x1xi1>
    %52 = vector.broadcast %51 : vector<256x1xi1> to vector<256x64xi1>
    %53 = vector.broadcast %cst_24 : f32 to vector<256x64xf32>
    %54 = arith.select %52, %50, %53 : vector<256x64xi1>, vector<256x64xf32>
    %55 = arith.addf %46, %54 : vector<256x64xf32>
    %c2 = arith.constant 2 : index
    %c0_25 = arith.constant 0 : index
    %c0_26 = arith.constant 0 : index
    %56 = vector.load %arg4[%c2, %c0_25, %c0_26] : memref<9x64x64xbf16, #tpu.memory_space<vmem>>, vector<1x64x64xbf16>
    %57 = vector.shape_cast %56 : vector<1x64x64xbf16> to vector<64x64xbf16>
    %cst_27 = arith.constant dense<0.000000e+00> : vector<256x64xf32>
    %58 = tpu.matmul %31, %57, %cst_27 {dimension_numbers = #tpu.dot_dimension_numbers<[1], [0], [0], [1], [0, 0, 1, 1], [], []>} : vector<256x64xbf16>, vector<64x64xbf16>, vector<256x64xf32> -> vector<256x64xf32>
    %c15_i32_28 = arith.constant 15 : i32
    %59 = tpu.dynamic_rotate %58 by %c15_i32_28 dim 0 : vector<256x64xf32>, i32 -> vector<256x64xf32>
    %cst_29 = arith.constant 0.000000e+00 : f32
    %60 = vector.shape_cast %15 : vector<256x1xi1> to vector<256x1xi1>
    %61 = vector.broadcast %60 : vector<256x1xi1> to vector<256x64xi1>
    %62 = vector.broadcast %cst_29 : f32 to vector<256x64xf32>
    %63 = arith.select %61, %59, %62 : vector<256x64xi1>, vector<256x64xf32>
    %64 = arith.addf %55, %63 : vector<256x64xf32>
    %c3 = arith.constant 3 : index
    %c0_30 = arith.constant 0 : index
    %c0_31 = arith.constant 0 : index
    %65 = vector.load %arg4[%c3, %c0_30, %c0_31] : memref<9x64x64xbf16, #tpu.memory_space<vmem>>, vector<1x64x64xbf16>
    %66 = vector.shape_cast %65 : vector<1x64x64xbf16> to vector<64x64xbf16>
    %cst_32 = arith.constant dense<0.000000e+00> : vector<256x64xf32>
    %67 = tpu.matmul %31, %66, %cst_32 {dimension_numbers = #tpu.dot_dimension_numbers<[1], [0], [0], [1], [0, 0, 1, 1], [], []>} : vector<256x64xbf16>, vector<64x64xbf16>, vector<256x64xf32> -> vector<256x64xf32>
    %c1_i32_33 = arith.constant 1 : i32
    %68 = tpu.dynamic_rotate %67 by %c1_i32_33 dim 0 : vector<256x64xf32>, i32 -> vector<256x64xf32>
    %cst_34 = arith.constant 0.000000e+00 : f32
    %69 = vector.shape_cast %13 : vector<256x1xi1> to vector<256x1xi1>
    %70 = vector.broadcast %69 : vector<256x1xi1> to vector<256x64xi1>
    %71 = vector.broadcast %cst_34 : f32 to vector<256x64xf32>
    %72 = arith.select %70, %68, %71 : vector<256x64xi1>, vector<256x64xf32>
    %73 = arith.addf %64, %72 : vector<256x64xf32>
    %c5 = arith.constant 5 : index
    %c0_35 = arith.constant 0 : index
    %c0_36 = arith.constant 0 : index
    %74 = vector.load %arg4[%c5, %c0_35, %c0_36] : memref<9x64x64xbf16, #tpu.memory_space<vmem>>, vector<1x64x64xbf16>
    %75 = vector.shape_cast %74 : vector<1x64x64xbf16> to vector<64x64xbf16>
    %cst_37 = arith.constant dense<0.000000e+00> : vector<256x64xf32>
    %76 = tpu.matmul %31, %75, %cst_37 {dimension_numbers = #tpu.dot_dimension_numbers<[1], [0], [0], [1], [0, 0, 1, 1], [], []>} : vector<256x64xbf16>, vector<64x64xbf16>, vector<256x64xf32> -> vector<256x64xf32>
    %c255_i32 = arith.constant 255 : i32
    %77 = tpu.dynamic_rotate %76 by %c255_i32 dim 0 : vector<256x64xf32>, i32 -> vector<256x64xf32>
    %cst_38 = arith.constant 0.000000e+00 : f32
    %78 = vector.shape_cast %11 : vector<256x1xi1> to vector<256x1xi1>
    %79 = vector.broadcast %78 : vector<256x1xi1> to vector<256x64xi1>
    %80 = vector.broadcast %cst_38 : f32 to vector<256x64xf32>
    %81 = arith.select %79, %77, %80 : vector<256x64xi1>, vector<256x64xf32>
    %82 = arith.addf %73, %81 : vector<256x64xf32>
    %c6 = arith.constant 6 : index
    %c0_39 = arith.constant 0 : index
    %c0_40 = arith.constant 0 : index
    %83 = vector.load %arg4[%c6, %c0_39, %c0_40] : memref<9x64x64xbf16, #tpu.memory_space<vmem>>, vector<1x64x64xbf16>
    %84 = vector.shape_cast %83 : vector<1x64x64xbf16> to vector<64x64xbf16>
    %cst_41 = arith.constant dense<0.000000e+00> : vector<256x64xf32>
    %85 = tpu.matmul %31, %84, %cst_41 {dimension_numbers = #tpu.dot_dimension_numbers<[1], [0], [0], [1], [0, 0, 1, 1], [], []>} : vector<256x64xbf16>, vector<64x64xbf16>, vector<256x64xf32> -> vector<256x64xf32>
    %c241_i32 = arith.constant 241 : i32
    %86 = tpu.dynamic_rotate %85 by %c241_i32 dim 0 : vector<256x64xf32>, i32 -> vector<256x64xf32>
    %cst_42 = arith.constant 0.000000e+00 : f32
    %87 = vector.shape_cast %16 : vector<256x1xi1> to vector<256x1xi1>
    %88 = vector.broadcast %87 : vector<256x1xi1> to vector<256x64xi1>
    %89 = vector.broadcast %cst_42 : f32 to vector<256x64xf32>
    %90 = arith.select %88, %86, %89 : vector<256x64xi1>, vector<256x64xf32>
    %91 = arith.addf %82, %90 : vector<256x64xf32>
    %c7 = arith.constant 7 : index
    %c0_43 = arith.constant 0 : index
    %c0_44 = arith.constant 0 : index
    %92 = vector.load %arg4[%c7, %c0_43, %c0_44] : memref<9x64x64xbf16, #tpu.memory_space<vmem>>, vector<1x64x64xbf16>
    %93 = vector.shape_cast %92 : vector<1x64x64xbf16> to vector<64x64xbf16>
    %cst_45 = arith.constant dense<0.000000e+00> : vector<256x64xf32>
    %94 = tpu.matmul %31, %93, %cst_45 {dimension_numbers = #tpu.dot_dimension_numbers<[1], [0], [0], [1], [0, 0, 1, 1], [], []>} : vector<256x64xbf16>, vector<64x64xbf16>, vector<256x64xf32> -> vector<256x64xf32>
    %c240_i32_46 = arith.constant 240 : i32
    %95 = tpu.dynamic_rotate %94 by %c240_i32_46 dim 0 : vector<256x64xf32>, i32 -> vector<256x64xf32>
    %cst_47 = arith.constant 0.000000e+00 : f32
    %96 = vector.shape_cast %5 : vector<256x1xi1> to vector<256x1xi1>
    %97 = vector.broadcast %96 : vector<256x1xi1> to vector<256x64xi1>
    %98 = vector.broadcast %cst_47 : f32 to vector<256x64xf32>
    %99 = arith.select %97, %95, %98 : vector<256x64xi1>, vector<256x64xf32>
    %100 = arith.addf %91, %99 : vector<256x64xf32>
    %c8 = arith.constant 8 : index
    %c0_48 = arith.constant 0 : index
    %c0_49 = arith.constant 0 : index
    %101 = vector.load %arg4[%c8, %c0_48, %c0_49] : memref<9x64x64xbf16, #tpu.memory_space<vmem>>, vector<1x64x64xbf16>
    %102 = vector.shape_cast %101 : vector<1x64x64xbf16> to vector<64x64xbf16>
    %cst_50 = arith.constant dense<0.000000e+00> : vector<256x64xf32>
    %103 = tpu.matmul %31, %102, %cst_50 {dimension_numbers = #tpu.dot_dimension_numbers<[1], [0], [0], [1], [0, 0, 1, 1], [], []>} : vector<256x64xbf16>, vector<64x64xbf16>, vector<256x64xf32> -> vector<256x64xf32>
    %c239_i32 = arith.constant 239 : i32
    %104 = tpu.dynamic_rotate %103 by %c239_i32 dim 0 : vector<256x64xf32>, i32 -> vector<256x64xf32>
    %cst_51 = arith.constant 0.000000e+00 : f32
    %105 = vector.shape_cast %17 : vector<256x1xi1> to vector<256x1xi1>
    %106 = vector.broadcast %105 : vector<256x1xi1> to vector<256x64xi1>
    %107 = vector.broadcast %cst_51 : f32 to vector<256x64xf32>
    %108 = arith.select %106, %104, %107 : vector<256x64xi1>, vector<256x64xf32>
    %109 = arith.addf %100, %108 : vector<256x64xf32>
    %cst_52 = arith.constant 0.000000e+00 : f32
    %110 = vector.broadcast %cst_52 : f32 to vector<256x64xf32>
    %111 = arith.maximumf %109, %110 : vector<256x64xf32>
    %112 = arith.truncf %111 : vector<256x64xf32> to vector<256x64xbf16>
    %c4_53 = arith.constant 4 : index
    %c0_54 = arith.constant 0 : index
    %c0_55 = arith.constant 0 : index
    %113 = vector.load %arg6[%c4_53, %c0_54, %c0_55] : memref<9x64x64xbf16, #tpu.memory_space<vmem>>, vector<1x64x64xbf16>
    %114 = vector.shape_cast %113 : vector<1x64x64xbf16> to vector<64x64xbf16>
    %cst_56 = arith.constant dense<0.000000e+00> : vector<256x64xf32>
    %115 = tpu.matmul %112, %114, %cst_56 {dimension_numbers = #tpu.dot_dimension_numbers<[1], [0], [0], [1], [0, 0, 1, 1], [], []>} : vector<256x64xbf16>, vector<64x64xbf16>, vector<256x64xf32> -> vector<256x64xf32>
    %c0_57 = arith.constant 0 : index
    %c0_58 = arith.constant 0 : index
    %116 = vector.load %arg7[%c0_57, %c0_58] : memref<1x64xf32, #tpu.memory_space<vmem>>, vector<1x64xf32>
    %117 = vector.broadcast %116 : vector<1x64xf32> to vector<256x64xf32>
    %118 = arith.addf %115, %117 : vector<256x64xf32>
    %c0_59 = arith.constant 0 : index
    %c0_60 = arith.constant 0 : index
    %c0_61 = arith.constant 0 : index
    %119 = vector.load %arg6[%c0_59, %c0_60, %c0_61] : memref<9x64x64xbf16, #tpu.memory_space<vmem>>, vector<1x64x64xbf16>
    %120 = vector.shape_cast %119 : vector<1x64x64xbf16> to vector<64x64xbf16>
    %cst_62 = arith.constant dense<0.000000e+00> : vector<256x64xf32>
    %121 = tpu.matmul %112, %120, %cst_62 {dimension_numbers = #tpu.dot_dimension_numbers<[1], [0], [0], [1], [0, 0, 1, 1], [], []>} : vector<256x64xbf16>, vector<64x64xbf16>, vector<256x64xf32> -> vector<256x64xf32>
    %c17_i32_63 = arith.constant 17 : i32
    %122 = tpu.dynamic_rotate %121 by %c17_i32_63 dim 0 : vector<256x64xf32>, i32 -> vector<256x64xf32>
    %cst_64 = arith.constant 0.000000e+00 : f32
    %123 = vector.shape_cast %14 : vector<256x1xi1> to vector<256x1xi1>
    %124 = vector.broadcast %123 : vector<256x1xi1> to vector<256x64xi1>
    %125 = vector.broadcast %cst_64 : f32 to vector<256x64xf32>
    %126 = arith.select %124, %122, %125 : vector<256x64xi1>, vector<256x64xf32>
    %127 = arith.addf %118, %126 : vector<256x64xf32>
    %c1_65 = arith.constant 1 : index
    %c0_66 = arith.constant 0 : index
    %c0_67 = arith.constant 0 : index
    %128 = vector.load %arg6[%c1_65, %c0_66, %c0_67] : memref<9x64x64xbf16, #tpu.memory_space<vmem>>, vector<1x64x64xbf16>
    %129 = vector.shape_cast %128 : vector<1x64x64xbf16> to vector<64x64xbf16>
    %cst_68 = arith.constant dense<0.000000e+00> : vector<256x64xf32>
    %130 = tpu.matmul %112, %129, %cst_68 {dimension_numbers = #tpu.dot_dimension_numbers<[1], [0], [0], [1], [0, 0, 1, 1], [], []>} : vector<256x64xbf16>, vector<64x64xbf16>, vector<256x64xf32> -> vector<256x64xf32>
    %c16_i32_69 = arith.constant 16 : i32
    %131 = tpu.dynamic_rotate %130 by %c16_i32_69 dim 0 : vector<256x64xf32>, i32 -> vector<256x64xf32>
    %cst_70 = arith.constant 0.000000e+00 : f32
    %132 = vector.shape_cast %7 : vector<256x1xi1> to vector<256x1xi1>
    %133 = vector.broadcast %132 : vector<256x1xi1> to vector<256x64xi1>
    %134 = vector.broadcast %cst_70 : f32 to vector<256x64xf32>
    %135 = arith.select %133, %131, %134 : vector<256x64xi1>, vector<256x64xf32>
    %136 = arith.addf %127, %135 : vector<256x64xf32>
    %c2_71 = arith.constant 2 : index
    %c0_72 = arith.constant 0 : index
    %c0_73 = arith.constant 0 : index
    %137 = vector.load %arg6[%c2_71, %c0_72, %c0_73] : memref<9x64x64xbf16, #tpu.memory_space<vmem>>, vector<1x64x64xbf16>
    %138 = vector.shape_cast %137 : vector<1x64x64xbf16> to vector<64x64xbf16>
    %cst_74 = arith.constant dense<0.000000e+00> : vector<256x64xf32>
    %139 = tpu.matmul %112, %138, %cst_74 {dimension_numbers = #tpu.dot_dimension_numbers<[1], [0], [0], [1], [0, 0, 1, 1], [], []>} : vector<256x64xbf16>, vector<64x64xbf16>, vector<256x64xf32> -> vector<256x64xf32>
    %c15_i32_75 = arith.constant 15 : i32
    %140 = tpu.dynamic_rotate %139 by %c15_i32_75 dim 0 : vector<256x64xf32>, i32 -> vector<256x64xf32>
    %cst_76 = arith.constant 0.000000e+00 : f32
    %141 = vector.shape_cast %15 : vector<256x1xi1> to vector<256x1xi1>
    %142 = vector.broadcast %141 : vector<256x1xi1> to vector<256x64xi1>
    %143 = vector.broadcast %cst_76 : f32 to vector<256x64xf32>
    %144 = arith.select %142, %140, %143 : vector<256x64xi1>, vector<256x64xf32>
    %145 = arith.addf %136, %144 : vector<256x64xf32>
    %c3_77 = arith.constant 3 : index
    %c0_78 = arith.constant 0 : index
    %c0_79 = arith.constant 0 : index
    %146 = vector.load %arg6[%c3_77, %c0_78, %c0_79] : memref<9x64x64xbf16, #tpu.memory_space<vmem>>, vector<1x64x64xbf16>
    %147 = vector.shape_cast %146 : vector<1x64x64xbf16> to vector<64x64xbf16>
    %cst_80 = arith.constant dense<0.000000e+00> : vector<256x64xf32>
    %148 = tpu.matmul %112, %147, %cst_80 {dimension_numbers = #tpu.dot_dimension_numbers<[1], [0], [0], [1], [0, 0, 1, 1], [], []>} : vector<256x64xbf16>, vector<64x64xbf16>, vector<256x64xf32> -> vector<256x64xf32>
    %c1_i32_81 = arith.constant 1 : i32
    %149 = tpu.dynamic_rotate %148 by %c1_i32_81 dim 0 : vector<256x64xf32>, i32 -> vector<256x64xf32>
    %cst_82 = arith.constant 0.000000e+00 : f32
    %150 = vector.shape_cast %13 : vector<256x1xi1> to vector<256x1xi1>
    %151 = vector.broadcast %150 : vector<256x1xi1> to vector<256x64xi1>
    %152 = vector.broadcast %cst_82 : f32 to vector<256x64xf32>
    %153 = arith.select %151, %149, %152 : vector<256x64xi1>, vector<256x64xf32>
    %154 = arith.addf %145, %153 : vector<256x64xf32>
    %c5_83 = arith.constant 5 : index
    %c0_84 = arith.constant 0 : index
    %c0_85 = arith.constant 0 : index
    %155 = vector.load %arg6[%c5_83, %c0_84, %c0_85] : memref<9x64x64xbf16, #tpu.memory_space<vmem>>, vector<1x64x64xbf16>
    %156 = vector.shape_cast %155 : vector<1x64x64xbf16> to vector<64x64xbf16>
    %cst_86 = arith.constant dense<0.000000e+00> : vector<256x64xf32>
    %157 = tpu.matmul %112, %156, %cst_86 {dimension_numbers = #tpu.dot_dimension_numbers<[1], [0], [0], [1], [0, 0, 1, 1], [], []>} : vector<256x64xbf16>, vector<64x64xbf16>, vector<256x64xf32> -> vector<256x64xf32>
    %c255_i32_87 = arith.constant 255 : i32
    %158 = tpu.dynamic_rotate %157 by %c255_i32_87 dim 0 : vector<256x64xf32>, i32 -> vector<256x64xf32>
    %cst_88 = arith.constant 0.000000e+00 : f32
    %159 = vector.shape_cast %11 : vector<256x1xi1> to vector<256x1xi1>
    %160 = vector.broadcast %159 : vector<256x1xi1> to vector<256x64xi1>
    %161 = vector.broadcast %cst_88 : f32 to vector<256x64xf32>
    %162 = arith.select %160, %158, %161 : vector<256x64xi1>, vector<256x64xf32>
    %163 = arith.addf %154, %162 : vector<256x64xf32>
    %c6_89 = arith.constant 6 : index
    %c0_90 = arith.constant 0 : index
    %c0_91 = arith.constant 0 : index
    %164 = vector.load %arg6[%c6_89, %c0_90, %c0_91] : memref<9x64x64xbf16, #tpu.memory_space<vmem>>, vector<1x64x64xbf16>
    %165 = vector.shape_cast %164 : vector<1x64x64xbf16> to vector<64x64xbf16>
    %cst_92 = arith.constant dense<0.000000e+00> : vector<256x64xf32>
    %166 = tpu.matmul %112, %165, %cst_92 {dimension_numbers = #tpu.dot_dimension_numbers<[1], [0], [0], [1], [0, 0, 1, 1], [], []>} : vector<256x64xbf16>, vector<64x64xbf16>, vector<256x64xf32> -> vector<256x64xf32>
    %c241_i32_93 = arith.constant 241 : i32
    %167 = tpu.dynamic_rotate %166 by %c241_i32_93 dim 0 : vector<256x64xf32>, i32 -> vector<256x64xf32>
    %cst_94 = arith.constant 0.000000e+00 : f32
    %168 = vector.shape_cast %16 : vector<256x1xi1> to vector<256x1xi1>
    %169 = vector.broadcast %168 : vector<256x1xi1> to vector<256x64xi1>
    %170 = vector.broadcast %cst_94 : f32 to vector<256x64xf32>
    %171 = arith.select %169, %167, %170 : vector<256x64xi1>, vector<256x64xf32>
    %172 = arith.addf %163, %171 : vector<256x64xf32>
    %c7_95 = arith.constant 7 : index
    %c0_96 = arith.constant 0 : index
    %c0_97 = arith.constant 0 : index
    %173 = vector.load %arg6[%c7_95, %c0_96, %c0_97] : memref<9x64x64xbf16, #tpu.memory_space<vmem>>, vector<1x64x64xbf16>
    %174 = vector.shape_cast %173 : vector<1x64x64xbf16> to vector<64x64xbf16>
    %cst_98 = arith.constant dense<0.000000e+00> : vector<256x64xf32>
    %175 = tpu.matmul %112, %174, %cst_98 {dimension_numbers = #tpu.dot_dimension_numbers<[1], [0], [0], [1], [0, 0, 1, 1], [], []>} : vector<256x64xbf16>, vector<64x64xbf16>, vector<256x64xf32> -> vector<256x64xf32>
    %c240_i32_99 = arith.constant 240 : i32
    %176 = tpu.dynamic_rotate %175 by %c240_i32_99 dim 0 : vector<256x64xf32>, i32 -> vector<256x64xf32>
    %cst_100 = arith.constant 0.000000e+00 : f32
    %177 = vector.shape_cast %5 : vector<256x1xi1> to vector<256x1xi1>
    %178 = vector.broadcast %177 : vector<256x1xi1> to vector<256x64xi1>
    %179 = vector.broadcast %cst_100 : f32 to vector<256x64xf32>
    %180 = arith.select %178, %176, %179 : vector<256x64xi1>, vector<256x64xf32>
    %181 = arith.addf %172, %180 : vector<256x64xf32>
    %c8_101 = arith.constant 8 : index
    %c0_102 = arith.constant 0 : index
    %c0_103 = arith.constant 0 : index
    %182 = vector.load %arg6[%c8_101, %c0_102, %c0_103] : memref<9x64x64xbf16, #tpu.memory_space<vmem>>, vector<1x64x64xbf16>
    %183 = vector.shape_cast %182 : vector<1x64x64xbf16> to vector<64x64xbf16>
    %cst_104 = arith.constant dense<0.000000e+00> : vector<256x64xf32>
    %184 = tpu.matmul %112, %183, %cst_104 {dimension_numbers = #tpu.dot_dimension_numbers<[1], [0], [0], [1], [0, 0, 1, 1], [], []>} : vector<256x64xbf16>, vector<64x64xbf16>, vector<256x64xf32> -> vector<256x64xf32>
    %c239_i32_105 = arith.constant 239 : i32
    %185 = tpu.dynamic_rotate %184 by %c239_i32_105 dim 0 : vector<256x64xf32>, i32 -> vector<256x64xf32>
    %cst_106 = arith.constant 0.000000e+00 : f32
    %186 = vector.shape_cast %17 : vector<256x1xi1> to vector<256x1xi1>
    %187 = vector.broadcast %186 : vector<256x1xi1> to vector<256x64xi1>
    %188 = vector.broadcast %cst_106 : f32 to vector<256x64xf32>
    %189 = arith.select %187, %185, %188 : vector<256x64xi1>, vector<256x64xf32>
    %190 = arith.addf %181, %189 : vector<256x64xf32>
    %191 = arith.truncf %29 : vector<256x64xf32> to vector<256x64xbf16>
    %c4_107 = arith.constant 4 : index
    %c0_108 = arith.constant 0 : index
    %c0_109 = arith.constant 0 : index
    %192 = vector.load %arg8[%c4_107, %c0_108, %c0_109] : memref<9x64x64xbf16, #tpu.memory_space<vmem>>, vector<1x64x64xbf16>
    %193 = vector.shape_cast %192 : vector<1x64x64xbf16> to vector<64x64xbf16>
    %cst_110 = arith.constant dense<0.000000e+00> : vector<256x64xf32>
    %194 = tpu.matmul %191, %193, %cst_110 {dimension_numbers = #tpu.dot_dimension_numbers<[1], [0], [0], [1], [0, 0, 1, 1], [], []>} : vector<256x64xbf16>, vector<64x64xbf16>, vector<256x64xf32> -> vector<256x64xf32>
    %c0_111 = arith.constant 0 : index
    %c0_112 = arith.constant 0 : index
    %195 = vector.load %arg9[%c0_111, %c0_112] : memref<1x64xf32, #tpu.memory_space<vmem>>, vector<1x64xf32>
    %196 = vector.broadcast %195 : vector<1x64xf32> to vector<256x64xf32>
    %197 = arith.addf %194, %196 : vector<256x64xf32>
    %c0_113 = arith.constant 0 : index
    %c0_114 = arith.constant 0 : index
    %c0_115 = arith.constant 0 : index
    %198 = vector.load %arg8[%c0_113, %c0_114, %c0_115] : memref<9x64x64xbf16, #tpu.memory_space<vmem>>, vector<1x64x64xbf16>
    %199 = vector.shape_cast %198 : vector<1x64x64xbf16> to vector<64x64xbf16>
    %cst_116 = arith.constant dense<0.000000e+00> : vector<256x64xf32>
    %200 = tpu.matmul %191, %199, %cst_116 {dimension_numbers = #tpu.dot_dimension_numbers<[1], [0], [0], [1], [0, 0, 1, 1], [], []>} : vector<256x64xbf16>, vector<64x64xbf16>, vector<256x64xf32> -> vector<256x64xf32>
    %c17_i32_117 = arith.constant 17 : i32
    %201 = tpu.dynamic_rotate %200 by %c17_i32_117 dim 0 : vector<256x64xf32>, i32 -> vector<256x64xf32>
    %cst_118 = arith.constant 0.000000e+00 : f32
    %202 = vector.shape_cast %14 : vector<256x1xi1> to vector<256x1xi1>
    %203 = vector.broadcast %202 : vector<256x1xi1> to vector<256x64xi1>
    %204 = vector.broadcast %cst_118 : f32 to vector<256x64xf32>
    %205 = arith.select %203, %201, %204 : vector<256x64xi1>, vector<256x64xf32>
    %206 = arith.addf %197, %205 : vector<256x64xf32>
    %c1_119 = arith.constant 1 : index
    %c0_120 = arith.constant 0 : index
    %c0_121 = arith.constant 0 : index
    %207 = vector.load %arg8[%c1_119, %c0_120, %c0_121] : memref<9x64x64xbf16, #tpu.memory_space<vmem>>, vector<1x64x64xbf16>
    %208 = vector.shape_cast %207 : vector<1x64x64xbf16> to vector<64x64xbf16>
    %cst_122 = arith.constant dense<0.000000e+00> : vector<256x64xf32>
    %209 = tpu.matmul %191, %208, %cst_122 {dimension_numbers = #tpu.dot_dimension_numbers<[1], [0], [0], [1], [0, 0, 1, 1], [], []>} : vector<256x64xbf16>, vector<64x64xbf16>, vector<256x64xf32> -> vector<256x64xf32>
    %c16_i32_123 = arith.constant 16 : i32
    %210 = tpu.dynamic_rotate %209 by %c16_i32_123 dim 0 : vector<256x64xf32>, i32 -> vector<256x64xf32>
    %cst_124 = arith.constant 0.000000e+00 : f32
    %211 = vector.shape_cast %7 : vector<256x1xi1> to vector<256x1xi1>
    %212 = vector.broadcast %211 : vector<256x1xi1> to vector<256x64xi1>
    %213 = vector.broadcast %cst_124 : f32 to vector<256x64xf32>
    %214 = arith.select %212, %210, %213 : vector<256x64xi1>, vector<256x64xf32>
    %215 = arith.addf %206, %214 : vector<256x64xf32>
    %c2_125 = arith.constant 2 : index
    %c0_126 = arith.constant 0 : index
    %c0_127 = arith.constant 0 : index
    %216 = vector.load %arg8[%c2_125, %c0_126, %c0_127] : memref<9x64x64xbf16, #tpu.memory_space<vmem>>, vector<1x64x64xbf16>
    %217 = vector.shape_cast %216 : vector<1x64x64xbf16> to vector<64x64xbf16>
    %cst_128 = arith.constant dense<0.000000e+00> : vector<256x64xf32>
    %218 = tpu.matmul %191, %217, %cst_128 {dimension_numbers = #tpu.dot_dimension_numbers<[1], [0], [0], [1], [0, 0, 1, 1], [], []>} : vector<256x64xbf16>, vector<64x64xbf16>, vector<256x64xf32> -> vector<256x64xf32>
    %c15_i32_129 = arith.constant 15 : i32
    %219 = tpu.dynamic_rotate %218 by %c15_i32_129 dim 0 : vector<256x64xf32>, i32 -> vector<256x64xf32>
    %cst_130 = arith.constant 0.000000e+00 : f32
    %220 = vector.shape_cast %15 : vector<256x1xi1> to vector<256x1xi1>
    %221 = vector.broadcast %220 : vector<256x1xi1> to vector<256x64xi1>
    %222 = vector.broadcast %cst_130 : f32 to vector<256x64xf32>
    %223 = arith.select %221, %219, %222 : vector<256x64xi1>, vector<256x64xf32>
    %224 = arith.addf %215, %223 : vector<256x64xf32>
    %c3_131 = arith.constant 3 : index
    %c0_132 = arith.constant 0 : index
    %c0_133 = arith.constant 0 : index
    %225 = vector.load %arg8[%c3_131, %c0_132, %c0_133] : memref<9x64x64xbf16, #tpu.memory_space<vmem>>, vector<1x64x64xbf16>
    %226 = vector.shape_cast %225 : vector<1x64x64xbf16> to vector<64x64xbf16>
    %cst_134 = arith.constant dense<0.000000e+00> : vector<256x64xf32>
    %227 = tpu.matmul %191, %226, %cst_134 {dimension_numbers = #tpu.dot_dimension_numbers<[1], [0], [0], [1], [0, 0, 1, 1], [], []>} : vector<256x64xbf16>, vector<64x64xbf16>, vector<256x64xf32> -> vector<256x64xf32>
    %c1_i32_135 = arith.constant 1 : i32
    %228 = tpu.dynamic_rotate %227 by %c1_i32_135 dim 0 : vector<256x64xf32>, i32 -> vector<256x64xf32>
    %cst_136 = arith.constant 0.000000e+00 : f32
    %229 = vector.shape_cast %13 : vector<256x1xi1> to vector<256x1xi1>
    %230 = vector.broadcast %229 : vector<256x1xi1> to vector<256x64xi1>
    %231 = vector.broadcast %cst_136 : f32 to vector<256x64xf32>
    %232 = arith.select %230, %228, %231 : vector<256x64xi1>, vector<256x64xf32>
    %233 = arith.addf %224, %232 : vector<256x64xf32>
    %c5_137 = arith.constant 5 : index
    %c0_138 = arith.constant 0 : index
    %c0_139 = arith.constant 0 : index
    %234 = vector.load %arg8[%c5_137, %c0_138, %c0_139] : memref<9x64x64xbf16, #tpu.memory_space<vmem>>, vector<1x64x64xbf16>
    %235 = vector.shape_cast %234 : vector<1x64x64xbf16> to vector<64x64xbf16>
    %cst_140 = arith.constant dense<0.000000e+00> : vector<256x64xf32>
    %236 = tpu.matmul %191, %235, %cst_140 {dimension_numbers = #tpu.dot_dimension_numbers<[1], [0], [0], [1], [0, 0, 1, 1], [], []>} : vector<256x64xbf16>, vector<64x64xbf16>, vector<256x64xf32> -> vector<256x64xf32>
    %c255_i32_141 = arith.constant 255 : i32
    %237 = tpu.dynamic_rotate %236 by %c255_i32_141 dim 0 : vector<256x64xf32>, i32 -> vector<256x64xf32>
    %cst_142 = arith.constant 0.000000e+00 : f32
    %238 = vector.shape_cast %11 : vector<256x1xi1> to vector<256x1xi1>
    %239 = vector.broadcast %238 : vector<256x1xi1> to vector<256x64xi1>
    %240 = vector.broadcast %cst_142 : f32 to vector<256x64xf32>
    %241 = arith.select %239, %237, %240 : vector<256x64xi1>, vector<256x64xf32>
    %242 = arith.addf %233, %241 : vector<256x64xf32>
    %c6_143 = arith.constant 6 : index
    %c0_144 = arith.constant 0 : index
    %c0_145 = arith.constant 0 : index
    %243 = vector.load %arg8[%c6_143, %c0_144, %c0_145] : memref<9x64x64xbf16, #tpu.memory_space<vmem>>, vector<1x64x64xbf16>
    %244 = vector.shape_cast %243 : vector<1x64x64xbf16> to vector<64x64xbf16>
    %cst_146 = arith.constant dense<0.000000e+00> : vector<256x64xf32>
    %245 = tpu.matmul %191, %244, %cst_146 {dimension_numbers = #tpu.dot_dimension_numbers<[1], [0], [0], [1], [0, 0, 1, 1], [], []>} : vector<256x64xbf16>, vector<64x64xbf16>, vector<256x64xf32> -> vector<256x64xf32>
    %c241_i32_147 = arith.constant 241 : i32
    %246 = tpu.dynamic_rotate %245 by %c241_i32_147 dim 0 : vector<256x64xf32>, i32 -> vector<256x64xf32>
    %cst_148 = arith.constant 0.000000e+00 : f32
    %247 = vector.shape_cast %16 : vector<256x1xi1> to vector<256x1xi1>
    %248 = vector.broadcast %247 : vector<256x1xi1> to vector<256x64xi1>
    %249 = vector.broadcast %cst_148 : f32 to vector<256x64xf32>
    %250 = arith.select %248, %246, %249 : vector<256x64xi1>, vector<256x64xf32>
    %251 = arith.addf %242, %250 : vector<256x64xf32>
    %c7_149 = arith.constant 7 : index
    %c0_150 = arith.constant 0 : index
    %c0_151 = arith.constant 0 : index
    %252 = vector.load %arg8[%c7_149, %c0_150, %c0_151] : memref<9x64x64xbf16, #tpu.memory_space<vmem>>, vector<1x64x64xbf16>
    %253 = vector.shape_cast %252 : vector<1x64x64xbf16> to vector<64x64xbf16>
    %cst_152 = arith.constant dense<0.000000e+00> : vector<256x64xf32>
    %254 = tpu.matmul %191, %253, %cst_152 {dimension_numbers = #tpu.dot_dimension_numbers<[1], [0], [0], [1], [0, 0, 1, 1], [], []>} : vector<256x64xbf16>, vector<64x64xbf16>, vector<256x64xf32> -> vector<256x64xf32>
    %c240_i32_153 = arith.constant 240 : i32
    %255 = tpu.dynamic_rotate %254 by %c240_i32_153 dim 0 : vector<256x64xf32>, i32 -> vector<256x64xf32>
    %cst_154 = arith.constant 0.000000e+00 : f32
    %256 = vector.shape_cast %5 : vector<256x1xi1> to vector<256x1xi1>
    %257 = vector.broadcast %256 : vector<256x1xi1> to vector<256x64xi1>
    %258 = vector.broadcast %cst_154 : f32 to vector<256x64xf32>
    %259 = arith.select %257, %255, %258 : vector<256x64xi1>, vector<256x64xf32>
    %260 = arith.addf %251, %259 : vector<256x64xf32>
    %c8_155 = arith.constant 8 : index
    %c0_156 = arith.constant 0 : index
    %c0_157 = arith.constant 0 : index
    %261 = vector.load %arg8[%c8_155, %c0_156, %c0_157] : memref<9x64x64xbf16, #tpu.memory_space<vmem>>, vector<1x64x64xbf16>
    %262 = vector.shape_cast %261 : vector<1x64x64xbf16> to vector<64x64xbf16>
    %cst_158 = arith.constant dense<0.000000e+00> : vector<256x64xf32>
    %263 = tpu.matmul %191, %262, %cst_158 {dimension_numbers = #tpu.dot_dimension_numbers<[1], [0], [0], [1], [0, 0, 1, 1], [], []>} : vector<256x64xbf16>, vector<64x64xbf16>, vector<256x64xf32> -> vector<256x64xf32>
    %c239_i32_159 = arith.constant 239 : i32
    %264 = tpu.dynamic_rotate %263 by %c239_i32_159 dim 0 : vector<256x64xf32>, i32 -> vector<256x64xf32>
    %cst_160 = arith.constant 0.000000e+00 : f32
    %265 = vector.shape_cast %17 : vector<256x1xi1> to vector<256x1xi1>
    %266 = vector.broadcast %265 : vector<256x1xi1> to vector<256x64xi1>
    %267 = vector.broadcast %cst_160 : f32 to vector<256x64xf32>
    %268 = arith.select %266, %264, %267 : vector<256x64xi1>, vector<256x64xf32>
    %269 = arith.addf %260, %268 : vector<256x64xf32>
    %c255_i32_161 = arith.constant 255 : i32
    %270 = tpu.dynamic_rotate %2 by %c255_i32_161 dim 0 : vector<256x4xf32>, i32 -> vector<256x4xf32>
    %cst_162 = arith.constant -3.000000e+38 : f32
    %271 = vector.shape_cast %11 : vector<256x1xi1> to vector<256x1xi1>
    %272 = vector.broadcast %271 : vector<256x1xi1> to vector<256x4xi1>
    %273 = vector.broadcast %cst_162 : f32 to vector<256x4xf32>
    %274 = arith.select %272, %270, %273 : vector<256x4xi1>, vector<256x4xf32>
    %c1_i32_163 = arith.constant 1 : i32
    %275 = tpu.dynamic_rotate %2 by %c1_i32_163 dim 0 : vector<256x4xf32>, i32 -> vector<256x4xf32>
    %cst_164 = arith.constant -3.000000e+38 : f32
    %276 = vector.shape_cast %13 : vector<256x1xi1> to vector<256x1xi1>
    %277 = vector.broadcast %276 : vector<256x1xi1> to vector<256x4xi1>
    %278 = vector.broadcast %cst_164 : f32 to vector<256x4xf32>
    %279 = arith.select %277, %275, %278 : vector<256x4xi1>, vector<256x4xf32>
    %280 = arith.maximumf %274, %279 : vector<256x4xf32>
    %281 = arith.maximumf %2, %280 : vector<256x4xf32>
    %c240_i32_165 = arith.constant 240 : i32
    %282 = tpu.dynamic_rotate %281 by %c240_i32_165 dim 0 : vector<256x4xf32>, i32 -> vector<256x4xf32>
    %cst_166 = arith.constant -3.000000e+38 : f32
    %283 = vector.shape_cast %5 : vector<256x1xi1> to vector<256x1xi1>
    %284 = vector.broadcast %283 : vector<256x1xi1> to vector<256x4xi1>
    %285 = vector.broadcast %cst_166 : f32 to vector<256x4xf32>
    %286 = arith.select %284, %282, %285 : vector<256x4xi1>, vector<256x4xf32>
    %c16_i32_167 = arith.constant 16 : i32
    %287 = tpu.dynamic_rotate %281 by %c16_i32_167 dim 0 : vector<256x4xf32>, i32 -> vector<256x4xf32>
    %cst_168 = arith.constant -3.000000e+38 : f32
    %288 = vector.shape_cast %7 : vector<256x1xi1> to vector<256x1xi1>
    %289 = vector.broadcast %288 : vector<256x1xi1> to vector<256x4xi1>
    %290 = vector.broadcast %cst_168 : f32 to vector<256x4xf32>
    %291 = arith.select %289, %287, %290 : vector<256x4xi1>, vector<256x4xf32>
    %292 = arith.maximumf %286, %291 : vector<256x4xf32>
    %293 = arith.maximumf %281, %292 : vector<256x4xf32>
    %294 = arith.truncf %293 : vector<256x4xf32> to vector<256x4xbf16>
    %c0_169 = arith.constant 0 : index
    %c0_170 = arith.constant 0 : index
    %295 = vector.load %arg10[%c0_169, %c0_170] : memref<4x64xbf16, #tpu.memory_space<vmem>>, vector<4x64xbf16>
    %cst_171 = arith.constant dense<0.000000e+00> : vector<256x64xf32>
    %296 = tpu.matmul %294, %295, %cst_171 {dimension_numbers = #tpu.dot_dimension_numbers<[1], [0], [0], [1], [0, 0, 1, 1], [], []>} : vector<256x4xbf16>, vector<4x64xbf16>, vector<256x64xf32> -> vector<256x64xf32>
    %c0_172 = arith.constant 0 : index
    %c0_173 = arith.constant 0 : index
    %297 = vector.load %arg11[%c0_172, %c0_173] : memref<1x64xf32, #tpu.memory_space<vmem>>, vector<1x64xf32>
    %298 = vector.broadcast %297 : vector<1x64xf32> to vector<256x64xf32>
    %299 = arith.addf %296, %298 : vector<256x64xf32>
    %300 = vector.shape_cast %190 : vector<256x64xf32> to vector<16x16x64xf32>
    %c0_174 = arith.constant 0 : index
    %c0_175 = arith.constant 0 : index
    %c0_176 = arith.constant 0 : index
    %c0_177 = arith.constant 0 : index
    %301 = vector.load %arg12[%c0_174, %c0_175, %c0_176, %c0_177] : memref<1x16x16x256xf32, #tpu.memory_space<vmem>>, vector<1x16x16x64xf32>
    %302 = vector.shape_cast %301 : vector<1x16x16x64xf32> to vector<16x16x64xf32>
    %303 = vector.shape_cast %300 : vector<16x16x64xf32> to vector<1x16x16x64xf32>
    tpu.vector_store %arg12[%c0_174, %c0_175, %c0_176, %c0_177], %303 {strides = array<i32>} : memref<1x16x16x256xf32, #tpu.memory_space<vmem>>, vector<1x16x16x64xf32>,
    %304 = vector.shape_cast %269 : vector<256x64xf32> to vector<16x16x64xf32>
    %c0_178 = arith.constant 0 : index
    %c0_179 = arith.constant 0 : index
    %c0_180 = arith.constant 0 : index
    %c64 = arith.constant 64 : index
    %305 = vector.load %arg12[%c0_178, %c0_179, %c0_180, %c64] : memref<1x16x16x256xf32, #tpu.memory_space<vmem>>, vector<1x16x16x64xf32>
    %306 = vector.shape_cast %305 : vector<1x16x16x64xf32> to vector<16x16x64xf32>
    %307 = vector.shape_cast %304 : vector<16x16x64xf32> to vector<1x16x16x64xf32>
    tpu.vector_store %arg12[%c0_178, %c0_179, %c0_180, %c64], %307 {strides = array<i32>} : memref<1x16x16x256xf32, #tpu.memory_space<vmem>>, vector<1x16x16x64xf32>,
    %308 = vector.shape_cast %299 : vector<256x64xf32> to vector<16x16x64xf32>
    %c0_181 = arith.constant 0 : index
    %c0_182 = arith.constant 0 : index
    %c0_183 = arith.constant 0 : index
    %c128 = arith.constant 128 : index
    %309 = vector.load %arg12[%c0_181, %c0_182, %c0_183, %c128] : memref<1x16x16x256xf32, #tpu.memory_space<vmem>>, vector<1x16x16x64xf32>
    %310 = vector.shape_cast %309 : vector<1x16x16x64xf32> to vector<16x16x64xf32>
    %311 = vector.shape_cast %308 : vector<16x16x64xf32> to vector<1x16x16x64xf32>
    tpu.vector_store %arg12[%c0_181, %c0_182, %c0_183, %c128], %311 {strides = array<i32>} : memref<1x16x16x256xf32, #tpu.memory_space<vmem>>, vector<1x16x16x64xf32>,
    %312 = vector.shape_cast %30 : vector<256x64xf32> to vector<16x16x64xf32>
    %c0_184 = arith.constant 0 : index
    %c0_185 = arith.constant 0 : index
    %c0_186 = arith.constant 0 : index
    %c192 = arith.constant 192 : index
    %313 = vector.load %arg12[%c0_184, %c0_185, %c0_186, %c192] : memref<1x16x16x256xf32, #tpu.memory_space<vmem>>, vector<1x16x16x64xf32>
    %314 = vector.shape_cast %313 : vector<1x16x16x64xf32> to vector<16x16x64xf32>
    %315 = vector.shape_cast %312 : vector<16x16x64xf32> to vector<1x16x16x64xf32>
    tpu.vector_store %arg12[%c0_184, %c0_185, %c0_186, %c192], %315 {strides = array<i32>} : memref<1x16x16x256xf32, #tpu.memory_space<vmem>>, vector<1x16x16x64xf32>,
    return
  }
  func.func @transform_0(%arg0: i32) -> (i32, i32, i32, i32) {
    %c0_i32 = arith.constant 0 : i32
    %c0_i32_0 = arith.constant 0 : i32
    %c0_i32_1 = arith.constant 0 : i32
    %c0_i32_2 = arith.constant 0 : i32
    return %arg0, %c0_i32, %c0_i32_0, %c0_i32_1 : i32, i32, i32, i32
  }
  func.func @transform_1(%arg0: i32) -> (i32, i32) {
    %c0_i32 = arith.constant 0 : i32
    %c0_i32_0 = arith.constant 0 : i32
    %c0_i32_1 = arith.constant 0 : i32
    return %c0_i32, %c0_i32_0 : i32, i32
  }
  func.func @transform_2(%arg0: i32) -> (i32, i32) {
    %c0_i32 = arith.constant 0 : i32
    %c0_i32_0 = arith.constant 0 : i32
    %c0_i32_1 = arith.constant 0 : i32
    return %c0_i32, %c0_i32_0 : i32, i32
  }
  func.func @transform_3(%arg0: i32) -> (i32, i32, i32) {
    %c0_i32 = arith.constant 0 : i32
    %c0_i32_0 = arith.constant 0 : i32
    %c0_i32_1 = arith.constant 0 : i32
    %c0_i32_2 = arith.constant 0 : i32
    return %c0_i32, %c0_i32_0, %c0_i32_1 : i32, i32, i32
  }
  func.func @transform_4(%arg0: i32) -> (i32, i32) {
    %c0_i32 = arith.constant 0 : i32
    %c0_i32_0 = arith.constant 0 : i32
    %c0_i32_1 = arith.constant 0 : i32
    return %c0_i32, %c0_i32_0 : i32, i32
  }
  func.func @transform_5(%arg0: i32) -> (i32, i32, i32) {
    %c0_i32 = arith.constant 0 : i32
    %c0_i32_0 = arith.constant 0 : i32
    %c0_i32_1 = arith.constant 0 : i32
    %c0_i32_2 = arith.constant 0 : i32
    return %c0_i32, %c0_i32_0, %c0_i32_1 : i32, i32, i32
  }
  func.func @transform_6(%arg0: i32) -> (i32, i32) {
    %c0_i32 = arith.constant 0 : i32
    %c0_i32_0 = arith.constant 0 : i32
    %c0_i32_1 = arith.constant 0 : i32
    return %c0_i32, %c0_i32_0 : i32, i32
  }
  func.func @transform_7(%arg0: i32) -> (i32, i32, i32) {
    %c0_i32 = arith.constant 0 : i32
    %c0_i32_0 = arith.constant 0 : i32
    %c0_i32_1 = arith.constant 0 : i32
    %c0_i32_2 = arith.constant 0 : i32
    return %c0_i32, %c0_i32_0, %c0_i32_1 : i32, i32, i32
  }
  func.func @transform_8(%arg0: i32) -> (i32, i32) {
    %c0_i32 = arith.constant 0 : i32
    %c0_i32_0 = arith.constant 0 : i32
    %c0_i32_1 = arith.constant 0 : i32
    return %c0_i32, %c0_i32_0 : i32, i32
  }
  func.func @transform_9(%arg0: i32) -> (i32, i32) {
    %c0_i32 = arith.constant 0 : i32
    %c0_i32_0 = arith.constant 0 : i32
    %c0_i32_1 = arith.constant 0 : i32
    return %c0_i32, %c0_i32_0 : i32, i32
  }
  func.func @transform_10(%arg0: i32) -> (i32, i32) {
    %c0_i32 = arith.constant 0 : i32
    %c0_i32_0 = arith.constant 0 : i32
    %c0_i32_1 = arith.constant 0 : i32
    return %c0_i32, %c0_i32_0 : i32, i32
  }
  func.func @transform_11(%arg0: i32) -> (i32, i32, i32, i32) {
    %c0_i32 = arith.constant 0 : i32
    %c0_i32_0 = arith.constant 0 : i32
    %c0_i32_1 = arith.constant 0 : i32
    %c0_i32_2 = arith.constant 0 : i32
    return %arg0, %c0_i32, %c0_i32_0, %c0_i32_1 : i32, i32, i32, i32
  }
}

</mosaic_0001>

<llo_original>
// kernel: tpu_custom_call.1
$region0: #{tpu_custom_call.1}
  #allocation0 [shape = 'u32[]', space=smem, size = 0x4, offset = 0x4, fixed_abs, tag = 'smem constant byte address 0x4 - core index']
  #allocation1 [shape = 'u32[144,128]{1,0:T(1,128)}', space=vmem, size = 0x12000, scoped, tag = 'internal scratch']
  %s0 = inlined_call_operand.vmem [shape: f32[2,16,16,4], index: 0, kind: input, shape index: {}]
  %s1 = inlined_call_operand.vmem [shape: bf16[4,192], index: 1, kind: input, shape index: {}]
  %s2 = inlined_call_operand.vmem [shape: f32[1,192], index: 2, kind: input, shape index: {}]
  %s3 = inlined_call_operand.vmem [shape: bf16[9,64,64], index: 3, kind: input, shape index: {}]
  %s4 = inlined_call_operand.vmem [shape: f32[1,64], index: 4, kind: input, shape index: {}]
  %s5 = inlined_call_operand.vmem [shape: bf16[9,64,64], index: 5, kind: input, shape index: {}]
  %s6 = inlined_call_operand.vmem [shape: f32[1,64], index: 6, kind: input, shape index: {}]
  %s7 = inlined_call_operand.hbm [shape: bf16[9,64,64], index: 7, kind: input, shape index: {}]
  %s8 = inlined_call_operand.vmem [shape: f32[1,64], index: 8, kind: input, shape index: {}]
  %s9 = inlined_call_operand.vmem [shape: bf16[4,64], index: 9, kind: input, shape index: {}]
  %s10 = inlined_call_operand.vmem [shape: f32[1,64], index: 10, kind: input, shape index: {}]
  %s11 = inlined_call_operand.hbm [shape: f32[2,16,16,256], index: 11, kind: output, shape index: {}]
  %s12 = sld [smem:[#allocation0]]
  $region81: #{tpu_custom_call.1} parent=0
    _
  %s14 = ssub.s32 1, %s12
  %s15 = scalar_select 0, %s14, %s12
  $region1: #{tpu_custom_call.1} parent=0
    #allocation2 [shape = 'u8[147456]{0}', space=vmem, size = 0x24000, scoped, tag = 'input window, operand 7, single buffered']
    #allocation3 [shape = 's32[2]{0}', space=sflag, size = 0x8, scoped, tag = 'scoped memory for tpu_custom_call.1']
    #allocation4 [shape = 's32[2]{0}', space=sflag, size = 0x8, scoped, tag = 'scoped memory for tpu_custom_call.1']
    #allocation5 [shape = 'u8[524288]{0}', space=vmem, size = 0x80000, scoped, tag = 'output window, operand 0']
    %16 = vsyncpa [#allocation3], 0
    %17 = vsyncpa [#allocation4], 0
    %s18 = scalar_lea.sflag [#allocation4], 1
    %19 = vsyncpa %s18, 0
    loop: start=0, step=1, limit=4
    $region2: #{tpu_custom_call.1} parent=1 // loop_pre_header
      _
    $region3: #{tpu_custom_call.1} parent=1 // loop_header
      %s21 = sphi 0, %s25
      %p22 = scmp.ge.s32.totalorder %s21, 4
      %s31 = sphi 0, %s33
      %s34 = sphi 0, %s31
      %s35 = sphi 0, %s34
      %s51 = sphi 0, %s35
      %s55 = sphi 0, %s55
      %s57 = sphi 0, %s55
      %s58 = sphi 0, %s57
      %s72 = sphi 0, %s58
      %s76 = sphi 0, %s76
      %s78 = sphi 0, %s76
      %s79 = sphi 0, %s78
      %s93 = sphi 0, %s79
      %s97 = sphi 0, %s97
      %s99 = sphi 0, %s97
      %s100 = sphi 0, %s99
      %s114 = sphi 0, %s100
      %s118 = sphi 0, %s118
      %s120 = sphi 0, %s118
      %s121 = sphi 0, %s120
      %s135 = sphi 0, %s121
      %s139 = sphi 0, %s139
      %s141 = sphi 0, %s139
      %s142 = sphi 0, %s141
      %s156 = sphi 0, %s142
      %s160 = sphi 0, %s160
      %s162 = sphi 0, %s160
      %s163 = sphi 0, %s162
      %s177 = sphi 0, %s163
      %s181 = sphi 0, %s181
      %s183 = sphi 0, %s181
      %s184 = sphi 0, %s183
      %s198 = sphi 0, %s184
      %s202 = sphi 0, %s202
      %s204 = sphi 0, %s202
      %s205 = sphi 0, %s204
      %s219 = sphi 0, %s205
      %s223 = sphi 0, %s223
      %s225 = sphi 0, %s223
      %s226 = sphi 0, %s225
      %s240 = sphi 0, %s226
      %s244 = sphi 0, %s244
      %s246 = sphi 0, %s244
      %s247 = sphi 0, %s246
      %s261 = sphi 0, %s247
      %s267 = sphi 0, %s269
      %s270 = sphi 0, %s267
      %s271 = sphi 0, %s270
      %s287 = sphi 0, %s271
    $region4: #{tpu_custom_call.1} parent=1 // loop_header_branch
      %24 = sbr.rel (%p22) target = $region8
    $region5: #{tpu_custom_call.1} parent=1 // loop_body
      %s26 = ssub.s32 %s21, 1
      %s27 = ssub.s32 %s21, 2
      %s28 = sadd.s32 %s21, 1
      %s29 = ssub.s32 %s21, %s28
      %p30 = scmp.eq.s32.totalorder %s29, 0
      %s32 = sadd.s32 %s31, 1
      %s33 = scalar_select %p30, %s31, %s32
      %p36 = pneg %p30
      %p37 = scmp.eq.s32.totalorder %s21, 1
      %p38 = por %p36, %p37
      %p39 = scmp.ne.s32.totalorder %s31, %s34
      %p40 = scmp.eq.s32.totalorder %s21, 0
      %p41 = por %p39, %p40
      %p42 = scmp.ne.s32.totalorder %s31, %s34
      %p43 = scmp.eq.s32.totalorder %s26, 1
      %p44 = por %p42, %p43
      %p45 = scmp.ne.s32.totalorder %s34, %s35
      %p46 = scmp.eq.s32.totalorder %s26, 0
      %p47 = por %p45, %p46
      %p48 = scmp.ne.s32.totalorder %s34, %s35
      %p49 = scmp.eq.s32.totalorder %s27, 1
      %p50 = por %p48, %p49
      %p52 = scmp.ne.s32.totalorder %s35, %s51
      %p53 = scmp.eq.s32.totalorder %s27, 0
      %p54 = por %p52, %p53
      %s56 = sadd.s32 %s55, 1
      %p59 = scmp.eq.s32.totalorder %s21, 1
      %p60 = scmp.ne.s32.totalorder %s55, %s57
      %p61 = scmp.eq.s32.totalorder %s21, 0
      %p62 = por %p60, %p61
      %p63 = scmp.ne.s32.totalorder %s55, %s57
      %p64 = scmp.eq.s32.totalorder %s26, 1
      %p65 = por %p63, %p64
      %p66 = scmp.ne.s32.totalorder %s57, %s58
      %p67 = scmp.eq.s32.totalorder %s26, 0
      %p68 = por %p66, %p67
      %p69 = scmp.ne.s32.totalorder %s57, %s58
      %p70 = scmp.eq.s32.totalorder %s27, 1
      %p71 = por %p69, %p70
      %p73 = scmp.ne.s32.totalorder %s58, %s72
      %p74 = scmp.eq.s32.totalorder %s27, 0
      %p75 = por %p73, %p74
      %s77 = sadd.s32 %s76, 1
      %p80 = scmp.eq.s32.totalorder %s21, 1
      %p81 = scmp.ne.s32.totalorder %s76, %s78
      %p82 = scmp.eq.s32.totalorder %s21, 0
      %p83 = por %p81, %p82
      %p84 = scmp.ne.s32.totalorder %s76, %s78
      %p85 = scmp.eq.s32.totalorder %s26, 1
      %p86 = por %p84, %p85
      %p87 = scmp.ne.s32.totalorder %s78, %s79
      %p88 = scmp.eq.s32.totalorder %s26, 0
      %p89 = por %p87, %p88
      %p90 = scmp.ne.s32.totalorder %s78, %s79
      %p91 = scmp.eq.s32.totalorder %s27, 1
      %p92 = por %p90, %p91
      %p94 = scmp.ne.s32.totalorder %s79, %s93
      %p95 = scmp.eq.s32.totalorder %s27, 0
      %p96 = por %p94, %p95
      %s98 = sadd.s32 %s97, 1
      %p101 = scmp.eq.s32.totalorder %s21, 1
      %p102 = scmp.ne.s32.totalorder %s97, %s99
      %p103 = scmp.eq.s32.totalorder %s21, 0
      %p104 = por %p102, %p103
      %p105 = scmp.ne.s32.totalorder %s97, %s99
      %p106 = scmp.eq.s32.totalorder %s26, 1
      %p107 = por %p105, %p106
      %p108 = scmp.ne.s32.totalorder %s99, %s100
      %p109 = scmp.eq.s32.totalorder %s26, 0
      %p110 = por %p108, %p109
      %p111 = scmp.ne.s32.totalorder %s99, %s100
      %p112 = scmp.eq.s32.totalorder %s27, 1
      %p113 = por %p111, %p112
      %p115 = scmp.ne.s32.totalorder %s100, %s114
      %p116 = scmp.eq.s32.totalorder %s27, 0
      %p117 = por %p115, %p116
      %s119 = sadd.s32 %s118, 1
      %p122 = scmp.eq.s32.totalorder %s21, 1
      %p123 = scmp.ne.s32.totalorder %s118, %s120
      %p124 = scmp.eq.s32.totalorder %s21, 0
      %p125 = por %p123, %p124
      %p126 = scmp.ne.s32.totalorder %s118, %s120
      %p127 = scmp.eq.s32.totalorder %s26, 1
      %p128 = por %p126, %p127
      %p129 = scmp.ne.s32.totalorder %s120, %s121
      %p130 = scmp.eq.s32.totalorder %s26, 0
      %p131 = por %p129, %p130
      %p132 = scmp.ne.s32.totalorder %s120, %s121
      %p133 = scmp.eq.s32.totalorder %s27, 1
      %p134 = por %p132, %p133
      %p136 = scmp.ne.s32.totalorder %s121, %s135
      %p137 = scmp.eq.s32.totalorder %s27, 0
      %p138 = por %p136, %p137
      %s140 = sadd.s32 %s139, 1
      %p143 = scmp.eq.s32.totalorder %s21, 1
      %p144 = scmp.ne.s32.totalorder %s139, %s141
      %p145 = scmp.eq.s32.totalorder %s21, 0
      %p146 = por %p144, %p145
      %p147 = scmp.ne.s32.totalorder %s139, %s141
      %p148 = scmp.eq.s32.totalorder %s26, 1
      %p149 = por %p147, %p148
      %p150 = scmp.ne.s32.totalorder %s141, %s142
      %p151 = scmp.eq.s32.totalorder %s26, 0
      %p152 = por %p150, %p151
      %p153 = scmp.ne.s32.totalorder %s141, %s142
      %p154 = scmp.eq.s32.totalorder %s27, 1
      %p155 = por %p153, %p154
      %p157 = scmp.ne.s32.totalorder %s142, %s156
      %p158 = scmp.eq.s32.totalorder %s27, 0
      %p159 = por %p157, %p158
      %s161 = sadd.s32 %s160, 1
      %p164 = scmp.eq.s32.totalorder %s21, 1
      %p165 = scmp.ne.s32.totalorder %s160, %s162
      %p166 = scmp.eq.s32.totalorder %s21, 0
      %p167 = por %p165, %p166
      %p168 = scmp.ne.s32.totalorder %s160, %s162
      %p169 = scmp.eq.s32.totalorder %s26, 1
      %p170 = por %p168, %p169
      %p171 = scmp.ne.s32.totalorder %s162, %s163
      %p172 = scmp.eq.s32.totalorder %s26, 0
      %p173 = por %p171, %p172
      %p174 = scmp.ne.s32.totalorder %s162, %s163
      %p175 = scmp.eq.s32.totalorder %s27, 1
      %p176 = por %p174, %p175
      %p178 = scmp.ne.s32.totalorder %s163, %s177
      %p179 = scmp.eq.s32.totalorder %s27, 0
      %p180 = por %p178, %p179
      %s182 = sadd.s32 %s181, 1
      %p185 = scmp.eq.s32.totalorder %s21, 1
      %p186 = scmp.ne.s32.totalorder %s181, %s183
      %p187 = scmp.eq.s32.totalorder %s21, 0
      %p188 = por %p186, %p187
      %p189 = scmp.ne.s32.totalorder %s181, %s183
      %p190 = scmp.eq.s32.totalorder %s26, 1
      %p191 = por %p189, %p190
      %p192 = scmp.ne.s32.totalorder %s183, %s184
      %p193 = scmp.eq.s32.totalorder %s26, 0
      %p194 = por %p192, %p193
      %p195 = scmp.ne.s32.totalorder %s183, %s184
      %p196 = scmp.eq.s32.totalorder %s27, 1
      %p197 = por %p195, %p196
      %p199 = scmp.ne.s32.totalorder %s184, %s198
      %p200 = scmp.eq.s32.totalorder %s27, 0
      %p201 = por %p199, %p200
      %s203 = sadd.s32 %s202, 1
      %p206 = scmp.eq.s32.totalorder %s21, 1
      %p207 = scmp.ne.s32.totalorder %s202, %s204
      %p208 = scmp.eq.s32.totalorder %s21, 0
      %p209 = por %p207, %p208
      %p210 = scmp.ne.s32.totalorder %s202, %s204
      %p211 = scmp.eq.s32.totalorder %s26, 1
      %p212 = por %p210, %p211
      %p213 = scmp.ne.s32.totalorder %s204, %s205
      %p214 = scmp.eq.s32.totalorder %s26, 0
      %p215 = por %p213, %p214
      %p216 = scmp.ne.s32.totalorder %s204, %s205
      %p217 = scmp.eq.s32.totalorder %s27, 1
      %p218 = por %p216, %p217
      %p220 = scmp.ne.s32.totalorder %s205, %s219
      %p221 = scmp.eq.s32.totalorder %s27, 0
      %p222 = por %p220, %p221
      %s224 = sadd.s32 %s223, 1
      %p227 = scmp.eq.s32.totalorder %s21, 1
      %p228 = scmp.ne.s32.totalorder %s223, %s225
      %p229 = scmp.eq.s32.totalorder %s21, 0
      %p230 = por %p228, %p229
      %p231 = scmp.ne.s32.totalorder %s223, %s225
      %p232 = scmp.eq.s32.totalorder %s26, 1
      %p233 = por %p231, %p232
      %p234 = scmp.ne.s32.totalorder %s225, %s226
      %p235 = scmp.eq.s32.totalorder %s26, 0
      %p236 = por %p234, %p235
      %p237 = scmp.ne.s32.totalorder %s225, %s226
      %p238 = scmp.eq.s32.totalorder %s27, 1
      %p239 = por %p237, %p238
      %p241 = scmp.ne.s32.totalorder %s226, %s240
      %p242 = scmp.eq.s32.totalorder %s27, 0
      %p243 = por %p241, %p242
      %s245 = sadd.s32 %s244, 1
      %p248 = scmp.eq.s32.totalorder %s21, 1
      %p249 = scmp.ne.s32.totalorder %s244, %s246
      %p250 = scmp.eq.s32.totalorder %s21, 0
      %p251 = por %p249, %p250
      %p252 = scmp.ne.s32.totalorder %s244, %s246
      %p253 = scmp.eq.s32.totalorder %s26, 1
      %p254 = por %p252, %p253
      %p255 = scmp.ne.s32.totalorder %s246, %s247
      %p256 = scmp.eq.s32.totalorder %s26, 0
      %p257 = por %p255, %p256
      %p258 = scmp.ne.s32.totalorder %s246, %s247
      %p259 = scmp.eq.s32.totalorder %s27, 1
      %p260 = por %p258, %p259
      %p262 = scmp.ne.s32.totalorder %s247, %s261
      %p263 = scmp.eq.s32.totalorder %s27, 0
      %p264 = por %p262, %p263
      %s265 = ssub.s32 %s21, %s28
      %p266 = scmp.eq.s32.totalorder %s265, 0
      %s268 = sadd.s32 %s267, 1
      %s269 = scalar_select %p266, %s267, %s268
      %p272 = pneg %p266
      %p273 = scmp.eq.s32.totalorder %s21, 1
      %p274 = por %p272, %p273
      %p275 = scmp.ne.s32.totalorder %s267, %s270
      %p276 = scmp.eq.s32.totalorder %s21, 0
      %p277 = por %p275, %p276
      %p278 = scmp.ne.s32.totalorder %s267, %s270
      %p279 = scmp.eq.s32.totalorder %s26, 1
      %p280 = por %p278, %p279
      %p281 = scmp.ne.s32.totalorder %s270, %s271
      %p282 = scmp.eq.s32.totalorder %s26, 0
      %p283 = por %p281, %p282
      %p284 = scmp.ne.s32.totalorder %s270, %s271
      %p285 = scmp.eq.s32.totalorder %s27, 1
      %p286 = por %p284, %p285
      %p288 = scmp.ne.s32.totalorder %s271, %s287
      %p289 = scmp.eq.s32.totalorder %s27, 0
      %p290 = por %p288, %p289
      %p291 = scmp.le.s32.totalorder 1, %s21
      %p292 = scmp.lt.s32.totalorder %s21, 3
      %p293 = pnand %p291, %p292
      %p294 = pneg %p293
      // Predicated region
      $region9: #{tpu_custom_call.1} parent=5 // pred_check
        _
      $region10: #{tpu_custom_call.1} parent=5 // pred_check_branch
        %296 = sbr.rel (%p293) target = $region12
      $region11: #{tpu_custom_call.1} parent=5 // pred_region
        %s297 = ssub.s32 %s21, 1
        // Predicated region
        $region13: #{tpu_custom_call.1} parent=11 // pred_check
          %p298 = pneg %p68
        $region14: #{tpu_custom_call.1} parent=11 // pred_check_branch
          %300 = sbr.rel (%p298) target = $region16
        $region15: #{tpu_custom_call.1} parent=11 // pred_region
          _
        $region16: #{tpu_custom_call.1} parent=11 // pred_fallthru
          _
        // Predicated region
        $region17: #{tpu_custom_call.1} parent=11 // pred_check
          %p301 = pneg %p89
        $region18: #{tpu_custom_call.1} parent=11 // pred_check_branch
          %303 = sbr.rel (%p301) target = $region20
        $region19: #{tpu_custom_call.1} parent=11 // pred_region
          _
        $region20: #{tpu_custom_call.1} parent=11 // pred_fallthru
          _
        // Predicated region
        $region21: #{tpu_custom_call.1} parent=11 // pred_check
          %p304 = pneg %p110
        $region22: #{tpu_custom_call.1} parent=11 // pred_check_branch
          %306 = sbr.rel (%p304) target = $region24
        $region23: #{tpu_custom_call.1} parent=11 // pred_region
          _
        $region24: #{tpu_custom_call.1} parent=11 // pred_fallthru
          _
        // Predicated region
        $region25: #{tpu_custom_call.1} parent=11 // pred_check
          %p307 = pneg %p131
        $region26: #{tpu_custom_call.1} parent=11 // pred_check_branch
          %309 = sbr.rel (%p307) target = $region28
        $region27: #{tpu_custom_call.1} parent=11 // pred_region
          _
        $region28: #{tpu_custom_call.1} parent=11 // pred_fallthru
          _
        // Predicated region
        $region29: #{tpu_custom_call.1} parent=11 // pred_check
          %p310 = pneg %p152
        $region30: #{tpu_custom_call.1} parent=11 // pred_check_branch
          %312 = sbr.rel (%p310) target = $region32
        $region31: #{tpu_custom_call.1} parent=11 // pred_region
          _
        $region32: #{tpu_custom_call.1} parent=11 // pred_fallthru
          _
        // Predicated region
        $region33: #{tpu_custom_call.1} parent=11 // pred_check
          %p313 = pneg %p173
        $region34: #{tpu_custom_call.1} parent=11 // pred_check_branch
          %315 = sbr.rel (%p313) target = $region36
        $region35: #{tpu_custom_call.1} parent=11 // pred_region
          _
        $region36: #{tpu_custom_call.1} parent=11 // pred_fallthru
          _
        // Predicated region
        $region37: #{tpu_custom_call.1} parent=11 // pred_check
          %p316 = pneg %p194
        $region38: #{tpu_custom_call.1} parent=11 // pred_check_branch
          %318 = sbr.rel (%p316) target = $region40
        $region39: #{tpu_custom_call.1} parent=11 // pred_region
          %s320 = ssub.s32 4608, 4608
          %321 = vsyncadd [#allocation3], %s320
          %s322 = sshll.u32 [#allocation2], 4
          %s323 = int_to_ptr.vmem [resolvable:$true] %s322
          %328 = dma.hbm_to_vmem [thread:$0]  %s7, 4608, %s323, [#allocation3], 64, 64, 4
        $region40: #{tpu_custom_call.1} parent=11 // pred_fallthru
          _
        // Predicated region
        $region41: #{tpu_custom_call.1} parent=11 // pred_check
          %p329 = pneg %p215
        $region42: #{tpu_custom_call.1} parent=11 // pred_check_branch
          %331 = sbr.rel (%p329) target = $region44
        $region43: #{tpu_custom_call.1} parent=11 // pred_region
          _
        $region44: #{tpu_custom_call.1} parent=11 // pred_fallthru
          _
        // Predicated region
        $region45: #{tpu_custom_call.1} parent=11 // pred_check
          %p332 = pneg %p236
        $region46: #{tpu_custom_call.1} parent=11 // pred_check_branch
          %334 = sbr.rel (%p332) target = $region48
        $region47: #{tpu_custom_call.1} parent=11 // pred_region
          _
        $region48: #{tpu_custom_call.1} parent=11 // pred_fallthru
          _
        // Predicated region
        $region49: #{tpu_custom_call.1} parent=11 // pred_check
          %p335 = pneg %p257
        $region50: #{tpu_custom_call.1} parent=11 // pred_check_branch
          %337 = sbr.rel (%p335) target = $region52
        $region51: #{tpu_custom_call.1} parent=11 // pred_region
          _
        $region52: #{tpu_custom_call.1} parent=11 // pred_fallthru
          _
      $region12: #{tpu_custom_call.1} parent=5 // pred_fallthru
        _
      %p338 = scmp.lt.s32.totalorder %s21, 2
      // Predicated region
      $region53: #{tpu_custom_call.1} parent=5 // pred_check
        %p339 = pneg %p338
      $region54: #{tpu_custom_call.1} parent=5 // pred_check_branch
        %341 = sbr.rel (%p339) target = $region56
      $region55: #{tpu_custom_call.1} parent=5 // pred_region
        // Predicated region
        $region57: #{tpu_custom_call.1} parent=55 // pred_check
          %p342 = pneg %p41
        $region58: #{tpu_custom_call.1} parent=55 // pred_check_branch
          %344 = sbr.rel (%p342) target = $region60
        $region59: #{tpu_custom_call.1} parent=55 // pred_region
          %p345 = scmp.lt.s32.totalorder %s21, 1
          %s346 = scalar_select %p345, %s21, 1
          %s347 = smul.addr %s346, 32
          %s348 = smul.addr %s347, 8
          %s349 = scalar_lea.vmem %s0, %s348
        $region60: #{tpu_custom_call.1} parent=55 // pred_fallthru
          _
      $region56: #{tpu_custom_call.1} parent=5 // pred_fallthru
        _
      %p350 = scmp.le.s32.totalorder 1, %s21
      %p351 = scmp.lt.s32.totalorder %s21, 3
      %p352 = pnand %p350, %p351
      %p353 = pneg %p352
      // Predicated region
      $region61: #{tpu_custom_call.1} parent=5 // pred_check
        _
      $region62: #{tpu_custom_call.1} parent=5 // pred_check_branch
        %355 = sbr.rel (%p352) target = $region64
      $region63: #{tpu_custom_call.1} parent=5 // pred_region
        %s356 = ssub.s32 %s21, 1
        // Predicated region
        $region65: #{tpu_custom_call.1} parent=63 // pred_check
          %p357 = pneg %p194
        $region66: #{tpu_custom_call.1} parent=63 // pred_check_branch
          %359 = sbr.rel (%p357) target = $region68
        $region67: #{tpu_custom_call.1} parent=63 // pred_region
          %360 = dma.done [#allocation3], 4608
        $region68: #{tpu_custom_call.1} parent=63 // pred_fallthru
          _
        %p361 = scmp.lt.s32.totalorder %s26, 1
        %s362 = scalar_select %p361, %s26, 1
        %s363 = smul.addr %s362, 32
        %s364 = smul.addr %s363, 8
        %s365 = scalar_lea.vmem %s0, %s364
        %p366 = pneg %p47
        %p367 = pneg %p44
        %p368 = pneg %p68
        %p369 = pneg %p65
        %p370 = pneg %p89
        %p371 = pneg %p86
        %p372 = pneg %p110
        %p373 = pneg %p107
        %p374 = pneg %p131
        %p375 = pneg %p128
        %p376 = pneg %p152
        %p377 = pneg %p149
        %p378 = pneg %p173
        %p379 = pneg %p170
        %p380 = pneg %p194
        %p381 = pneg %p191
        %p382 = pneg %p215
        %p383 = pneg %p212
        %p384 = pneg %p236
        %p385 = pneg %p233
        %p386 = pneg %p257
        %p387 = pneg %p254
        %p388 = pneg %p283
        %p389 = pneg %p280
        %s390 = sand.u32 %s270, 1
        %s391 = scalar_lea.sflag [#allocation4], %s390
        %s392 = sand.u32 %s270, 1
        %s393 = smul.addr %s392, 512
        %s394 = scalar_lea.vmem [#allocation5], %s393
        %p395 = scmp.lt.s32.totalorder %s26, 1
        %s396 = scalar_select %p395, %s26, 1
        %s397 = smul.addr %s396, 32
        %s398 = smul.addr %s397, 8
        %s399 = scalar_lea.vmem %s0, %s398
        %v401 = vld [vmem:[%s399] sm:$0xff]
        %v402 = vld [vmem:[%s399 + $0x8] sm:$0xff]
        %v403 = vld [vmem:[%s399 + $0x10] sm:$0xff]
        %v404 = vld [vmem:[%s399 + $0x18] sm:$0xff]
        %v405 = vld [vmem:[%s399 + $0x20] sm:$0xff]
        %v406 = vld [vmem:[%s399 + $0x28] sm:$0xff]
        %v407 = vld [vmem:[%s399 + $0x30] sm:$0xff]
        %v408 = vld [vmem:[%s399 + $0x38] sm:$0xff]
        %v409 = vld [vmem:[%s399 + $0x40] sm:$0xff]
        %v410 = vld [vmem:[%s399 + $0x48] sm:$0xff]
        %v411 = vld [vmem:[%s399 + $0x50] sm:$0xff]
        %v412 = vld [vmem:[%s399 + $0x58] sm:$0xff]
        %v413 = vld [vmem:[%s399 + $0x60] sm:$0xff]
        %v414 = vld [vmem:[%s399 + $0x68] sm:$0xff]
        %v415 = vld [vmem:[%s399 + $0x70] sm:$0xff]
        %v416 = vld [vmem:[%s399 + $0x78] sm:$0xff]
        %v417 = vld [vmem:[%s399 + $0x80] sm:$0xff]
        %v418 = vld [vmem:[%s399 + $0x88] sm:$0xff]
        %v419 = vld [vmem:[%s399 + $0x90] sm:$0xff]
        %v420 = vld [vmem:[%s399 + $0x98] sm:$0xff]
        %v421 = vld [vmem:[%s399 + $0xa0] sm:$0xff]
        %v422 = vld [vmem:[%s399 + $0xa8] sm:$0xff]
        %v423 = vld [vmem:[%s399 + $0xb0] sm:$0xff]
        %v424 = vld [vmem:[%s399 + $0xb8] sm:$0xff]
        %v425 = vld [vmem:[%s399 + $0xc0] sm:$0xff]
        %v426 = vld [vmem:[%s399 + $0xc8] sm:$0xff]
        %v427 = vld [vmem:[%s399 + $0xd0] sm:$0xff]
        %v428 = vld [vmem:[%s399 + $0xd8] sm:$0xff]
        %v429 = vld [vmem:[%s399 + $0xe0] sm:$0xff]
        %v430 = vld [vmem:[%s399 + $0xe8] sm:$0xff]
        %v431 = vld [vmem:[%s399 + $0xf0] sm:$0xff]
        %v432 = vld [vmem:[%s399 + $0xf8] sm:$0xff]
        %v433 = vlaneseq
        %v434 = vshrl.u32 %v433, 7
        %v435 = vadd.s32 %v434, 8
        %v436 = vadd.s32 %v434, 16
        %v437 = vadd.s32 %v434, 24
        %v438 = vadd.s32 %v434, 32
        %v439 = vadd.s32 %v434, 40
        %v440 = vadd.s32 %v434, 48
        %v441 = vadd.s32 %v434, 56
        %v442 = vadd.s32 %v434, 64
        %v443 = vadd.s32 %v434, 72
        %v444 = vadd.s32 %v434, 80
        %v445 = vadd.s32 %v434, 88
        %v446 = vadd.s32 %v434, 96
        %v447 = vadd.s32 %v434, 104
        %v448 = vadd.s32 %v434, 112
        %v449 = vadd.s32 %v434, 120
        %v450 = vadd.s32 %v434, 128
        %v451 = vadd.s32 %v434, 136
        %v452 = vadd.s32 %v434, 144
        %v453 = vadd.s32 %v434, 152
        %v454 = vadd.s32 %v434, 160
        %v455 = vadd.s32 %v434, 168
        %v456 = vadd.s32 %v434, 176
        %v457 = vadd.s32 %v434, 184
        %v458 = vadd.s32 %v434, 192
        %v459 = vadd.s32 %v434, 200
        %v460 = vadd.s32 %v434, 208
        %v461 = vadd.s32 %v434, 216
        %v462 = vadd.s32 %v434, 224
        %v463 = vadd.s32 %v434, 232
        %v464 = vadd.s32 %v434, 240
        %v465 = vadd.s32 %v434, 248
        %vm466 = vcmp.lt.s32.totalorder %v434, 240
        %vm467 = vcmp.lt.s32.totalorder %v435, 240
        %vm468 = vcmp.lt.s32.totalorder %v436, 240
        %vm469 = vcmp.lt.s32.totalorder %v437, 240
        %vm470 = vcmp.lt.s32.totalorder %v438, 240
        %vm471 = vcmp.lt.s32.totalorder %v439, 240
        %vm472 = vcmp.lt.s32.totalorder %v440, 240
        %vm473 = vcmp.lt.s32.totalorder %v441, 240
        %vm474 = vcmp.lt.s32.totalorder %v442, 240
        %vm475 = vcmp.lt.s32.totalorder %v443, 240
        %vm476 = vcmp.lt.s32.totalorder %v444, 240
        %vm477 = vcmp.lt.s32.totalorder %v445, 240
        %vm478 = vcmp.lt.s32.totalorder %v446, 240
        %vm479 = vcmp.lt.s32.totalorder %v447, 240
        %vm480 = vcmp.lt.s32.totalorder %v448, 240
        %vm481 = vcmp.lt.s32.totalorder %v449, 240
        %vm482 = vcmp.lt.s32.totalorder %v450, 240
        %vm483 = vcmp.lt.s32.totalorder %v451, 240
        %vm484 = vcmp.lt.s32.totalorder %v452, 240
        %vm485 = vcmp.lt.s32.totalorder %v453, 240
        %vm486 = vcmp.lt.s32.totalorder %v454, 240
        %vm487 = vcmp.lt.s32.totalorder %v455, 240
        %vm488 = vcmp.lt.s32.totalorder %v456, 240
        %vm489 = vcmp.lt.s32.totalorder %v457, 240
        %vm490 = vcmp.lt.s32.totalorder %v458, 240
        %vm491 = vcmp.lt.s32.totalorder %v459, 240
        %vm492 = vcmp.lt.s32.totalorder %v460, 240
        %vm493 = vcmp.lt.s32.totalorder %v461, 240
        %vm494 = vcmp.lt.s32.totalorder %v462, 240
        %vm495 = vcmp.lt.s32.totalorder %v463, 240
        %vm496 = vcmp.lt.s32.totalorder %v464, 240
        %vm497 = vcmp.lt.s32.totalorder %v465, 240
        %vm498 = vcmp.ge.s32.totalorder %v434, 16
        %vm499 = vcmp.ge.s32.totalorder %v435, 16
        %vm500 = vcmp.ge.s32.totalorder %v436, 16
        %vm501 = vcmp.ge.s32.totalorder %v437, 16
        %vm502 = vcmp.ge.s32.totalorder %v438, 16
        %vm503 = vcmp.ge.s32.totalorder %v439, 16
        %vm504 = vcmp.ge.s32.totalorder %v440, 16
        %vm505 = vcmp.ge.s32.totalorder %v441, 16
        %vm506 = vcmp.ge.s32.totalorder %v442, 16
        %vm507 = vcmp.ge.s32.totalorder %v443, 16
        %vm508 = vcmp.ge.s32.totalorder %v444, 16
        %vm509 = vcmp.ge.s32.totalorder %v445, 16
        %vm510 = vcmp.ge.s32.totalorder %v446, 16
        %vm511 = vcmp.ge.s32.totalorder %v447, 16
        %vm512 = vcmp.ge.s32.totalorder %v448, 16
        %vm513 = vcmp.ge.s32.totalorder %v449, 16
        %vm514 = vcmp.ge.s32.totalorder %v450, 16
        %vm515 = vcmp.ge.s32.totalorder %v451, 16
        %vm516 = vcmp.ge.s32.totalorder %v452, 16
        %vm517 = vcmp.ge.s32.totalorder %v453, 16
        %vm518 = vcmp.ge.s32.totalorder %v454, 16
        %vm519 = vcmp.ge.s32.totalorder %v455, 16
        %vm520 = vcmp.ge.s32.totalorder %v456, 16
        %vm521 = vcmp.ge.s32.totalorder %v457, 16
        %vm522 = vcmp.ge.s32.totalorder %v458, 16
        %vm523 = vcmp.ge.s32.totalorder %v459, 16
        %vm524 = vcmp.ge.s32.totalorder %v460, 16
        %vm525 = vcmp.ge.s32.totalorder %v461, 16
        %vm526 = vcmp.ge.s32.totalorder %v462, 16
        %vm527 = vcmp.ge.s32.totalorder %v463, 16
        %vm528 = vcmp.ge.s32.totalorder %v464, 16
        %vm529 = vcmp.ge.s32.totalorder %v465, 16
        %v530 = vand.u32 %v434, 15
        %v531 = vand.u32 %v435, 15
        %v532 = vand.u32 %v436, 15
        %v533 = vand.u32 %v437, 15
        %v534 = vand.u32 %v438, 15
        %v535 = vand.u32 %v439, 15
        %v536 = vand.u32 %v440, 15
        %v537 = vand.u32 %v441, 15
        %v538 = vand.u32 %v442, 15
        %v539 = vand.u32 %v443, 15
        %v540 = vand.u32 %v444, 15
        %v541 = vand.u32 %v445, 15
        %v542 = vand.u32 %v446, 15
        %v543 = vand.u32 %v447, 15
        %v544 = vand.u32 %v448, 15
        %v545 = vand.u32 %v449, 15
        %v546 = vand.u32 %v450, 15
        %v547 = vand.u32 %v451, 15
        %v548 = vand.u32 %v452, 15
        %v549 = vand.u32 %v453, 15
        %v550 = vand.u32 %v454, 15
        %v551 = vand.u32 %v455, 15
        %v552 = vand.u32 %v456, 15
        %v553 = vand.u32 %v457, 15
        %v554 = vand.u32 %v458, 15
        %v555 = vand.u32 %v459, 15
        %v556 = vand.u32 %v460, 15
        %v557 = vand.u32 %v461, 15
        %v558 = vand.u32 %v462, 15
        %v559 = vand.u32 %v463, 15
        %v560 = vand.u32 %v464, 15
        %v561 = vand.u32 %v465, 15
        %vm562 = vcmp.lt.s32.totalorder %v530, 15
        %vm563 = vcmp.lt.s32.totalorder %v531, 15
        %vm564 = vcmp.lt.s32.totalorder %v532, 15
        %vm565 = vcmp.lt.s32.totalorder %v533, 15
        %vm566 = vcmp.lt.s32.totalorder %v534, 15
        %vm567 = vcmp.lt.s32.totalorder %v535, 15
        %vm568 = vcmp.lt.s32.totalorder %v536, 15
        %vm569 = vcmp.lt.s32.totalorder %v537, 15
        %vm570 = vcmp.lt.s32.totalorder %v538, 15
        %vm571 = vcmp.lt.s32.totalorder %v539, 15
        %vm572 = vcmp.lt.s32.totalorder %v540, 15
        %vm573 = vcmp.lt.s32.totalorder %v541, 15
        %vm574 = vcmp.lt.s32.totalorder %v542, 15
        %vm575 = vcmp.lt.s32.totalorder %v543, 15
        %vm576 = vcmp.lt.s32.totalorder %v544, 15
        %vm577 = vcmp.lt.s32.totalorder %v545, 15
        %vm578 = vcmp.lt.s32.totalorder %v546, 15
        %vm579 = vcmp.lt.s32.totalorder %v547, 15
        %vm580 = vcmp.lt.s32.totalorder %v548, 15
        %vm581 = vcmp.lt.s32.totalorder %v549, 15
        %vm582 = vcmp.lt.s32.totalorder %v550, 15
        %vm583 = vcmp.lt.s32.totalorder %v551, 15
        %vm584 = vcmp.lt.s32.totalorder %v552, 15
        %vm585 = vcmp.lt.s32.totalorder %v553, 15
        %vm586 = vcmp.lt.s32.totalorder %v554, 15
        %vm587 = vcmp.lt.s32.totalorder %v555, 15
        %vm588 = vcmp.lt.s32.totalorder %v556, 15
        %vm589 = vcmp.lt.s32.totalorder %v557, 15
        %vm590 = vcmp.lt.s32.totalorder %v558, 15
        %vm591 = vcmp.lt.s32.totalorder %v559, 15
        %vm592 = vcmp.lt.s32.totalorder %v560, 15
        %vm593 = vcmp.lt.s32.totalorder %v561, 15
        %vm594 = vcmp.ge.s32.totalorder %v530, 1
        %vm595 = vcmp.ge.s32.totalorder %v531, 1
        %vm596 = vcmp.ge.s32.totalorder %v532, 1
        %vm597 = vcmp.ge.s32.totalorder %v533, 1
        %vm598 = vcmp.ge.s32.totalorder %v534, 1
        %vm599 = vcmp.ge.s32.totalorder %v535, 1
        %vm600 = vcmp.ge.s32.totalorder %v536, 1
        %vm601 = vcmp.ge.s32.totalorder %v537, 1
        %vm602 = vcmp.ge.s32.totalorder %v538, 1
        %vm603 = vcmp.ge.s32.totalorder %v539, 1
        %vm604 = vcmp.ge.s32.totalorder %v540, 1
        %vm605 = vcmp.ge.s32.totalorder %v541, 1
        %vm606 = vcmp.ge.s32.totalorder %v542, 1
        %vm607 = vcmp.ge.s32.totalorder %v543, 1
        %vm608 = vcmp.ge.s32.totalorder %v544, 1
        %vm609 = vcmp.ge.s32.totalorder %v545, 1
        %vm610 = vcmp.ge.s32.totalorder %v546, 1
        %vm611 = vcmp.ge.s32.totalorder %v547, 1
        %vm612 = vcmp.ge.s32.totalorder %v548, 1
        %vm613 = vcmp.ge.s32.totalorder %v549, 1
        %vm614 = vcmp.ge.s32.totalorder %v550, 1
        %vm615 = vcmp.ge.s32.totalorder %v551, 1
        %vm616 = vcmp.ge.s32.totalorder %v552, 1
        %vm617 = vcmp.ge.s32.totalorder %v553, 1
        %vm618 = vcmp.ge.s32.totalorder %v554, 1
        %vm619 = vcmp.ge.s32.totalorder %v555, 1
        %vm620 = vcmp.ge.s32.totalorder %v556, 1
        %vm621 = vcmp.ge.s32.totalorder %v557, 1
        %vm622 = vcmp.ge.s32.totalorder %v558, 1
        %vm623 = vcmp.ge.s32.totalorder %v559, 1
        %vm624 = vcmp.ge.s32.totalorder %v560, 1
        %vm625 = vcmp.ge.s32.totalorder %v561, 1
        %vm626 = vmand %vm498, %vm594
        %vm627 = vmand %vm499, %vm595
        %vm628 = vmand %vm500, %vm596
        %vm629 = vmand %vm501, %vm597
        %vm630 = vmand %vm502, %vm598
        %vm631 = vmand %vm503, %vm599
        %vm632 = vmand %vm504, %vm600
        %vm633 = vmand %vm505, %vm601
        %vm634 = vmand %vm506, %vm602
        %vm635 = vmand %vm507, %vm603
        %vm636 = vmand %vm508, %vm604
        %vm637 = vmand %vm509, %vm605
        %vm638 = vmand %vm510, %vm606
        %vm639 = vmand %vm511, %vm607
        %vm640 = vmand %vm512, %vm608
        %vm641 = vmand %vm513, %vm609
        %vm642 = vmand %vm514, %vm610
        %vm643 = vmand %vm515, %vm611
        %vm644 = vmand %vm516, %vm612
        %vm645 = vmand %vm517, %vm613
        %vm646 = vmand %vm518, %vm614
        %vm647 = vmand %vm519, %vm615
        %vm648 = vmand %vm520, %vm616
        %vm649 = vmand %vm521, %vm617
        %vm650 = vmand %vm522, %vm618
        %vm651 = vmand %vm523, %vm619
        %vm652 = vmand %vm524, %vm620
        %vm653 = vmand %vm525, %vm621
        %vm654 = vmand %vm526, %vm622
        %vm655 = vmand %vm527, %vm623
        %vm656 = vmand %vm528, %vm624
        %vm657 = vmand %vm529, %vm625
        %vm658 = vmand %vm498, %vm562
        %vm659 = vmand %vm499, %vm563
        %vm660 = vmand %vm500, %vm564
        %vm661 = vmand %vm501, %vm565
        %vm662 = vmand %vm502, %vm566
        %vm663 = vmand %vm503, %vm567
        %vm664 = vmand %vm504, %vm568
        %vm665 = vmand %vm505, %vm569
        %vm666 = vmand %vm506, %vm570
        %vm667 = vmand %vm507, %vm571
        %vm668 = vmand %vm508, %vm572
        %vm669 = vmand %vm509, %vm573
        %vm670 = vmand %vm510, %vm574
        %vm671 = vmand %vm511, %vm575
        %vm672 = vmand %vm512, %vm576
        %vm673 = vmand %vm513, %vm577
        %vm674 = vmand %vm514, %vm578
        %vm675 = vmand %vm515, %vm579
        %vm676 = vmand %vm516, %vm580
        %vm677 = vmand %vm517, %vm581
        %vm678 = vmand %vm518, %vm582
        %vm679 = vmand %vm519, %vm583
        %vm680 = vmand %vm520, %vm584
        %vm681 = vmand %vm521, %vm585
        %vm682 = vmand %vm522, %vm586
        %vm683 = vmand %vm523, %vm587
        %vm684 = vmand %vm524, %vm588
        %vm685 = vmand %vm525, %vm589
        %vm686 = vmand %vm526, %vm590
        %vm687 = vmand %vm527, %vm591
        %vm688 = vmand %vm528, %vm592
        %vm689 = vmand %vm529, %vm593
        %vm690 = vmand %vm466, %vm594
        %vm691 = vmand %vm467, %vm595
        %vm692 = vmand %vm468, %vm596
        %vm693 = vmand %vm469, %vm597
        %vm694 = vmand %vm470, %vm598
        %vm695 = vmand %vm471, %vm599
        %vm696 = vmand %vm472, %vm600
        %vm697 = vmand %vm473, %vm601
        %vm698 = vmand %vm474, %vm602
        %vm699 = vmand %vm475, %vm603
        %vm700 = vmand %vm476, %vm604
        %vm701 = vmand %vm477, %vm605
        %vm702 = vmand %vm478, %vm606
        %vm703 = vmand %vm479, %vm607
        %vm704 = vmand %vm480, %vm608
        %vm705 = vmand %vm481, %vm609
        %vm706 = vmand %vm482, %vm610
        %vm707 = vmand %vm483, %vm611
        %vm708 = vmand %vm484, %vm612
        %vm709 = vmand %vm485, %vm613
        %vm710 = vmand %vm486, %vm614
        %vm711 = vmand %vm487, %vm615
        %vm712 = vmand %vm488, %vm616
        %vm713 = vmand %vm489, %vm617
        %vm714 = vmand %vm490, %vm618
        %vm715 = vmand %vm491, %vm619
        %vm716 = vmand %vm492, %vm620
        %vm717 = vmand %vm493, %vm621
        %vm718 = vmand %vm494, %vm622
        %vm719 = vmand %vm495, %vm623
        %vm720 = vmand %vm496, %vm624
        %vm721 = vmand %vm497, %vm625
        %vm722 = vmand %vm466, %vm562
        %vm723 = vmand %vm467, %vm563
        %vm724 = vmand %vm468, %vm564
        %vm725 = vmand %vm469, %vm565
        %vm726 = vmand %vm470, %vm566
        %vm727 = vmand %vm471, %vm567
        %vm728 = vmand %vm472, %vm568
        %vm729 = vmand %vm473, %vm569
        %vm730 = vmand %vm474, %vm570
        %vm731 = vmand %vm475, %vm571
        %vm732 = vmand %vm476, %vm572
        %vm733 = vmand %vm477, %vm573
        %vm734 = vmand %vm478, %vm574
        %vm735 = vmand %vm479, %vm575
        %vm736 = vmand %vm480, %vm576
        %vm737 = vmand %vm481, %vm577
        %vm738 = vmand %vm482, %vm578
        %vm739 = vmand %vm483, %vm579
        %vm740 = vmand %vm484, %vm580
        %vm741 = vmand %vm485, %vm581
        %vm742 = vmand %vm486, %vm582
        %vm743 = vmand %vm487, %vm583
        %vm744 = vmand %vm488, %vm584
        %vm745 = vmand %vm489, %vm585
        %vm746 = vmand %vm490, %vm586
        %vm747 = vmand %vm491, %vm587
        %vm748 = vmand %vm492, %vm588
        %vm749 = vmand %vm493, %vm589
        %vm750 = vmand %vm494, %vm590
        %vm751 = vmand %vm495, %vm591
        %vm752 = vmand %vm496, %vm592
        %vm753 = vmand %vm497, %vm593
        %v754 = vpack.c.bf16 %v402, %v401
        %v755 = vpack.c.bf16 %v404, %v403
        %v756 = vpack.c.bf16 %v406, %v405
        %v757 = vpack.c.bf16 %v408, %v407
        %v758 = vpack.c.bf16 %v410, %v409
        %v759 = vpack.c.bf16 %v412, %v411
        %v760 = vpack.c.bf16 %v414, %v413
        %v761 = vpack.c.bf16 %v416, %v415
        %v762 = vpack.c.bf16 %v418, %v417
        %v763 = vpack.c.bf16 %v420, %v419
        %v764 = vpack.c.bf16 %v422, %v421
        %v765 = vpack.c.bf16 %v424, %v423
        %v766 = vpack.c.bf16 %v426, %v425
        %v767 = vpack.c.bf16 %v428, %v427
        %v768 = vpack.c.bf16 %v430, %v429
        %v769 = vpack.c.bf16 %v432, %v431
        %v770 = vld [vmem:[%s1] sm:$0xf]
        %v771 = vld [vmem:[%s2] sm:$0x3]
        %v773 = vlaneseq
        %v774 = vshrl.u32 %v773, 7
        %v775 = vsub.s32 0, %v774
        %v776 = vrot.slane %v771, %v775
        %v777 = vlaneseq
        %v778 = vshrl.u32 %v777, 7
        %v779 = vsub.s32 1, %v778
        %v780 = vrot.slane %v771, %v779
        %v785 = vunpack.c.l.s4 1983009808
        %v786 = vunpack.c.0.s8 %v785
        %v787 = vlaneseq
        %v788 = vshrl.u32 %v787, 7
        %v789 = vsub.s32 %v786, %v788
        %v790 = vrot.slane %v770, %v789
        %v791 = vcombine.high %v790, %v790
        %vm792 = vcmask 31744
        %v794 = vsel %vm792, %v754, 0
        %v797 = vsel %vm792, %v755, 0
        %v800 = vsel %vm792, %v756, 0
        %v803 = vsel %vm792, %v757, 0
        %v806 = vsel %vm792, %v758, 0
        %v809 = vsel %vm792, %v759, 0
        %v812 = vsel %vm792, %v760, 0
        %v815 = vsel %vm792, %v761, 0
        %v818 = vsel %vm792, %v762, 0
        %v821 = vsel %vm792, %v763, 0
        %v824 = vsel %vm792, %v764, 0
        %v827 = vsel %vm792, %v765, 0
        %v830 = vsel %vm792, %v766, 0
        %v833 = vsel %vm792, %v767, 0
        %v836 = vsel %vm792, %v768, 0
        %v839 = vsel %vm792, %v769, 0
        %vm841 = vcmask 1041408
        %v843 = vsel %vm841, %v790, 0
        %v846 = vsel %vm841, %v791, 0
        %848 = vmatprep.subr.bf16.mxu0 %v846
        %849 = vmatpush1.bf16.msra.mxu0 %v843
        %850 = vmatprep.subr.bf16.mxu0 0
        %851 = vmatpush1.bf16.msra.mxu0 0
        %852 = vmatprep.subr.bf16.mxu0 0
        %853 = vmatpush1.bf16.msra.mxu0 0
        %854 = vmatprep.subr.bf16.mxu0 0
        %855 = vmatpush1.bf16.msra.mxu0 0
        %856 = vmatprep.subr.bf16.mxu0 0
        %857 = vmatpush1.bf16.msra.mxu0 0
        %858 = vmatprep.subr.bf16.mxu0 0
        %859 = vmatpush1.bf16.msra.mxu0 0
        %860 = vmatprep.subr.bf16.mxu0 0
        %861 = vmatpush1.bf16.msra.mxu0 0
        %862 = vmatprep.subr.bf16.mxu0 0
        %863 = vmatpush1.bf16.msra.mxu0 0
        %864 = vmatprep.subr.bf16.mxu0 0
        %865 = vmatpush1.bf16.msra.mxu0 0
        %866 = vmatprep.subr.bf16.mxu0 0
        %867 = vmatpush1.bf16.msra.mxu0 0
        %868 = vmatprep.subr.bf16.mxu0 0
        %869 = vmatpush1.bf16.msra.mxu0 0
        %870 = vmatprep.subr.bf16.mxu0 0
        %871 = vmatpush1.bf16.msra.mxu0 0
        %872 = vmatprep.subr.bf16.mxu0 0
        %873 = vmatpush1.bf16.msra.mxu0 0
        %874 = vmatprep.subr.bf16.mxu0 0
        %875 = vmatpush1.bf16.msra.mxu0 0
        %876 = vmatprep.subr.bf16.mxu0 0
        %877 = vmatpush1.bf16.msra.mxu0 0
        %878 = vmatprep.subr.bf16.mxu0 0
        %879 = vmatpush1.bf16.msra.mxu0 0
        %880 = vmatprep.mubr.bf16.mxu0 0
        %881 = vmatmul.mubr.bf16.gmra.mrb[0].mxu0 %v794
        %v882 = vpop.f32.mrb[0].mxu0
        %v883 = vadd.f32 %v776, %v882
        %v884 = vpop.f32.mrb[0].mxu0
        %v885 = vadd.f32 %v780, %v884
        %v886 = vpop.f32.mrb[0].mxu0
        %v887 = vadd.f32 %v776, %v886
        %v888 = vpop.f32.mrb[0].mxu0
        %v889 = vadd.f32 %v780, %v888
        %890 = vmatprep.mubr.bf16.mxu0 0
        %891 = vmatmul.mubr.bf16.gmra.mrb[0].mxu0 %v797
        %v892 = vpop.f32.mrb[0].mxu0
        %v893 = vadd.f32 %v776, %v892
        %v894 = vpop.f32.mrb[0].mxu0
        %v895 = vadd.f32 %v780, %v894
        %v896 = vpop.f32.mrb[0].mxu0
        %v897 = vadd.f32 %v776, %v896
        %v898 = vpop.f32.mrb[0].mxu0
        %v899 = vadd.f32 %v780, %v898
        %900 = vmatprep.mubr.bf16.mxu0 0
        %901 = vmatmul.mubr.bf16.gmra.mrb[0].mxu0 %v800
        %v902 = vpop.f32.mrb[0].mxu0
        %v903 = vadd.f32 %v776, %v902
        %v904 = vpop.f32.mrb[0].mxu0
        %v905 = vadd.f32 %v780, %v904
        %v906 = vpop.f32.mrb[0].mxu0
        %v907 = vadd.f32 %v776, %v906
        %v908 = vpop.f32.mrb[0].mxu0
        %v909 = vadd.f32 %v780, %v908
        %910 = vmatprep.mubr.bf16.mxu0 0
        %911 = vmatmul.mubr.bf16.gmra.mrb[0].mxu0 %v803
        %v912 = vpop.f32.mrb[0].mxu0
        %v913 = vadd.f32 %v776, %v912
        %v914 = vpop.f32.mrb[0].mxu0
        %v915 = vadd.f32 %v780, %v914
        %v916 = vpop.f32.mrb[0].mxu0
        %v917 = vadd.f32 %v776, %v916
        %v918 = vpop.f32.mrb[0].mxu0
        %v919 = vadd.f32 %v780, %v918
        %920 = vmatprep.mubr.bf16.mxu0 0
        %921 = vmatmul.mubr.bf16.gmra.mrb[0].mxu0 %v806
        %v922 = vpop.f32.mrb[0].mxu0
        %v923 = vadd.f32 %v776, %v922
        %v924 = vpop.f32.mrb[0].mxu0
        %v925 = vadd.f32 %v780, %v924
        %v926 = vpop.f32.mrb[0].mxu0
        %v927 = vadd.f32 %v776, %v926
        %v928 = vpop.f32.mrb[0].mxu0
        %v929 = vadd.f32 %v780, %v928
        %930 = vmatprep.mubr.bf16.mxu0 0
        %931 = vmatmul.mubr.bf16.gmra.mrb[0].mxu0 %v809
        %v932 = vpop.f32.mrb[0].mxu0
        %v933 = vadd.f32 %v776, %v932
        %v934 = vpop.f32.mrb[0].mxu0
        %v935 = vadd.f32 %v780, %v934
        %v936 = vpop.f32.mrb[0].mxu0
        %v937 = vadd.f32 %v776, %v936
        %v938 = vpop.f32.mrb[0].mxu0
        %v939 = vadd.f32 %v780, %v938
        %940 = vmatprep.mubr.bf16.mxu0 0
        %941 = vmatmul.mubr.bf16.gmra.mrb[0].mxu0 %v812
        %v942 = vpop.f32.mrb[0].mxu0
        %v943 = vadd.f32 %v776, %v942
        %v944 = vpop.f32.mrb[0].mxu0
        %v945 = vadd.f32 %v780, %v944
        %v946 = vpop.f32.mrb[0].mxu0
        %v947 = vadd.f32 %v776, %v946
        %v948 = vpop.f32.mrb[0].mxu0
        %v949 = vadd.f32 %v780, %v948
        %950 = vmatprep.mubr.bf16.mxu0 0
        %951 = vmatmul.mubr.bf16.gmra.mrb[0].mxu0 %v815
        %v952 = vpop.f32.mrb[0].mxu0
        %v953 = vadd.f32 %v776, %v952
        %v954 = vpop.f32.mrb[0].mxu0
        %v955 = vadd.f32 %v780, %v954
        %v956 = vpop.f32.mrb[0].mxu0
        %v957 = vadd.f32 %v776, %v956
        %v958 = vpop.f32.mrb[0].mxu0
        %v959 = vadd.f32 %v780, %v958
        %960 = vmatprep.mubr.bf16.mxu0 0
        %961 = vmatmul.mubr.bf16.gmra.mrb[0].mxu0 %v818
        %v962 = vpop.f32.mrb[0].mxu0
        %v963 = vadd.f32 %v776, %v962
        %v964 = vpop.f32.mrb[0].mxu0
        %v965 = vadd.f32 %v780, %v964
        %v966 = vpop.f32.mrb[0].mxu0
        %v967 = vadd.f32 %v776, %v966
        %v968 = vpop.f32.mrb[0].mxu0
        %v969 = vadd.f32 %v780, %v968
        %970 = vmatprep.mubr.bf16.mxu0 0
        %971 = vmatmul.mubr.bf16.gmra.mrb[0].mxu0 %v821
        %v972 = vpop.f32.mrb[0].mxu0
        %v973 = vadd.f32 %v776, %v972
        %v974 = vpop.f32.mrb[0].mxu0
        %v975 = vadd.f32 %v780, %v974
        %v976 = vpop.f32.mrb[0].mxu0
        %v977 = vadd.f32 %v776, %v976
        %v978 = vpop.f32.mrb[0].mxu0
        %v979 = vadd.f32 %v780, %v978
        %980 = vmatprep.mubr.bf16.mxu0 0
        %981 = vmatmul.mubr.bf16.gmra.mrb[0].mxu0 %v824
        %v982 = vpop.f32.mrb[0].mxu0
        %v983 = vadd.f32 %v776, %v982
        %v984 = vpop.f32.mrb[0].mxu0
        %v985 = vadd.f32 %v780, %v984
        %v986 = vpop.f32.mrb[0].mxu0
        %v987 = vadd.f32 %v776, %v986
        %v988 = vpop.f32.mrb[0].mxu0
        %v989 = vadd.f32 %v780, %v988
        %990 = vmatprep.mubr.bf16.mxu0 0
        %991 = vmatmul.mubr.bf16.gmra.mrb[0].mxu0 %v827
        %v992 = vpop.f32.mrb[0].mxu0
        %v993 = vadd.f32 %v776, %v992
        %v994 = vpop.f32.mrb[0].mxu0
        %v995 = vadd.f32 %v780, %v994
        %v996 = vpop.f32.mrb[0].mxu0
        %v997 = vadd.f32 %v776, %v996
        %v998 = vpop.f32.mrb[0].mxu0
        %v999 = vadd.f32 %v780, %v998
        %1000 = vmatprep.mubr.bf16.mxu0 0
        %1001 = vmatmul.mubr.bf16.gmra.mrb[0].mxu0 %v830
        %v1002 = vpop.f32.mrb[0].mxu0
        %v1003 = vadd.f32 %v776, %v1002
        %v1004 = vpop.f32.mrb[0].mxu0
        %v1005 = vadd.f32 %v780, %v1004
        %v1006 = vpop.f32.mrb[0].mxu0
        %v1007 = vadd.f32 %v776, %v1006
        %v1008 = vpop.f32.mrb[0].mxu0
        %v1009 = vadd.f32 %v780, %v1008
        %1010 = vmatprep.mubr.bf16.mxu0 0
        %1011 = vmatmul.mubr.bf16.gmra.mrb[0].mxu0 %v833
        %v1012 = vpop.f32.mrb[0].mxu0
        %v1013 = vadd.f32 %v776, %v1012
        %v1014 = vpop.f32.mrb[0].mxu0
        %v1015 = vadd.f32 %v780, %v1014
        %v1016 = vpop.f32.mrb[0].mxu0
        %v1017 = vadd.f32 %v776, %v1016
        %v1018 = vpop.f32.mrb[0].mxu0
        %v1019 = vadd.f32 %v780, %v1018
        %1020 = vmatprep.mubr.bf16.mxu0 0
        %1021 = vmatmul.mubr.bf16.gmra.mrb[0].mxu0 %v836
        %v1022 = vpop.f32.mrb[0].mxu0
        %v1023 = vadd.f32 %v776, %v1022
        %v1024 = vpop.f32.mrb[0].mxu0
        %v1025 = vadd.f32 %v780, %v1024
        %v1026 = vpop.f32.mrb[0].mxu0
        %v1027 = vadd.f32 %v776, %v1026
        %v1028 = vpop.f32.mrb[0].mxu0
        %v1029 = vadd.f32 %v780, %v1028
        %1030 = vmatprep.mubr.bf16.mxu0 0
        %1031 = vmatmul.mubr.bf16.gmra.mrb[0].mxu0 %v839
        %v1032 = vpop.f32.mrb[0].mxu0
        %v1033 = vadd.f32 %v776, %v1032
        %v1034 = vpop.f32.mrb[0].mxu0
        %v1035 = vadd.f32 %v780, %v1034
        %v1036 = vpop.f32.mrb[0].mxu0
        %v1037 = vadd.f32 %v776, %v1036
        %v1038 = vpop.f32.mrb[0].mxu0
        %v1039 = vadd.f32 %v780, %v1038
        %1040 = vdwg.mxu0
        %v1041 = vmax.f32 %v883, 0.0
        %v1042 = vmax.f32 %v887, 0.0
        %v1043 = vmax.f32 %v893, 0.0
        %v1044 = vmax.f32 %v897, 0.0
        %v1045 = vmax.f32 %v903, 0.0
        %v1046 = vmax.f32 %v907, 0.0
        %v1047 = vmax.f32 %v913, 0.0
        %v1048 = vmax.f32 %v917, 0.0
        %v1049 = vmax.f32 %v923, 0.0
        %v1050 = vmax.f32 %v927, 0.0
        %v1051 = vmax.f32 %v933, 0.0
        %v1052 = vmax.f32 %v937, 0.0
        %v1053 = vmax.f32 %v943, 0.0
        %v1054 = vmax.f32 %v947, 0.0
        %v1055 = vmax.f32 %v953, 0.0
        %v1056 = vmax.f32 %v957, 0.0
        %v1057 = vmax.f32 %v963, 0.0
        %v1058 = vmax.f32 %v967, 0.0
        %v1059 = vmax.f32 %v973, 0.0
        %v1060 = vmax.f32 %v977, 0.0
        %v1061 = vmax.f32 %v983, 0.0
        %v1062 = vmax.f32 %v987, 0.0
        %v1063 = vmax.f32 %v993, 0.0
        %v1064 = vmax.f32 %v997, 0.0
        %v1065 = vmax.f32 %v1003, 0.0
        %v1066 = vmax.f32 %v1007, 0.0
        %v1067 = vmax.f32 %v1013, 0.0
        %v1068 = vmax.f32 %v1017, 0.0
        %v1069 = vmax.f32 %v1023, 0.0
        %v1070 = vmax.f32 %v1027, 0.0
        %v1071 = vmax.f32 %v1033, 0.0
        %v1072 = vmax.f32 %v1037, 0.0
        %v1073 = vpack.c.bf16 %v1042, %v1041
        %v1074 = vpack.c.bf16 %v1044, %v1043
        %v1075 = vpack.c.bf16 %v1046, %v1045
        %v1076 = vpack.c.bf16 %v1048, %v1047
        %v1077 = vpack.c.bf16 %v1050, %v1049
        %v1078 = vpack.c.bf16 %v1052, %v1051
        %v1079 = vpack.c.bf16 %v1054, %v1053
        %v1080 = vpack.c.bf16 %v1056, %v1055
        %v1081 = vpack.c.bf16 %v1058, %v1057
        %v1082 = vpack.c.bf16 %v1060, %v1059
        %v1083 = vpack.c.bf16 %v1062, %v1061
        %v1084 = vpack.c.bf16 %v1064, %v1063
        %v1085 = vpack.c.bf16 %v1066, %v1065
        %v1086 = vpack.c.bf16 %v1068, %v1067
        %v1087 = vpack.c.bf16 %v1070, %v1069
        %v1088 = vpack.c.bf16 %v1072, %v1071
        %s1089 = scalar_lea.vmem %s3, 128
        %v1090 = vld [vmem:[%s1089] sm:$0xf]
        %v1091 = vld [vmem:[%s1089 + $0x4] sm:$0xf]
        %v1092 = vld [vmem:[%s1089 + $0x8] sm:$0xf]
        %v1093 = vld [vmem:[%s1089 + $0xc] sm:$0xf]
        %v1094 = vld [vmem:[%s1089 + $0x10] sm:$0xf]
        %v1095 = vld [vmem:[%s1089 + $0x14] sm:$0xf]
        %v1096 = vld [vmem:[%s1089 + $0x18] sm:$0xf]
        %v1097 = vld [vmem:[%s1089 + $0x1c] sm:$0xf]
        %v1098 = vld [vmem:[%s4] sm:$0x1]
        %v1100 = vlaneseq
        %v1101 = vshrl.u32 %v1100, 7
        %v1102 = vsub.s32 0, %v1101
        %v1103 = vrot.slane %v1098, %v1102
        %v1113 = vunpack.c.l.b16 %v1090
        %v1114 = vunpack.c.l.b16 %v1091
        %v1115 = vunpack.c.l.b16 %v1092
        %v1116 = vunpack.c.l.b16 %v1093
        %v1117 = vunpack.c.l.b16 %v1094
        %v1118 = vunpack.c.l.b16 %v1095
        %v1119 = vunpack.c.l.b16 %v1096
        %v1120 = vunpack.c.l.b16 %v1097
        %v1121 = vpack.c.b16 %v1114, %v1113
        %v1122 = vpack.c.b16 %v1116, %v1115
        %v1123 = vpack.c.b16 %v1118, %v1117
        %v1124 = vpack.c.b16 %v1120, %v1119
        %vm1129 = vcmask 523264
        %v1131 = vsel %vm1129, %v1073, 0
        %v1134 = vsel %vm1129, %v1074, 0
        %v1137 = vsel %vm1129, %v1075, 0
        %v1140 = vsel %vm1129, %v1076, 0
        %v1143 = vsel %vm1129, %v1077, 0
        %v1146 = vsel %vm1129, %v1078, 0
        %v1149 = vsel %vm1129, %v1079, 0
        %v1152 = vsel %vm1129, %v1080, 0
        %v1155 = vsel %vm1129, %v1081, 0
        %v1158 = vsel %vm1129, %v1082, 0
        %v1161 = vsel %vm1129, %v1083, 0
        %v1164 = vsel %vm1129, %v1084, 0
        %v1167 = vsel %vm1129, %v1085, 0
        %v1170 = vsel %vm1129, %v1086, 0
        %v1173 = vsel %vm1129, %v1087, 0
        %v1176 = vsel %vm1129, %v1088, 0
        %1178 = vmatprep.subr.bf16.mxu0 0
        %1179 = vmatpush1.bf16.msra.mxu0 %v1121
        %1180 = vmatprep.subr.bf16.mxu0 0
        %1181 = vmatpush1.bf16.msra.mxu0 %v1122
        %1182 = vmatprep.subr.bf16.mxu0 0
        %1183 = vmatpush1.bf16.msra.mxu0 %v1123
        %1184 = vmatprep.subr.bf16.mxu0 0
        %1185 = vmatpush1.bf16.msra.mxu0 %v1124
        %1186 = vmatprep.subr.bf16.mxu0 0
        %1187 = vmatpush1.bf16.msra.mxu0 0
        %1188 = vmatprep.subr.bf16.mxu0 0
        %1189 = vmatpush1.bf16.msra.mxu0 0
        %1190 = vmatprep.subr.bf16.mxu0 0
        %1191 = vmatpush1.bf16.msra.mxu0 0
        %1192 = vmatprep.subr.bf16.mxu0 0
        %1193 = vmatpush1.bf16.msra.mxu0 0
        %1194 = vmatprep.subr.bf16.mxu0 0
        %1195 = vmatpush1.bf16.msra.mxu0 0
        %1196 = vmatprep.subr.bf16.mxu0 0
        %1197 = vmatpush1.bf16.msra.mxu0 0
        %1198 = vmatprep.subr.bf16.mxu0 0
        %1199 = vmatpush1.bf16.msra.mxu0 0
        %1200 = vmatprep.subr.bf16.mxu0 0
        %1201 = vmatpush1.bf16.msra.mxu0 0
        %1202 = vmatprep.subr.bf16.mxu0 0
        %1203 = vmatpush1.bf16.msra.mxu0 0
        %1204 = vmatprep.subr.bf16.mxu0 0
        %1205 = vmatpush1.bf16.msra.mxu0 0
        %1206 = vmatprep.subr.bf16.mxu0 0
        %1207 = vmatpush1.bf16.msra.mxu0 0
        %1208 = vmatprep.subr.bf16.mxu0 0
        %1209 = vmatpush1.bf16.msra.mxu0 0
        %1210 = vmatprep.mubr.bf16.mxu0 0
        %1211 = vmatmul.mubr.bf16.gmra.mrb[0].mxu0 %v1131
        %v1212 = vpop.f32.mrb[0].mxu0
        %v1213 = vadd.f32 %v1103, %v1212
        %v1214 = vpop.f32.mrb[0].mxu0
        %v1215 = vpop.f32.mrb[0].mxu0
        %v1216 = vadd.f32 %v1103, %v1215
        %v1217 = vpop.f32.mrb[0].mxu0
        %1218 = vmatprep.mubr.bf16.mxu0 0
        %1219 = vmatmul.mubr.bf16.gmra.mrb[0].mxu0 %v1134
        %v1220 = vpop.f32.mrb[0].mxu0
        %v1221 = vadd.f32 %v1103, %v1220
        %v1222 = vpop.f32.mrb[0].mxu0
        %v1223 = vpop.f32.mrb[0].mxu0
        %v1224 = vadd.f32 %v1103, %v1223
        %v1225 = vpop.f32.mrb[0].mxu0
        %1226 = vmatprep.mubr.bf16.mxu0 0
        %1227 = vmatmul.mubr.bf16.gmra.mrb[0].mxu0 %v1137
        %v1228 = vpop.f32.mrb[0].mxu0
        %v1229 = vadd.f32 %v1103, %v1228
        %v1230 = vpop.f32.mrb[0].mxu0
        %v1231 = vpop.f32.mrb[0].mxu0
        %v1232 = vadd.f32 %v1103, %v1231
        %v1233 = vpop.f32.mrb[0].mxu0
        %1234 = vmatprep.mubr.bf16.mxu0 0
        %1235 = vmatmul.mubr.bf16.gmra.mrb[0].mxu0 %v1140
        %v1236 = vpop.f32.mrb[0].mxu0
        %v1237 = vadd.f32 %v1103, %v1236
        %v1238 = vpop.f32.mrb[0].mxu0
        %v1239 = vpop.f32.mrb[0].mxu0
        %v1240 = vadd.f32 %v1103, %v1239
        %v1241 = vpop.f32.mrb[0].mxu0
        %1242 = vmatprep.mubr.bf16.mxu0 0
        %1243 = vmatmul.mubr.bf16.gmra.mrb[0].mxu0 %v1143
        %v1244 = vpop.f32.mrb[0].mxu0
        %v1245 = vadd.f32 %v1103, %v1244
        %v1246 = vpop.f32.mrb[0].mxu0
        %v1247 = vpop.f32.mrb[0].mxu0
        %v1248 = vadd.f32 %v1103, %v1247
        %v1249 = vpop.f32.mrb[0].mxu0
        %1250 = vmatprep.mubr.bf16.mxu0 0
        %1251 = vmatmul.mubr.bf16.gmra.mrb[0].mxu0 %v1146
        %v1252 = vpop.f32.mrb[0].mxu0
        %v1253 = vadd.f32 %v1103, %v1252
        %v1254 = vpop.f32.mrb[0].mxu0
        %v1255 = vpop.f32.mrb[0].mxu0
        %v1256 = vadd.f32 %v1103, %v1255
        %v1257 = vpop.f32.mrb[0].mxu0
        %1258 = vmatprep.mubr.bf16.mxu0 0
        %1259 = vmatmul.mubr.bf16.gmra.mrb[0].mxu0 %v1149
        %v1260 = vpop.f32.mrb[0].mxu0
        %v1261 = vadd.f32 %v1103, %v1260
        %v1262 = vpop.f32.mrb[0].mxu0
        %v1263 = vpop.f32.mrb[0].mxu0
        %v1264 = vadd.f32 %v1103, %v1263
        %v1265 = vpop.f32.mrb[0].mxu0
        %1266 = vmatprep.mubr.bf16.mxu0 0
        %1267 = vmatmul.mubr.bf16.gmra.mrb[0].mxu0 %v1152
        %v1268 = vpop.f32.mrb[0].mxu0
        %v1269 = vadd.f32 %v1103, %v1268
        %v1270 = vpop.f32.mrb[0].mxu0
        %v1271 = vpop.f32.mrb[0].mxu0
        %v1272 = vadd.f32 %v1103, %v1271
        %v1273 = vpop.f32.mrb[0].mxu0
        %1274 = vmatprep.mubr.bf16.mxu0 0
        %1275 = vmatmul.mubr.bf16.gmra.mrb[0].mxu0 %v1155
        %v1276 = vpop.f32.mrb[0].mxu0
        %v1277 = vadd.f32 %v1103, %v1276
        %v1278 = vpop.f32.mrb[0].mxu0
        %v1279 = vpop.f32.mrb[0].mxu0
        %v1280 = vadd.f32 %v1103, %v1279
        %v1281 = vpop.f32.mrb[0].mxu0
        %1282 = vmatprep.mubr.bf16.mxu0 0
        %1283 = vmatmul.mubr.bf16.gmra.mrb[0].mxu0 %v1158
        %v1284 = vpop.f32.mrb[0].mxu0
        %v1285 = vadd.f32 %v1103, %v1284
        %v1286 = vpop.f32.mrb[0].mxu0
        %v1287 = vpop.f32.mrb[0].mxu0
        %v1288 = vadd.f32 %v1103, %v1287
        %v1289 = vpop.f32.mrb[0].mxu0
        %1290 = vmatprep.mubr.bf16.mxu0 0
        %1291 = vmatmul.mubr.bf16.gmra.mrb[0].mxu0 %v1161
        %v1292 = vpop.f32.mrb[0].mxu0
        %v1293 = vadd.f32 %v1103, %v1292
        %v1294 = vpop.f32.mrb[0].mxu0
        %v1295 = vpop.f32.mrb[0].mxu0
        %v1296 = vadd.f32 %v1103, %v1295
        %v1297 = vpop.f32.mrb[0].mxu0
        %1298 = vmatprep.mubr.bf16.mxu0 0
        %1299 = vmatmul.mubr.bf16.gmra.mrb[0].mxu0 %v1164
        %v1300 = vpop.f32.mrb[0].mxu0
        %v1301 = vadd.f32 %v1103, %v1300
        %v1302 = vpop.f32.mrb[0].mxu0
        %v1303 = vpop.f32.mrb[0].mxu0
        %v1304 = vadd.f32 %v1103, %v1303
        %v1305 = vpop.f32.mrb[0].mxu0
        %1306 = vmatprep.mubr.bf16.mxu0 0
        %1307 = vmatmul.mubr.bf16.gmra.mrb[0].mxu0 %v1167
        %v1308 = vpop.f32.mrb[0].mxu0
        %v1309 = vadd.f32 %v1103, %v1308
        %v1310 = vpop.f32.mrb[0].mxu0
        %v1311 = vpop.f32.mrb[0].mxu0
        %v1312 = vadd.f32 %v1103, %v1311
        %v1313 = vpop.f32.mrb[0].mxu0
        %1314 = vmatprep.mubr.bf16.mxu0 0
        %1315 = vmatmul.mubr.bf16.gmra.mrb[0].mxu0 %v1170
        %v1316 = vpop.f32.mrb[0].mxu0
        %v1317 = vadd.f32 %v1103, %v1316
        %v1318 = vpop.f32.mrb[0].mxu0
        %v1319 = vpop.f32.mrb[0].mxu0
        %v1320 = vadd.f32 %v1103, %v1319
        %v1321 = vpop.f32.mrb[0].mxu0
        %1322 = vmatprep.mubr.bf16.mxu0 0
        %1323 = vmatmul.mubr.bf16.gmra.mrb[0].mxu0 %v1173
        %v1324 = vpop.f32.mrb[0].mxu0
        %v1325 = vadd.f32 %v1103, %v1324
        %v1326 = vpop.f32.mrb[0].mxu0
        %v1327 = vpop.f32.mrb[0].mxu0
        %v1328 = vadd.f32 %v1103, %v1327
        %v1329 = vpop.f32.mrb[0].mxu0
        %1330 = vmatprep.mubr.bf16.mxu0 0
        %1331 = vmatmul.mubr.bf16.gmra.mrb[0].mxu0 %v1176
        %v1332 = vpop.f32.mrb[0].mxu0
        %v1333 = vadd.f32 %v1103, %v1332
        %v1334 = vpop.f32.mrb[0].mxu0
        %v1335 = vpop.f32.mrb[0].mxu0
        %v1336 = vadd.f32 %v1103, %v1335
        %v1337 = vpop.f32.mrb[0].mxu0
        %1338 = vdwg.mxu0
        %v1339 = vld [vmem:[%s3] sm:$0xf]
        %v1340 = vld [vmem:[%s3 + $0x4] sm:$0xf]
        %v1341 = vld [vmem:[%s3 + $0x8] sm:$0xf]
        %v1342 = vld [vmem:[%s3 + $0xc] sm:$0xf]
        %v1343 = vld [vmem:[%s3 + $0x10] sm:$0xf]
        %v1344 = vld [vmem:[%s3 + $0x14] sm:$0xf]
        %v1345 = vld [vmem:[%s3 + $0x18] sm:$0xf]
        %v1346 = vld [vmem:[%s3 + $0x1c] sm:$0xf]
        %v1355 = vunpack.c.l.b16 %v1339
        %v1356 = vunpack.c.l.b16 %v1340
        %v1357 = vunpack.c.l.b16 %v1341
        %v1358 = vunpack.c.l.b16 %v1342
        %v1359 = vunpack.c.l.b16 %v1343
        %v1360 = vunpack.c.l.b16 %v1344
        %v1361 = vunpack.c.l.b16 %v1345
        %v1362 = vunpack.c.l.b16 %v1346
        %v1363 = vpack.c.b16 %v1356, %v1355
        %v1364 = vpack.c.b16 %v1358, %v1357
        %v1365 = vpack.c.b16 %v1360, %v1359
        %v1366 = vpack.c.b16 %v1362, %v1361
        %1371 = vmatprep.subr.bf16.mxu0 0
        %1372 = vmatpush1.bf16.msra.mxu0 %v1363
        %1373 = vmatprep.subr.bf16.mxu0 0
        %1374 = vmatpush1.bf16.msra.mxu0 %v1364
        %1375 = vmatprep.subr.bf16.mxu0 0
        %1376 = vmatpush1.bf16.msra.mxu0 %v1365
        %1377 = vmatprep.subr.bf16.mxu0 0
        %1378 = vmatpush1.bf16.msra.mxu0 %v1366
        %1379 = vmatprep.subr.bf16.mxu0 0
        %1380 = vmatpush1.bf16.msra.mxu0 0
        %1381 = vmatprep.subr.bf16.mxu0 0
        %1382 = vmatpush1.bf16.msra.mxu0 0
        %1383 = vmatprep.subr.bf16.mxu0 0
        %1384 = vmatpush1.bf16.msra.mxu0 0
        %1385 = vmatprep.subr.bf16.mxu0 0
        %1386 = vmatpush1.bf16.msra.mxu0 0
        %1387 = vmatprep.subr.bf16.mxu0 0
        %1388 = vmatpush1.bf16.msra.mxu0 0
        %1389 = vmatprep.subr.bf16.mxu0 0
        %1390 = vmatpush1.bf16.msra.mxu0 0
        %1391 = vmatprep.subr.bf16.mxu0 0
        %1392 = vmatpush1.bf16.msra.mxu0 0
        %1393 = vmatprep.subr.bf16.mxu0 0
        %1394 = vmatpush1.bf16.msra.mxu0 0
        %1395 = vmatprep.subr.bf16.mxu0 0
        %1396 = vmatpush1.bf16.msra.mxu0 0
        %1397 = vmatprep.subr.bf16.mxu0 0
        %1398 = vmatpush1.bf16.msra.mxu0 0
        %1399 = vmatprep.subr.bf16.mxu0 0
        %1400 = vmatpush1.bf16.msra.mxu0 0
        %1401 = vmatprep.subr.bf16.mxu0 0
        %1402 = vmatpush1.bf16.msra.mxu0 0
        %1403 = vmatprep.mubr.bf16.mxu0 0
        %1404 = vmatmul.mubr.bf16.gmra.mrb[0].mxu0 %v1131
        %v1405 = vpop.f32.mrb[0].mxu0
        %v1406 = vadd.f32 0.0, %v1405
        %v1407 = vpop.f32.mrb[0].mxu0
        %v1408 = vpop.f32.mrb[0].mxu0
        %v1409 = vadd.f32 0.0, %v1408
        %v1410 = vpop.f32.mrb[0].mxu0
        %1411 = vmatprep.mubr.bf16.mxu0 0
        %1412 = vmatmul.mubr.bf16.gmra.mrb[0].mxu0 %v1134
        %v1413 = vpop.f32.mrb[0].mxu0
        %v1414 = vadd.f32 0.0, %v1413
        %v1415 = vpop.f32.mrb[0].mxu0
        %v1416 = vpop.f32.mrb[0].mxu0
        %v1417 = vadd.f32 0.0, %v1416
        %v1418 = vpop.f32.mrb[0].mxu0
        %1419 = vmatprep.mubr.bf16.mxu0 0
        %1420 = vmatmul.mubr.bf16.gmra.mrb[0].mxu0 %v1137
        %v1421 = vpop.f32.mrb[0].mxu0
        %v1422 = vadd.f32 0.0, %v1421
        %v1423 = vpop.f32.mrb[0].mxu0
        %v1424 = vpop.f32.mrb[0].mxu0
        %v1425 = vadd.f32 0.0, %v1424
        %v1426 = vpop.f32.mrb[0].mxu0
        %1427 = vmatprep.mubr.bf16.mxu0 0
        %1428 = vmatmul.mubr.bf16.gmra.mrb[0].mxu0 %v1140
        %v1429 = vpop.f32.mrb[0].mxu0
        %v1430 = vadd.f32 0.0, %v1429
        %v1431 = vpop.f32.mrb[0].mxu0
        %v1432 = vpop.f32.mrb[0].mxu0
        %v1433 = vadd.f32 0.0, %v1432
        %v1434 = vpop.f32.mrb[0].mxu0
        %1435 = vmatprep.mubr.bf16.mxu0 0
        %1436 = vmatmul.mubr.bf16.gmra.mrb[0].mxu0 %v1143
        %v1437 = vpop.f32.mrb[0].mxu0
        %v1438 = vadd.f32 0.0, %v1437
        %v1439 = vpop.f32.mrb[0].mxu0
        %v1440 = vpop.f32.mrb[0].mxu0
        %v1441 = vadd.f32 0.0, %v1440
        %v1442 = vpop.f32.mrb[0].mxu0
        %1443 = vmatprep.mubr.bf16.mxu0 0
        %1444 = vmatmul.mubr.bf16.gmra.mrb[0].mxu0 %v1146
        %v1445 = vpop.f32.mrb[0].mxu0
        %v1446 = vadd.f32 0.0, %v1445
        %v1447 = vpop.f32.mrb[0].mxu0
        %v1448 = vpop.f32.mrb[0].mxu0
        %v1449 = vadd.f32 0.0, %v1448
        %v1450 = vpop.f32.mrb[0].mxu0
        %1451 = vmatprep.mubr.bf16.mxu0 0
        %1452 = vmatmul.mubr.bf16.gmra.mrb[0].mxu0 %v1149
        %v1453 = vpop.f32.mrb[0].mxu0
        %v1454 = vadd.f32 0.0, %v1453
        %v1455 = vpop.f32.mrb[0].mxu0
        %v1456 = vpop.f32.mrb[0].mxu0
        %v1457 = vadd.f32 0.0, %v1456
        %v1458 = vpop.f32.mrb[0].mxu0
        %1459 = vmatprep.mubr.bf16.mxu0 0
        %1460 = vmatmul.mubr.bf16.gmra.mrb[0].mxu0 %v1152
        %v1461 = vpop.f32.mrb[0].mxu0
        %v1462 = vadd.f32 0.0, %v1461
        %v1463 = vpop.f32.mrb[0].mxu0
        %v1464 = vpop.f32.mrb[0].mxu0
        %v1465 = vadd.f32 0.0, %v1464
        %v1466 = vpop.f32.mrb[0].mxu0
        %1467 = vmatprep.mubr.bf16.mxu0 0
        %1468 = vmatmul.mubr.bf16.gmra.mrb[0].mxu0 %v1155
        %v1469 = vpop.f32.mrb[0].mxu0
        %v1470 = vadd.f32 0.0, %v1469
        %v1471 = vpop.f32.mrb[0].mxu0
        %v1472 = vpop.f32.mrb[0].mxu0
        %v1473 = vadd.f32 0.0, %v1472
        %v1474 = vpop.f32.mrb[0].mxu0
        %1475 = vmatprep.mubr.bf16.mxu0 0
        %1476 = vmatmul.mubr.bf16.gmra.mrb[0].mxu0 %v1158
        %v1477 = vpop.f32.mrb[0].mxu0
        %v1478 = vadd.f32 0.0, %v1477
        %v1479 = vpop.f32.mrb[0].mxu0
        %v1480 = vpop.f32.mrb[0].mxu0
        %v1481 = vadd.f32 0.0, %v1480
        %v1482 = vpop.f32.mrb[0].mxu0
        %1483 = vmatprep.mubr.bf16.mxu0 0
        %1484 = vmatmul.mubr.bf16.gmra.mrb[0].mxu0 %v1161
        %v1485 = vpop.f32.mrb[0].mxu0
        %v1486 = vadd.f32 0.0, %v1485
        %v1487 = vpop.f32.mrb[0].mxu0
        %v1488 = vpop.f32.mrb[0].mxu0
        %v1489 = vadd.f32 0.0, %v1488
        %v1490 = vpop.f32.mrb[0].mxu0
        %1491 = vmatprep.mubr.bf16.mxu0 0
        %1492 = vmatmul.mubr.bf16.gmra.mrb[0].mxu0 %v1164
        %v1493 = vpop.f32.mrb[0].mxu0
        %v1494 = vadd.f32 0.0, %v1493
        %v1495 = vpop.f32.mrb[0].mxu0
        %v1496 = vpop.f32.mrb[0].mxu0
        %v1497 = vadd.f32 0.0, %v1496
        %v1498 = vpop.f32.mrb[0].mxu0
        %1499 = vmatprep.mubr.bf16.mxu0 0
        %1500 = vmatmul.mubr.bf16.gmra.mrb[0].mxu0 %v1167
        %v1501 = vpop.f32.mrb[0].mxu0
        %v1502 = vadd.f32 0.0, %v1501
        %v1503 = vpop.f32.mrb[0].mxu0
        %v1504 = vpop.f32.mrb[0].mxu0
        %v1505 = vadd.f32 0.0, %v1504
        %v1506 = vpop.f32.mrb[0].mxu0
        %1507 = vmatprep.mubr.bf16.mxu0 0
        %1508 = vmatmul.mubr.bf16.gmra.mrb[0].mxu0 %v1170
        %v1509 = vpop.f32.mrb[0].mxu0
        %v1510 = vadd.f32 0.0, %v1509
        %v1511 = vpop.f32.mrb[0].mxu0
        %v1512 = vpop.f32.mrb[0].mxu0
        %v1513 = vadd.f32 0.0, %v1512
        %v1514 = vpop.f32.mrb[0].mxu0
        %1515 = vmatprep.mubr.bf16.mxu0 0
        %1516 = vmatmul.mubr.bf16.gmra.mrb[0].mxu0 %v1173
        %v1517 = vpop.f32.mrb[0].mxu0
        %v1518 = vadd.f32 0.0, %v1517
        %v1519 = vpop.f32.mrb[0].mxu0
        %v1520 = vpop.f32.mrb[0].mxu0
        %v1521 = vadd.f32 0.0, %v1520
        %v1522 = vpop.f32.mrb[0].mxu0
        %1523 = vmatprep.mubr.bf16.mxu0 0
        %1524 = vmatmul.mubr.bf16.gmra.mrb[0].mxu0 %v1176
        %v1525 = vpop.f32.mrb[0].mxu0
        %v1526 = vadd.f32 0.0, %v1525
        %v1527 = vpop.f32.mrb[0].mxu0
        %v1528 = vpop.f32.mrb[0].mxu0
        %v1529 = vadd.f32 0.0, %v1528
        %v1530 = vpop.f32.mrb[0].mxu0
        %1531 = vdwg.mxu0
        %v1532 = vrot.slane %v1406, 7
        %v1533 = vrot.slane %v1409, 7
        %v1534 = vrot.slane %v1414, 7
        %v1535 = vrot.slane %v1417, 7
        %v1536 = vrot.slane %v1422, 7
        %v1537 = vrot.slane %v1425, 7
        %v1538 = vrot.slane %v1430, 7
        %v1539 = vrot.slane %v1433, 7
        %v1540 = vrot.slane %v1438, 7
        %v1541 = vrot.slane %v1441, 7
        %v1542 = vrot.slane %v1446, 7
        %v1543 = vrot.slane %v1449, 7
        %v1544 = vrot.slane %v1454, 7
        %v1545 = vrot.slane %v1457, 7
        %v1546 = vrot.slane %v1462, 7
        %v1547 = vrot.slane %v1465, 7
        %v1548 = vrot.slane %v1470, 7
        %v1549 = vrot.slane %v1473, 7
        %v1550 = vrot.slane %v1478, 7
        %v1551 = vrot.slane %v1481, 7
        %v1552 = vrot.slane %v1486, 7
        %v1553 = vrot.slane %v1489, 7
        %v1554 = vrot.slane %v1494, 7
        %v1555 = vrot.slane %v1497, 7
        %v1556 = vrot.slane %v1502, 7
        %v1557 = vrot.slane %v1505, 7
        %v1558 = vrot.slane %v1510, 7
        %v1559 = vrot.slane %v1513, 7
        %v1560 = vrot.slane %v1518, 7
        %v1561 = vrot.slane %v1521, 7
        %v1562 = vrot.slane %v1526, 7
        %v1563 = vrot.slane %v1529, 7
        %vm1564 = vcmp.lt.s32.totalorder %v434, 1
        %v1565 = vsel %vm1564, %v1562, %v1563
        %v1566 = vsel %vm1564, %v1561, %v1562
        %v1567 = vsel %vm1564, %v1560, %v1561
        %v1568 = vsel %vm1564, %v1559, %v1560
        %v1569 = vsel %vm1564, %v1558, %v1559
        %v1570 = vsel %vm1564, %v1557, %v1558
        %v1571 = vsel %vm1564, %v1556, %v1557
        %v1572 = vsel %vm1564, %v1555, %v1556
        %v1573 = vsel %vm1564, %v1554, %v1555
        %v1574 = vsel %vm1564, %v1553, %v1554
        %v1575 = vsel %vm1564, %v1552, %v1553
        %v1576 = vsel %vm1564, %v1551, %v1552
        %v1577 = vsel %vm1564, %v1550, %v1551
        %v1578 = vsel %vm1564, %v1549, %v1550
        %v1579 = vsel %vm1564, %v1548, %v1549
        %v1580 = vsel %vm1564, %v1547, %v1548
        %v1581 = vsel %vm1564, %v1546, %v1547
        %v1582 = vsel %vm1564, %v1545, %v1546
        %v1583 = vsel %vm1564, %v1544, %v1545
        %v1584 = vsel %vm1564, %v1543, %v1544
        %v1585 = vsel %vm1564, %v1542, %v1543
        %v1586 = vsel %vm1564, %v1541, %v1542
        %v1587 = vsel %vm1564, %v1540, %v1541
        %v1588 = vsel %vm1564, %v1539, %v1540
        %v1589 = vsel %vm1564, %v1538, %v1539
        %v1590 = vsel %vm1564, %v1537, %v1538
        %v1591 = vsel %vm1564, %v1536, %v1537
        %v1592 = vsel %vm1564, %v1535, %v1536
        %v1593 = vsel %vm1564, %v1534, %v1535
        %v1594 = vsel %vm1564, %v1533, %v1534
        %v1595 = vsel %vm1564, %v1532, %v1533
        %v1596 = vsel %vm1564, %v1563, %v1532
        %v1597 = vsel %vm626, 1, 0
        %v1598 = vsel %vm627, 1, 0
        %v1599 = vsel %vm628, 1, 0
        %v1600 = vsel %vm629, 1, 0
        %v1601 = vsel %vm630, 1, 0
        %v1602 = vsel %vm631, 1, 0
        %v1603 = vsel %vm632, 1, 0
        %v1604 = vsel %vm633, 1, 0
        %v1605 = vsel %vm634, 1, 0
        %v1606 = vsel %vm635, 1, 0
        %v1607 = vsel %vm636, 1, 0
        %v1608 = vsel %vm637, 1, 0
        %v1609 = vsel %vm638, 1, 0
        %v1610 = vsel %vm639, 1, 0
        %v1611 = vsel %vm640, 1, 0
        %v1612 = vsel %vm641, 1, 0
        %v1613 = vsel %vm642, 1, 0
        %v1614 = vsel %vm643, 1, 0
        %v1615 = vsel %vm644, 1, 0
        %v1616 = vsel %vm645, 1, 0
        %v1617 = vsel %vm646, 1, 0
        %v1618 = vsel %vm647, 1, 0
        %v1619 = vsel %vm648, 1, 0
        %v1620 = vsel %vm649, 1, 0
        %v1621 = vsel %vm650, 1, 0
        %v1622 = vsel %vm651, 1, 0
        %v1623 = vsel %vm652, 1, 0
        %v1624 = vsel %vm653, 1, 0
        %v1625 = vsel %vm654, 1, 0
        %v1626 = vsel %vm655, 1, 0
        %v1627 = vsel %vm656, 1, 0
        %v1628 = vsel %vm657, 1, 0
        %vm1629 = vcmp.eq.s32.totalorder %v1597, 1
        %vm1630 = vcmp.eq.s32.totalorder %v1598, 1
        %vm1631 = vcmp.eq.s32.totalorder %v1599, 1
        %vm1632 = vcmp.eq.s32.totalorder %v1600, 1
        %vm1633 = vcmp.eq.s32.totalorder %v1601, 1
        %vm1634 = vcmp.eq.s32.totalorder %v1602, 1
        %vm1635 = vcmp.eq.s32.totalorder %v1603, 1
        %vm1636 = vcmp.eq.s32.totalorder %v1604, 1
        %vm1637 = vcmp.eq.s32.totalorder %v1605, 1
        %vm1638 = vcmp.eq.s32.totalorder %v1606, 1
        %vm1639 = vcmp.eq.s32.totalorder %v1607, 1
        %vm1640 = vcmp.eq.s32.totalorder %v1608, 1
        %vm1641 = vcmp.eq.s32.totalorder %v1609, 1
        %vm1642 = vcmp.eq.s32.totalorder %v1610, 1
        %vm1643 = vcmp.eq.s32.totalorder %v1611, 1
        %vm1644 = vcmp.eq.s32.totalorder %v1612, 1
        %vm1645 = vcmp.eq.s32.totalorder %v1613, 1
        %vm1646 = vcmp.eq.s32.totalorder %v1614, 1
        %vm1647 = vcmp.eq.s32.totalorder %v1615, 1
        %vm1648 = vcmp.eq.s32.totalorder %v1616, 1
        %vm1649 = vcmp.eq.s32.totalorder %v1617, 1
        %vm1650 = vcmp.eq.s32.totalorder %v1618, 1
        %vm1651 = vcmp.eq.s32.totalorder %v1619, 1
        %vm1652 = vcmp.eq.s32.totalorder %v1620, 1
        %vm1653 = vcmp.eq.s32.totalorder %v1621, 1
        %vm1654 = vcmp.eq.s32.totalorder %v1622, 1
        %vm1655 = vcmp.eq.s32.totalorder %v1623, 1
        %vm1656 = vcmp.eq.s32.totalorder %v1624, 1
        %vm1657 = vcmp.eq.s32.totalorder %v1625, 1
        %vm1658 = vcmp.eq.s32.totalorder %v1626, 1
        %vm1659 = vcmp.eq.s32.totalorder %v1627, 1
        %vm1660 = vcmp.eq.s32.totalorder %v1628, 1
        %v1661 = vsel %vm1629, %v1566, 0.0
        %v1662 = vsel %vm1630, %v1565, 0.0
        %v1663 = vsel %vm1631, %v1596, 0.0
        %v1664 = vsel %vm1632, %v1595, 0.0
        %v1665 = vsel %vm1633, %v1594, 0.0
        %v1666 = vsel %vm1634, %v1593, 0.0
        %v1667 = vsel %vm1635, %v1592, 0.0
        %v1668 = vsel %vm1636, %v1591, 0.0
        %v1669 = vsel %vm1637, %v1590, 0.0
        %v1670 = vsel %vm1638, %v1589, 0.0
        %v1671 = vsel %vm1639, %v1588, 0.0
        %v1672 = vsel %vm1640, %v1587, 0.0
        %v1673 = vsel %vm1641, %v1586, 0.0
        %v1674 = vsel %vm1642, %v1585, 0.0
        %v1675 = vsel %vm1643, %v1584, 0.0
        %v1676 = vsel %vm1644, %v1583, 0.0
        %v1677 = vsel %vm1645, %v1582, 0.0
        %v1678 = vsel %vm1646, %v1581, 0.0
        %v1679 = vsel %vm1647, %v1580, 0.0
        %v1680 = vsel %vm1648, %v1579, 0.0
        %v1681 = vsel %vm1649, %v1578, 0.0
        %v1682 = vsel %vm1650, %v1577, 0.0
        %v1683 = vsel %vm1651, %v1576, 0.0
        %v1684 = vsel %vm1652, %v1575, 0.0
        %v1685 = vsel %vm1653, %v1574, 0.0
        %v1686 = vsel %vm1654, %v1573, 0.0
        %v1687 = vsel %vm1655, %v1572, 0.0
        %v1688 = vsel %vm1656, %v1571, 0.0
        %v1689 = vsel %vm1657, %v1570, 0.0
        %v1690 = vsel %vm1658, %v1569, 0.0
        %v1691 = vsel %vm1659, %v1568, 0.0
        %v1692 = vsel %vm1660, %v1567, 0.0
        %v1693 = vadd.f32 %v1213, %v1661
        %v1694 = vadd.f32 %v1216, %v1662
        %v1695 = vadd.f32 %v1221, %v1663
        %v1696 = vadd.f32 %v1224, %v1664
        %v1697 = vadd.f32 %v1229, %v1665
        %v1698 = vadd.f32 %v1232, %v1666
        %v1699 = vadd.f32 %v1237, %v1667
        %v1700 = vadd.f32 %v1240, %v1668
        %v1701 = vadd.f32 %v1245, %v1669
        %v1702 = vadd.f32 %v1248, %v1670
        %v1703 = vadd.f32 %v1253, %v1671
        %v1704 = vadd.f32 %v1256, %v1672
        %v1705 = vadd.f32 %v1261, %v1673
        %v1706 = vadd.f32 %v1264, %v1674
        %v1707 = vadd.f32 %v1269, %v1675
        %v1708 = vadd.f32 %v1272, %v1676
        %v1709 = vadd.f32 %v1277, %v1677
        %v1710 = vadd.f32 %v1280, %v1678
        %v1711 = vadd.f32 %v1285, %v1679
        %v1712 = vadd.f32 %v1288, %v1680
        %v1713 = vadd.f32 %v1293, %v1681
        %v1714 = vadd.f32 %v1296, %v1682
        %v1715 = vadd.f32 %v1301, %v1683
        %v1716 = vadd.f32 %v1304, %v1684
        %v1717 = vadd.f32 %v1309, %v1685
        %v1718 = vadd.f32 %v1312, %v1686
        %v1719 = vadd.f32 %v1317, %v1687
        %v1720 = vadd.f32 %v1320, %v1688
        %v1721 = vadd.f32 %v1325, %v1689
        %v1722 = vadd.f32 %v1328, %v1690
        %v1723 = vadd.f32 %v1333, %v1691
        %v1724 = vadd.f32 %v1336, %v1692
        %s1725 = scalar_lea.vmem %s3, 32
        %v1726 = vld [vmem:[%s1725] sm:$0xf]
        %v1727 = vld [vmem:[%s1725 + $0x4] sm:$0xf]
        %v1728 = vld [vmem:[%s1725 + $0x8] sm:$0xf]
        %v1729 = vld [vmem:[%s1725 + $0xc] sm:$0xf]
        %v1730 = vld [vmem:[%s1725 + $0x10] sm:$0xf]
        %v1731 = vld [vmem:[%s1725 + $0x14] sm:$0xf]
        %v1732 = vld [vmem:[%s1725 + $0x18] sm:$0xf]
        %v1733 = vld [vmem:[%s1725 + $0x1c] sm:$0xf]
        %v1742 = vunpack.c.l.b16 %v1726
        %v1743 = vunpack.c.l.b16 %v1727
        %v1744 = vunpack.c.l.b16 %v1728
        %v1745 = vunpack.c.l.b16 %v1729
        %v1746 = vunpack.c.l.b16 %v1730
        %v1747 = vunpack.c.l.b16 %v1731
        %v1748 = vunpack.c.l.b16 %v1732
        %v1749 = vunpack.c.l.b16 %v1733
        %v1750 = vpack.c.b16 %v1743, %v1742
        %v1751 = vpack.c.b16 %v1745, %v1744
        %v1752 = vpack.c.b16 %v1747, %v1746
        %v1753 = vpack.c.b16 %v1749, %v1748
        %1758 = vmatprep.subr.bf16.mxu0 0
        %1759 = vmatpush1.bf16.msra.mxu0 %v1750
        %1760 = vmatprep.subr.bf16.mxu0 0
        %1761 = vmatpush1.bf16.msra.mxu0 %v1751
        %1762 = vmatprep.subr.bf16.mxu0 0
        %1763 = vmatpush1.bf16.msra.mxu0 %v1752
        %1764 = vmatprep.subr.bf16.mxu0 0
        %1765 = vmatpush1.bf16.msra.mxu0 %v1753
        %1766 = vmatprep.subr.bf16.mxu0 0
        %1767 = vmatpush1.bf16.msra.mxu0 0
        %1768 = vmatprep.subr.bf16.mxu0 0
        %1769 = vmatpush1.bf16.msra.mxu0 0
        %1770 = vmatprep.subr.bf16.mxu0 0
        %1771 = vmatpush1.bf16.msra.mxu0 0
        %1772 = vmatprep.subr.bf16.mxu0 0
        %1773 = vmatpush1.bf16.msra.mxu0 0
        %1774 = vmatprep.subr.bf16.mxu0 0
        %1775 = vmatpush1.bf16.msra.mxu0 0
        %1776 = vmatprep.subr.bf16.mxu0 0
        %1777 = vmatpush1.bf16.msra.mxu0 0
        %1778 = vmatprep.subr.bf16.mxu0 0
        %1779 = vmatpush1.bf16.msra.mxu0 0
        %1780 = vmatprep.subr.bf16.mxu0 0
        %1781 = vmatpush1.bf16.msra.mxu0 0
        %1782 = vmatprep.subr.bf16.mxu0 0
        %1783 = vmatpush1.bf16.msra.mxu0 0
        %1784 = vmatprep.subr.bf16.mxu0 0
        %1785 = vmatpush1.bf16.msra.mxu0 0
        %1786 = vmatprep.subr.bf16.mxu0 0
        %1787 = vmatpush1.bf16.msra.mxu0 0
        %1788 = vmatprep.subr.bf16.mxu0 0
        %1789 = vmatpush1.bf16.msra.mxu0 0
        %1790 = vmatprep.mubr.bf16.mxu0 0
        %1791 = vmatmul.mubr.bf16.gmra.mrb[0].mxu0 %v1131
        %v1792 = vpop.f32.mrb[0].mxu0
        %v1793 = vadd.f32 0.0, %v1792
        %v1794 = vpop.f32.mrb[0].mxu0
        %v1795 = vpop.f32.mrb[0].mxu0
        %v1796 = vadd.f32 0.0, %v1795
        %v1797 = vpop.f32.mrb[0].mxu0
        %1798 = vmatprep.mubr.bf16.mxu0 0
        %1799 = vmatmul.mubr.bf16.gmra.mrb[0].mxu0 %v1134
        %v1800 = vpop.f32.mrb[0].mxu0
        %v1801 = vadd.f32 0.0, %v1800
        %v1802 = vpop.f32.mrb[0].mxu0
        %v1803 = vpop.f32.mrb[0].mxu0
        %v1804 = vadd.f32 0.0, %v1803
        %v1805 = vpop.f32.mrb[0].mxu0
        %1806 = vmatprep.mubr.bf16.mxu0 0
        %1807 = vmatmul.mubr.bf16.gmra.mrb[0].mxu0 %v1137
        %v1808 = vpop.f32.mrb[0].mxu0
        %v1809 = vadd.f32 0.0, %v1808
        %v1810 = vpop.f32.mrb[0].mxu0
        %v1811 = vpop.f32.mrb[0].mxu0
        %v1812 = vadd.f32 0.0, %v1811
        %v1813 = vpop.f32.mrb[0].mxu0
        %1814 = vmatprep.mubr.bf16.mxu0 0
        %1815 = vmatmul.mubr.bf16.gmra.mrb[0].mxu0 %v1140
        %v1816 = vpop.f32.mrb[0].mxu0
        %v1817 = vadd.f32 0.0, %v1816
        %v1818 = vpop.f32.mrb[0].mxu0
        %v1819 = vpop.f32.mrb[0].mxu0
        %v1820 = vadd.f32 0.0, %v1819
        %v1821 = vpop.f32.mrb[0].mxu0
        %1822 = vmatprep.mubr.bf16.mxu0 0
        %1823 = vmatmul.mubr.bf16.gmra.mrb[0].mxu0 %v1143
        %v1824 = vpop.f32.mrb[0].mxu0
        %v1825 = vadd.f32 0.0, %v1824
        %v1826 = vpop.f32.mrb[0].mxu0
        %v1827 = vpop.f32.mrb[0].mxu0
        %v1828 = vadd.f32 0.0, %v1827
        %v1829 = vpop.f32.mrb[0].mxu0
        %1830 = vmatprep.mubr.bf16.mxu0 0
        %1831 = vmatmul.mubr.bf16.gmra.mrb[0].mxu0 %v1146
        %v1832 = vpop.f32.mrb[0].mxu0
        %v1833 = vadd.f32 0.0, %v1832
        %v1834 = vpop.f32.mrb[0].mxu0
        %v1835 = vpop.f32.mrb[0].mxu0
        %v1836 = vadd.f32 0.0, %v1835
        %v1837 = vpop.f32.mrb[0].mxu0
        %1838 = vmatprep.mubr.bf16.mxu0 0
        %1839 = vmatmul.mubr.bf16.gmra.mrb[0].mxu0 %v1149
        %v1840 = vpop.f32.mrb[0].mxu0
        %v1841 = vadd.f32 0.0, %v1840
        %v1842 = vpop.f32.mrb[0].mxu0
        %v1843 = vpop.f32.mrb[0].mxu0
        %v1844 = vadd.f32 0.0, %v1843
        %v1845 = vpop.f32.mrb[0].mxu0
        %1846 = vmatprep.mubr.bf16.mxu0 0
        %1847 = vmatmul.mubr.bf16.gmra.mrb[0].mxu0 %v1152
        %v1848 = vpop.f32.mrb[0].mxu0
        %v1849 = vadd.f32 0.0, %v1848
        %v1850 = vpop.f32.mrb[0].mxu0
        %v1851 = vpop.f32.mrb[0].mxu0
        %v1852 = vadd.f32 0.0, %v1851
        %v1853 = vpop.f32.mrb[0].mxu0
        %1854 = vmatprep.mubr.bf16.mxu0 0
        %1855 = vmatmul.mubr.bf16.gmra.mrb[0].mxu0 %v1155
        %v1856 = vpop.f32.mrb[0].mxu0
        %v1857 = vadd.f32 0.0, %v1856
        %v1858 = vpop.f32.mrb[0].mxu0
        %v1859 = vpop.f32.mrb[0].mxu0
        %v1860 = vadd.f32 0.0, %v1859
        %v1861 = vpop.f32.mrb[0].mxu0
        %1862 = vmatprep.mubr.bf16.mxu0 0
        %1863 = vmatmul.mubr.bf16.gmra.mrb[0].mxu0 %v1158
        %v1864 = vpop.f32.mrb[0].mxu0
        %v1865 = vadd.f32 0.0, %v1864
        %v1866 = vpop.f32.mrb[0].mxu0
        %v1867 = vpop.f32.mrb[0].mxu0
        %v1868 = vadd.f32 0.0, %v1867
        %v1869 = vpop.f32.mrb[0].mxu0
        %1870 = vmatprep.mubr.bf16.mxu0 0
        %1871 = vmatmul.mubr.bf16.gmra.mrb[0].mxu0 %v1161
        %v1872 = vpop.f32.mrb[0].mxu0
        %v1873 = vadd.f32 0.0, %v1872
        %v1874 = vpop.f32.mrb[0].mxu0
        %v1875 = vpop.f32.mrb[0].mxu0
        %v1876 = vadd.f32 0.0, %v1875
        %v1877 = vpop.f32.mrb[0].mxu0
        %1878 = vmatprep.mubr.bf16.mxu0 0
        %1879 = vmatmul.mubr.bf16.gmra.mrb[0].mxu0 %v1164
        %v1880 = vpop.f32.mrb[0].mxu0
        %v1881 = vadd.f32 0.0, %v1880
        %v1882 = vpop.f32.mrb[0].mxu0
        %v1883 = vpop.f32.mrb[0].mxu0
        %v1884 = vadd.f32 0.0, %v1883
        %v1885 = vpop.f32.mrb[0].mxu0
        %1886 = vmatprep.mubr.bf16.mxu0 0
        %1887 = vmatmul.mubr.bf16.gmra.mrb[0].mxu0 %v1167
        %v1888 = vpop.f32.mrb[0].mxu0
        %v1889 = vadd.f32 0.0, %v1888
        %v1890 = vpop.f32.mrb[0].mxu0
        %v1891 = vpop.f32.mrb[0].mxu0
        %v1892 = vadd.f32 0.0, %v1891
        %v1893 = vpop.f32.mrb[0].mxu0
        %1894 = vmatprep.mubr.bf16.mxu0 0
        %1895 = vmatmul.mubr.bf16.gmra.mrb[0].mxu0 %v1170
        %v1896 = vpop.f32.mrb[0].mxu0
        %v1897 = vadd.f32 0.0, %v1896
        %v1898 = vpop.f32.mrb[0].mxu0
        %v1899 = vpop.f32.mrb[0].mxu0
        %v1900 = vadd.f32 0.0, %v1899
        %v1901 = vpop.f32.mrb[0].mxu0
        %1902 = vmatprep.mubr.bf16.mxu0 0
        %1903 = vmatmul.mubr.bf16.gmra.mrb[0].mxu0 %v1173
        %v1904 = vpop.f32.mrb[0].mxu0
        %v1905 = vadd.f32 0.0, %v1904
        %v1906 = vpop.f32.mrb[0].mxu0
        %v1907 = vpop.f32.mrb[0].mxu0
        %v1908 = vadd.f32 0.0, %v1907
        %v1909 = vpop.f32.mrb[0].mxu0
        %1910 = vmatprep.mubr.bf16.mxu0 0
        %1911 = vmatmul.mubr.bf16.gmra.mrb[0].mxu0 %v1176
        %v1912 = vpop.f32.mrb[0].mxu0
        %v1913 = vadd.f32 0.0, %v1912
        %v1914 = vpop.f32.mrb[0].mxu0
        %v1915 = vpop.f32.mrb[0].mxu0
        %v1916 = vadd.f32 0.0, %v1915
        %v1917 = vpop.f32.mrb[0].mxu0
        %1918 = vdwg.mxu0
        %v1919 = vsel %vm498, 1, 0
        %v1920 = vsel %vm499, 1, 0
        %v1921 = vsel %vm500, 1, 0
        %v1922 = vsel %vm501, 1, 0
        %v1923 = vsel %vm502, 1, 0
        %v1924 = vsel %vm503, 1, 0
        %v1925 = vsel %vm504, 1, 0
        %v1926 = vsel %vm505, 1, 0
        %v1927 = vsel %vm506, 1, 0
        %v1928 = vsel %vm507, 1, 0
        %v1929 = vsel %vm508, 1, 0
        %v1930 = vsel %vm509, 1, 0
        %v1931 = vsel %vm510, 1, 0
        %v1932 = vsel %vm511, 1, 0
        %v1933 = vsel %vm512, 1, 0
        %v1934 = vsel %vm513, 1, 0
        %v1935 = vsel %vm514, 1, 0
        %v1936 = vsel %vm515, 1, 0
        %v1937 = vsel %vm516, 1, 0
        %v1938 = vsel %vm517, 1, 0
        %v1939 = vsel %vm518, 1, 0
        %v1940 = vsel %vm519, 1, 0
        %v1941 = vsel %vm520, 1, 0
        %v1942 = vsel %vm521, 1, 0
        %v1943 = vsel %vm522, 1, 0
        %v1944 = vsel %vm523, 1, 0
        %v1945 = vsel %vm524, 1, 0
        %v1946 = vsel %vm525, 1, 0
        %v1947 = vsel %vm526, 1, 0
        %v1948 = vsel %vm527, 1, 0
        %v1949 = vsel %vm528, 1, 0
        %v1950 = vsel %vm529, 1, 0
        %vm1951 = vcmp.eq.s32.totalorder %v1919, 1
        %vm1952 = vcmp.eq.s32.totalorder %v1920, 1
        %vm1953 = vcmp.eq.s32.totalorder %v1921, 1
        %vm1954 = vcmp.eq.s32.totalorder %v1922, 1
        %vm1955 = vcmp.eq.s32.totalorder %v1923, 1
        %vm1956 = vcmp.eq.s32.totalorder %v1924, 1
        %vm1957 = vcmp.eq.s32.totalorder %v1925, 1
        %vm1958 = vcmp.eq.s32.totalorder %v1926, 1
        %vm1959 = vcmp.eq.s32.totalorder %v1927, 1
        %vm1960 = vcmp.eq.s32.totalorder %v1928, 1
        %vm1961 = vcmp.eq.s32.totalorder %v1929, 1
        %vm1962 = vcmp.eq.s32.totalorder %v1930, 1
        %vm1963 = vcmp.eq.s32.totalorder %v1931, 1
        %vm1964 = vcmp.eq.s32.totalorder %v1932, 1
        %vm1965 = vcmp.eq.s32.totalorder %v1933, 1
        %vm1966 = vcmp.eq.s32.totalorder %v1934, 1
        %vm1967 = vcmp.eq.s32.totalorder %v1935, 1
        %vm1968 = vcmp.eq.s32.totalorder %v1936, 1
        %vm1969 = vcmp.eq.s32.totalorder %v1937, 1
        %vm1970 = vcmp.eq.s32.totalorder %v1938, 1
        %vm1971 = vcmp.eq.s32.totalorder %v1939, 1
        %vm1972 = vcmp.eq.s32.totalorder %v1940, 1
        %vm1973 = vcmp.eq.s32.totalorder %v1941, 1
        %vm1974 = vcmp.eq.s32.totalorder %v1942, 1
        %vm1975 = vcmp.eq.s32.totalorder %v1943, 1
        %vm1976 = vcmp.eq.s32.totalorder %v1944, 1
        %vm1977 = vcmp.eq.s32.totalorder %v1945, 1
        %vm1978 = vcmp.eq.s32.totalorder %v1946, 1
        %vm1979 = vcmp.eq.s32.totalorder %v1947, 1
        %vm1980 = vcmp.eq.s32.totalorder %v1948, 1
        %vm1981 = vcmp.eq.s32.totalorder %v1949, 1
        %vm1982 = vcmp.eq.s32.totalorder %v1950, 1
        %v1983 = vsel %vm1951, %v1913, 0.0
        %v1984 = vsel %vm1952, %v1916, 0.0
        %v1985 = vsel %vm1953, %v1793, 0.0
        %v1986 = vsel %vm1954, %v1796, 0.0
        %v1987 = vsel %vm1955, %v1801, 0.0
        %v1988 = vsel %vm1956, %v1804, 0.0
        %v1989 = vsel %vm1957, %v1809, 0.0
        %v1990 = vsel %vm1958, %v1812, 0.0
        %v1991 = vsel %vm1959, %v1817, 0.0
        %v1992 = vsel %vm1960, %v1820, 0.0
        %v1993 = vsel %vm1961, %v1825, 0.0
        %v1994 = vsel %vm1962, %v1828, 0.0
        %v1995 = vsel %vm1963, %v1833, 0.0
        %v1996 = vsel %vm1964, %v1836, 0.0
        %v1997 = vsel %vm1965, %v1841, 0.0
        %v1998 = vsel %vm1966, %v1844, 0.0
        %v1999 = vsel %vm1967, %v1849, 0.0
        %v2000 = vsel %vm1968, %v1852, 0.0
        %v2001 = vsel %vm1969, %v1857, 0.0
        %v2002 = vsel %vm1970, %v1860, 0.0
        %v2003 = vsel %vm1971, %v1865, 0.0
        %v2004 = vsel %vm1972, %v1868, 0.0
        %v2005 = vsel %vm1973, %v1873, 0.0
        %v2006 = vsel %vm1974, %v1876, 0.0
        %v2007 = vsel %vm1975, %v1881, 0.0
        %v2008 = vsel %vm1976, %v1884, 0.0
        %v2009 = vsel %vm1977, %v1889, 0.0
        %v2010 = vsel %vm1978, %v1892, 0.0
        %v2011 = vsel %vm1979, %v1897, 0.0
        %v2012 = vsel %vm1980, %v1900, 0.0
        %v2013 = vsel %vm1981, %v1905, 0.0
        %v2014 = vsel %vm1982, %v1908, 0.0
        %v2015 = vadd.f32 %v1693, %v1983
        %v2016 = vadd.f32 %v1694, %v1984
        %v2017 = vadd.f32 %v1695, %v1985
        %v2018 = vadd.f32 %v1696, %v1986
        %v2019 = vadd.f32 %v1697, %v1987
        %v2020 = vadd.f32 %v1698, %v1988
        %v2021 = vadd.f32 %v1699, %v1989
        %v2022 = vadd.f32 %v1700, %v1990
        %v2023 = vadd.f32 %v1701, %v1991
        %v2024 = vadd.f32 %v1702, %v1992
        %v2025 = vadd.f32 %v1703, %v1993
        %v2026 = vadd.f32 %v1704, %v1994
        %v2027 = vadd.f32 %v1705, %v1995
        %v2028 = vadd.f32 %v1706, %v1996
        %v2029 = vadd.f32 %v1707, %v1997
        %v2030 = vadd.f32 %v1708, %v1998
        %v2031 = vadd.f32 %v1709, %v1999
        %v2032 = vadd.f32 %v1710, %v2000
        %v2033 = vadd.f32 %v1711, %v2001
        %v2034 = vadd.f32 %v1712, %v2002
        %v2035 = vadd.f32 %v1713, %v2003
        %v2036 = vadd.f32 %v1714, %v2004
        %v2037 = vadd.f32 %v1715, %v2005
        %v2038 = vadd.f32 %v1716, %v2006
        %v2039 = vadd.f32 %v1717, %v2007
        %v2040 = vadd.f32 %v1718, %v2008
        %v2041 = vadd.f32 %v1719, %v2009
        %v2042 = vadd.f32 %v1720, %v2010
        %v2043 = vadd.f32 %v1721, %v2011
        %v2044 = vadd.f32 %v1722, %v2012
        %v2045 = vadd.f32 %v1723, %v2013
        %v2046 = vadd.f32 %v1724, %v2014
        %s2047 = scalar_lea.vmem %s3, 64
        %v2048 = vld [vmem:[%s2047] sm:$0xf]
        %v2049 = vld [vmem:[%s2047 + $0x4] sm:$0xf]
        %v2050 = vld [vmem:[%s2047 + $0x8] sm:$0xf]
        %v2051 = vld [vmem:[%s2047 + $0xc] sm:$0xf]
        %v2052 = vld [vmem:[%s2047 + $0x10] sm:$0xf]
        %v2053 = vld [vmem:[%s2047 + $0x14] sm:$0xf]
        %v2054 = vld [vmem:[%s2047 + $0x18] sm:$0xf]
        %v2055 = vld [vmem:[%s2047 + $0x1c] sm:$0xf]
        %v2064 = vunpack.c.l.b16 %v2048
        %v2065 = vunpack.c.l.b16 %v2049
        %v2066 = vunpack.c.l.b16 %v2050
        %v2067 = vunpack.c.l.b16 %v2051
        %v2068 = vunpack.c.l.b16 %v2052
        %v2069 = vunpack.c.l.b16 %v2053
        %v2070 = vunpack.c.l.b16 %v2054
        %v2071 = vunpack.c.l.b16 %v2055
        %v2072 = vpack.c.b16 %v2065, %v2064
        %v2073 = vpack.c.b16 %v2067, %v2066
        %v2074 = vpack.c.b16 %v2069, %v2068
        %v2075 = vpack.c.b16 %v2071, %v2070
        %2080 = vmatprep.subr.bf16.mxu0 0
        %2081 = vmatpush1.bf16.msra.mxu0 %v2072
        %2082 = vmatprep.subr.bf16.mxu0 0
        %2083 = vmatpush1.bf16.msra.mxu0 %v2073
        %2084 = vmatprep.subr.bf16.mxu0 0
        %2085 = vmatpush1.bf16.msra.mxu0 %v2074
        %2086 = vmatprep.subr.bf16.mxu0 0
        %2087 = vmatpush1.bf16.msra.mxu0 %v2075
        %2088 = vmatprep.subr.bf16.mxu0 0
        %2089 = vmatpush1.bf16.msra.mxu0 0
        %2090 = vmatprep.subr.bf16.mxu0 0
        %2091 = vmatpush1.bf16.msra.mxu0 0
        %2092 = vmatprep.subr.bf16.mxu0 0
        %2093 = vmatpush1.bf16.msra.mxu0 0
        %2094 = vmatprep.subr.bf16.mxu0 0
        %2095 = vmatpush1.bf16.msra.mxu0 0
        %2096 = vmatprep.subr.bf16.mxu0 0
        %2097 = vmatpush1.bf16.msra.mxu0 0
        %2098 = vmatprep.subr.bf16.mxu0 0
        %2099 = vmatpush1.bf16.msra.mxu0 0
        %2100 = vmatprep.subr.bf16.mxu0 0
        %2101 = vmatpush1.bf16.msra.mxu0 0
        %2102 = vmatprep.subr.bf16.mxu0 0
        %2103 = vmatpush1.bf16.msra.mxu0 0
        %2104 = vmatprep.subr.bf16.mxu0 0
        %2105 = vmatpush1.bf16.msra.mxu0 0
        %2106 = vmatprep.subr.bf16.mxu0 0
        %2107 = vmatpush1.bf16.msra.mxu0 0
        %2108 = vmatprep.subr.bf16.mxu0 0
        %2109 = vmatpush1.bf16.msra.mxu0 0
        %2110 = vmatprep.subr.bf16.mxu0 0
        %2111 = vmatpush1.bf16.msra.mxu0 0
        %2112 = vmatprep.mubr.bf16.mxu0 0
        %2113 = vmatmul.mubr.bf16.gmra.mrb[0].mxu0 %v1131
        %v2114 = vpop.f32.mrb[0].mxu0
        %v2115 = vadd.f32 0.0, %v2114
        %v2116 = vpop.f32.mrb[0].mxu0
        %v2117 = vpop.f32.mrb[0].mxu0
        %v2118 = vadd.f32 0.0, %v2117
        %v2119 = vpop.f32.mrb[0].mxu0
        %2120 = vmatprep.mubr.bf16.mxu0 0
        %2121 = vmatmul.mubr.bf16.gmra.mrb[0].mxu0 %v1134
        %v2122 = vpop.f32.mrb[0].mxu0
        %v2123 = vadd.f32 0.0, %v2122
        %v2124 = vpop.f32.mrb[0].mxu0
        %v2125 = vpop.f32.mrb[0].mxu0
        %v2126 = vadd.f32 0.0, %v2125
        %v2127 = vpop.f32.mrb[0].mxu0
        %2128 = vmatprep.mubr.bf16.mxu0 0
        %2129 = vmatmul.mubr.bf16.gmra.mrb[0].mxu0 %v1137
        %v2130 = vpop.f32.mrb[0].mxu0
        %v2131 = vadd.f32 0.0, %v2130
        %v2132 = vpop.f32.mrb[0].mxu0
        %v2133 = vpop.f32.mrb[0].mxu0
        %v2134 = vadd.f32 0.0, %v2133
        %v2135 = vpop.f32.mrb[0].mxu0
        %2136 = vmatprep.mubr.bf16.mxu0 0
        %2137 = vmatmul.mubr.bf16.gmra.mrb[0].mxu0 %v1140
        %v2138 = vpop.f32.mrb[0].mxu0
        %v2139 = vadd.f32 0.0, %v2138
        %v2140 = vpop.f32.mrb[0].mxu0
        %v2141 = vpop.f32.mrb[0].mxu0
        %v2142 = vadd.f32 0.0, %v2141
        %v2143 = vpop.f32.mrb[0].mxu0
        %2144 = vmatprep.mubr.bf16.mxu0 0
        %2145 = vmatmul.mubr.bf16.gmra.mrb[0].mxu0 %v1143
        %v2146 = vpop.f32.mrb[0].mxu0
        %v2147 = vadd.f32 0.0, %v2146
        %v2148 = vpop.f32.mrb[0].mxu0
        %v2149 = vpop.f32.mrb[0].mxu0
        %v2150 = vadd.f32 0.0, %v2149
        %v2151 = vpop.f32.mrb[0].mxu0
        %2152 = vmatprep.mubr.bf16.mxu0 0
        %2153 = vmatmul.mubr.bf16.gmra.mrb[0].mxu0 %v1146
        %v2154 = vpop.f32.mrb[0].mxu0
        %v2155 = vadd.f32 0.0, %v2154
        %v2156 = vpop.f32.mrb[0].mxu0
        %v2157 = vpop.f32.mrb[0].mxu0
        %v2158 = vadd.f32 0.0, %v2157
        %v2159 = vpop.f32.mrb[0].mxu0
        %2160 = vmatprep.mubr.bf16.mxu0 0
        %2161 = vmatmul.mubr.bf16.gmra.mrb[0].mxu0 %v1149
        %v2162 = vpop.f32.mrb[0].mxu0
        %v2163 = vadd.f32 0.0, %v2162
        %v2164 = vpop.f32.mrb[0].mxu0
        %v2165 = vpop.f32.mrb[0].mxu0
        %v2166 = vadd.f32 0.0, %v2165
        %v2167 = vpop.f32.mrb[0].mxu0
        %2168 = vmatprep.mubr.bf16.mxu0 0
        %2169 = vmatmul.mubr.bf16.gmra.mrb[0].mxu0 %v1152
        %v2170 = vpop.f32.mrb[0].mxu0
        %v2171 = vadd.f32 0.0, %v2170
        %v2172 = vpop.f32.mrb[0].mxu0
        %v2173 = vpop.f32.mrb[0].mxu0
        %v2174 = vadd.f32 0.0, %v2173
        %v2175 = vpop.f32.mrb[0].mxu0
        %2176 = vmatprep.mubr.bf16.mxu0 0
        %2177 = vmatmul.mubr.bf16.gmra.mrb[0].mxu0 %v1155
        %v2178 = vpop.f32.mrb[0].mxu0
        %v2179 = vadd.f32 0.0, %v2178
        %v2180 = vpop.f32.mrb[0].mxu0
        %v2181 = vpop.f32.mrb[0].mxu0
        %v2182 = vadd.f32 0.0, %v2181
        %v2183 = vpop.f32.mrb[0].mxu0
        %2184 = vmatprep.mubr.bf16.mxu0 0
        %2185 = vmatmul.mubr.bf16.gmra.mrb[0].mxu0 %v1158
        %v2186 = vpop.f32.mrb[0].mxu0
        %v2187 = vadd.f32 0.0, %v2186
        %v2188 = vpop.f32.mrb[0].mxu0
        %v2189 = vpop.f32.mrb[0].mxu0
        %v2190 = vadd.f32 0.0, %v2189
        %v2191 = vpop.f32.mrb[0].mxu0
        %2192 = vmatprep.mubr.bf16.mxu0 0
        %2193 = vmatmul.mubr.bf16.gmra.mrb[0].mxu0 %v1161
        %v2194 = vpop.f32.mrb[0].mxu0
        %v2195 = vadd.f32 0.0, %v2194
        %v2196 = vpop.f32.mrb[0].mxu0
        %v2197 = vpop.f32.mrb[0].mxu0
        %v2198 = vadd.f32 0.0, %v2197
        %v2199 = vpop.f32.mrb[0].mxu0
        %2200 = vmatprep.mubr.bf16.mxu0 0
        %2201 = vmatmul.mubr.bf16.gmra.mrb[0].mxu0 %v1164
        %v2202 = vpop.f32.mrb[0].mxu0
        %v2203 = vadd.f32 0.0, %v2202
        %v2204 = vpop.f32.mrb[0].mxu0
        %v2205 = vpop.f32.mrb[0].mxu0
        %v2206 = vadd.f32 0.0, %v2205
        %v2207 = vpop.f32.mrb[0].mxu0
        %2208 = vmatprep.mubr.bf16.mxu0 0
        %2209 = vmatmul.mubr.bf16.gmra.mrb[0].mxu0 %v1167
        %v2210 = vpop.f32.mrb[0].mxu0
        %v2211 = vadd.f32 0.0, %v2210
        %v2212 = vpop.f32.mrb[0].mxu0
        %v2213 = vpop.f32.mrb[0].mxu0
        %v2214 = vadd.f32 0.0, %v2213
        %v2215 = vpop.f32.mrb[0].mxu0
        %2216 = vmatprep.mubr.bf16.mxu0 0
        %2217 = vmatmul.mubr.bf16.gmra.mrb[0].mxu0 %v1170
        %v2218 = vpop.f32.mrb[0].mxu0
        %v2219 = vadd.f32 0.0, %v2218
        %v2220 = vpop.f32.mrb[0].mxu0
        %v2221 = vpop.f32.mrb[0].mxu0
        %v2222 = vadd.f32 0.0, %v2221
        %v2223 = vpop.f32.mrb[0].mxu0
        %2224 = vmatprep.mubr.bf16.mxu0 0
        %2225 = vmatmul.mubr.bf16.gmra.mrb[0].mxu0 %v1173
        %v2226 = vpop.f32.mrb[0].mxu0
        %v2227 = vadd.f32 0.0, %v2226
        %v2228 = vpop.f32.mrb[0].mxu0
        %v2229 = vpop.f32.mrb[0].mxu0
        %v2230 = vadd.f32 0.0, %v2229
        %v2231 = vpop.f32.mrb[0].mxu0
        %2232 = vmatprep.mubr.bf16.mxu0 0
        %2233 = vmatmul.mubr.bf16.gmra.mrb[0].mxu0 %v1176
        %v2234 = vpop.f32.mrb[0].mxu0
        %v2235 = vadd.f32 0.0, %v2234
        %v2236 = vpop.f32.mrb[0].mxu0
        %v2237 = vpop.f32.mrb[0].mxu0
        %v2238 = vadd.f32 0.0, %v2237
        %v2239 = vpop.f32.mrb[0].mxu0
        %2240 = vdwg.mxu0
        %v2241 = vrot.slane %v2115, 1
        %v2242 = vrot.slane %v2118, 1
        %v2243 = vrot.slane %v2123, 1
        %v2244 = vrot.slane %v2126, 1
        %v2245 = vrot.slane %v2131, 1
        %v2246 = vrot.slane %v2134, 1
        %v2247 = vrot.slane %v2139, 1
        %v2248 = vrot.slane %v2142, 1
        %v2249 = vrot.slane %v2147, 1
        %v2250 = vrot.slane %v2150, 1
        %v2251 = vrot.slane %v2155, 1
        %v2252 = vrot.slane %v2158, 1
        %v2253 = vrot.slane %v2163, 1
        %v2254 = vrot.slane %v2166, 1
        %v2255 = vrot.slane %v2171, 1
        %v2256 = vrot.slane %v2174, 1
        %v2257 = vrot.slane %v2179, 1
        %v2258 = vrot.slane %v2182, 1
        %v2259 = vrot.slane %v2187, 1
        %v2260 = vrot.slane %v2190, 1
        %v2261 = vrot.slane %v2195, 1
        %v2262 = vrot.slane %v2198, 1
        %v2263 = vrot.slane %v2203, 1
        %v2264 = vrot.slane %v2206, 1
        %v2265 = vrot.slane %v2211, 1
        %v2266 = vrot.slane %v2214, 1
        %v2267 = vrot.slane %v2219, 1
        %v2268 = vrot.slane %v2222, 1
        %v2269 = vrot.slane %v2227, 1
        %v2270 = vrot.slane %v2230, 1
        %v2271 = vrot.slane %v2235, 1
        %v2272 = vrot.slane %v2238, 1
        %vm2273 = vcmp.lt.s32.totalorder %v434, 7
        %v2274 = vsel %vm2273, %v2271, %v2272
        %v2275 = vsel %vm2273, %v2270, %v2271
        %v2276 = vsel %vm2273, %v2269, %v2270
        %v2277 = vsel %vm2273, %v2268, %v2269
        %v2278 = vsel %vm2273, %v2267, %v2268
        %v2279 = vsel %vm2273, %v2266, %v2267
        %v2280 = vsel %vm2273, %v2265, %v2266
        %v2281 = vsel %vm2273, %v2264, %v2265
        %v2282 = vsel %vm2273, %v2263, %v2264
        %v2283 = vsel %vm2273, %v2262, %v2263
        %v2284 = vsel %vm2273, %v2261, %v2262
        %v2285 = vsel %vm2273, %v2260, %v2261
        %v2286 = vsel %vm2273, %v2259, %v2260
        %v2287 = vsel %vm2273, %v2258, %v2259
        %v2288 = vsel %vm2273, %v2257, %v2258
        %v2289 = vsel %vm2273, %v2256, %v2257
        %v2290 = vsel %vm2273, %v2255, %v2256
        %v2291 = vsel %vm2273, %v2254, %v2255
        %v2292 = vsel %vm2273, %v2253, %v2254
        %v2293 = vsel %vm2273, %v2252, %v2253
        %v2294 = vsel %vm2273, %v2251, %v2252
        %v2295 = vsel %vm2273, %v2250, %v2251
        %v2296 = vsel %vm2273, %v2249, %v2250
        %v2297 = vsel %vm2273, %v2248, %v2249
        %v2298 = vsel %vm2273, %v2247, %v2248
        %v2299 = vsel %vm2273, %v2246, %v2247
        %v2300 = vsel %vm2273, %v2245, %v2246
        %v2301 = vsel %vm2273, %v2244, %v2245
        %v2302 = vsel %vm2273, %v2243, %v2244
        %v2303 = vsel %vm2273, %v2242, %v2243
        %v2304 = vsel %vm2273, %v2241, %v2242
        %v2305 = vsel %vm2273, %v2272, %v2241
        %v2306 = vsel %vm658, 1, 0
        %v2307 = vsel %vm659, 1, 0
        %v2308 = vsel %vm660, 1, 0
        %v2309 = vsel %vm661, 1, 0
        %v2310 = vsel %vm662, 1, 0
        %v2311 = vsel %vm663, 1, 0
        %v2312 = vsel %vm664, 1, 0
        %v2313 = vsel %vm665, 1, 0
        %v2314 = vsel %vm666, 1, 0
        %v2315 = vsel %vm667, 1, 0
        %v2316 = vsel %vm668, 1, 0
        %v2317 = vsel %vm669, 1, 0
        %v2318 = vsel %vm670, 1, 0
        %v2319 = vsel %vm671, 1, 0
        %v2320 = vsel %vm672, 1, 0
        %v2321 = vsel %vm673, 1, 0
        %v2322 = vsel %vm674, 1, 0
        %v2323 = vsel %vm675, 1, 0
        %v2324 = vsel %vm676, 1, 0
        %v2325 = vsel %vm677, 1, 0
        %v2326 = vsel %vm678, 1, 0
        %v2327 = vsel %vm679, 1, 0
        %v2328 = vsel %vm680, 1, 0
        %v2329 = vsel %vm681, 1, 0
        %v2330 = vsel %vm682, 1, 0
        %v2331 = vsel %vm683, 1, 0
        %v2332 = vsel %vm684, 1, 0
        %v2333 = vsel %vm685, 1, 0
        %v2334 = vsel %vm686, 1, 0
        %v2335 = vsel %vm687, 1, 0
        %v2336 = vsel %vm688, 1, 0
        %v2337 = vsel %vm689, 1, 0
        %vm2338 = vcmp.eq.s32.totalorder %v2306, 1
        %vm2339 = vcmp.eq.s32.totalorder %v2307, 1
        %vm2340 = vcmp.eq.s32.totalorder %v2308, 1
        %vm2341 = vcmp.eq.s32.totalorder %v2309, 1
        %vm2342 = vcmp.eq.s32.totalorder %v2310, 1
        %vm2343 = vcmp.eq.s32.totalorder %v2311, 1
        %vm2344 = vcmp.eq.s32.totalorder %v2312, 1
        %vm2345 = vcmp.eq.s32.totalorder %v2313, 1
        %vm2346 = vcmp.eq.s32.totalorder %v2314, 1
        %vm2347 = vcmp.eq.s32.totalorder %v2315, 1
        %vm2348 = vcmp.eq.s32.totalorder %v2316, 1
        %vm2349 = vcmp.eq.s32.totalorder %v2317, 1
        %vm2350 = vcmp.eq.s32.totalorder %v2318, 1
        %vm2351 = vcmp.eq.s32.totalorder %v2319, 1
        %vm2352 = vcmp.eq.s32.totalorder %v2320, 1
        %vm2353 = vcmp.eq.s32.totalorder %v2321, 1
        %vm2354 = vcmp.eq.s32.totalorder %v2322, 1
        %vm2355 = vcmp.eq.s32.totalorder %v2323, 1
        %vm2356 = vcmp.eq.s32.totalorder %v2324, 1
        %vm2357 = vcmp.eq.s32.totalorder %v2325, 1
        %vm2358 = vcmp.eq.s32.totalorder %v2326, 1
        %vm2359 = vcmp.eq.s32.totalorder %v2327, 1
        %vm2360 = vcmp.eq.s32.totalorder %v2328, 1
        %vm2361 = vcmp.eq.s32.totalorder %v2329, 1
        %vm2362 = vcmp.eq.s32.totalorder %v2330, 1
        %vm2363 = vcmp.eq.s32.totalorder %v2331, 1
        %vm2364 = vcmp.eq.s32.totalorder %v2332, 1
        %vm2365 = vcmp.eq.s32.totalorder %v2333, 1
        %vm2366 = vcmp.eq.s32.totalorder %v2334, 1
        %vm2367 = vcmp.eq.s32.totalorder %v2335, 1
        %vm2368 = vcmp.eq.s32.totalorder %v2336, 1
        %vm2369 = vcmp.eq.s32.totalorder %v2337, 1
        %v2370 = vsel %vm2338, %v2274, 0.0
        %v2371 = vsel %vm2339, %v2305, 0.0
        %v2372 = vsel %vm2340, %v2304, 0.0
        %v2373 = vsel %vm2341, %v2303, 0.0
        %v2374 = vsel %vm2342, %v2302, 0.0
        %v2375 = vsel %vm2343, %v2301, 0.0
        %v2376 = vsel %vm2344, %v2300, 0.0
        %v2377 = vsel %vm2345, %v2299, 0.0
        %v2378 = vsel %vm2346, %v2298, 0.0
        %v2379 = vsel %vm2347, %v2297, 0.0
        %v2380 = vsel %vm2348, %v2296, 0.0
        %v2381 = vsel %vm2349, %v2295, 0.0
        %v2382 = vsel %vm2350, %v2294, 0.0
        %v2383 = vsel %vm2351, %v2293, 0.0
        %v2384 = vsel %vm2352, %v2292, 0.0
        %v2385 = vsel %vm2353, %v2291, 0.0
        %v2386 = vsel %vm2354, %v2290, 0.0
        %v2387 = vsel %vm2355, %v2289, 0.0
        %v2388 = vsel %vm2356, %v2288, 0.0
        %v2389 = vsel %vm2357, %v2287, 0.0
        %v2390 = vsel %vm2358, %v2286, 0.0
        %v2391 = vsel %vm2359, %v2285, 0.0
        %v2392 = vsel %vm2360, %v2284, 0.0
        %v2393 = vsel %vm2361, %v2283, 0.0
        %v2394 = vsel %vm2362, %v2282, 0.0
        %v2395 = vsel %vm2363, %v2281, 0.0
        %v2396 = vsel %vm2364, %v2280, 0.0
        %v2397 = vsel %vm2365, %v2279, 0.0
        %v2398 = vsel %vm2366, %v2278, 0.0
        %v2399 = vsel %vm2367, %v2277, 0.0
        %v2400 = vsel %vm2368, %v2276, 0.0
        %v2401 = vsel %vm2369, %v2275, 0.0
        %v2402 = vadd.f32 %v2015, %v2370
        %v2403 = vadd.f32 %v2016, %v2371
        %v2404 = vadd.f32 %v2017, %v2372
        %v2405 = vadd.f32 %v2018, %v2373
        %v2406 = vadd.f32 %v2019, %v2374
        %v2407 = vadd.f32 %v2020, %v2375
        %v2408 = vadd.f32 %v2021, %v2376
        %v2409 = vadd.f32 %v2022, %v2377
        %v2410 = vadd.f32 %v2023, %v2378
        %v2411 = vadd.f32 %v2024, %v2379
        %v2412 = vadd.f32 %v2025, %v2380
        %v2413 = vadd.f32 %v2026, %v2381
        %v2414 = vadd.f32 %v2027, %v2382
        %v2415 = vadd.f32 %v2028, %v2383
        %v2416 = vadd.f32 %v2029, %v2384
        %v2417 = vadd.f32 %v2030, %v2385
        %v2418 = vadd.f32 %v2031, %v2386
        %v2419 = vadd.f32 %v2032, %v2387
        %v2420 = vadd.f32 %v2033, %v2388
        %v2421 = vadd.f32 %v2034, %v2389
        %v2422 = vadd.f32 %v2035, %v2390
        %v2423 = vadd.f32 %v2036, %v2391
        %v2424 = vadd.f32 %v2037, %v2392
        %v2425 = vadd.f32 %v2038, %v2393
        %v2426 = vadd.f32 %v2039, %v2394
        %v2427 = vadd.f32 %v2040, %v2395
        %v2428 = vadd.f32 %v2041, %v2396
        %v2429 = vadd.f32 %v2042, %v2397
        %v2430 = vadd.f32 %v2043, %v2398
        %v2431 = vadd.f32 %v2044, %v2399
        %v2432 = vadd.f32 %v2045, %v2400
        %v2433 = vadd.f32 %v2046, %v2401
        %s2434 = scalar_lea.vmem %s3, 96
        %v2435 = vld [vmem:[%s2434] sm:$0xf]
        %v2436 = vld [vmem:[%s2434 + $0x4] sm:$0xf]
        %v2437 = vld [vmem:[%s2434 + $0x8] sm:$0xf]
        %v2438 = vld [vmem:[%s2434 + $0xc] sm:$0xf]
        %v2439 = vld [vmem:[%s2434 + $0x10] sm:$0xf]
        %v2440 = vld [vmem:[%s2434 + $0x14] sm:$0xf]
        %v2441 = vld [vmem:[%s2434 + $0x18] sm:$0xf]
        %v2442 = vld [vmem:[%s2434 + $0x1c] sm:$0xf]
        %v2451 = vunpack.c.l.b16 %v2435
        %v2452 = vunpack.c.l.b16 %v2436
        %v2453 = vunpack.c.l.b16 %v2437
        %v2454 = vunpack.c.l.b16 %v2438
        %v2455 = vunpack.c.l.b16 %v2439
        %v2456 = vunpack.c.l.b16 %v2440
        %v2457 = vunpack.c.l.b16 %v2441
        %v2458 = vunpack.c.l.b16 %v2442
        %v2459 = vpack.c.b16 %v2452, %v2451
        %v2460 = vpack.c.b16 %v2454, %v2453
        %v2461 = vpack.c.b16 %v2456, %v2455
        %v2462 = vpack.c.b16 %v2458, %v2457
        %2467 = vmatprep.subr.bf16.mxu0 0
        %2468 = vmatpush1.bf16.msra.mxu0 %v2459
        %2469 = vmatprep.subr.bf16.mxu0 0
        %2470 = vmatpush1.bf16.msra.mxu0 %v2460
        %2471 = vmatprep.subr.bf16.mxu0 0
        %2472 = vmatpush1.bf16.msra.mxu0 %v2461
        %2473 = vmatprep.subr.bf16.mxu0 0
        %2474 = vmatpush1.bf16.msra.mxu0 %v2462
        %2475 = vmatprep.subr.bf16.mxu0 0
        %2476 = vmatpush1.bf16.msra.mxu0 0
        %2477 = vmatprep.subr.bf16.mxu0 0
        %2478 = vmatpush1.bf16.msra.mxu0 0
        %2479 = vmatprep.subr.bf16.mxu0 0
        %2480 = vmatpush1.bf16.msra.mxu0 0
        %2481 = vmatprep.subr.bf16.mxu0 0
        %2482 = vmatpush1.bf16.msra.mxu0 0
        %2483 = vmatprep.subr.bf16.mxu0 0
        %2484 = vmatpush1.bf16.msra.mxu0 0
        %2485 = vmatprep.subr.bf16.mxu0 0
        %2486 = vmatpush1.bf16.msra.mxu0 0
        %2487 = vmatprep.subr.bf16.mxu0 0
        %2488 = vmatpush1.bf16.msra.mxu0 0
        %2489 = vmatprep.subr.bf16.mxu0 0
        %2490 = vmatpush1.bf16.msra.mxu0 0
        %2491 = vmatprep.subr.bf16.mxu0 0
        %2492 = vmatpush1.bf16.msra.mxu0 0
        %2493 = vmatprep.subr.bf16.mxu0 0
        %2494 = vmatpush1.bf16.msra.mxu0 0
        %2495 = vmatprep.subr.bf16.mxu0 0
        %2496 = vmatpush1.bf16.msra.mxu0 0
        %2497 = vmatprep.subr.bf16.mxu0 0
        %2498 = vmatpush1.bf16.msra.mxu0 0
        %2499 = vmatprep.mubr.bf16.mxu0 0
        %2500 = vmatmul.mubr.bf16.gmra.mrb[0].mxu0 %v1131
        %v2501 = vpop.f32.mrb[0].mxu0
        %v2502 = vadd.f32 0.0, %v2501
        %v2503 = vpop.f32.mrb[0].mxu0
        %v2504 = vpop.f32.mrb[0].mxu0
        %v2505 = vadd.f32 0.0, %v2504
        %v2506 = vpop.f32.mrb[0].mxu0
        %2507 = vmatprep.mubr.bf16.mxu0 0
        %2508 = vmatmul.mubr.bf16.gmra.mrb[0].mxu0 %v1134
        %v2509 = vpop.f32.mrb[0].mxu0
        %v2510 = vadd.f32 0.0, %v2509
        %v2511 = vpop.f32.mrb[0].mxu0
        %v2512 = vpop.f32.mrb[0].mxu0
        %v2513 = vadd.f32 0.0, %v2512
        %v2514 = vpop.f32.mrb[0].mxu0
        %2515 = vmatprep.mubr.bf16.mxu0 0
        %2516 = vmatmul.mubr.bf16.gmra.mrb[0].mxu0 %v1137
        %v2517 = vpop.f32.mrb[0].mxu0
        %v2518 = vadd.f32 0.0, %v2517
        %v2519 = vpop.f32.mrb[0].mxu0
        %v2520 = vpop.f32.mrb[0].mxu0
        %v2521 = vadd.f32 0.0, %v2520
        %v2522 = vpop.f32.mrb[0].mxu0
        %2523 = vmatprep.mubr.bf16.mxu0 0
        %2524 = vmatmul.mubr.bf16.gmra.mrb[0].mxu0 %v1140
        %v2525 = vpop.f32.mrb[0].mxu0
        %v2526 = vadd.f32 0.0, %v2525
        %v2527 = vpop.f32.mrb[0].mxu0
        %v2528 = vpop.f32.mrb[0].mxu0
        %v2529 = vadd.f32 0.0, %v2528
        %v2530 = vpop.f32.mrb[0].mxu0
        %2531 = vmatprep.mubr.bf16.mxu0 0
        %2532 = vmatmul.mubr.bf16.gmra.mrb[0].mxu0 %v1143
        %v2533 = vpop.f32.mrb[0].mxu0
        %v2534 = vadd.f32 0.0, %v2533
        %v2535 = vpop.f32.mrb[0].mxu0
        %v2536 = vpop.f32.mrb[0].mxu0
        %v2537 = vadd.f32 0.0, %v2536
        %v2538 = vpop.f32.mrb[0].mxu0
        %2539 = vmatprep.mubr.bf16.mxu0 0
        %2540 = vmatmul.mubr.bf16.gmra.mrb[0].mxu0 %v1146
        %v2541 = vpop.f32.mrb[0].mxu0
        %v2542 = vadd.f32 0.0, %v2541
        %v2543 = vpop.f32.mrb[0].mxu0
        %v2544 = vpop.f32.mrb[0].mxu0
        %v2545 = vadd.f32 0.0, %v2544
        %v2546 = vpop.f32.mrb[0].mxu0
        %2547 = vmatprep.mubr.bf16.mxu0 0
        %2548 = vmatmul.mubr.bf16.gmra.mrb[0].mxu0 %v1149
        %v2549 = vpop.f32.mrb[0].mxu0
        %v2550 = vadd.f32 0.0, %v2549
        %v2551 = vpop.f32.mrb[0].mxu0
        %v2552 = vpop.f32.mrb[0].mxu0
        %v2553 = vadd.f32 0.0, %v2552
        %v2554 = vpop.f32.mrb[0].mxu0
        %2555 = vmatprep.mubr.bf16.mxu0 0
        %2556 = vmatmul.mubr.bf16.gmra.mrb[0].mxu0 %v1152
        %v2557 = vpop.f32.mrb[0].mxu0
        %v2558 = vadd.f32 0.0, %v2557
        %v2559 = vpop.f32.mrb[0].mxu0
        %v2560 = vpop.f32.mrb[0].mxu0
        %v2561 = vadd.f32 0.0, %v2560
        %v2562 = vpop.f32.mrb[0].mxu0
        %2563 = vmatprep.mubr.bf16.mxu0 0
        %2564 = vmatmul.mubr.bf16.gmra.mrb[0].mxu0 %v1155
        %v2565 = vpop.f32.mrb[0].mxu0
        %v2566 = vadd.f32 0.0, %v2565
        %v2567 = vpop.f32.mrb[0].mxu0
        %v2568 = vpop.f32.mrb[0].mxu0
        %v2569 = vadd.f32 0.0, %v2568
        %v2570 = vpop.f32.mrb[0].mxu0
        %2571 = vmatprep.mubr.bf16.mxu0 0
        %2572 = vmatmul.mubr.bf16.gmra.mrb[0].mxu0 %v1158
        %v2573 = vpop.f32.mrb[0].mxu0
        %v2574 = vadd.f32 0.0, %v2573
        %v2575 = vpop.f32.mrb[0].mxu0
        %v2576 = vpop.f32.mrb[0].mxu0
        %v2577 = vadd.f32 0.0, %v2576
        %v2578 = vpop.f32.mrb[0].mxu0
        %2579 = vmatprep.mubr.bf16.mxu0 0
        %2580 = vmatmul.mubr.bf16.gmra.mrb[0].mxu0 %v1161
        %v2581 = vpop.f32.mrb[0].mxu0
        %v2582 = vadd.f32 0.0, %v2581
        %v2583 = vpop.f32.mrb[0].mxu0
        %v2584 = vpop.f32.mrb[0].mxu0
        %v2585 = vadd.f32 0.0, %v2584
        %v2586 = vpop.f32.mrb[0].mxu0
        %2587 = vmatprep.mubr.bf16.mxu0 0
        %2588 = vmatmul.mubr.bf16.gmra.mrb[0].mxu0 %v1164
        %v2589 = vpop.f32.mrb[0].mxu0
        %v2590 = vadd.f32 0.0, %v2589
        %v2591 = vpop.f32.mrb[0].mxu0
        %v2592 = vpop.f32.mrb[0].mxu0
        %v2593 = vadd.f32 0.0, %v2592
        %v2594 = vpop.f32.mrb[0].mxu0
        %2595 = vmatprep.mubr.bf16.mxu0 0
        %2596 = vmatmul.mubr.bf16.gmra.mrb[0].mxu0 %v1167
        %v2597 = vpop.f32.mrb[0].mxu0
        %v2598 = vadd.f32 0.0, %v2597
        %v2599 = vpop.f32.mrb[0].mxu0
        %v2600 = vpop.f32.mrb[0].mxu0
        %v2601 = vadd.f32 0.0, %v2600
        %v2602 = vpop.f32.mrb[0].mxu0
        %2603 = vmatprep.mubr.bf16.mxu0 0
        %2604 = vmatmul.mubr.bf16.gmra.mrb[0].mxu0 %v1170
        %v2605 = vpop.f32.mrb[0].mxu0
        %v2606 = vadd.f32 0.0, %v2605
        %v2607 = vpop.f32.mrb[0].mxu0
        %v2608 = vpop.f32.mrb[0].mxu0
        %v2609 = vadd.f32 0.0, %v2608
        %v2610 = vpop.f32.mrb[0].mxu0
        %2611 = vmatprep.mubr.bf16.mxu0 0
        %2612 = vmatmul.mubr.bf16.gmra.mrb[0].mxu0 %v1173
        %v2613 = vpop.f32.mrb[0].mxu0
        %v2614 = vadd.f32 0.0, %v2613
        %v2615 = vpop.f32.mrb[0].mxu0
        %v2616 = vpop.f32.mrb[0].mxu0
        %v2617 = vadd.f32 0.0, %v2616
        %v2618 = vpop.f32.mrb[0].mxu0
        %2619 = vmatprep.mubr.bf16.mxu0 0
        %2620 = vmatmul.mubr.bf16.gmra.mrb[0].mxu0 %v1176
        %v2621 = vpop.f32.mrb[0].mxu0
        %v2622 = vadd.f32 0.0, %v2621
        %v2623 = vpop.f32.mrb[0].mxu0
        %v2624 = vpop.f32.mrb[0].mxu0
        %v2625 = vadd.f32 0.0, %v2624
        %v2626 = vpop.f32.mrb[0].mxu0
        %2627 = vdwg.mxu0
        %v2628 = vrot.slane %v2502, 7
        %v2629 = vrot.slane %v2505, 7
        %v2630 = vrot.slane %v2510, 7
        %v2631 = vrot.slane %v2513, 7
        %v2632 = vrot.slane %v2518, 7
        %v2633 = vrot.slane %v2521, 7
        %v2634 = vrot.slane %v2526, 7
        %v2635 = vrot.slane %v2529, 7
        %v2636 = vrot.slane %v2534, 7
        %v2637 = vrot.slane %v2537, 7
        %v2638 = vrot.slane %v2542, 7
        %v2639 = vrot.slane %v2545, 7
        %v2640 = vrot.slane %v2550, 7
        %v2641 = vrot.slane %v2553, 7
        %v2642 = vrot.slane %v2558, 7
        %v2643 = vrot.slane %v2561, 7
        %v2644 = vrot.slane %v2566, 7
        %v2645 = vrot.slane %v2569, 7
        %v2646 = vrot.slane %v2574, 7
        %v2647 = vrot.slane %v2577, 7
        %v2648 = vrot.slane %v2582, 7
        %v2649 = vrot.slane %v2585, 7
        %v2650 = vrot.slane %v2590, 7
        %v2651 = vrot.slane %v2593, 7
        %v2652 = vrot.slane %v2598, 7
        %v2653 = vrot.slane %v2601, 7
        %v2654 = vrot.slane %v2606, 7
        %v2655 = vrot.slane %v2609, 7
        %v2656 = vrot.slane %v2614, 7
        %v2657 = vrot.slane %v2617, 7
        %v2658 = vrot.slane %v2622, 7
        %v2659 = vrot.slane %v2625, 7
        %v2660 = vsel %vm1564, %v2658, %v2659
        %v2661 = vsel %vm1564, %v2657, %v2658
        %v2662 = vsel %vm1564, %v2656, %v2657
        %v2663 = vsel %vm1564, %v2655, %v2656
        %v2664 = vsel %vm1564, %v2654, %v2655
        %v2665 = vsel %vm1564, %v2653, %v2654
        %v2666 = vsel %vm1564, %v2652, %v2653
        %v2667 = vsel %vm1564, %v2651, %v2652
        %v2668 = vsel %vm1564, %v2650, %v2651
        %v2669 = vsel %vm1564, %v2649, %v2650
        %v2670 = vsel %vm1564, %v2648, %v2649
        %v2671 = vsel %vm1564, %v2647, %v2648
        %v2672 = vsel %vm1564, %v2646, %v2647
        %v2673 = vsel %vm1564, %v2645, %v2646
        %v2674 = vsel %vm1564, %v2644, %v2645
        %v2675 = vsel %vm1564, %v2643, %v2644
        %v2676 = vsel %vm1564, %v2642, %v2643
        %v2677 = vsel %vm1564, %v2641, %v2642
        %v2678 = vsel %vm1564, %v2640, %v2641
        %v2679 = vsel %vm1564, %v2639, %v2640
        %v2680 = vsel %vm1564, %v2638, %v2639
        %v2681 = vsel %vm1564, %v2637, %v2638
        %v2682 = vsel %vm1564, %v2636, %v2637
        %v2683 = vsel %vm1564, %v2635, %v2636
        %v2684 = vsel %vm1564, %v2634, %v2635
        %v2685 = vsel %vm1564, %v2633, %v2634
        %v2686 = vsel %vm1564, %v2632, %v2633
        %v2687 = vsel %vm1564, %v2631, %v2632
        %v2688 = vsel %vm1564, %v2630, %v2631
        %v2689 = vsel %vm1564, %v2629, %v2630
        %v2690 = vsel %vm1564, %v2628, %v2629
        %v2691 = vsel %vm1564, %v2659, %v2628
        %v2692 = vsel %vm594, 1, 0
        %v2693 = vsel %vm595, 1, 0
        %v2694 = vsel %vm596, 1, 0
        %v2695 = vsel %vm597, 1, 0
        %v2696 = vsel %vm598, 1, 0
        %v2697 = vsel %vm599, 1, 0
        %v2698 = vsel %vm600, 1, 0
        %v2699 = vsel %vm601, 1, 0
        %v2700 = vsel %vm602, 1, 0
        %v2701 = vsel %vm603, 1, 0
        %v2702 = vsel %vm604, 1, 0
        %v2703 = vsel %vm605, 1, 0
        %v2704 = vsel %vm606, 1, 0
        %v2705 = vsel %vm607, 1, 0
        %v2706 = vsel %vm608, 1, 0
        %v2707 = vsel %vm609, 1, 0
        %v2708 = vsel %vm610, 1, 0
        %v2709 = vsel %vm611, 1, 0
        %v2710 = vsel %vm612, 1, 0
        %v2711 = vsel %vm613, 1, 0
        %v2712 = vsel %vm614, 1, 0
        %v2713 = vsel %vm615, 1, 0
        %v2714 = vsel %vm616, 1, 0
        %v2715 = vsel %vm617, 1, 0
        %v2716 = vsel %vm618, 1, 0
        %v2717 = vsel %vm619, 1, 0
        %v2718 = vsel %vm620, 1, 0
        %v2719 = vsel %vm621, 1, 0
        %v2720 = vsel %vm622, 1, 0
        %v2721 = vsel %vm623, 1, 0
        %v2722 = vsel %vm624, 1, 0
        %v2723 = vsel %vm625, 1, 0
        %vm2724 = vcmp.eq.s32.totalorder %v2692, 1
        %vm2725 = vcmp.eq.s32.totalorder %v2693, 1
        %vm2726 = vcmp.eq.s32.totalorder %v2694, 1
        %vm2727 = vcmp.eq.s32.totalorder %v2695, 1
        %vm2728 = vcmp.eq.s32.totalorder %v2696, 1
        %vm2729 = vcmp.eq.s32.totalorder %v2697, 1
        %vm2730 = vcmp.eq.s32.totalorder %v2698, 1
        %vm2731 = vcmp.eq.s32.totalorder %v2699, 1
        %vm2732 = vcmp.eq.s32.totalorder %v2700, 1
        %vm2733 = vcmp.eq.s32.totalorder %v2701, 1
        %vm2734 = vcmp.eq.s32.totalorder %v2702, 1
        %vm2735 = vcmp.eq.s32.totalorder %v2703, 1
        %vm2736 = vcmp.eq.s32.totalorder %v2704, 1
        %vm2737 = vcmp.eq.s32.totalorder %v2705, 1
        %vm2738 = vcmp.eq.s32.totalorder %v2706, 1
        %vm2739 = vcmp.eq.s32.totalorder %v2707, 1
        %vm2740 = vcmp.eq.s32.totalorder %v2708, 1
        %vm2741 = vcmp.eq.s32.totalorder %v2709, 1
        %vm2742 = vcmp.eq.s32.totalorder %v2710, 1
        %vm2743 = vcmp.eq.s32.totalorder %v2711, 1
        %vm2744 = vcmp.eq.s32.totalorder %v2712, 1
        %vm2745 = vcmp.eq.s32.totalorder %v2713, 1
        %vm2746 = vcmp.eq.s32.totalorder %v2714, 1
        %vm2747 = vcmp.eq.s32.totalorder %v2715, 1
        %vm2748 = vcmp.eq.s32.totalorder %v2716, 1
        %vm2749 = vcmp.eq.s32.totalorder %v2717, 1
        %vm2750 = vcmp.eq.s32.totalorder %v2718, 1
        %vm2751 = vcmp.eq.s32.totalorder %v2719, 1
        %vm2752 = vcmp.eq.s32.totalorder %v2720, 1
        %vm2753 = vcmp.eq.s32.totalorder %v2721, 1
        %vm2754 = vcmp.eq.s32.totalorder %v2722, 1
        %vm2755 = vcmp.eq.s32.totalorder %v2723, 1
        %v2756 = vsel %vm2724, %v2691, 0.0
        %v2757 = vsel %vm2725, %v2690, 0.0
        %v2758 = vsel %vm2726, %v2689, 0.0
        %v2759 = vsel %vm2727, %v2688, 0.0
        %v2760 = vsel %vm2728, %v2687, 0.0
        %v2761 = vsel %vm2729, %v2686, 0.0
        %v2762 = vsel %vm2730, %v2685, 0.0
        %v2763 = vsel %vm2731, %v2684, 0.0
        %v2764 = vsel %vm2732, %v2683, 0.0
        %v2765 = vsel %vm2733, %v2682, 0.0
        %v2766 = vsel %vm2734, %v2681, 0.0
        %v2767 = vsel %vm2735, %v2680, 0.0
        %v2768 = vsel %vm2736, %v2679, 0.0
        %v2769 = vsel %vm2737, %v2678, 0.0
        %v2770 = vsel %vm2738, %v2677, 0.0
        %v2771 = vsel %vm2739, %v2676, 0.0
        %v2772 = vsel %vm2740, %v2675, 0.0
        %v2773 = vsel %vm2741, %v2674, 0.0
        %v2774 = vsel %vm2742, %v2673, 0.0
        %v2775 = vsel %vm2743, %v2672, 0.0
        %v2776 = vsel %vm2744, %v2671, 0.0
        %v2777 = vsel %vm2745, %v2670, 0.0
        %v2778 = vsel %vm2746, %v2669, 0.0
        %v2779 = vsel %vm2747, %v2668, 0.0
        %v2780 = vsel %vm2748, %v2667, 0.0
        %v2781 = vsel %vm2749, %v2666, 0.0
        %v2782 = vsel %vm2750, %v2665, 0.0
        %v2783 = vsel %vm2751, %v2664, 0.0
        %v2784 = vsel %vm2752, %v2663, 0.0
        %v2785 = vsel %vm2753, %v2662, 0.0
        %v2786 = vsel %vm2754, %v2661, 0.0
        %v2787 = vsel %vm2755, %v2660, 0.0
        %v2788 = vadd.f32 %v2402, %v2756
        %v2789 = vadd.f32 %v2403, %v2757
        %v2790 = vadd.f32 %v2404, %v2758
        %v2791 = vadd.f32 %v2405, %v2759
        %v2792 = vadd.f32 %v2406, %v2760
        %v2793 = vadd.f32 %v2407, %v2761
        %v2794 = vadd.f32 %v2408, %v2762
        %v2795 = vadd.f32 %v2409, %v2763
        %v2796 = vadd.f32 %v2410, %v2764
        %v2797 = vadd.f32 %v2411, %v2765
        %v2798 = vadd.f32 %v2412, %v2766
        %v2799 = vadd.f32 %v2413, %v2767
        %v2800 = vadd.f32 %v2414, %v2768
        %v2801 = vadd.f32 %v2415, %v2769
        %v2802 = vadd.f32 %v2416, %v2770
        %v2803 = vadd.f32 %v2417, %v2771
        %v2804 = vadd.f32 %v2418, %v2772
        %v2805 = vadd.f32 %v2419, %v2773
        %v2806 = vadd.f32 %v2420, %v2774
        %v2807 = vadd.f32 %v2421, %v2775
        %v2808 = vadd.f32 %v2422, %v2776
        %v2809 = vadd.f32 %v2423, %v2777
        %v2810 = vadd.f32 %v2424, %v2778
        %v2811 = vadd.f32 %v2425, %v2779
        %v2812 = vadd.f32 %v2426, %v2780
        %v2813 = vadd.f32 %v2427, %v2781
        %v2814 = vadd.f32 %v2428, %v2782
        %v2815 = vadd.f32 %v2429, %v2783
        %v2816 = vadd.f32 %v2430, %v2784
        %v2817 = vadd.f32 %v2431, %v2785
        %v2818 = vadd.f32 %v2432, %v2786
        %v2819 = vadd.f32 %v2433, %v2787
        %s2820 = scalar_lea.vmem %s3, 160
        %v2821 = vld [vmem:[%s2820] sm:$0xf]
        %v2822 = vld [vmem:[%s2820 + $0x4] sm:$0xf]
        %v2823 = vld [vmem:[%s2820 + $0x8] sm:$0xf]
        %v2824 = vld [vmem:[%s2820 + $0xc] sm:$0xf]
        %v2825 = vld [vmem:[%s2820 + $0x10] sm:$0xf]
        %v2826 = vld [vmem:[%s2820 + $0x14] sm:$0xf]
        %v2827 = vld [vmem:[%s2820 + $0x18] sm:$0xf]
        %v2828 = vld [vmem:[%s2820 + $0x1c] sm:$0xf]
        %v2837 = vunpack.c.l.b16 %v2821
        %v2838 = vunpack.c.l.b16 %v2822
        %v2839 = vunpack.c.l.b16 %v2823
        %v2840 = vunpack.c.l.b16 %v2824
        %v2841 = vunpack.c.l.b16 %v2825
        %v2842 = vunpack.c.l.b16 %v2826
        %v2843 = vunpack.c.l.b16 %v2827
        %v2844 = vunpack.c.l.b16 %v2828
        %v2845 = vpack.c.b16 %v2838, %v2837
        %v2846 = vpack.c.b16 %v2840, %v2839
        %v2847 = vpack.c.b16 %v2842, %v2841
        %v2848 = vpack.c.b16 %v2844, %v2843
        %2853 = vmatprep.subr.bf16.mxu0 0
        %2854 = vmatpush1.bf16.msra.mxu0 %v2845
        %2855 = vmatprep.subr.bf16.mxu0 0
        %2856 = vmatpush1.bf16.msra.mxu0 %v2846
        %2857 = vmatprep.subr.bf16.mxu0 0
        %2858 = vmatpush1.bf16.msra.mxu0 %v2847
        %2859 = vmatprep.subr.bf16.mxu0 0
        %2860 = vmatpush1.bf16.msra.mxu0 %v2848
        %2861 = vmatprep.subr.bf16.mxu0 0
        %2862 = vmatpush1.bf16.msra.mxu0 0
        %2863 = vmatprep.subr.bf16.mxu0 0
        %2864 = vmatpush1.bf16.msra.mxu0 0
        %2865 = vmatprep.subr.bf16.mxu0 0
        %2866 = vmatpush1.bf16.msra.mxu0 0
        %2867 = vmatprep.subr.bf16.mxu0 0
        %2868 = vmatpush1.bf16.msra.mxu0 0
        %2869 = vmatprep.subr.bf16.mxu0 0
        %2870 = vmatpush1.bf16.msra.mxu0 0
        %2871 = vmatprep.subr.bf16.mxu0 0
        %2872 = vmatpush1.bf16.msra.mxu0 0
        %2873 = vmatprep.subr.bf16.mxu0 0
        %2874 = vmatpush1.bf16.msra.mxu0 0
        %2875 = vmatprep.subr.bf16.mxu0 0
        %2876 = vmatpush1.bf16.msra.mxu0 0
        %2877 = vmatprep.subr.bf16.mxu0 0
        %2878 = vmatpush1.bf16.msra.mxu0 0
        %2879 = vmatprep.subr.bf16.mxu0 0
        %2880 = vmatpush1.bf16.msra.mxu0 0
        %2881 = vmatprep.subr.bf16.mxu0 0
        %2882 = vmatpush1.bf16.msra.mxu0 0
        %2883 = vmatprep.subr.bf16.mxu0 0
        %2884 = vmatpush1.bf16.msra.mxu0 0
        %2885 = vmatprep.mubr.bf16.mxu0 0
        %2886 = vmatmul.mubr.bf16.gmra.mrb[0].mxu0 %v1131
        %v2887 = vpop.f32.mrb[0].mxu0
        %v2888 = vadd.f32 0.0, %v2887
        %v2889 = vpop.f32.mrb[0].mxu0
        %v2890 = vpop.f32.mrb[0].mxu0
        %v2891 = vadd.f32 0.0, %v2890
        %v2892 = vpop.f32.mrb[0].mxu0
        %2893 = vmatprep.mubr.bf16.mxu0 0
        %2894 = vmatmul.mubr.bf16.gmra.mrb[0].mxu0 %v1134
        %v2895 = vpop.f32.mrb[0].mxu0
        %v2896 = vadd.f32 0.0, %v2895
        %v2897 = vpop.f32.mrb[0].mxu0
        %v2898 = vpop.f32.mrb[0].mxu0
        %v2899 = vadd.f32 0.0, %v2898
        %v2900 = vpop.f32.mrb[0].mxu0
        %2901 = vmatprep.mubr.bf16.mxu0 0
        %2902 = vmatmul.mubr.bf16.gmra.mrb[0].mxu0 %v1137
        %v2903 = vpop.f32.mrb[0].mxu0
        %v2904 = vadd.f32 0.0, %v2903
        %v2905 = vpop.f32.mrb[0].mxu0
        %v2906 = vpop.f32.mrb[0].mxu0
        %v2907 = vadd.f32 0.0, %v2906
        %v2908 = vpop.f32.mrb[0].mxu0
        %2909 = vmatprep.mubr.bf16.mxu0 0
        %2910 = vmatmul.mubr.bf16.gmra.mrb[0].mxu0 %v1140
        %v2911 = vpop.f32.mrb[0].mxu0
        %v2912 = vadd.f32 0.0, %v2911
        %v2913 = vpop.f32.mrb[0].mxu0
        %v2914 = vpop.f32.mrb[0].mxu0
        %v2915 = vadd.f32 0.0, %v2914
        %v2916 = vpop.f32.mrb[0].mxu0
        %2917 = vmatprep.mubr.bf16.mxu0 0
        %2918 = vmatmul.mubr.bf16.gmra.mrb[0].mxu0 %v1143
        %v2919 = vpop.f32.mrb[0].mxu0
        %v2920 = vadd.f32 0.0, %v2919
        %v2921 = vpop.f32.mrb[0].mxu0
        %v2922 = vpop.f32.mrb[0].mxu0
        %v2923 = vadd.f32 0.0, %v2922
        %v2924 = vpop.f32.mrb[0].mxu0
        %2925 = vmatprep.mubr.bf16.mxu0 0
        %2926 = vmatmul.mubr.bf16.gmra.mrb[0].mxu0 %v1146
        %v2927 = vpop.f32.mrb[0].mxu0
        %v2928 = vadd.f32 0.0, %v2927
        %v2929 = vpop.f32.mrb[0].mxu0
        %v2930 = vpop.f32.mrb[0].mxu0
        %v2931 = vadd.f32 0.0, %v2930
        %v2932 = vpop.f32.mrb[0].mxu0
        %2933 = vmatprep.mubr.bf16.mxu0 0
        %2934 = vmatmul.mubr.bf16.gmra.mrb[0].mxu0 %v1149
        %v2935 = vpop.f32.mrb[0].mxu0
        %v2936 = vadd.f32 0.0, %v2935
        %v2937 = vpop.f32.mrb[0].mxu0
        %v2938 = vpop.f32.mrb[0].mxu0
        %v2939 = vadd.f32 0.0, %v2938
        %v2940 = vpop.f32.mrb[0].mxu0
        %2941 = vmatprep.mubr.bf16.mxu0 0
        %2942 = vmatmul.mubr.bf16.gmra.mrb[0].mxu0 %v1152
        %v2943 = vpop.f32.mrb[0].mxu0
        %v2944 = vadd.f32 0.0, %v2943
        %v2945 = vpop.f32.mrb[0].mxu0
        %v2946 = vpop.f32.mrb[0].mxu0
        %v2947 = vadd.f32 0.0, %v2946
        %v2948 = vpop.f32.mrb[0].mxu0
        %2949 = vmatprep.mubr.bf16.mxu0 0
        %2950 = vmatmul.mubr.bf16.gmra.mrb[0].mxu0 %v1155
        %v2951 = vpop.f32.mrb[0].mxu0
        %v2952 = vadd.f32 0.0, %v2951
        %v2953 = vpop.f32.mrb[0].mxu0
        %v2954 = vpop.f32.mrb[0].mxu0
        %v2955 = vadd.f32 0.0, %v2954
        %v2956 = vpop.f32.mrb[0].mxu0
        %2957 = vmatprep.mubr.bf16.mxu0 0
        %2958 = vmatmul.mubr.bf16.gmra.mrb[0].mxu0 %v1158
        %v2959 = vpop.f32.mrb[0].mxu0
        %v2960 = vadd.f32 0.0, %v2959
        %v2961 = vpop.f32.mrb[0].mxu0
        %v2962 = vpop.f32.mrb[0].mxu0
        %v2963 = vadd.f32 0.0, %v2962
        %v2964 = vpop.f32.mrb[0].mxu0
        %2965 = vmatprep.mubr.bf16.mxu0 0
        %2966 = vmatmul.mubr.bf16.gmra.mrb[0].mxu0 %v1161
        %v2967 = vpop.f32.mrb[0].mxu0
        %v2968 = vadd.f32 0.0, %v2967
        %v2969 = vpop.f32.mrb[0].mxu0
        %v2970 = vpop.f32.mrb[0].mxu0
        %v2971 = vadd.f32 0.0, %v2970
        %v2972 = vpop.f32.mrb[0].mxu0
        %2973 = vmatprep.mubr.bf16.mxu0 0
        %2974 = vmatmul.mubr.bf16.gmra.mrb[0].mxu0 %v1164
        %v2975 = vpop.f32.mrb[0].mxu0
        %v2976 = vadd.f32 0.0, %v2975
        %v2977 = vpop.f32.mrb[0].mxu0
        %v2978 = vpop.f32.mrb[0].mxu0
        %v2979 = vadd.f32 0.0, %v2978
        %v2980 = vpop.f32.mrb[0].mxu0
        %2981 = vmatprep.mubr.bf16.mxu0 0
        %2982 = vmatmul.mubr.bf16.gmra.mrb[0].mxu0 %v1167
        %v2983 = vpop.f32.mrb[0].mxu0
        %v2984 = vadd.f32 0.0, %v2983
        %v2985 = vpop.f32.mrb[0].mxu0
        %v2986 = vpop.f32.mrb[0].mxu0
        %v2987 = vadd.f32 0.0, %v2986
        %v2988 = vpop.f32.mrb[0].mxu0
        %2989 = vmatprep.mubr.bf16.mxu0 0
        %2990 = vmatmul.mubr.bf16.gmra.mrb[0].mxu0 %v1170
        %v2991 = vpop.f32.mrb[0].mxu0
        %v2992 = vadd.f32 0.0, %v2991
        %v2993 = vpop.f32.mrb[0].mxu0
        %v2994 = vpop.f32.mrb[0].mxu0
        %v2995 = vadd.f32 0.0, %v2994
        %v2996 = vpop.f32.mrb[0].mxu0
        %2997 = vmatprep.mubr.bf16.mxu0 0
        %2998 = vmatmul.mubr.bf16.gmra.mrb[0].mxu0 %v1173
        %v2999 = vpop.f32.mrb[0].mxu0
        %v3000 = vadd.f32 0.0, %v2999
        %v3001 = vpop.f32.mrb[0].mxu0
        %v3002 = vpop.f32.mrb[0].mxu0
        %v3003 = vadd.f32 0.0, %v3002
        %v3004 = vpop.f32.mrb[0].mxu0
        %3005 = vmatprep.mubr.bf16.mxu0 0
        %3006 = vmatmul.mubr.bf16.gmra.mrb[0].mxu0 %v1176
        %v3007 = vpop.f32.mrb[0].mxu0
        %v3008 = vadd.f32 0.0, %v3007
        %v3009 = vpop.f32.mrb[0].mxu0
        %v3010 = vpop.f32.mrb[0].mxu0
        %v3011 = vadd.f32 0.0, %v3010
        %v3012 = vpop.f32.mrb[0].mxu0
        %3013 = vdwg.mxu0
        %v3014 = vrot.slane %v2888, 1
        %v3015 = vrot.slane %v2891, 1
        %v3016 = vrot.slane %v2896, 1
        %v3017 = vrot.slane %v2899, 1
        %v3018 = vrot.slane %v2904, 1
        %v3019 = vrot.slane %v2907, 1
        %v3020 = vrot.slane %v2912, 1
        %v3021 = vrot.slane %v2915, 1
        %v3022 = vrot.slane %v2920, 1
        %v3023 = vrot.slane %v2923, 1
        %v3024 = vrot.slane %v2928, 1
        %v3025 = vrot.slane %v2931, 1
        %v3026 = vrot.slane %v2936, 1
        %v3027 = vrot.slane %v2939, 1
        %v3028 = vrot.slane %v2944, 1
        %v3029 = vrot.slane %v2947, 1
        %v3030 = vrot.slane %v2952, 1
        %v3031 = vrot.slane %v2955, 1
        %v3032 = vrot.slane %v2960, 1
        %v3033 = vrot.slane %v2963, 1
        %v3034 = vrot.slane %v2968, 1
        %v3035 = vrot.slane %v2971, 1
        %v3036 = vrot.slane %v2976, 1
        %v3037 = vrot.slane %v2979, 1
        %v3038 = vrot.slane %v2984, 1
        %v3039 = vrot.slane %v2987, 1
        %v3040 = vrot.slane %v2992, 1
        %v3041 = vrot.slane %v2995, 1
        %v3042 = vrot.slane %v3000, 1
        %v3043 = vrot.slane %v3003, 1
        %v3044 = vrot.slane %v3008, 1
        %v3045 = vrot.slane %v3011, 1
        %v3046 = vsel %vm2273, %v3044, %v3045
        %v3047 = vsel %vm2273, %v3043, %v3044
        %v3048 = vsel %vm2273, %v3042, %v3043
        %v3049 = vsel %vm2273, %v3041, %v3042
        %v3050 = vsel %vm2273, %v3040, %v3041
        %v3051 = vsel %vm2273, %v3039, %v3040
        %v3052 = vsel %vm2273, %v3038, %v3039
        %v3053 = vsel %vm2273, %v3037, %v3038
        %v3054 = vsel %vm2273, %v3036, %v3037
        %v3055 = vsel %vm2273, %v3035, %v3036
        %v3056 = vsel %vm2273, %v3034, %v3035
        %v3057 = vsel %vm2273, %v3033, %v3034
        %v3058 = vsel %vm2273, %v3032, %v3033
        %v3059 = vsel %vm2273, %v3031, %v3032
        %v3060 = vsel %vm2273, %v3030, %v3031
        %v3061 = vsel %vm2273, %v3029, %v3030
        %v3062 = vsel %vm2273, %v3028, %v3029
        %v3063 = vsel %vm2273, %v3027, %v3028
        %v3064 = vsel %vm2273, %v3026, %v3027
        %v3065 = vsel %vm2273, %v3025, %v3026
        %v3066 = vsel %vm2273, %v3024, %v3025
        %v3067 = vsel %vm2273, %v3023, %v3024
        %v3068 = vsel %vm2273, %v3022, %v3023
        %v3069 = vsel %vm2273, %v3021, %v3022
        %v3070 = vsel %vm2273, %v3020, %v3021
        %v3071 = vsel %vm2273, %v3019, %v3020
        %v3072 = vsel %vm2273, %v3018, %v3019
        %v3073 = vsel %vm2273, %v3017, %v3018
        %v3074 = vsel %vm2273, %v3016, %v3017
        %v3075 = vsel %vm2273, %v3015, %v3016
        %v3076 = vsel %vm2273, %v3014, %v3015
        %v3077 = vsel %vm2273, %v3045, %v3014
        %v3078 = vsel %vm562, 1, 0
        %v3079 = vsel %vm563, 1, 0
        %v3080 = vsel %vm564, 1, 0
        %v3081 = vsel %vm565, 1, 0
        %v3082 = vsel %vm566, 1, 0
        %v3083 = vsel %vm567, 1, 0
        %v3084 = vsel %vm568, 1, 0
        %v3085 = vsel %vm569, 1, 0
        %v3086 = vsel %vm570, 1, 0
        %v3087 = vsel %vm571, 1, 0
        %v3088 = vsel %vm572, 1, 0
        %v3089 = vsel %vm573, 1, 0
        %v3090 = vsel %vm574, 1, 0
        %v3091 = vsel %vm575, 1, 0
        %v3092 = vsel %vm576, 1, 0
        %v3093 = vsel %vm577, 1, 0
        %v3094 = vsel %vm578, 1, 0
        %v3095 = vsel %vm579, 1, 0
        %v3096 = vsel %vm580, 1, 0
        %v3097 = vsel %vm581, 1, 0
        %v3098 = vsel %vm582, 1, 0
        %v3099 = vsel %vm583, 1, 0
        %v3100 = vsel %vm584, 1, 0
        %v3101 = vsel %vm585, 1, 0
        %v3102 = vsel %vm586, 1, 0
        %v3103 = vsel %vm587, 1, 0
        %v3104 = vsel %vm588, 1, 0
        %v3105 = vsel %vm589, 1, 0
        %v3106 = vsel %vm590, 1, 0
        %v3107 = vsel %vm591, 1, 0
        %v3108 = vsel %vm592, 1, 0
        %v3109 = vsel %vm593, 1, 0
        %vm3110 = vcmp.eq.s32.totalorder %v3078, 1
        %vm3111 = vcmp.eq.s32.totalorder %v3079, 1
        %vm3112 = vcmp.eq.s32.totalorder %v3080, 1
        %vm3113 = vcmp.eq.s32.totalorder %v3081, 1
        %vm3114 = vcmp.eq.s32.totalorder %v3082, 1
        %vm3115 = vcmp.eq.s32.totalorder %v3083, 1
        %vm3116 = vcmp.eq.s32.totalorder %v3084, 1
        %vm3117 = vcmp.eq.s32.totalorder %v3085, 1
        %vm3118 = vcmp.eq.s32.totalorder %v3086, 1
        %vm3119 = vcmp.eq.s32.totalorder %v3087, 1
        %vm3120 = vcmp.eq.s32.totalorder %v3088, 1
        %vm3121 = vcmp.eq.s32.totalorder %v3089, 1
        %vm3122 = vcmp.eq.s32.totalorder %v3090, 1
        %vm3123 = vcmp.eq.s32.totalorder %v3091, 1
        %vm3124 = vcmp.eq.s32.totalorder %v3092, 1
        %vm3125 = vcmp.eq.s32.totalorder %v3093, 1
        %vm3126 = vcmp.eq.s32.totalorder %v3094, 1
        %vm3127 = vcmp.eq.s32.totalorder %v3095, 1
        %vm3128 = vcmp.eq.s32.totalorder %v3096, 1
        %vm3129 = vcmp.eq.s32.totalorder %v3097, 1
        %vm3130 = vcmp.eq.s32.totalorder %v3098, 1
        %vm3131 = vcmp.eq.s32.totalorder %v3099, 1
        %vm3132 = vcmp.eq.s32.totalorder %v3100, 1
        %vm3133 = vcmp.eq.s32.totalorder %v3101, 1
        %vm3134 = vcmp.eq.s32.totalorder %v3102, 1
        %vm3135 = vcmp.eq.s32.totalorder %v3103, 1
        %vm3136 = vcmp.eq.s32.totalorder %v3104, 1
        %vm3137 = vcmp.eq.s32.totalorder %v3105, 1
        %vm3138 = vcmp.eq.s32.totalorder %v3106, 1
        %vm3139 = vcmp.eq.s32.totalorder %v3107, 1
        %vm3140 = vcmp.eq.s32.totalorder %v3108, 1
        %vm3141 = vcmp.eq.s32.totalorder %v3109, 1
        %v3142 = vsel %vm3110, %v3076, 0.0
        %v3143 = vsel %vm3111, %v3075, 0.0
        %v3144 = vsel %vm3112, %v3074, 0.0
        %v3145 = vsel %vm3113, %v3073, 0.0
        %v3146 = vsel %vm3114, %v3072, 0.0
        %v3147 = vsel %vm3115, %v3071, 0.0
        %v3148 = vsel %vm3116, %v3070, 0.0
        %v3149 = vsel %vm3117, %v3069, 0.0
        %v3150 = vsel %vm3118, %v3068, 0.0
        %v3151 = vsel %vm3119, %v3067, 0.0
        %v3152 = vsel %vm3120, %v3066, 0.0
        %v3153 = vsel %vm3121, %v3065, 0.0
        %v3154 = vsel %vm3122, %v3064, 0.0
        %v3155 = vsel %vm3123, %v3063, 0.0
        %v3156 = vsel %vm3124, %v3062, 0.0
        %v3157 = vsel %vm3125, %v3061, 0.0
        %v3158 = vsel %vm3126, %v3060, 0.0
        %v3159 = vsel %vm3127, %v3059, 0.0
        %v3160 = vsel %vm3128, %v3058, 0.0
        %v3161 = vsel %vm3129, %v3057, 0.0
        %v3162 = vsel %vm3130, %v3056, 0.0
        %v3163 = vsel %vm3131, %v3055, 0.0
        %v3164 = vsel %vm3132, %v3054, 0.0
        %v3165 = vsel %vm3133, %v3053, 0.0
        %v3166 = vsel %vm3134, %v3052, 0.0
        %v3167 = vsel %vm3135, %v3051, 0.0
        %v3168 = vsel %vm3136, %v3050, 0.0
        %v3169 = vsel %vm3137, %v3049, 0.0
        %v3170 = vsel %vm3138, %v3048, 0.0
        %v3171 = vsel %vm3139, %v3047, 0.0
        %v3172 = vsel %vm3140, %v3046, 0.0
        %v3173 = vsel %vm3141, %v3077, 0.0
        %v3174 = vadd.f32 %v2788, %v3142
        %v3175 = vadd.f32 %v2789, %v3143
        %v3176 = vadd.f32 %v2790, %v3144
        %v3177 = vadd.f32 %v2791, %v3145
        %v3178 = vadd.f32 %v2792, %v3146
        %v3179 = vadd.f32 %v2793, %v3147
        %v3180 = vadd.f32 %v2794, %v3148
        %v3181 = vadd.f32 %v2795, %v3149
        %v3182 = vadd.f32 %v2796, %v3150
        %v3183 = vadd.f32 %v2797, %v3151
        %v3184 = vadd.f32 %v2798, %v3152
        %v3185 = vadd.f32 %v2799, %v3153
        %v3186 = vadd.f32 %v2800, %v3154
        %v3187 = vadd.f32 %v2801, %v3155
        %v3188 = vadd.f32 %v2802, %v3156
        %v3189 = vadd.f32 %v2803, %v3157
        %v3190 = vadd.f32 %v2804, %v3158
        %v3191 = vadd.f32 %v2805, %v3159
        %v3192 = vadd.f32 %v2806, %v3160
        %v3193 = vadd.f32 %v2807, %v3161
        %v3194 = vadd.f32 %v2808, %v3162
        %v3195 = vadd.f32 %v2809, %v3163
        %v3196 = vadd.f32 %v2810, %v3164
        %v3197 = vadd.f32 %v2811, %v3165
        %v3198 = vadd.f32 %v2812, %v3166
        %v3199 = vadd.f32 %v2813, %v3167
        %v3200 = vadd.f32 %v2814, %v3168
        %v3201 = vadd.f32 %v2815, %v3169
        %v3202 = vadd.f32 %v2816, %v3170
        %v3203 = vadd.f32 %v2817, %v3171
        %v3204 = vadd.f32 %v2818, %v3172
        %v3205 = vadd.f32 %v2819, %v3173
        %s3206 = scalar_lea.vmem %s3, 192
        %v3207 = vld [vmem:[%s3206] sm:$0xf]
        %v3208 = vld [vmem:[%s3206 + $0x4] sm:$0xf]
        %v3209 = vld [vmem:[%s3206 + $0x8] sm:$0xf]
        %v3210 = vld [vmem:[%s3206 + $0xc] sm:$0xf]
        %v3211 = vld [vmem:[%s3206 + $0x10] sm:$0xf]
        %v3212 = vld [vmem:[%s3206 + $0x14] sm:$0xf]
        %v3213 = vld [vmem:[%s3206 + $0x18] sm:$0xf]
        %v3214 = vld [vmem:[%s3206 + $0x1c] sm:$0xf]
        %v3223 = vunpack.c.l.b16 %v3207
        %v3224 = vunpack.c.l.b16 %v3208
        %v3225 = vunpack.c.l.b16 %v3209
        %v3226 = vunpack.c.l.b16 %v3210
        %v3227 = vunpack.c.l.b16 %v3211
        %v3228 = vunpack.c.l.b16 %v3212
        %v3229 = vunpack.c.l.b16 %v3213
        %v3230 = vunpack.c.l.b16 %v3214
        %v3231 = vpack.c.b16 %v3224, %v3223
        %v3232 = vpack.c.b16 %v3226, %v3225
        %v3233 = vpack.c.b16 %v3228, %v3227
        %v3234 = vpack.c.b16 %v3230, %v3229
        %3239 = vmatprep.subr.bf16.mxu0 0
        %3240 = vmatpush1.bf16.msra.mxu0 %v3231
        %3241 = vmatprep.subr.bf16.mxu0 0
        %3242 = vmatpush1.bf16.msra.mxu0 %v3232
        %3243 = vmatprep.subr.bf16.mxu0 0
        %3244 = vmatpush1.bf16.msra.mxu0 %v3233
        %3245 = vmatprep.subr.bf16.mxu0 0
        %3246 = vmatpush1.bf16.msra.mxu0 %v3234
        %3247 = vmatprep.subr.bf16.mxu0 0
        %3248 = vmatpush1.bf16.msra.mxu0 0
        %3249 = vmatprep.subr.bf16.mxu0 0
        %3250 = vmatpush1.bf16.msra.mxu0 0
        %3251 = vmatprep.subr.bf16.mxu0 0
        %3252 = vmatpush1.bf16.msra.mxu0 0
        %3253 = vmatprep.subr.bf16.mxu0 0
        %3254 = vmatpush1.bf16.msra.mxu0 0
        %3255 = vmatprep.subr.bf16.mxu0 0
        %3256 = vmatpush1.bf16.msra.mxu0 0
        %3257 = vmatprep.subr.bf16.mxu0 0
        %3258 = vmatpush1.bf16.msra.mxu0 0
        %3259 = vmatprep.subr.bf16.mxu0 0
        %3260 = vmatpush1.bf16.msra.mxu0 0
        %3261 = vmatprep.subr.bf16.mxu0 0
        %3262 = vmatpush1.bf16.msra.mxu0 0
        %3263 = vmatprep.subr.bf16.mxu0 0
        %3264 = vmatpush1.bf16.msra.mxu0 0
        %3265 = vmatprep.subr.bf16.mxu0 0
        %3266 = vmatpush1.bf16.msra.mxu0 0
        %3267 = vmatprep.subr.bf16.mxu0 0
        %3268 = vmatpush1.bf16.msra.mxu0 0
        %3269 = vmatprep.subr.bf16.mxu0 0
        %3270 = vmatpush1.bf16.msra.mxu0 0
        %3271 = vmatprep.mubr.bf16.mxu0 0
        %3272 = vmatmul.mubr.bf16.gmra.mrb[0].mxu0 %v1131
        %v3273 = vpop.f32.mrb[0].mxu0
        %v3274 = vadd.f32 0.0, %v3273
        %v3275 = vpop.f32.mrb[0].mxu0
        %v3276 = vpop.f32.mrb[0].mxu0
        %v3277 = vadd.f32 0.0, %v3276
        %v3278 = vpop.f32.mrb[0].mxu0
        %3279 = vmatprep.mubr.bf16.mxu0 0
        %3280 = vmatmul.mubr.bf16.gmra.mrb[0].mxu0 %v1134
        %v3281 = vpop.f32.mrb[0].mxu0
        %v3282 = vadd.f32 0.0, %v3281
        %v3283 = vpop.f32.mrb[0].mxu0
        %v3284 = vpop.f32.mrb[0].mxu0
        %v3285 = vadd.f32 0.0, %v3284
        %v3286 = vpop.f32.mrb[0].mxu0
        %3287 = vmatprep.mubr.bf16.mxu0 0
        %3288 = vmatmul.mubr.bf16.gmra.mrb[0].mxu0 %v1137
        %v3289 = vpop.f32.mrb[0].mxu0
        %v3290 = vadd.f32 0.0, %v3289
        %v3291 = vpop.f32.mrb[0].mxu0
        %v3292 = vpop.f32.mrb[0].mxu0
        %v3293 = vadd.f32 0.0, %v3292
        %v3294 = vpop.f32.mrb[0].mxu0
        %3295 = vmatprep.mubr.bf16.mxu0 0
        %3296 = vmatmul.mubr.bf16.gmra.mrb[0].mxu0 %v1140
        %v3297 = vpop.f32.mrb[0].mxu0
        %v3298 = vadd.f32 0.0, %v3297
        %v3299 = vpop.f32.mrb[0].mxu0
        %v3300 = vpop.f32.mrb[0].mxu0
        %v3301 = vadd.f32 0.0, %v3300
        %v3302 = vpop.f32.mrb[0].mxu0
        %3303 = vmatprep.mubr.bf16.mxu0 0
        %3304 = vmatmul.mubr.bf16.gmra.mrb[0].mxu0 %v1143
        %v3305 = vpop.f32.mrb[0].mxu0
        %v3306 = vadd.f32 0.0, %v3305
        %v3307 = vpop.f32.mrb[0].mxu0
        %v3308 = vpop.f32.mrb[0].mxu0
        %v3309 = vadd.f32 0.0, %v3308
        %v3310 = vpop.f32.mrb[0].mxu0
        %3311 = vmatprep.mubr.bf16.mxu0 0
        %3312 = vmatmul.mubr.bf16.gmra.mrb[0].mxu0 %v1146
        %v3313 = vpop.f32.mrb[0].mxu0
        %v3314 = vadd.f32 0.0, %v3313
        %v3315 = vpop.f32.mrb[0].mxu0
        %v3316 = vpop.f32.mrb[0].mxu0
        %v3317 = vadd.f32 0.0, %v3316
        %v3318 = vpop.f32.mrb[0].mxu0
        %3319 = vmatprep.mubr.bf16.mxu0 0
        %3320 = vmatmul.mubr.bf16.gmra.mrb[0].mxu0 %v1149
        %v3321 = vpop.f32.mrb[0].mxu0
        %v3322 = vadd.f32 0.0, %v3321
        %v3323 = vpop.f32.mrb[0].mxu0
        %v3324 = vpop.f32.mrb[0].mxu0
        %v3325 = vadd.f32 0.0, %v3324
        %v3326 = vpop.f32.mrb[0].mxu0
        %3327 = vmatprep.mubr.bf16.mxu0 0
        %3328 = vmatmul.mubr.bf16.gmra.mrb[0].mxu0 %v1152
        %v3329 = vpop.f32.mrb[0].mxu0
        %v3330 = vadd.f32 0.0, %v3329
        %v3331 = vpop.f32.mrb[0].mxu0
        %v3332 = vpop.f32.mrb[0].mxu0
        %v3333 = vadd.f32 0.0, %v3332
        %v3334 = vpop.f32.mrb[0].mxu0
        %3335 = vmatprep.mubr.bf16.mxu0 0
        %3336 = vmatmul.mubr.bf16.gmra.mrb[0].mxu0 %v1155
        %v3337 = vpop.f32.mrb[0].mxu0
        %v3338 = vadd.f32 0.0, %v3337
        %v3339 = vpop.f32.mrb[0].mxu0
        %v3340 = vpop.f32.mrb[0].mxu0
        %v3341 = vadd.f32 0.0, %v3340
        %v3342 = vpop.f32.mrb[0].mxu0
        %3343 = vmatprep.mubr.bf16.mxu0 0
        %3344 = vmatmul.mubr.bf16.gmra.mrb[0].mxu0 %v1158
        %v3345 = vpop.f32.mrb[0].mxu0
        %v3346 = vadd.f32 0.0, %v3345
        %v3347 = vpop.f32.mrb[0].mxu0
        %v3348 = vpop.f32.mrb[0].mxu0
        %v3349 = vadd.f32 0.0, %v3348
        %v3350 = vpop.f32.mrb[0].mxu0
        %3351 = vmatprep.mubr.bf16.mxu0 0
        %3352 = vmatmul.mubr.bf16.gmra.mrb[0].mxu0 %v1161
        %v3353 = vpop.f32.mrb[0].mxu0
        %v3354 = vadd.f32 0.0, %v3353
        %v3355 = vpop.f32.mrb[0].mxu0
        %v3356 = vpop.f32.mrb[0].mxu0
        %v3357 = vadd.f32 0.0, %v3356
        %v3358 = vpop.f32.mrb[0].mxu0
        %3359 = vmatprep.mubr.bf16.mxu0 0
        %3360 = vmatmul.mubr.bf16.gmra.mrb[0].mxu0 %v1164
        %v3361 = vpop.f32.mrb[0].mxu0
        %v3362 = vadd.f32 0.0, %v3361
        %v3363 = vpop.f32.mrb[0].mxu0
        %v3364 = vpop.f32.mrb[0].mxu0
        %v3365 = vadd.f32 0.0, %v3364
        %v3366 = vpop.f32.mrb[0].mxu0
        %3367 = vmatprep.mubr.bf16.mxu0 0
        %3368 = vmatmul.mubr.bf16.gmra.mrb[0].mxu0 %v1167
        %v3369 = vpop.f32.mrb[0].mxu0
        %v3370 = vadd.f32 0.0, %v3369
        %v3371 = vpop.f32.mrb[0].mxu0
        %v3372 = vpop.f32.mrb[0].mxu0
        %v3373 = vadd.f32 0.0, %v3372
        %v3374 = vpop.f32.mrb[0].mxu0
        %3375 = vmatprep.mubr.bf16.mxu0 0
        %3376 = vmatmul.mubr.bf16.gmra.mrb[0].mxu0 %v1170
        %v3377 = vpop.f32.mrb[0].mxu0
        %v3378 = vadd.f32 0.0, %v3377
        %v3379 = vpop.f32.mrb[0].mxu0
        %v3380 = vpop.f32.mrb[0].mxu0
        %v3381 = vadd.f32 0.0, %v3380
        %v3382 = vpop.f32.mrb[0].mxu0
        %3383 = vmatprep.mubr.bf16.mxu0 0
        %3384 = vmatmul.mubr.bf16.gmra.mrb[0].mxu0 %v1173
        %v3385 = vpop.f32.mrb[0].mxu0
        %v3386 = vadd.f32 0.0, %v3385
        %v3387 = vpop.f32.mrb[0].mxu0
        %v3388 = vpop.f32.mrb[0].mxu0
        %v3389 = vadd.f32 0.0, %v3388
        %v3390 = vpop.f32.mrb[0].mxu0
        %3391 = vmatprep.mubr.bf16.mxu0 0
        %3392 = vmatmul.mubr.bf16.gmra.mrb[0].mxu0 %v1176
        %v3393 = vpop.f32.mrb[0].mxu0
        %v3394 = vadd.f32 0.0, %v3393
        %v3395 = vpop.f32.mrb[0].mxu0
        %v3396 = vpop.f32.mrb[0].mxu0
        %v3397 = vadd.f32 0.0, %v3396
        %v3398 = vpop.f32.mrb[0].mxu0
        %3399 = vdwg.mxu0
        %v3400 = vrot.slane %v3274, 7
        %v3401 = vrot.slane %v3277, 7
        %v3402 = vrot.slane %v3282, 7
        %v3403 = vrot.slane %v3285, 7
        %v3404 = vrot.slane %v3290, 7
        %v3405 = vrot.slane %v3293, 7
        %v3406 = vrot.slane %v3298, 7
        %v3407 = vrot.slane %v3301, 7
        %v3408 = vrot.slane %v3306, 7
        %v3409 = vrot.slane %v3309, 7
        %v3410 = vrot.slane %v3314, 7
        %v3411 = vrot.slane %v3317, 7
        %v3412 = vrot.slane %v3322, 7
        %v3413 = vrot.slane %v3325, 7
        %v3414 = vrot.slane %v3330, 7
        %v3415 = vrot.slane %v3333, 7
        %v3416 = vrot.slane %v3338, 7
        %v3417 = vrot.slane %v3341, 7
        %v3418 = vrot.slane %v3346, 7
        %v3419 = vrot.slane %v3349, 7
        %v3420 = vrot.slane %v3354, 7
        %v3421 = vrot.slane %v3357, 7
        %v3422 = vrot.slane %v3362, 7
        %v3423 = vrot.slane %v3365, 7
        %v3424 = vrot.slane %v3370, 7
        %v3425 = vrot.slane %v3373, 7
        %v3426 = vrot.slane %v3378, 7
        %v3427 = vrot.slane %v3381, 7
        %v3428 = vrot.slane %v3386, 7
        %v3429 = vrot.slane %v3389, 7
        %v3430 = vrot.slane %v3394, 7
        %v3431 = vrot.slane %v3397, 7
        %v3432 = vsel %vm1564, %v3430, %v3431
        %v3433 = vsel %vm1564, %v3429, %v3430
        %v3434 = vsel %vm1564, %v3428, %v3429
        %v3435 = vsel %vm1564, %v3427, %v3428
        %v3436 = vsel %vm1564, %v3426, %v3427
        %v3437 = vsel %vm1564, %v3425, %v3426
        %v3438 = vsel %vm1564, %v3424, %v3425
        %v3439 = vsel %vm1564, %v3423, %v3424
        %v3440 = vsel %vm1564, %v3422, %v3423
        %v3441 = vsel %vm1564, %v3421, %v3422
        %v3442 = vsel %vm1564, %v3420, %v3421
        %v3443 = vsel %vm1564, %v3419, %v3420
        %v3444 = vsel %vm1564, %v3418, %v3419
        %v3445 = vsel %vm1564, %v3417, %v3418
        %v3446 = vsel %vm1564, %v3416, %v3417
        %v3447 = vsel %vm1564, %v3415, %v3416
        %v3448 = vsel %vm1564, %v3414, %v3415
        %v3449 = vsel %vm1564, %v3413, %v3414
        %v3450 = vsel %vm1564, %v3412, %v3413
        %v3451 = vsel %vm1564, %v3411, %v3412
        %v3452 = vsel %vm1564, %v3410, %v3411
        %v3453 = vsel %vm1564, %v3409, %v3410
        %v3454 = vsel %vm1564, %v3408, %v3409
        %v3455 = vsel %vm1564, %v3407, %v3408
        %v3456 = vsel %vm1564, %v3406, %v3407
        %v3457 = vsel %vm1564, %v3405, %v3406
        %v3458 = vsel %vm1564, %v3404, %v3405
        %v3459 = vsel %vm1564, %v3403, %v3404
        %v3460 = vsel %vm1564, %v3402, %v3403
        %v3461 = vsel %vm1564, %v3401, %v3402
        %v3462 = vsel %vm1564, %v3400, %v3401
        %v3463 = vsel %vm1564, %v3431, %v3400
        %v3464 = vsel %vm690, 1, 0
        %v3465 = vsel %vm691, 1, 0
        %v3466 = vsel %vm692, 1, 0
        %v3467 = vsel %vm693, 1, 0
        %v3468 = vsel %vm694, 1, 0
        %v3469 = vsel %vm695, 1, 0
        %v3470 = vsel %vm696, 1, 0
        %v3471 = vsel %vm697, 1, 0
        %v3472 = vsel %vm698, 1, 0
        %v3473 = vsel %vm699, 1, 0
        %v3474 = vsel %vm700, 1, 0
        %v3475 = vsel %vm701, 1, 0
        %v3476 = vsel %vm702, 1, 0
        %v3477 = vsel %vm703, 1, 0
        %v3478 = vsel %vm704, 1, 0
        %v3479 = vsel %vm705, 1, 0
        %v3480 = vsel %vm706, 1, 0
        %v3481 = vsel %vm707, 1, 0
        %v3482 = vsel %vm708, 1, 0
        %v3483 = vsel %vm709, 1, 0
        %v3484 = vsel %vm710, 1, 0
        %v3485 = vsel %vm711, 1, 0
        %v3486 = vsel %vm712, 1, 0
        %v3487 = vsel %vm713, 1, 0
        %v3488 = vsel %vm714, 1, 0
        %v3489 = vsel %vm715, 1, 0
        %v3490 = vsel %vm716, 1, 0
        %v3491 = vsel %vm717, 1, 0
        %v3492 = vsel %vm718, 1, 0
        %v3493 = vsel %vm719, 1, 0
        %v3494 = vsel %vm720, 1, 0
        %v3495 = vsel %vm721, 1, 0
        %vm3496 = vcmp.eq.s32.totalorder %v3464, 1
        %vm3497 = vcmp.eq.s32.totalorder %v3465, 1
        %vm3498 = vcmp.eq.s32.totalorder %v3466, 1
        %vm3499 = vcmp.eq.s32.totalorder %v3467, 1
        %vm3500 = vcmp.eq.s32.totalorder %v3468, 1
        %vm3501 = vcmp.eq.s32.totalorder %v3469, 1
        %vm3502 = vcmp.eq.s32.totalorder %v3470, 1
        %vm3503 = vcmp.eq.s32.totalorder %v3471, 1
        %vm3504 = vcmp.eq.s32.totalorder %v3472, 1
        %vm3505 = vcmp.eq.s32.totalorder %v3473, 1
        %vm3506 = vcmp.eq.s32.totalorder %v3474, 1
        %vm3507 = vcmp.eq.s32.totalorder %v3475, 1
        %vm3508 = vcmp.eq.s32.totalorder %v3476, 1
        %vm3509 = vcmp.eq.s32.totalorder %v3477, 1
        %vm3510 = vcmp.eq.s32.totalorder %v3478, 1
        %vm3511 = vcmp.eq.s32.totalorder %v3479, 1
        %vm3512 = vcmp.eq.s32.totalorder %v3480, 1
        %vm3513 = vcmp.eq.s32.totalorder %v3481, 1
        %vm3514 = vcmp.eq.s32.totalorder %v3482, 1
        %vm3515 = vcmp.eq.s32.totalorder %v3483, 1
        %vm3516 = vcmp.eq.s32.totalorder %v3484, 1
        %vm3517 = vcmp.eq.s32.totalorder %v3485, 1
        %vm3518 = vcmp.eq.s32.totalorder %v3486, 1
        %vm3519 = vcmp.eq.s32.totalorder %v3487, 1
        %vm3520 = vcmp.eq.s32.totalorder %v3488, 1
        %vm3521 = vcmp.eq.s32.totalorder %v3489, 1
        %vm3522 = vcmp.eq.s32.totalorder %v3490, 1
        %vm3523 = vcmp.eq.s32.totalorder %v3491, 1
        %vm3524 = vcmp.eq.s32.totalorder %v3492, 1
        %vm3525 = vcmp.eq.s32.totalorder %v3493, 1
        %vm3526 = vcmp.eq.s32.totalorder %v3494, 1
        %vm3527 = vcmp.eq.s32.totalorder %v3495, 1
        %v3528 = vsel %vm3496, %v3461, 0.0
        %v3529 = vsel %vm3497, %v3460, 0.0
        %v3530 = vsel %vm3498, %v3459, 0.0
        %v3531 = vsel %vm3499, %v3458, 0.0
        %v3532 = vsel %vm3500, %v3457, 0.0
        %v3533 = vsel %vm3501, %v3456, 0.0
        %v3534 = vsel %vm3502, %v3455, 0.0
        %v3535 = vsel %vm3503, %v3454, 0.0
        %v3536 = vsel %vm3504, %v3453, 0.0
        %v3537 = vsel %vm3505, %v3452, 0.0
        %v3538 = vsel %vm3506, %v3451, 0.0
        %v3539 = vsel %vm3507, %v3450, 0.0
        %v3540 = vsel %vm3508, %v3449, 0.0
        %v3541 = vsel %vm3509, %v3448, 0.0
        %v3542 = vsel %vm3510, %v3447, 0.0
        %v3543 = vsel %vm3511, %v3446, 0.0
        %v3544 = vsel %vm3512, %v3445, 0.0
        %v3545 = vsel %vm3513, %v3444, 0.0
        %v3546 = vsel %vm3514, %v3443, 0.0
        %v3547 = vsel %vm3515, %v3442, 0.0
        %v3548 = vsel %vm3516, %v3441, 0.0
        %v3549 = vsel %vm3517, %v3440, 0.0
        %v3550 = vsel %vm3518, %v3439, 0.0
        %v3551 = vsel %vm3519, %v3438, 0.0
        %v3552 = vsel %vm3520, %v3437, 0.0
        %v3553 = vsel %vm3521, %v3436, 0.0
        %v3554 = vsel %vm3522, %v3435, 0.0
        %v3555 = vsel %vm3523, %v3434, 0.0
        %v3556 = vsel %vm3524, %v3433, 0.0
        %v3557 = vsel %vm3525, %v3432, 0.0
        %v3558 = vsel %vm3526, %v3463, 0.0
        %v3559 = vsel %vm3527, %v3462, 0.0
        %v3560 = vadd.f32 %v3174, %v3528
        %v3561 = vadd.f32 %v3175, %v3529
        %v3562 = vadd.f32 %v3176, %v3530
        %v3563 = vadd.f32 %v3177, %v3531
        %v3564 = vadd.f32 %v3178, %v3532
        %v3565 = vadd.f32 %v3179, %v3533
        %v3566 = vadd.f32 %v3180, %v3534
        %v3567 = vadd.f32 %v3181, %v3535
        %v3568 = vadd.f32 %v3182, %v3536
        %v3569 = vadd.f32 %v3183, %v3537
        %v3570 = vadd.f32 %v3184, %v3538
        %v3571 = vadd.f32 %v3185, %v3539
        %v3572 = vadd.f32 %v3186, %v3540
        %v3573 = vadd.f32 %v3187, %v3541
        %v3574 = vadd.f32 %v3188, %v3542
        %v3575 = vadd.f32 %v3189, %v3543
        %v3576 = vadd.f32 %v3190, %v3544
        %v3577 = vadd.f32 %v3191, %v3545
        %v3578 = vadd.f32 %v3192, %v3546
        %v3579 = vadd.f32 %v3193, %v3547
        %v3580 = vadd.f32 %v3194, %v3548
        %v3581 = vadd.f32 %v3195, %v3549
        %v3582 = vadd.f32 %v3196, %v3550
        %v3583 = vadd.f32 %v3197, %v3551
        %v3584 = vadd.f32 %v3198, %v3552
        %v3585 = vadd.f32 %v3199, %v3553
        %v3586 = vadd.f32 %v3200, %v3554
        %v3587 = vadd.f32 %v3201, %v3555
        %v3588 = vadd.f32 %v3202, %v3556
        %v3589 = vadd.f32 %v3203, %v3557
        %v3590 = vadd.f32 %v3204, %v3558
        %v3591 = vadd.f32 %v3205, %v3559
        %s3592 = scalar_lea.vmem %s3, 224
        %v3593 = vld [vmem:[%s3592] sm:$0xf]
        %v3594 = vld [vmem:[%s3592 + $0x4] sm:$0xf]
        %v3595 = vld [vmem:[%s3592 + $0x8] sm:$0xf]
        %v3596 = vld [vmem:[%s3592 + $0xc] sm:$0xf]
        %v3597 = vld [vmem:[%s3592 + $0x10] sm:$0xf]
        %v3598 = vld [vmem:[%s3592 + $0x14] sm:$0xf]
        %v3599 = vld [vmem:[%s3592 + $0x18] sm:$0xf]
        %v3600 = vld [vmem:[%s3592 + $0x1c] sm:$0xf]
        %v3609 = vunpack.c.l.b16 %v3593
        %v3610 = vunpack.c.l.b16 %v3594
        %v3611 = vunpack.c.l.b16 %v3595
        %v3612 = vunpack.c.l.b16 %v3596
        %v3613 = vunpack.c.l.b16 %v3597
        %v3614 = vunpack.c.l.b16 %v3598
        %v3615 = vunpack.c.l.b16 %v3599
        %v3616 = vunpack.c.l.b16 %v3600
        %v3617 = vpack.c.b16 %v3610, %v3609
        %v3618 = vpack.c.b16 %v3612, %v3611
        %v3619 = vpack.c.b16 %v3614, %v3613
        %v3620 = vpack.c.b16 %v3616, %v3615
        %3625 = vmatprep.subr.bf16.mxu0 0
        %3626 = vmatpush1.bf16.msra.mxu0 %v3617
        %3627 = vmatprep.subr.bf16.mxu0 0
        %3628 = vmatpush1.bf16.msra.mxu0 %v3618
        %3629 = vmatprep.subr.bf16.mxu0 0
        %3630 = vmatpush1.bf16.msra.mxu0 %v3619
        %3631 = vmatprep.subr.bf16.mxu0 0
        %3632 = vmatpush1.bf16.msra.mxu0 %v3620
        %3633 = vmatprep.subr.bf16.mxu0 0
        %3634 = vmatpush1.bf16.msra.mxu0 0
        %3635 = vmatprep.subr.bf16.mxu0 0
        %3636 = vmatpush1.bf16.msra.mxu0 0
        %3637 = vmatprep.subr.bf16.mxu0 0
        %3638 = vmatpush1.bf16.msra.mxu0 0
        %3639 = vmatprep.subr.bf16.mxu0 0
        %3640 = vmatpush1.bf16.msra.mxu0 0
        %3641 = vmatprep.subr.bf16.mxu0 0
        %3642 = vmatpush1.bf16.msra.mxu0 0
        %3643 = vmatprep.subr.bf16.mxu0 0
        %3644 = vmatpush1.bf16.msra.mxu0 0
        %3645 = vmatprep.subr.bf16.mxu0 0
        %3646 = vmatpush1.bf16.msra.mxu0 0
        %3647 = vmatprep.subr.bf16.mxu0 0
        %3648 = vmatpush1.bf16.msra.mxu0 0
        %3649 = vmatprep.subr.bf16.mxu0 0
        %3650 = vmatpush1.bf16.msra.mxu0 0
        %3651 = vmatprep.subr.bf16.mxu0 0
        %3652 = vmatpush1.bf16.msra.mxu0 0
        %3653 = vmatprep.subr.bf16.mxu0 0
        %3654 = vmatpush1.bf16.msra.mxu0 0
        %3655 = vmatprep.subr.bf16.mxu0 0
        %3656 = vmatpush1.bf16.msra.mxu0 0
        %3657 = vmatprep.mubr.bf16.mxu0 0
        %3658 = vmatmul.mubr.bf16.gmra.mrb[0].mxu0 %v1131
        %v3659 = vpop.f32.mrb[0].mxu0
        %v3660 = vadd.f32 0.0, %v3659
        %v3661 = vpop.f32.mrb[0].mxu0
        %v3662 = vpop.f32.mrb[0].mxu0
        %v3663 = vadd.f32 0.0, %v3662
        %v3664 = vpop.f32.mrb[0].mxu0
        %3665 = vmatprep.mubr.bf16.mxu0 0
        %3666 = vmatmul.mubr.bf16.gmra.mrb[0].mxu0 %v1134
        %v3667 = vpop.f32.mrb[0].mxu0
        %v3668 = vadd.f32 0.0, %v3667
        %v3669 = vpop.f32.mrb[0].mxu0
        %v3670 = vpop.f32.mrb[0].mxu0
        %v3671 = vadd.f32 0.0, %v3670
        %v3672 = vpop.f32.mrb[0].mxu0
        %3673 = vmatprep.mubr.bf16.mxu0 0
        %3674 = vmatmul.mubr.bf16.gmra.mrb[0].mxu0 %v1137
        %v3675 = vpop.f32.mrb[0].mxu0
        %v3676 = vadd.f32 0.0, %v3675
        %v3677 = vpop.f32.mrb[0].mxu0
        %v3678 = vpop.f32.mrb[0].mxu0
        %v3679 = vadd.f32 0.0, %v3678
        %v3680 = vpop.f32.mrb[0].mxu0
        %3681 = vmatprep.mubr.bf16.mxu0 0
        %3682 = vmatmul.mubr.bf16.gmra.mrb[0].mxu0 %v1140
        %v3683 = vpop.f32.mrb[0].mxu0
        %v3684 = vadd.f32 0.0, %v3683
        %v3685 = vpop.f32.mrb[0].mxu0
        %v3686 = vpop.f32.mrb[0].mxu0
        %v3687 = vadd.f32 0.0, %v3686
        %v3688 = vpop.f32.mrb[0].mxu0
        %3689 = vmatprep.mubr.bf16.mxu0 0
        %3690 = vmatmul.mubr.bf16.gmra.mrb[0].mxu0 %v1143
        %v3691 = vpop.f32.mrb[0].mxu0
        %v3692 = vadd.f32 0.0, %v3691
        %v3693 = vpop.f32.mrb[0].mxu0
        %v3694 = vpop.f32.mrb[0].mxu0
        %v3695 = vadd.f32 0.0, %v3694
        %v3696 = vpop.f32.mrb[0].mxu0
        %3697 = vmatprep.mubr.bf16.mxu0 0
        %3698 = vmatmul.mubr.bf16.gmra.mrb[0].mxu0 %v1146
        %v3699 = vpop.f32.mrb[0].mxu0
        %v3700 = vadd.f32 0.0, %v3699
        %v3701 = vpop.f32.mrb[0].mxu0
        %v3702 = vpop.f32.mrb[0].mxu0
        %v3703 = vadd.f32 0.0, %v3702
        %v3704 = vpop.f32.mrb[0].mxu0
        %3705 = vmatprep.mubr.bf16.mxu0 0
        %3706 = vmatmul.mubr.bf16.gmra.mrb[0].mxu0 %v1149
        %v3707 = vpop.f32.mrb[0].mxu0
        %v3708 = vadd.f32 0.0, %v3707
        %v3709 = vpop.f32.mrb[0].mxu0
        %v3710 = vpop.f32.mrb[0].mxu0
        %v3711 = vadd.f32 0.0, %v3710
        %v3712 = vpop.f32.mrb[0].mxu0
        %3713 = vmatprep.mubr.bf16.mxu0 0
        %3714 = vmatmul.mubr.bf16.gmra.mrb[0].mxu0 %v1152
        %v3715 = vpop.f32.mrb[0].mxu0
        %v3716 = vadd.f32 0.0, %v3715
        %v3717 = vpop.f32.mrb[0].mxu0
        %v3718 = vpop.f32.mrb[0].mxu0
        %v3719 = vadd.f32 0.0, %v3718
        %v3720 = vpop.f32.mrb[0].mxu0
        %3721 = vmatprep.mubr.bf16.mxu0 0
        %3722 = vmatmul.mubr.bf16.gmra.mrb[0].mxu0 %v1155
        %v3723 = vpop.f32.mrb[0].mxu0
        %v3724 = vadd.f32 0.0, %v3723
        %v3725 = vpop.f32.mrb[0].mxu0
        %v3726 = vpop.f32.mrb[0].mxu0
        %v3727 = vadd.f32 0.0, %v3726
        %v3728 = vpop.f32.mrb[0].mxu0
        %3729 = vmatprep.mubr.bf16.mxu0 0
        %3730 = vmatmul.mubr.bf16.gmra.mrb[0].mxu0 %v1158
        %v3731 = vpop.f32.mrb[0].mxu0
        %v3732 = vadd.f32 0.0, %v3731
        %v3733 = vpop.f32.mrb[0].mxu0
        %v3734 = vpop.f32.mrb[0].mxu0
        %v3735 = vadd.f32 0.0, %v3734
        %v3736 = vpop.f32.mrb[0].mxu0
        %3737 = vmatprep.mubr.bf16.mxu0 0
        %3738 = vmatmul.mubr.bf16.gmra.mrb[0].mxu0 %v1161
        %v3739 = vpop.f32.mrb[0].mxu0
        %v3740 = vadd.f32 0.0, %v3739
        %v3741 = vpop.f32.mrb[0].mxu0
        %v3742 = vpop.f32.mrb[0].mxu0
        %v3743 = vadd.f32 0.0, %v3742
        %v3744 = vpop.f32.mrb[0].mxu0
        %3745 = vmatprep.mubr.bf16.mxu0 0
        %3746 = vmatmul.mubr.bf16.gmra.mrb[0].mxu0 %v1164
        %v3747 = vpop.f32.mrb[0].mxu0
        %v3748 = vadd.f32 0.0, %v3747
        %v3749 = vpop.f32.mrb[0].mxu0
        %v3750 = vpop.f32.mrb[0].mxu0
        %v3751 = vadd.f32 0.0, %v3750
        %v3752 = vpop.f32.mrb[0].mxu0
        %3753 = vmatprep.mubr.bf16.mxu0 0
        %3754 = vmatmul.mubr.bf16.gmra.mrb[0].mxu0 %v1167
        %v3755 = vpop.f32.mrb[0].mxu0
        %v3756 = vadd.f32 0.0, %v3755
        %v3757 = vpop.f32.mrb[0].mxu0
        %v3758 = vpop.f32.mrb[0].mxu0
        %v3759 = vadd.f32 0.0, %v3758
        %v3760 = vpop.f32.mrb[0].mxu0
        %3761 = vmatprep.mubr.bf16.mxu0 0
        %3762 = vmatmul.mubr.bf16.gmra.mrb[0].mxu0 %v1170
        %v3763 = vpop.f32.mrb[0].mxu0
        %v3764 = vadd.f32 0.0, %v3763
        %v3765 = vpop.f32.mrb[0].mxu0
        %v3766 = vpop.f32.mrb[0].mxu0
        %v3767 = vadd.f32 0.0, %v3766
        %v3768 = vpop.f32.mrb[0].mxu0
        %3769 = vmatprep.mubr.bf16.mxu0 0
        %3770 = vmatmul.mubr.bf16.gmra.mrb[0].mxu0 %v1173
        %v3771 = vpop.f32.mrb[0].mxu0
        %v3772 = vadd.f32 0.0, %v3771
        %v3773 = vpop.f32.mrb[0].mxu0
        %v3774 = vpop.f32.mrb[0].mxu0
        %v3775 = vadd.f32 0.0, %v3774
        %v3776 = vpop.f32.mrb[0].mxu0
        %3777 = vmatprep.mubr.bf16.mxu0 0
        %3778 = vmatmul.mubr.bf16.gmra.mrb[0].mxu0 %v1176
        %v3779 = vpop.f32.mrb[0].mxu0
        %v3780 = vadd.f32 0.0, %v3779
        %v3781 = vpop.f32.mrb[0].mxu0
        %v3782 = vpop.f32.mrb[0].mxu0
        %v3783 = vadd.f32 0.0, %v3782
        %v3784 = vpop.f32.mrb[0].mxu0
        %3785 = vdwg.mxu0
        %v3786 = vsel %vm466, 1, 0
        %v3787 = vsel %vm467, 1, 0
        %v3788 = vsel %vm468, 1, 0
        %v3789 = vsel %vm469, 1, 0
        %v3790 = vsel %vm470, 1, 0
        %v3791 = vsel %vm471, 1, 0
        %v3792 = vsel %vm472, 1, 0
        %v3793 = vsel %vm473, 1, 0
        %v3794 = vsel %vm474, 1, 0
        %v3795 = vsel %vm475, 1, 0
        %v3796 = vsel %vm476, 1, 0
        %v3797 = vsel %vm477, 1, 0
        %v3798 = vsel %vm478, 1, 0
        %v3799 = vsel %vm479, 1, 0
        %v3800 = vsel %vm480, 1, 0
        %v3801 = vsel %vm481, 1, 0
        %v3802 = vsel %vm482, 1, 0
        %v3803 = vsel %vm483, 1, 0
        %v3804 = vsel %vm484, 1, 0
        %v3805 = vsel %vm485, 1, 0
        %v3806 = vsel %vm486, 1, 0
        %v3807 = vsel %vm487, 1, 0
        %v3808 = vsel %vm488, 1, 0
        %v3809 = vsel %vm489, 1, 0
        %v3810 = vsel %vm490, 1, 0
        %v3811 = vsel %vm491, 1, 0
        %v3812 = vsel %vm492, 1, 0
        %v3813 = vsel %vm493, 1, 0
        %v3814 = vsel %vm494, 1, 0
        %v3815 = vsel %vm495, 1, 0
        %v3816 = vsel %vm496, 1, 0
        %v3817 = vsel %vm497, 1, 0
        %vm3818 = vcmp.eq.s32.totalorder %v3786, 1
        %vm3819 = vcmp.eq.s32.totalorder %v3787, 1
        %vm3820 = vcmp.eq.s32.totalorder %v3788, 1
        %vm3821 = vcmp.eq.s32.totalorder %v3789, 1
        %vm3822 = vcmp.eq.s32.totalorder %v3790, 1
        %vm3823 = vcmp.eq.s32.totalorder %v3791, 1
        %vm3824 = vcmp.eq.s32.totalorder %v3792, 1
        %vm3825 = vcmp.eq.s32.totalorder %v3793, 1
        %vm3826 = vcmp.eq.s32.totalorder %v3794, 1
        %vm3827 = vcmp.eq.s32.totalorder %v3795, 1
        %vm3828 = vcmp.eq.s32.totalorder %v3796, 1
        %vm3829 = vcmp.eq.s32.totalorder %v3797, 1
        %vm3830 = vcmp.eq.s32.totalorder %v3798, 1
        %vm3831 = vcmp.eq.s32.totalorder %v3799, 1
        %vm3832 = vcmp.eq.s32.totalorder %v3800, 1
        %vm3833 = vcmp.eq.s32.totalorder %v3801, 1
        %vm3834 = vcmp.eq.s32.totalorder %v3802, 1
        %vm3835 = vcmp.eq.s32.totalorder %v3803, 1
        %vm3836 = vcmp.eq.s32.totalorder %v3804, 1
        %vm3837 = vcmp.eq.s32.totalorder %v3805, 1
        %vm3838 = vcmp.eq.s32.totalorder %v3806, 1
        %vm3839 = vcmp.eq.s32.totalorder %v3807, 1
        %vm3840 = vcmp.eq.s32.totalorder %v3808, 1
        %vm3841 = vcmp.eq.s32.totalorder %v3809, 1
        %vm3842 = vcmp.eq.s32.totalorder %v3810, 1
        %vm3843 = vcmp.eq.s32.totalorder %v3811, 1
        %vm3844 = vcmp.eq.s32.totalorder %v3812, 1
        %vm3845 = vcmp.eq.s32.totalorder %v3813, 1
        %vm3846 = vcmp.eq.s32.totalorder %v3814, 1
        %vm3847 = vcmp.eq.s32.totalorder %v3815, 1
        %vm3848 = vcmp.eq.s32.totalorder %v3816, 1
        %vm3849 = vcmp.eq.s32.totalorder %v3817, 1
        %v3850 = vsel %vm3818, %v3668, 0.0
        %v3851 = vsel %vm3819, %v3671, 0.0
        %v3852 = vsel %vm3820, %v3676, 0.0
        %v3853 = vsel %vm3821, %v3679, 0.0
        %v3854 = vsel %vm3822, %v3684, 0.0
        %v3855 = vsel %vm3823, %v3687, 0.0
        %v3856 = vsel %vm3824, %v3692, 0.0
        %v3857 = vsel %vm3825, %v3695, 0.0
        %v3858 = vsel %vm3826, %v3700, 0.0
        %v3859 = vsel %vm3827, %v3703, 0.0
        %v3860 = vsel %vm3828, %v3708, 0.0
        %v3861 = vsel %vm3829, %v3711, 0.0
        %v3862 = vsel %vm3830, %v3716, 0.0
        %v3863 = vsel %vm3831, %v3719, 0.0
        %v3864 = vsel %vm3832, %v3724, 0.0
        %v3865 = vsel %vm3833, %v3727, 0.0
        %v3866 = vsel %vm3834, %v3732, 0.0
        %v3867 = vsel %vm3835, %v3735, 0.0
        %v3868 = vsel %vm3836, %v3740, 0.0
        %v3869 = vsel %vm3837, %v3743, 0.0
        %v3870 = vsel %vm3838, %v3748, 0.0
        %v3871 = vsel %vm3839, %v3751, 0.0
        %v3872 = vsel %vm3840, %v3756, 0.0
        %v3873 = vsel %vm3841, %v3759, 0.0
        %v3874 = vsel %vm3842, %v3764, 0.0
        %v3875 = vsel %vm3843, %v3767, 0.0
        %v3876 = vsel %vm3844, %v3772, 0.0
        %v3877 = vsel %vm3845, %v3775, 0.0
        %v3878 = vsel %vm3846, %v3780, 0.0
        %v3879 = vsel %vm3847, %v3783, 0.0
        %v3880 = vsel %vm3848, %v3660, 0.0
        %v3881 = vsel %vm3849, %v3663, 0.0
        %v3882 = vadd.f32 %v3560, %v3850
        %v3883 = vadd.f32 %v3561, %v3851
        %v3884 = vadd.f32 %v3562, %v3852
        %v3885 = vadd.f32 %v3563, %v3853
        %v3886 = vadd.f32 %v3564, %v3854
        %v3887 = vadd.f32 %v3565, %v3855
        %v3888 = vadd.f32 %v3566, %v3856
        %v3889 = vadd.f32 %v3567, %v3857
        %v3890 = vadd.f32 %v3568, %v3858
        %v3891 = vadd.f32 %v3569, %v3859
        %v3892 = vadd.f32 %v3570, %v3860
        %v3893 = vadd.f32 %v3571, %v3861
        %v3894 = vadd.f32 %v3572, %v3862
        %v3895 = vadd.f32 %v3573, %v3863
        %v3896 = vadd.f32 %v3574, %v3864
        %v3897 = vadd.f32 %v3575, %v3865
        %v3898 = vadd.f32 %v3576, %v3866
        %v3899 = vadd.f32 %v3577, %v3867
        %v3900 = vadd.f32 %v3578, %v3868
        %v3901 = vadd.f32 %v3579, %v3869
        %v3902 = vadd.f32 %v3580, %v3870
        %v3903 = vadd.f32 %v3581, %v3871
        %v3904 = vadd.f32 %v3582, %v3872
        %v3905 = vadd.f32 %v3583, %v3873
        %v3906 = vadd.f32 %v3584, %v3874
        %v3907 = vadd.f32 %v3585, %v3875
        %v3908 = vadd.f32 %v3586, %v3876
        %v3909 = vadd.f32 %v3587, %v3877
        %v3910 = vadd.f32 %v3588, %v3878
        %v3911 = vadd.f32 %v3589, %v3879
        %v3912 = vadd.f32 %v3590, %v3880
        %v3913 = vadd.f32 %v3591, %v3881
        %s3914 = scalar_lea.vmem %s3, 256
        %v3915 = vld [vmem:[%s3914] sm:$0xf]
        %v3916 = vld [vmem:[%s3914 + $0x4] sm:$0xf]
        %v3917 = vld [vmem:[%s3914 + $0x8] sm:$0xf]
        %v3918 = vld [vmem:[%s3914 + $0xc] sm:$0xf]
        %v3919 = vld [vmem:[%s3914 + $0x10] sm:$0xf]
        %v3920 = vld [vmem:[%s3914 + $0x14] sm:$0xf]
        %v3921 = vld [vmem:[%s3914 + $0x18] sm:$0xf]
        %v3922 = vld [vmem:[%s3914 + $0x1c] sm:$0xf]
        %v3931 = vunpack.c.l.b16 %v3915
        %v3932 = vunpack.c.l.b16 %v3916
        %v3933 = vunpack.c.l.b16 %v3917
        %v3934 = vunpack.c.l.b16 %v3918
        %v3935 = vunpack.c.l.b16 %v3919
        %v3936 = vunpack.c.l.b16 %v3920
        %v3937 = vunpack.c.l.b16 %v3921
        %v3938 = vunpack.c.l.b16 %v3922
        %v3939 = vpack.c.b16 %v3932, %v3931
        %v3940 = vpack.c.b16 %v3934, %v3933
        %v3941 = vpack.c.b16 %v3936, %v3935
        %v3942 = vpack.c.b16 %v3938, %v3937
        %3947 = vmatprep.subr.bf16.mxu0 0
        %3948 = vmatpush1.bf16.msra.mxu0 %v3939
        %3949 = vmatprep.subr.bf16.mxu0 0
        %3950 = vmatpush1.bf16.msra.mxu0 %v3940
        %3951 = vmatprep.subr.bf16.mxu0 0
        %3952 = vmatpush1.bf16.msra.mxu0 %v3941
        %3953 = vmatprep.subr.bf16.mxu0 0
        %3954 = vmatpush1.bf16.msra.mxu0 %v3942
        %3955 = vmatprep.subr.bf16.mxu0 0
        %3956 = vmatpush1.bf16.msra.mxu0 0
        %3957 = vmatprep.subr.bf16.mxu0 0
        %3958 = vmatpush1.bf16.msra.mxu0 0
        %3959 = vmatprep.subr.bf16.mxu0 0
        %3960 = vmatpush1.bf16.msra.mxu0 0
        %3961 = vmatprep.subr.bf16.mxu0 0
        %3962 = vmatpush1.bf16.msra.mxu0 0
        %3963 = vmatprep.subr.bf16.mxu0 0
        %3964 = vmatpush1.bf16.msra.mxu0 0
        %3965 = vmatprep.subr.bf16.mxu0 0
        %3966 = vmatpush1.bf16.msra.mxu0 0
        %3967 = vmatprep.subr.bf16.mxu0 0
        %3968 = vmatpush1.bf16.msra.mxu0 0
        %3969 = vmatprep.subr.bf16.mxu0 0
        %3970 = vmatpush1.bf16.msra.mxu0 0
        %3971 = vmatprep.subr.bf16.mxu0 0
        %3972 = vmatpush1.bf16.msra.mxu0 0
        %3973 = vmatprep.subr.bf16.mxu0 0
        %3974 = vmatpush1.bf16.msra.mxu0 0
        %3975 = vmatprep.subr.bf16.mxu0 0
        %3976 = vmatpush1.bf16.msra.mxu0 0
        %3977 = vmatprep.subr.bf16.mxu0 0
        %3978 = vmatpush1.bf16.msra.mxu0 0
        %3979 = vmatprep.mubr.bf16.mxu0 0
        %3980 = vmatmul.mubr.bf16.gmra.mrb[0].mxu0 %v1131
        %v3981 = vpop.f32.mrb[0].mxu0
        %v3982 = vadd.f32 0.0, %v3981
        %v3983 = vpop.f32.mrb[0].mxu0
        %v3984 = vpop.f32.mrb[0].mxu0
        %v3985 = vadd.f32 0.0, %v3984
        %v3986 = vpop.f32.mrb[0].mxu0
        %3987 = vmatprep.mubr.bf16.mxu0 0
        %3988 = vmatmul.mubr.bf16.gmra.mrb[0].mxu0 %v1134
        %v3989 = vpop.f32.mrb[0].mxu0
        %v3990 = vadd.f32 0.0, %v3989
        %v3991 = vpop.f32.mrb[0].mxu0
        %v3992 = vpop.f32.mrb[0].mxu0
        %v3993 = vadd.f32 0.0, %v3992
        %v3994 = vpop.f32.mrb[0].mxu0
        %3995 = vmatprep.mubr.bf16.mxu0 0
        %3996 = vmatmul.mubr.bf16.gmra.mrb[0].mxu0 %v1137
        %v3997 = vpop.f32.mrb[0].mxu0
        %v3998 = vadd.f32 0.0, %v3997
        %v3999 = vpop.f32.mrb[0].mxu0
        %v4000 = vpop.f32.mrb[0].mxu0
        %v4001 = vadd.f32 0.0, %v4000
        %v4002 = vpop.f32.mrb[0].mxu0
        %4003 = vmatprep.mubr.bf16.mxu0 0
        %4004 = vmatmul.mubr.bf16.gmra.mrb[0].mxu0 %v1140
        %v4005 = vpop.f32.mrb[0].mxu0
        %v4006 = vadd.f32 0.0, %v4005
        %v4007 = vpop.f32.mrb[0].mxu0
        %v4008 = vpop.f32.mrb[0].mxu0
        %v4009 = vadd.f32 0.0, %v4008
        %v4010 = vpop.f32.mrb[0].mxu0
        %4011 = vmatprep.mubr.bf16.mxu0 0
        %4012 = vmatmul.mubr.bf16.gmra.mrb[0].mxu0 %v1143
        %v4013 = vpop.f32.mrb[0].mxu0
        %v4014 = vadd.f32 0.0, %v4013
        %v4015 = vpop.f32.mrb[0].mxu0
        %v4016 = vpop.f32.mrb[0].mxu0
        %v4017 = vadd.f32 0.0, %v4016
        %v4018 = vpop.f32.mrb[0].mxu0
        %4019 = vmatprep.mubr.bf16.mxu0 0
        %4020 = vmatmul.mubr.bf16.gmra.mrb[0].mxu0 %v1146
        %v4021 = vpop.f32.mrb[0].mxu0
        %v4022 = vadd.f32 0.0, %v4021
        %v4023 = vpop.f32.mrb[0].mxu0
        %v4024 = vpop.f32.mrb[0].mxu0
        %v4025 = vadd.f32 0.0, %v4024
        %v4026 = vpop.f32.mrb[0].mxu0
        %4027 = vmatprep.mubr.bf16.mxu0 0
        %4028 = vmatmul.mubr.bf16.gmra.mrb[0].mxu0 %v1149
        %v4029 = vpop.f32.mrb[0].mxu0
        %v4030 = vadd.f32 0.0, %v4029
        %v4031 = vpop.f32.mrb[0].mxu0
        %v4032 = vpop.f32.mrb[0].mxu0
        %v4033 = vadd.f32 0.0, %v4032
        %v4034 = vpop.f32.mrb[0].mxu0
        %4035 = vmatprep.mubr.bf16.mxu0 0
        %4036 = vmatmul.mubr.bf16.gmra.mrb[0].mxu0 %v1152
        %v4037 = vpop.f32.mrb[0].mxu0
        %v4038 = vadd.f32 0.0, %v4037
        %v4039 = vpop.f32.mrb[0].mxu0
        %v4040 = vpop.f32.mrb[0].mxu0
        %v4041 = vadd.f32 0.0, %v4040
        %v4042 = vpop.f32.mrb[0].mxu0
        %4043 = vmatprep.mubr.bf16.mxu0 0
        %4044 = vmatmul.mubr.bf16.gmra.mrb[0].mxu0 %v1155
        %v4045 = vpop.f32.mrb[0].mxu0
        %v4046 = vadd.f32 0.0, %v4045
        %v4047 = vpop.f32.mrb[0].mxu0
        %v4048 = vpop.f32.mrb[0].mxu0
        %v4049 = vadd.f32 0.0, %v4048
        %v4050 = vpop.f32.mrb[0].mxu0
        %4051 = vmatprep.mubr.bf16.mxu0 0
        %4052 = vmatmul.mubr.bf16.gmra.mrb[0].mxu0 %v1158
        %v4053 = vpop.f32.mrb[0].mxu0
        %v4054 = vadd.f32 0.0, %v4053
        %v4055 = vpop.f32.mrb[0].mxu0
        %v4056 = vpop.f32.mrb[0].mxu0
        %v4057 = vadd.f32 0.0, %v4056
        %v4058 = vpop.f32.mrb[0].mxu0
        %4059 = vmatprep.mubr.bf16.mxu0 0
        %4060 = vmatmul.mubr.bf16.gmra.mrb[0].mxu0 %v1161
        %v4061 = vpop.f32.mrb[0].mxu0
        %v4062 = vadd.f32 0.0, %v4061
        %v4063 = vpop.f32.mrb[0].mxu0
        %v4064 = vpop.f32.mrb[0].mxu0
        %v4065 = vadd.f32 0.0, %v4064
        %v4066 = vpop.f32.mrb[0].mxu0
        %4067 = vmatprep.mubr.bf16.mxu0 0
        %4068 = vmatmul.mubr.bf16.gmra.mrb[0].mxu0 %v1164
        %v4069 = vpop.f32.mrb[0].mxu0
        %v4070 = vadd.f32 0.0, %v4069
        %v4071 = vpop.f32.mrb[0].mxu0
        %v4072 = vpop.f32.mrb[0].mxu0
        %v4073 = vadd.f32 0.0, %v4072
        %v4074 = vpop.f32.mrb[0].mxu0
        %4075 = vmatprep.mubr.bf16.mxu0 0
        %4076 = vmatmul.mubr.bf16.gmra.mrb[0].mxu0 %v1167
        %v4077 = vpop.f32.mrb[0].mxu0
        %v4078 = vadd.f32 0.0, %v4077
        %v4079 = vpop.f32.mrb[0].mxu0
        %v4080 = vpop.f32.mrb[0].mxu0
        %v4081 = vadd.f32 0.0, %v4080
        %v4082 = vpop.f32.mrb[0].mxu0
        %4083 = vmatprep.mubr.bf16.mxu0 0
        %4084 = vmatmul.mubr.bf16.gmra.mrb[0].mxu0 %v1170
        %v4085 = vpop.f32.mrb[0].mxu0
        %v4086 = vadd.f32 0.0, %v4085
        %v4087 = vpop.f32.mrb[0].mxu0
        %v4088 = vpop.f32.mrb[0].mxu0
        %v4089 = vadd.f32 0.0, %v4088
        %v4090 = vpop.f32.mrb[0].mxu0
        %4091 = vmatprep.mubr.bf16.mxu0 0
        %4092 = vmatmul.mubr.bf16.gmra.mrb[0].mxu0 %v1173
        %v4093 = vpop.f32.mrb[0].mxu0
        %v4094 = vadd.f32 0.0, %v4093
        %v4095 = vpop.f32.mrb[0].mxu0
        %v4096 = vpop.f32.mrb[0].mxu0
        %v4097 = vadd.f32 0.0, %v4096
        %v4098 = vpop.f32.mrb[0].mxu0
        %4099 = vmatprep.mubr.bf16.mxu0 0
        %4100 = vmatmul.mubr.bf16.gmra.mrb[0].mxu0 %v1176
        %v4101 = vpop.f32.mrb[0].mxu0
        %v4102 = vadd.f32 0.0, %v4101
        %v4103 = vpop.f32.mrb[0].mxu0
        %v4104 = vpop.f32.mrb[0].mxu0
        %v4105 = vadd.f32 0.0, %v4104
        %v4106 = vpop.f32.mrb[0].mxu0
        %4107 = vdwg.mxu0
        %v4108 = vrot.slane %v3982, 1
        %v4109 = vrot.slane %v3985, 1
        %v4110 = vrot.slane %v3990, 1
        %v4111 = vrot.slane %v3993, 1
        %v4112 = vrot.slane %v3998, 1
        %v4113 = vrot.slane %v4001, 1
        %v4114 = vrot.slane %v4006, 1
        %v4115 = vrot.slane %v4009, 1
        %v4116 = vrot.slane %v4014, 1
        %v4117 = vrot.slane %v4017, 1
        %v4118 = vrot.slane %v4022, 1
        %v4119 = vrot.slane %v4025, 1
        %v4120 = vrot.slane %v4030, 1
        %v4121 = vrot.slane %v4033, 1
        %v4122 = vrot.slane %v4038, 1
        %v4123 = vrot.slane %v4041, 1
        %v4124 = vrot.slane %v4046, 1
        %v4125 = vrot.slane %v4049, 1
        %v4126 = vrot.slane %v4054, 1
        %v4127 = vrot.slane %v4057, 1
        %v4128 = vrot.slane %v4062, 1
        %v4129 = vrot.slane %v4065, 1
        %v4130 = vrot.slane %v4070, 1
        %v4131 = vrot.slane %v4073, 1
        %v4132 = vrot.slane %v4078, 1
        %v4133 = vrot.slane %v4081, 1
        %v4134 = vrot.slane %v4086, 1
        %v4135 = vrot.slane %v4089, 1
        %v4136 = vrot.slane %v4094, 1
        %v4137 = vrot.slane %v4097, 1
        %v4138 = vrot.slane %v4102, 1
        %v4139 = vrot.slane %v4105, 1
        %v4140 = vsel %vm2273, %v4138, %v4139
        %v4141 = vsel %vm2273, %v4137, %v4138
        %v4142 = vsel %vm2273, %v4136, %v4137
        %v4143 = vsel %vm2273, %v4135, %v4136
        %v4144 = vsel %vm2273, %v4134, %v4135
        %v4145 = vsel %vm2273, %v4133, %v4134
        %v4146 = vsel %vm2273, %v4132, %v4133
        %v4147 = vsel %vm2273, %v4131, %v4132
        %v4148 = vsel %vm2273, %v4130, %v4131
        %v4149 = vsel %vm2273, %v4129, %v4130
        %v4150 = vsel %vm2273, %v4128, %v4129
        %v4151 = vsel %vm2273, %v4127, %v4128
        %v4152 = vsel %vm2273, %v4126, %v4127
        %v4153 = vsel %vm2273, %v4125, %v4126
        %v4154 = vsel %vm2273, %v4124, %v4125
        %v4155 = vsel %vm2273, %v4123, %v4124
        %v4156 = vsel %vm2273, %v4122, %v4123
        %v4157 = vsel %vm2273, %v4121, %v4122
        %v4158 = vsel %vm2273, %v4120, %v4121
        %v4159 = vsel %vm2273, %v4119, %v4120
        %v4160 = vsel %vm2273, %v4118, %v4119
        %v4161 = vsel %vm2273, %v4117, %v4118
        %v4162 = vsel %vm2273, %v4116, %v4117
        %v4163 = vsel %vm2273, %v4115, %v4116
        %v4164 = vsel %vm2273, %v4114, %v4115
        %v4165 = vsel %vm2273, %v4113, %v4114
        %v4166 = vsel %vm2273, %v4112, %v4113
        %v4167 = vsel %vm2273, %v4111, %v4112
        %v4168 = vsel %vm2273, %v4110, %v4111
        %v4169 = vsel %vm2273, %v4109, %v4110
        %v4170 = vsel %vm2273, %v4108, %v4109
        %v4171 = vsel %vm2273, %v4139, %v4108
        %v4172 = vsel %vm722, 1, 0
        %v4173 = vsel %vm723, 1, 0
        %v4174 = vsel %vm724, 1, 0
        %v4175 = vsel %vm725, 1, 0
        %v4176 = vsel %vm726, 1, 0
        %v4177 = vsel %vm727, 1, 0
        %v4178 = vsel %vm728, 1, 0
        %v4179 = vsel %vm729, 1, 0
        %v4180 = vsel %vm730, 1, 0
        %v4181 = vsel %vm731, 1, 0
        %v4182 = vsel %vm732, 1, 0
        %v4183 = vsel %vm733, 1, 0
        %v4184 = vsel %vm734, 1, 0
        %v4185 = vsel %vm735, 1, 0
        %v4186 = vsel %vm736, 1, 0
        %v4187 = vsel %vm737, 1, 0
        %v4188 = vsel %vm738, 1, 0
        %v4189 = vsel %vm739, 1, 0
        %v4190 = vsel %vm740, 1, 0
        %v4191 = vsel %vm741, 1, 0
        %v4192 = vsel %vm742, 1, 0
        %v4193 = vsel %vm743, 1, 0
        %v4194 = vsel %vm744, 1, 0
        %v4195 = vsel %vm745, 1, 0
        %v4196 = vsel %vm746, 1, 0
        %v4197 = vsel %vm747, 1, 0
        %v4198 = vsel %vm748, 1, 0
        %v4199 = vsel %vm749, 1, 0
        %v4200 = vsel %vm750, 1, 0
        %v4201 = vsel %vm751, 1, 0
        %v4202 = vsel %vm752, 1, 0
        %v4203 = vsel %vm753, 1, 0
        %vm4204 = vcmp.eq.s32.totalorder %v4172, 1
        %vm4205 = vcmp.eq.s32.totalorder %v4173, 1
        %vm4206 = vcmp.eq.s32.totalorder %v4174, 1
        %vm4207 = vcmp.eq.s32.totalorder %v4175, 1
        %vm4208 = vcmp.eq.s32.totalorder %v4176, 1
        %vm4209 = vcmp.eq.s32.totalorder %v4177, 1
        %vm4210 = vcmp.eq.s32.totalorder %v4178, 1
        %vm4211 = vcmp.eq.s32.totalorder %v4179, 1
        %vm4212 = vcmp.eq.s32.totalorder %v4180, 1
        %vm4213 = vcmp.eq.s32.totalorder %v4181, 1
        %vm4214 = vcmp.eq.s32.totalorder %v4182, 1
        %vm4215 = vcmp.eq.s32.totalorder %v4183, 1
        %vm4216 = vcmp.eq.s32.totalorder %v4184, 1
        %vm4217 = vcmp.eq.s32.totalorder %v4185, 1
        %vm4218 = vcmp.eq.s32.totalorder %v4186, 1
        %vm4219 = vcmp.eq.s32.totalorder %v4187, 1
        %vm4220 = vcmp.eq.s32.totalorder %v4188, 1
        %vm4221 = vcmp.eq.s32.totalorder %v4189, 1
        %vm4222 = vcmp.eq.s32.totalorder %v4190, 1
        %vm4223 = vcmp.eq.s32.totalorder %v4191, 1
        %vm4224 = vcmp.eq.s32.totalorder %v4192, 1
        %vm4225 = vcmp.eq.s32.totalorder %v4193, 1
        %vm4226 = vcmp.eq.s32.totalorder %v4194, 1
        %vm4227 = vcmp.eq.s32.totalorder %v4195, 1
        %vm4228 = vcmp.eq.s32.totalorder %v4196, 1
        %vm4229 = vcmp.eq.s32.totalorder %v4197, 1
        %vm4230 = vcmp.eq.s32.totalorder %v4198, 1
        %vm4231 = vcmp.eq.s32.totalorder %v4199, 1
        %vm4232 = vcmp.eq.s32.totalorder %v4200, 1
        %vm4233 = vcmp.eq.s32.totalorder %v4201, 1
        %vm4234 = vcmp.eq.s32.totalorder %v4202, 1
        %vm4235 = vcmp.eq.s32.totalorder %v4203, 1
        %v4236 = vsel %vm4204, %v4168, 0.0
        %v4237 = vsel %vm4205, %v4167, 0.0
        %v4238 = vsel %vm4206, %v4166, 0.0
        %v4239 = vsel %vm4207, %v4165, 0.0
        %v4240 = vsel %vm4208, %v4164, 0.0
        %v4241 = vsel %vm4209, %v4163, 0.0
        %v4242 = vsel %vm4210, %v4162, 0.0
        %v4243 = vsel %vm4211, %v4161, 0.0
        %v4244 = vsel %vm4212, %v4160, 0.0
        %v4245 = vsel %vm4213, %v4159, 0.0
        %v4246 = vsel %vm4214, %v4158, 0.0
        %v4247 = vsel %vm4215, %v4157, 0.0
        %v4248 = vsel %vm4216, %v4156, 0.0
        %v4249 = vsel %vm4217, %v4155, 0.0
        %v4250 = vsel %vm4218, %v4154, 0.0
        %v4251 = vsel %vm4219, %v4153, 0.0
        %v4252 = vsel %vm4220, %v4152, 0.0
        %v4253 = vsel %vm4221, %v4151, 0.0
        %v4254 = vsel %vm4222, %v4150, 0.0
        %v4255 = vsel %vm4223, %v4149, 0.0
        %v4256 = vsel %vm4224, %v4148, 0.0
        %v4257 = vsel %vm4225, %v4147, 0.0
        %v4258 = vsel %vm4226, %v4146, 0.0
        %v4259 = vsel %vm4227, %v4145, 0.0
        %v4260 = vsel %vm4228, %v4144, 0.0
        %v4261 = vsel %vm4229, %v4143, 0.0
        %v4262 = vsel %vm4230, %v4142, 0.0
        %v4263 = vsel %vm4231, %v4141, 0.0
        %v4264 = vsel %vm4232, %v4140, 0.0
        %v4265 = vsel %vm4233, %v4171, 0.0
        %v4266 = vsel %vm4234, %v4170, 0.0
        %v4267 = vsel %vm4235, %v4169, 0.0
        %v4268 = vadd.f32 %v3882, %v4236
        %v4269 = vadd.f32 %v3883, %v4237
        %v4270 = vadd.f32 %v3884, %v4238
        %v4271 = vadd.f32 %v3885, %v4239
        %v4272 = vadd.f32 %v3886, %v4240
        %v4273 = vadd.f32 %v3887, %v4241
        %v4274 = vadd.f32 %v3888, %v4242
        %v4275 = vadd.f32 %v3889, %v4243
        %v4276 = vadd.f32 %v3890, %v4244
        %v4277 = vadd.f32 %v3891, %v4245
        %v4278 = vadd.f32 %v3892, %v4246
        %v4279 = vadd.f32 %v3893, %v4247
        %v4280 = vadd.f32 %v3894, %v4248
        %v4281 = vadd.f32 %v3895, %v4249
        %v4282 = vadd.f32 %v3896, %v4250
        %v4283 = vadd.f32 %v3897, %v4251
        %v4284 = vadd.f32 %v3898, %v4252
        %v4285 = vadd.f32 %v3899, %v4253
        %v4286 = vadd.f32 %v3900, %v4254
        %v4287 = vadd.f32 %v3901, %v4255
        %v4288 = vadd.f32 %v3902, %v4256
        %v4289 = vadd.f32 %v3903, %v4257
        %v4290 = vadd.f32 %v3904, %v4258
        %v4291 = vadd.f32 %v3905, %v4259
        %v4292 = vadd.f32 %v3906, %v4260
        %v4293 = vadd.f32 %v3907, %v4261
        %v4294 = vadd.f32 %v3908, %v4262
        %v4295 = vadd.f32 %v3909, %v4263
        %v4296 = vadd.f32 %v3910, %v4264
        %v4297 = vadd.f32 %v3911, %v4265
        %v4298 = vadd.f32 %v3912, %v4266
        %v4299 = vadd.f32 %v3913, %v4267
        %v4300 = vmax.f32 %v4268, 0.0
        %v4301 = vmax.f32 %v4269, 0.0
        %v4302 = vmax.f32 %v4270, 0.0
        %v4303 = vmax.f32 %v4271, 0.0
        %v4304 = vmax.f32 %v4272, 0.0
        %v4305 = vmax.f32 %v4273, 0.0
        %v4306 = vmax.f32 %v4274, 0.0
        %v4307 = vmax.f32 %v4275, 0.0
        %v4308 = vmax.f32 %v4276, 0.0
        %v4309 = vmax.f32 %v4277, 0.0
        %v4310 = vmax.f32 %v4278, 0.0
        %v4311 = vmax.f32 %v4279, 0.0
        %v4312 = vmax.f32 %v4280, 0.0
        %v4313 = vmax.f32 %v4281, 0.0
        %v4314 = vmax.f32 %v4282, 0.0
        %v4315 = vmax.f32 %v4283, 0.0
        %v4316 = vmax.f32 %v4284, 0.0
        %v4317 = vmax.f32 %v4285, 0.0
        %v4318 = vmax.f32 %v4286, 0.0
        %v4319 = vmax.f32 %v4287, 0.0
        %v4320 = vmax.f32 %v4288, 0.0
        %v4321 = vmax.f32 %v4289, 0.0
        %v4322 = vmax.f32 %v4290, 0.0
        %v4323 = vmax.f32 %v4291, 0.0
        %v4324 = vmax.f32 %v4292, 0.0
        %v4325 = vmax.f32 %v4293, 0.0
        %v4326 = vmax.f32 %v4294, 0.0
        %v4327 = vmax.f32 %v4295, 0.0
        %v4328 = vmax.f32 %v4296, 0.0
        %v4329 = vmax.f32 %v4297, 0.0
        %v4330 = vmax.f32 %v4298, 0.0
        %v4331 = vmax.f32 %v4299, 0.0
        %v4332 = vpack.c.bf16 %v4301, %v4300
        %v4333 = vpack.c.bf16 %v4303, %v4302
        %v4334 = vpack.c.bf16 %v4305, %v4304
        %v4335 = vpack.c.bf16 %v4307, %v4306
        %v4336 = vpack.c.bf16 %v4309, %v4308
        %v4337 = vpack.c.bf16 %v4311, %v4310
        %v4338 = vpack.c.bf16 %v4313, %v4312
        %v4339 = vpack.c.bf16 %v4315, %v4314
        %v4340 = vpack.c.bf16 %v4317, %v4316
        %v4341 = vpack.c.bf16 %v4319, %v4318
        %v4342 = vpack.c.bf16 %v4321, %v4320
        %v4343 = vpack.c.bf16 %v4323, %v4322
        %v4344 = vpack.c.bf16 %v4325, %v4324
        %v4345 = vpack.c.bf16 %v4327, %v4326
        %v4346 = vpack.c.bf16 %v4329, %v4328
        %v4347 = vpack.c.bf16 %v4331, %v4330
        %s4348 = scalar_lea.vmem %s5, 128
        %v4349 = vld [vmem:[%s4348] sm:$0xf]
        %v4350 = vld [vmem:[%s4348 + $0x4] sm:$0xf]
        %v4351 = vld [vmem:[%s4348 + $0x8] sm:$0xf]
        %v4352 = vld [vmem:[%s4348 + $0xc] sm:$0xf]
        %v4353 = vld [vmem:[%s4348 + $0x10] sm:$0xf]
        %v4354 = vld [vmem:[%s4348 + $0x14] sm:$0xf]
        %v4355 = vld [vmem:[%s4348 + $0x18] sm:$0xf]
        %v4356 = vld [vmem:[%s4348 + $0x1c] sm:$0xf]
        %v4357 = vld [vmem:[%s6] sm:$0x1]
        %v4359 = vlaneseq
        %v4360 = vshrl.u32 %v4359, 7
        %v4361 = vsub.s32 0, %v4360
        %v4362 = vrot.slane %v4357, %v4361
        %v4372 = vunpack.c.l.b16 %v4349
        %v4373 = vunpack.c.l.b16 %v4350
        %v4374 = vunpack.c.l.b16 %v4351
        %v4375 = vunpack.c.l.b16 %v4352
        %v4376 = vunpack.c.l.b16 %v4353
        %v4377 = vunpack.c.l.b16 %v4354
        %v4378 = vunpack.c.l.b16 %v4355
        %v4379 = vunpack.c.l.b16 %v4356
        %v4380 = vpack.c.b16 %v4373, %v4372
        %v4381 = vpack.c.b16 %v4375, %v4374
        %v4382 = vpack.c.b16 %v4377, %v4376
        %v4383 = vpack.c.b16 %v4379, %v4378
        %v4389 = vsel %vm1129, %v4332, 0
        %v4392 = vsel %vm1129, %v4333, 0
        %v4395 = vsel %vm1129, %v4334, 0
        %v4398 = vsel %vm1129, %v4335, 0
        %v4401 = vsel %vm1129, %v4336, 0
        %v4404 = vsel %vm1129, %v4337, 0
        %v4407 = vsel %vm1129, %v4338, 0
        %v4410 = vsel %vm1129, %v4339, 0
        %v4413 = vsel %vm1129, %v4340, 0
        %v4416 = vsel %vm1129, %v4341, 0
        %v4419 = vsel %vm1129, %v4342, 0
        %v4422 = vsel %vm1129, %v4343, 0
        %v4425 = vsel %vm1129, %v4344, 0
        %v4428 = vsel %vm1129, %v4345, 0
        %v4431 = vsel %vm1129, %v4346, 0
        %v4434 = vsel %vm1129, %v4347, 0
        %4436 = vmatprep.subr.bf16.mxu0 0
        %4437 = vmatpush1.bf16.msra.mxu0 %v4380
        %4438 = vmatprep.subr.bf16.mxu0 0
        %4439 = vmatpush1.bf16.msra.mxu0 %v4381
        %4440 = vmatprep.subr.bf16.mxu0 0
        %4441 = vmatpush1.bf16.msra.mxu0 %v4382
        %4442 = vmatprep.subr.bf16.mxu0 0
        %4443 = vmatpush1.bf16.msra.mxu0 %v4383
        %4444 = vmatprep.subr.bf16.mxu0 0
        %4445 = vmatpush1.bf16.msra.mxu0 0
        %4446 = vmatprep.subr.bf16.mxu0 0
        %4447 = vmatpush1.bf16.msra.mxu0 0
        %4448 = vmatprep.subr.bf16.mxu0 0
        %4449 = vmatpush1.bf16.msra.mxu0 0
        %4450 = vmatprep.subr.bf16.mxu0 0
        %4451 = vmatpush1.bf16.msra.mxu0 0
        %4452 = vmatprep.subr.bf16.mxu0 0
        %4453 = vmatpush1.bf16.msra.mxu0 0
        %4454 = vmatprep.subr.bf16.mxu0 0
        %4455 = vmatpush1.bf16.msra.mxu0 0
        %4456 = vmatprep.subr.bf16.mxu0 0
        %4457 = vmatpush1.bf16.msra.mxu0 0
        %4458 = vmatprep.subr.bf16.mxu0 0
        %4459 = vmatpush1.bf16.msra.mxu0 0
        %4460 = vmatprep.subr.bf16.mxu0 0
        %4461 = vmatpush1.bf16.msra.mxu0 0
        %4462 = vmatprep.subr.bf16.mxu0 0
        %4463 = vmatpush1.bf16.msra.mxu0 0
        %4464 = vmatprep.subr.bf16.mxu0 0
        %4465 = vmatpush1.bf16.msra.mxu0 0
        %4466 = vmatprep.subr.bf16.mxu0 0
        %4467 = vmatpush1.bf16.msra.mxu0 0
        %4468 = vmatprep.mubr.bf16.mxu0 0
        %4469 = vmatmul.mubr.bf16.gmra.mrb[0].mxu0 %v4389
        %v4470 = vpop.f32.mrb[0].mxu0
        %v4471 = vadd.f32 %v4362, %v4470
        %v4472 = vpop.f32.mrb[0].mxu0
        %v4473 = vpop.f32.mrb[0].mxu0
        %v4474 = vadd.f32 %v4362, %v4473
        %v4475 = vpop.f32.mrb[0].mxu0
        %4476 = vmatprep.mubr.bf16.mxu0 0
        %4477 = vmatmul.mubr.bf16.gmra.mrb[0].mxu0 %v4392
        %v4478 = vpop.f32.mrb[0].mxu0
        %v4479 = vadd.f32 %v4362, %v4478
        %v4480 = vpop.f32.mrb[0].mxu0
        %v4481 = vpop.f32.mrb[0].mxu0
        %v4482 = vadd.f32 %v4362, %v4481
        %v4483 = vpop.f32.mrb[0].mxu0
        %4484 = vmatprep.mubr.bf16.mxu0 0
        %4485 = vmatmul.mubr.bf16.gmra.mrb[0].mxu0 %v4395
        %v4486 = vpop.f32.mrb[0].mxu0
        %v4487 = vadd.f32 %v4362, %v4486
        %v4488 = vpop.f32.mrb[0].mxu0
        %v4489 = vpop.f32.mrb[0].mxu0
        %v4490 = vadd.f32 %v4362, %v4489
        %v4491 = vpop.f32.mrb[0].mxu0
        %4492 = vmatprep.mubr.bf16.mxu0 0
        %4493 = vmatmul.mubr.bf16.gmra.mrb[0].mxu0 %v4398
        %v4494 = vpop.f32.mrb[0].mxu0
        %v4495 = vadd.f32 %v4362, %v4494
        %v4496 = vpop.f32.mrb[0].mxu0
        %v4497 = vpop.f32.mrb[0].mxu0
        %v4498 = vadd.f32 %v4362, %v4497
        %v4499 = vpop.f32.mrb[0].mxu0
        %4500 = vmatprep.mubr.bf16.mxu0 0
        %4501 = vmatmul.mubr.bf16.gmra.mrb[0].mxu0 %v4401
        %v4502 = vpop.f32.mrb[0].mxu0
        %v4503 = vadd.f32 %v4362, %v4502
        %v4504 = vpop.f32.mrb[0].mxu0
        %v4505 = vpop.f32.mrb[0].mxu0
        %v4506 = vadd.f32 %v4362, %v4505
        %v4507 = vpop.f32.mrb[0].mxu0
        %4508 = vmatprep.mubr.bf16.mxu0 0
        %4509 = vmatmul.mubr.bf16.gmra.mrb[0].mxu0 %v4404
        %v4510 = vpop.f32.mrb[0].mxu0
        %v4511 = vadd.f32 %v4362, %v4510
        %v4512 = vpop.f32.mrb[0].mxu0
        %v4513 = vpop.f32.mrb[0].mxu0
        %v4514 = vadd.f32 %v4362, %v4513
        %v4515 = vpop.f32.mrb[0].mxu0
        %4516 = vmatprep.mubr.bf16.mxu0 0
        %4517 = vmatmul.mubr.bf16.gmra.mrb[0].mxu0 %v4407
        %v4518 = vpop.f32.mrb[0].mxu0
        %v4519 = vadd.f32 %v4362, %v4518
        %v4520 = vpop.f32.mrb[0].mxu0
        %v4521 = vpop.f32.mrb[0].mxu0
        %v4522 = vadd.f32 %v4362, %v4521
        %v4523 = vpop.f32.mrb[0].mxu0
        %4524 = vmatprep.mubr.bf16.mxu0 0
        %4525 = vmatmul.mubr.bf16.gmra.mrb[0].mxu0 %v4410
        %v4526 = vpop.f32.mrb[0].mxu0
        %v4527 = vadd.f32 %v4362, %v4526
        %v4528 = vpop.f32.mrb[0].mxu0
        %v4529 = vpop.f32.mrb[0].mxu0
        %v4530 = vadd.f32 %v4362, %v4529
        %v4531 = vpop.f32.mrb[0].mxu0
        %4532 = vmatprep.mubr.bf16.mxu0 0
        %4533 = vmatmul.mubr.bf16.gmra.mrb[0].mxu0 %v4413
        %v4534 = vpop.f32.mrb[0].mxu0
        %v4535 = vadd.f32 %v4362, %v4534
        %v4536 = vpop.f32.mrb[0].mxu0
        %v4537 = vpop.f32.mrb[0].mxu0
        %v4538 = vadd.f32 %v4362, %v4537
        %v4539 = vpop.f32.mrb[0].mxu0
        %4540 = vmatprep.mubr.bf16.mxu0 0
        %4541 = vmatmul.mubr.bf16.gmra.mrb[0].mxu0 %v4416
        %v4542 = vpop.f32.mrb[0].mxu0
        %v4543 = vadd.f32 %v4362, %v4542
        %v4544 = vpop.f32.mrb[0].mxu0
        %v4545 = vpop.f32.mrb[0].mxu0
        %v4546 = vadd.f32 %v4362, %v4545
        %v4547 = vpop.f32.mrb[0].mxu0
        %4548 = vmatprep.mubr.bf16.mxu0 0
        %4549 = vmatmul.mubr.bf16.gmra.mrb[0].mxu0 %v4419
        %v4550 = vpop.f32.mrb[0].mxu0
        %v4551 = vadd.f32 %v4362, %v4550
        %v4552 = vpop.f32.mrb[0].mxu0
        %v4553 = vpop.f32.mrb[0].mxu0
        %v4554 = vadd.f32 %v4362, %v4553
        %v4555 = vpop.f32.mrb[0].mxu0
        %4556 = vmatprep.mubr.bf16.mxu0 0
        %4557 = vmatmul.mubr.bf16.gmra.mrb[0].mxu0 %v4422
        %v4558 = vpop.f32.mrb[0].mxu0
        %v4559 = vadd.f32 %v4362, %v4558
        %v4560 = vpop.f32.mrb[0].mxu0
        %v4561 = vpop.f32.mrb[0].mxu0
        %v4562 = vadd.f32 %v4362, %v4561
        %v4563 = vpop.f32.mrb[0].mxu0
        %4564 = vmatprep.mubr.bf16.mxu0 0
        %4565 = vmatmul.mubr.bf16.gmra.mrb[0].mxu0 %v4425
        %v4566 = vpop.f32.mrb[0].mxu0
        %v4567 = vadd.f32 %v4362, %v4566
        %v4568 = vpop.f32.mrb[0].mxu0
        %v4569 = vpop.f32.mrb[0].mxu0
        %v4570 = vadd.f32 %v4362, %v4569
        %v4571 = vpop.f32.mrb[0].mxu0
        %4572 = vmatprep.mubr.bf16.mxu0 0
        %4573 = vmatmul.mubr.bf16.gmra.mrb[0].mxu0 %v4428
        %v4574 = vpop.f32.mrb[0].mxu0
        %v4575 = vadd.f32 %v4362, %v4574
        %v4576 = vpop.f32.mrb[0].mxu0
        %v4577 = vpop.f32.mrb[0].mxu0
        %v4578 = vadd.f32 %v4362, %v4577
        %v4579 = vpop.f32.mrb[0].mxu0
        %4580 = vmatprep.mubr.bf16.mxu0 0
        %4581 = vmatmul.mubr.bf16.gmra.mrb[0].mxu0 %v4431
        %v4582 = vpop.f32.mrb[0].mxu0
        %v4583 = vadd.f32 %v4362, %v4582
        %v4584 = vpop.f32.mrb[0].mxu0
        %v4585 = vpop.f32.mrb[0].mxu0
        %v4586 = vadd.f32 %v4362, %v4585
        %v4587 = vpop.f32.mrb[0].mxu0
        %4588 = vmatprep.mubr.bf16.mxu0 0
        %4589 = vmatmul.mubr.bf16.gmra.mrb[0].mxu0 %v4434
        %v4590 = vpop.f32.mrb[0].mxu0
        %v4591 = vadd.f32 %v4362, %v4590
        %v4592 = vpop.f32.mrb[0].mxu0
        %v4593 = vpop.f32.mrb[0].mxu0
        %v4594 = vadd.f32 %v4362, %v4593
        %v4595 = vpop.f32.mrb[0].mxu0
        %4596 = vdwg.mxu0
        %v4597 = vld [vmem:[%s5] sm:$0xf]
        %v4598 = vld [vmem:[%s5 + $0x4] sm:$0xf]
        %v4599 = vld [vmem:[%s5 + $0x8] sm:$0xf]
        %v4600 = vld [vmem:[%s5 + $0xc] sm:$0xf]
        %v4601 = vld [vmem:[%s5 + $0x10] sm:$0xf]
        %v4602 = vld [vmem:[%s5 + $0x14] sm:$0xf]
        %v4603 = vld [vmem:[%s5 + $0x18] sm:$0xf]
        %v4604 = vld [vmem:[%s5 + $0x1c] sm:$0xf]
        %v4613 = vunpack.c.l.b16 %v4597
        %v4614 = vunpack.c.l.b16 %v4598
        %v4615 = vunpack.c.l.b16 %v4599
        %v4616 = vunpack.c.l.b16 %v4600
        %v4617 = vunpack.c.l.b16 %v4601
        %v4618 = vunpack.c.l.b16 %v4602
        %v4619 = vunpack.c.l.b16 %v4603
        %v4620 = vunpack.c.l.b16 %v4604
        %v4621 = vpack.c.b16 %v4614, %v4613
        %v4622 = vpack.c.b16 %v4616, %v4615
        %v4623 = vpack.c.b16 %v4618, %v4617
        %v4624 = vpack.c.b16 %v4620, %v4619
        %4629 = vmatprep.subr.bf16.mxu0 0
        %4630 = vmatpush1.bf16.msra.mxu0 %v4621
        %4631 = vmatprep.subr.bf16.mxu0 0
        %4632 = vmatpush1.bf16.msra.mxu0 %v4622
        %4633 = vmatprep.subr.bf16.mxu0 0
        %4634 = vmatpush1.bf16.msra.mxu0 %v4623
        %4635 = vmatprep.subr.bf16.mxu0 0
        %4636 = vmatpush1.bf16.msra.mxu0 %v4624
        %4637 = vmatprep.subr.bf16.mxu0 0
        %4638 = vmatpush1.bf16.msra.mxu0 0
        %4639 = vmatprep.subr.bf16.mxu0 0
        %4640 = vmatpush1.bf16.msra.mxu0 0
        %4641 = vmatprep.subr.bf16.mxu0 0
        %4642 = vmatpush1.bf16.msra.mxu0 0
        %4643 = vmatprep.subr.bf16.mxu0 0
        %4644 = vmatpush1.bf16.msra.mxu0 0
        %4645 = vmatprep.subr.bf16.mxu0 0
        %4646 = vmatpush1.bf16.msra.mxu0 0
        %4647 = vmatprep.subr.bf16.mxu0 0
        %4648 = vmatpush1.bf16.msra.mxu0 0
        %4649 = vmatprep.subr.bf16.mxu0 0
        %4650 = vmatpush1.bf16.msra.mxu0 0
        %4651 = vmatprep.subr.bf16.mxu0 0
        %4652 = vmatpush1.bf16.msra.mxu0 0
        %4653 = vmatprep.subr.bf16.mxu0 0
        %4654 = vmatpush1.bf16.msra.mxu0 0
        %4655 = vmatprep.subr.bf16.mxu0 0
        %4656 = vmatpush1.bf16.msra.mxu0 0
        %4657 = vmatprep.subr.bf16.mxu0 0
        %4658 = vmatpush1.bf16.msra.mxu0 0
        %4659 = vmatprep.subr.bf16.mxu0 0
        %4660 = vmatpush1.bf16.msra.mxu0 0
        %4661 = vmatprep.mubr.bf16.mxu0 0
        %4662 = vmatmul.mubr.bf16.gmra.mrb[0].mxu0 %v4389
        %v4663 = vpop.f32.mrb[0].mxu0
        %v4664 = vadd.f32 0.0, %v4663
        %v4665 = vpop.f32.mrb[0].mxu0
        %v4666 = vpop.f32.mrb[0].mxu0
        %v4667 = vadd.f32 0.0, %v4666
        %v4668 = vpop.f32.mrb[0].mxu0
        %4669 = vmatprep.mubr.bf16.mxu0 0
        %4670 = vmatmul.mubr.bf16.gmra.mrb[0].mxu0 %v4392
        %v4671 = vpop.f32.mrb[0].mxu0
        %v4672 = vadd.f32 0.0, %v4671
        %v4673 = vpop.f32.mrb[0].mxu0
        %v4674 = vpop.f32.mrb[0].mxu0
        %v4675 = vadd.f32 0.0, %v4674
        %v4676 = vpop.f32.mrb[0].mxu0
        %4677 = vmatprep.mubr.bf16.mxu0 0
        %4678 = vmatmul.mubr.bf16.gmra.mrb[0].mxu0 %v4395
        %v4679 = vpop.f32.mrb[0].mxu0
        %v4680 = vadd.f32 0.0, %v4679
        %v4681 = vpop.f32.mrb[0].mxu0
        %v4682 = vpop.f32.mrb[0].mxu0
        %v4683 = vadd.f32 0.0, %v4682
        %v4684 = vpop.f32.mrb[0].mxu0
        %4685 = vmatprep.mubr.bf16.mxu0 0
        %4686 = vmatmul.mubr.bf16.gmra.mrb[0].mxu0 %v4398
        %v4687 = vpop.f32.mrb[0].mxu0
        %v4688 = vadd.f32 0.0, %v4687
        %v4689 = vpop.f32.mrb[0].mxu0
        %v4690 = vpop.f32.mrb[0].mxu0
        %v4691 = vadd.f32 0.0, %v4690
        %v4692 = vpop.f32.mrb[0].mxu0
        %4693 = vmatprep.mubr.bf16.mxu0 0
        %4694 = vmatmul.mubr.bf16.gmra.mrb[0].mxu0 %v4401
        %v4695 = vpop.f32.mrb[0].mxu0
        %v4696 = vadd.f32 0.0, %v4695
        %v4697 = vpop.f32.mrb[0].mxu0
        %v4698 = vpop.f32.mrb[0].mxu0
        %v4699 = vadd.f32 0.0, %v4698
        %v4700 = vpop.f32.mrb[0].mxu0
        %4701 = vmatprep.mubr.bf16.mxu0 0
        %4702 = vmatmul.mubr.bf16.gmra.mrb[0].mxu0 %v4404
        %v4703 = vpop.f32.mrb[0].mxu0
        %v4704 = vadd.f32 0.0, %v4703
        %v4705 = vpop.f32.mrb[0].mxu0
        %v4706 = vpop.f32.mrb[0].mxu0
        %v4707 = vadd.f32 0.0, %v4706
        %v4708 = vpop.f32.mrb[0].mxu0
        %4709 = vmatprep.mubr.bf16.mxu0 0
        %4710 = vmatmul.mubr.bf16.gmra.mrb[0].mxu0 %v4407
        %v4711 = vpop.f32.mrb[0].mxu0
        %v4712 = vadd.f32 0.0, %v4711
        %v4713 = vpop.f32.mrb[0].mxu0
        %v4714 = vpop.f32.mrb[0].mxu0
        %v4715 = vadd.f32 0.0, %v4714
        %v4716 = vpop.f32.mrb[0].mxu0
        %4717 = vmatprep.mubr.bf16.mxu0 0
        %4718 = vmatmul.mubr.bf16.gmra.mrb[0].mxu0 %v4410
        %v4719 = vpop.f32.mrb[0].mxu0
        %v4720 = vadd.f32 0.0, %v4719
        %v4721 = vpop.f32.mrb[0].mxu0
        %v4722 = vpop.f32.mrb[0].mxu0
        %v4723 = vadd.f32 0.0, %v4722
        %v4724 = vpop.f32.mrb[0].mxu0
        %4725 = vmatprep.mubr.bf16.mxu0 0
        %4726 = vmatmul.mubr.bf16.gmra.mrb[0].mxu0 %v4413
        %v4727 = vpop.f32.mrb[0].mxu0
        %v4728 = vadd.f32 0.0, %v4727
        %v4729 = vpop.f32.mrb[0].mxu0
        %v4730 = vpop.f32.mrb[0].mxu0
        %v4731 = vadd.f32 0.0, %v4730
        %v4732 = vpop.f32.mrb[0].mxu0
        %4733 = vmatprep.mubr.bf16.mxu0 0
        %4734 = vmatmul.mubr.bf16.gmra.mrb[0].mxu0 %v4416
        %v4735 = vpop.f32.mrb[0].mxu0
        %v4736 = vadd.f32 0.0, %v4735
        %v4737 = vpop.f32.mrb[0].mxu0
        %v4738 = vpop.f32.mrb[0].mxu0
        %v4739 = vadd.f32 0.0, %v4738
        %v4740 = vpop.f32.mrb[0].mxu0
        %4741 = vmatprep.mubr.bf16.mxu0 0
        %4742 = vmatmul.mubr.bf16.gmra.mrb[0].mxu0 %v4419
        %v4743 = vpop.f32.mrb[0].mxu0
        %v4744 = vadd.f32 0.0, %v4743
        %v4745 = vpop.f32.mrb[0].mxu0
        %v4746 = vpop.f32.mrb[0].mxu0
        %v4747 = vadd.f32 0.0, %v4746
        %v4748 = vpop.f32.mrb[0].mxu0
        %4749 = vmatprep.mubr.bf16.mxu0 0
        %4750 = vmatmul.mubr.bf16.gmra.mrb[0].mxu0 %v4422
        %v4751 = vpop.f32.mrb[0].mxu0
        %v4752 = vadd.f32 0.0, %v4751
        %v4753 = vpop.f32.mrb[0].mxu0
        %v4754 = vpop.f32.mrb[0].mxu0
        %v4755 = vadd.f32 0.0, %v4754
        %v4756 = vpop.f32.mrb[0].mxu0
        %4757 = vmatprep.mubr.bf16.mxu0 0
        %4758 = vmatmul.mubr.bf16.gmra.mrb[0].mxu0 %v4425
        %v4759 = vpop.f32.mrb[0].mxu0
        %v4760 = vadd.f32 0.0, %v4759
        %v4761 = vpop.f32.mrb[0].mxu0
        %v4762 = vpop.f32.mrb[0].mxu0
        %v4763 = vadd.f32 0.0, %v4762
        %v4764 = vpop.f32.mrb[0].mxu0
        %4765 = vmatprep.mubr.bf16.mxu0 0
        %4766 = vmatmul.mubr.bf16.gmra.mrb[0].mxu0 %v4428
        %v4767 = vpop.f32.mrb[0].mxu0
        %v4768 = vadd.f32 0.0, %v4767
        %v4769 = vpop.f32.mrb[0].mxu0
        %v4770 = vpop.f32.mrb[0].mxu0
        %v4771 = vadd.f32 0.0, %v4770
        %v4772 = vpop.f32.mrb[0].mxu0
        %4773 = vmatprep.mubr.bf16.mxu0 0
        %4774 = vmatmul.mubr.bf16.gmra.mrb[0].mxu0 %v4431
        %v4775 = vpop.f32.mrb[0].mxu0
        %v4776 = vadd.f32 0.0, %v4775
        %v4777 = vpop.f32.mrb[0].mxu0
        %v4778 = vpop.f32.mrb[0].mxu0
        %v4779 = vadd.f32 0.0, %v4778
        %v4780 = vpop.f32.mrb[0].mxu0
        %4781 = vmatprep.mubr.bf16.mxu0 0
        %4782 = vmatmul.mubr.bf16.gmra.mrb[0].mxu0 %v4434
        %v4783 = vpop.f32.mrb[0].mxu0
        %v4784 = vadd.f32 0.0, %v4783
        %v4785 = vpop.f32.mrb[0].mxu0
        %v4786 = vpop.f32.mrb[0].mxu0
        %v4787 = vadd.f32 0.0, %v4786
        %v4788 = vpop.f32.mrb[0].mxu0
        %4789 = vdwg.mxu0
        %v4790 = vrot.slane %v4664, 7
        %v4791 = vrot.slane %v4667, 7
        %v4792 = vrot.slane %v4672, 7
        %v4793 = vrot.slane %v4675, 7
        %v4794 = vrot.slane %v4680, 7
        %v4795 = vrot.slane %v4683, 7
        %v4796 = vrot.slane %v4688, 7
        %v4797 = vrot.slane %v4691, 7
        %v4798 = vrot.slane %v4696, 7
        %v4799 = vrot.slane %v4699, 7
        %v4800 = vrot.slane %v4704, 7
        %v4801 = vrot.slane %v4707, 7
        %v4802 = vrot.slane %v4712, 7
        %v4803 = vrot.slane %v4715, 7
        %v4804 = vrot.slane %v4720, 7
        %v4805 = vrot.slane %v4723, 7
        %v4806 = vrot.slane %v4728, 7
        %v4807 = vrot.slane %v4731, 7
        %v4808 = vrot.slane %v4736, 7
        %v4809 = vrot.slane %v4739, 7
        %v4810 = vrot.slane %v4744, 7
        %v4811 = vrot.slane %v4747, 7
        %v4812 = vrot.slane %v4752, 7
        %v4813 = vrot.slane %v4755, 7
        %v4814 = vrot.slane %v4760, 7
        %v4815 = vrot.slane %v4763, 7
        %v4816 = vrot.slane %v4768, 7
        %v4817 = vrot.slane %v4771, 7
        %v4818 = vrot.slane %v4776, 7
        %v4819 = vrot.slane %v4779, 7
        %v4820 = vrot.slane %v4784, 7
        %v4821 = vrot.slane %v4787, 7
        %v4822 = vsel %vm1564, %v4820, %v4821
        %v4823 = vsel %vm1564, %v4819, %v4820
        %v4824 = vsel %vm1564, %v4818, %v4819
        %v4825 = vsel %vm1564, %v4817, %v4818
        %v4826 = vsel %vm1564, %v4816, %v4817
        %v4827 = vsel %vm1564, %v4815, %v4816
        %v4828 = vsel %vm1564, %v4814, %v4815
        %v4829 = vsel %vm1564, %v4813, %v4814
        %v4830 = vsel %vm1564, %v4812, %v4813
        %v4831 = vsel %vm1564, %v4811, %v4812
        %v4832 = vsel %vm1564, %v4810, %v4811
        %v4833 = vsel %vm1564, %v4809, %v4810
        %v4834 = vsel %vm1564, %v4808, %v4809
        %v4835 = vsel %vm1564, %v4807, %v4808
        %v4836 = vsel %vm1564, %v4806, %v4807
        %v4837 = vsel %vm1564, %v4805, %v4806
        %v4838 = vsel %vm1564, %v4804, %v4805
        %v4839 = vsel %vm1564, %v4803, %v4804
        %v4840 = vsel %vm1564, %v4802, %v4803
        %v4841 = vsel %vm1564, %v4801, %v4802
        %v4842 = vsel %vm1564, %v4800, %v4801
        %v4843 = vsel %vm1564, %v4799, %v4800
        %v4844 = vsel %vm1564, %v4798, %v4799
        %v4845 = vsel %vm1564, %v4797, %v4798
        %v4846 = vsel %vm1564, %v4796, %v4797
        %v4847 = vsel %vm1564, %v4795, %v4796
        %v4848 = vsel %vm1564, %v4794, %v4795
        %v4849 = vsel %vm1564, %v4793, %v4794
        %v4850 = vsel %vm1564, %v4792, %v4793
        %v4851 = vsel %vm1564, %v4791, %v4792
        %v4852 = vsel %vm1564, %v4790, %v4791
        %v4853 = vsel %vm1564, %v4821, %v4790
        %v4854 = vsel %vm1629, %v4823, 0.0
        %v4855 = vsel %vm1630, %v4822, 0.0
        %v4856 = vsel %vm1631, %v4853, 0.0
        %v4857 = vsel %vm1632, %v4852, 0.0
        %v4858 = vsel %vm1633, %v4851, 0.0
        %v4859 = vsel %vm1634, %v4850, 0.0
        %v4860 = vsel %vm1635, %v4849, 0.0
        %v4861 = vsel %vm1636, %v4848, 0.0
        %v4862 = vsel %vm1637, %v4847, 0.0
        %v4863 = vsel %vm1638, %v4846, 0.0
        %v4864 = vsel %vm1639, %v4845, 0.0
        %v4865 = vsel %vm1640, %v4844, 0.0
        %v4866 = vsel %vm1641, %v4843, 0.0
        %v4867 = vsel %vm1642, %v4842, 0.0
        %v4868 = vsel %vm1643, %v4841, 0.0
        %v4869 = vsel %vm1644, %v4840, 0.0
        %v4870 = vsel %vm1645, %v4839, 0.0
        %v4871 = vsel %vm1646, %v4838, 0.0
        %v4872 = vsel %vm1647, %v4837, 0.0
        %v4873 = vsel %vm1648, %v4836, 0.0
        %v4874 = vsel %vm1649, %v4835, 0.0
        %v4875 = vsel %vm1650, %v4834, 0.0
        %v4876 = vsel %vm1651, %v4833, 0.0
        %v4877 = vsel %vm1652, %v4832, 0.0
        %v4878 = vsel %vm1653, %v4831, 0.0
        %v4879 = vsel %vm1654, %v4830, 0.0
        %v4880 = vsel %vm1655, %v4829, 0.0
        %v4881 = vsel %vm1656, %v4828, 0.0
        %v4882 = vsel %vm1657, %v4827, 0.0
        %v4883 = vsel %vm1658, %v4826, 0.0
        %v4884 = vsel %vm1659, %v4825, 0.0
        %v4885 = vsel %vm1660, %v4824, 0.0
        %v4886 = vadd.f32 %v4471, %v4854
        %v4887 = vadd.f32 %v4474, %v4855
        %v4888 = vadd.f32 %v4479, %v4856
        %v4889 = vadd.f32 %v4482, %v4857
        %v4890 = vadd.f32 %v4487, %v4858
        %v4891 = vadd.f32 %v4490, %v4859
        %v4892 = vadd.f32 %v4495, %v4860
        %v4893 = vadd.f32 %v4498, %v4861
        %v4894 = vadd.f32 %v4503, %v4862
        %v4895 = vadd.f32 %v4506, %v4863
        %v4896 = vadd.f32 %v4511, %v4864
        %v4897 = vadd.f32 %v4514, %v4865
        %v4898 = vadd.f32 %v4519, %v4866
        %v4899 = vadd.f32 %v4522, %v4867
        %v4900 = vadd.f32 %v4527, %v4868
        %v4901 = vadd.f32 %v4530, %v4869
        %v4902 = vadd.f32 %v4535, %v4870
        %v4903 = vadd.f32 %v4538, %v4871
        %v4904 = vadd.f32 %v4543, %v4872
        %v4905 = vadd.f32 %v4546, %v4873
        %v4906 = vadd.f32 %v4551, %v4874
        %v4907 = vadd.f32 %v4554, %v4875
        %v4908 = vadd.f32 %v4559, %v4876
        %v4909 = vadd.f32 %v4562, %v4877
        %v4910 = vadd.f32 %v4567, %v4878
        %v4911 = vadd.f32 %v4570, %v4879
        %v4912 = vadd.f32 %v4575, %v4880
        %v4913 = vadd.f32 %v4578, %v4881
        %v4914 = vadd.f32 %v4583, %v4882
        %v4915 = vadd.f32 %v4586, %v4883
        %v4916 = vadd.f32 %v4591, %v4884
        %v4917 = vadd.f32 %v4594, %v4885
        %s4918 = scalar_lea.vmem %s5, 32
        %v4919 = vld [vmem:[%s4918] sm:$0xf]
        %v4920 = vld [vmem:[%s4918 + $0x4] sm:$0xf]
        %v4921 = vld [vmem:[%s4918 + $0x8] sm:$0xf]
        %v4922 = vld [vmem:[%s4918 + $0xc] sm:$0xf]
        %v4923 = vld [vmem:[%s4918 + $0x10] sm:$0xf]
        %v4924 = vld [vmem:[%s4918 + $0x14] sm:$0xf]
        %v4925 = vld [vmem:[%s4918 + $0x18] sm:$0xf]
        %v4926 = vld [vmem:[%s4918 + $0x1c] sm:$0xf]
        %v4935 = vunpack.c.l.b16 %v4919
        %v4936 = vunpack.c.l.b16 %v4920
        %v4937 = vunpack.c.l.b16 %v4921
        %v4938 = vunpack.c.l.b16 %v4922
        %v4939 = vunpack.c.l.b16 %v4923
        %v4940 = vunpack.c.l.b16 %v4924
        %v4941 = vunpack.c.l.b16 %v4925
        %v4942 = vunpack.c.l.b16 %v4926
        %v4943 = vpack.c.b16 %v4936, %v4935
        %v4944 = vpack.c.b16 %v4938, %v4937
        %v4945 = vpack.c.b16 %v4940, %v4939
        %v4946 = vpack.c.b16 %v4942, %v4941
        %4951 = vmatprep.subr.bf16.mxu0 0
        %4952 = vmatpush1.bf16.msra.mxu0 %v4943
        %4953 = vmatprep.subr.bf16.mxu0 0
        %4954 = vmatpush1.bf16.msra.mxu0 %v4944
        %4955 = vmatprep.subr.bf16.mxu0 0
        %4956 = vmatpush1.bf16.msra.mxu0 %v4945
        %4957 = vmatprep.subr.bf16.mxu0 0
        %4958 = vmatpush1.bf16.msra.mxu0 %v4946
        %4959 = vmatprep.subr.bf16.mxu0 0
        %4960 = vmatpush1.bf16.msra.mxu0 0
        %4961 = vmatprep.subr.bf16.mxu0 0
        %4962 = vmatpush1.bf16.msra.mxu0 0
        %4963 = vmatprep.subr.bf16.mxu0 0
        %4964 = vmatpush1.bf16.msra.mxu0 0
        %4965 = vmatprep.subr.bf16.mxu0 0
        %4966 = vmatpush1.bf16.msra.mxu0 0
        %4967 = vmatprep.subr.bf16.mxu0 0
        %4968 = vmatpush1.bf16.msra.mxu0 0
        %4969 = vmatprep.subr.bf16.mxu0 0
        %4970 = vmatpush1.bf16.msra.mxu0 0
        %4971 = vmatprep.subr.bf16.mxu0 0
        %4972 = vmatpush1.bf16.msra.mxu0 0
        %4973 = vmatprep.subr.bf16.mxu0 0
        %4974 = vmatpush1.bf16.msra.mxu0 0
        %4975 = vmatprep.subr.bf16.mxu0 0
        %4976 = vmatpush1.bf16.msra.mxu0 0
        %4977 = vmatprep.subr.bf16.mxu0 0
        %4978 = vmatpush1.bf16.msra.mxu0 0
        %4979 = vmatprep.subr.bf16.mxu0 0
        %4980 = vmatpush1.bf16.msra.mxu0 0
        %4981 = vmatprep.subr.bf16.mxu0 0
        %4982 = vmatpush1.bf16.msra.mxu0 0
        %4983 = vmatprep.mubr.bf16.mxu0 0
        %4984 = vmatmul.mubr.bf16.gmra.mrb[0].mxu0 %v4389
        %v4985 = vpop.f32.mrb[0].mxu0
        %v4986 = vadd.f32 0.0, %v4985
        %v4987 = vpop.f32.mrb[0].mxu0
        %v4988 = vpop.f32.mrb[0].mxu0
        %v4989 = vadd.f32 0.0, %v4988
        %v4990 = vpop.f32.mrb[0].mxu0
        %4991 = vmatprep.mubr.bf16.mxu0 0
        %4992 = vmatmul.mubr.bf16.gmra.mrb[0].mxu0 %v4392
        %v4993 = vpop.f32.mrb[0].mxu0
        %v4994 = vadd.f32 0.0, %v4993
        %v4995 = vpop.f32.mrb[0].mxu0
        %v4996 = vpop.f32.mrb[0].mxu0
        %v4997 = vadd.f32 0.0, %v4996
        %v4998 = vpop.f32.mrb[0].mxu0
        %4999 = vmatprep.mubr.bf16.mxu0 0
        %5000 = vmatmul.mubr.bf16.gmra.mrb[0].mxu0 %v4395
        %v5001 = vpop.f32.mrb[0].mxu0
        %v5002 = vadd.f32 0.0, %v5001
        %v5003 = vpop.f32.mrb[0].mxu0
        %v5004 = vpop.f32.mrb[0].mxu0
        %v5005 = vadd.f32 0.0, %v5004
        %v5006 = vpop.f32.mrb[0].mxu0
        %5007 = vmatprep.mubr.bf16.mxu0 0
        %5008 = vmatmul.mubr.bf16.gmra.mrb[0].mxu0 %v4398
        %v5009 = vpop.f32.mrb[0].mxu0
        %v5010 = vadd.f32 0.0, %v5009
        %v5011 = vpop.f32.mrb[0].mxu0
        %v5012 = vpop.f32.mrb[0].mxu0
        %v5013 = vadd.f32 0.0, %v5012
        %v5014 = vpop.f32.mrb[0].mxu0
        %5015 = vmatprep.mubr.bf16.mxu0 0
        %5016 = vmatmul.mubr.bf16.gmra.mrb[0].mxu0 %v4401
        %v5017 = vpop.f32.mrb[0].mxu0
        %v5018 = vadd.f32 0.0, %v5017
        %v5019 = vpop.f32.mrb[0].mxu0
        %v5020 = vpop.f32.mrb[0].mxu0
        %v5021 = vadd.f32 0.0, %v5020
        %v5022 = vpop.f32.mrb[0].mxu0
        %5023 = vmatprep.mubr.bf16.mxu0 0
        %5024 = vmatmul.mubr.bf16.gmra.mrb[0].mxu0 %v4404
        %v5025 = vpop.f32.mrb[0].mxu0
        %v5026 = vadd.f32 0.0, %v5025
        %v5027 = vpop.f32.mrb[0].mxu0
        %v5028 = vpop.f32.mrb[0].mxu0
        %v5029 = vadd.f32 0.0, %v5028
        %v5030 = vpop.f32.mrb[0].mxu0
        %5031 = vmatprep.mubr.bf16.mxu0 0
        %5032 = vmatmul.mubr.bf16.gmra.mrb[0].mxu0 %v4407
        %v5033 = vpop.f32.mrb[0].mxu0
        %v5034 = vadd.f32 0.0, %v5033
        %v5035 = vpop.f32.mrb[0].mxu0
        %v5036 = vpop.f32.mrb[0].mxu0
        %v5037 = vadd.f32 0.0, %v5036
        %v5038 = vpop.f32.mrb[0].mxu0
        %5039 = vmatprep.mubr.bf16.mxu0 0
        %5040 = vmatmul.mubr.bf16.gmra.mrb[0].mxu0 %v4410
        %v5041 = vpop.f32.mrb[0].mxu0
        %v5042 = vadd.f32 0.0, %v5041
        %v5043 = vpop.f32.mrb[0].mxu0
        %v5044 = vpop.f32.mrb[0].mxu0
        %v5045 = vadd.f32 0.0, %v5044
        %v5046 = vpop.f32.mrb[0].mxu0
        %5047 = vmatprep.mubr.bf16.mxu0 0
        %5048 = vmatmul.mubr.bf16.gmra.mrb[0].mxu0 %v4413
        %v5049 = vpop.f32.mrb[0].mxu0
        %v5050 = vadd.f32 0.0, %v5049
        %v5051 = vpop.f32.mrb[0].mxu0
        %v5052 = vpop.f32.mrb[0].mxu0
        %v5053 = vadd.f32 0.0, %v5052
        %v5054 = vpop.f32.mrb[0].mxu0
        %5055 = vmatprep.mubr.bf16.mxu0 0
        %5056 = vmatmul.mubr.bf16.gmra.mrb[0].mxu0 %v4416
        %v5057 = vpop.f32.mrb[0].mxu0
        %v5058 = vadd.f32 0.0, %v5057
        %v5059 = vpop.f32.mrb[0].mxu0
        %v5060 = vpop.f32.mrb[0].mxu0
        %v5061 = vadd.f32 0.0, %v5060
        %v5062 = vpop.f32.mrb[0].mxu0
        %5063 = vmatprep.mubr.bf16.mxu0 0
        %5064 = vmatmul.mubr.bf16.gmra.mrb[0].mxu0 %v4419
        %v5065 = vpop.f32.mrb[0].mxu0
        %v5066 = vadd.f32 0.0, %v5065
        %v5067 = vpop.f32.mrb[0].mxu0
        %v5068 = vpop.f32.mrb[0].mxu0
        %v5069 = vadd.f32 0.0, %v5068
        %v5070 = vpop.f32.mrb[0].mxu0
        %5071 = vmatprep.mubr.bf16.mxu0 0
        %5072 = vmatmul.mubr.bf16.gmra.mrb[0].mxu0 %v4422
        %v5073 = vpop.f32.mrb[0].mxu0
        %v5074 = vadd.f32 0.0, %v5073
        %v5075 = vpop.f32.mrb[0].mxu0
        %v5076 = vpop.f32.mrb[0].mxu0
        %v5077 = vadd.f32 0.0, %v5076
        %v5078 = vpop.f32.mrb[0].mxu0
        %5079 = vmatprep.mubr.bf16.mxu0 0
        %5080 = vmatmul.mubr.bf16.gmra.mrb[0].mxu0 %v4425
        %v5081 = vpop.f32.mrb[0].mxu0
        %v5082 = vadd.f32 0.0, %v5081
        %v5083 = vpop.f32.mrb[0].mxu0
        %v5084 = vpop.f32.mrb[0].mxu0
        %v5085 = vadd.f32 0.0, %v5084
        %v5086 = vpop.f32.mrb[0].mxu0
        %5087 = vmatprep.mubr.bf16.mxu0 0
        %5088 = vmatmul.mubr.bf16.gmra.mrb[0].mxu0 %v4428
        %v5089 = vpop.f32.mrb[0].mxu0
        %v5090 = vadd.f32 0.0, %v5089
        %v5091 = vpop.f32.mrb[0].mxu0
        %v5092 = vpop.f32.mrb[0].mxu0
        %v5093 = vadd.f32 0.0, %v5092
        %v5094 = vpop.f32.mrb[0].mxu0
        %5095 = vmatprep.mubr.bf16.mxu0 0
        %5096 = vmatmul.mubr.bf16.gmra.mrb[0].mxu0 %v4431
        %v5097 = vpop.f32.mrb[0].mxu0
        %v5098 = vadd.f32 0.0, %v5097
        %v5099 = vpop.f32.mrb[0].mxu0
        %v5100 = vpop.f32.mrb[0].mxu0
        %v5101 = vadd.f32 0.0, %v5100
        %v5102 = vpop.f32.mrb[0].mxu0
        %5103 = vmatprep.mubr.bf16.mxu0 0
        %5104 = vmatmul.mubr.bf16.gmra.mrb[0].mxu0 %v4434
        %v5105 = vpop.f32.mrb[0].mxu0
        %v5106 = vadd.f32 0.0, %v5105
        %v5107 = vpop.f32.mrb[0].mxu0
        %v5108 = vpop.f32.mrb[0].mxu0
        %v5109 = vadd.f32 0.0, %v5108
        %v5110 = vpop.f32.mrb[0].mxu0
        %5111 = vdwg.mxu0
        %v5112 = vsel %vm1951, %v5106, 0.0
        %v5113 = vsel %vm1952, %v5109, 0.0
        %v5114 = vsel %vm1953, %v4986, 0.0
        %v5115 = vsel %vm1954, %v4989, 0.0
        %v5116 = vsel %vm1955, %v4994, 0.0
        %v5117 = vsel %vm1956, %v4997, 0.0
        %v5118 = vsel %vm1957, %v5002, 0.0
        %v5119 = vsel %vm1958, %v5005, 0.0
        %v5120 = vsel %vm1959, %v5010, 0.0
        %v5121 = vsel %vm1960, %v5013, 0.0
        %v5122 = vsel %vm1961, %v5018, 0.0
        %v5123 = vsel %vm1962, %v5021, 0.0
        %v5124 = vsel %vm1963, %v5026, 0.0
        %v5125 = vsel %vm1964, %v5029, 0.0
        %v5126 = vsel %vm1965, %v5034, 0.0
        %v5127 = vsel %vm1966, %v5037, 0.0
        %v5128 = vsel %vm1967, %v5042, 0.0
        %v5129 = vsel %vm1968, %v5045, 0.0
        %v5130 = vsel %vm1969, %v5050, 0.0
        %v5131 = vsel %vm1970, %v5053, 0.0
        %v5132 = vsel %vm1971, %v5058, 0.0
        %v5133 = vsel %vm1972, %v5061, 0.0
        %v5134 = vsel %vm1973, %v5066, 0.0
        %v5135 = vsel %vm1974, %v5069, 0.0
        %v5136 = vsel %vm1975, %v5074, 0.0
        %v5137 = vsel %vm1976, %v5077, 0.0
        %v5138 = vsel %vm1977, %v5082, 0.0
        %v5139 = vsel %vm1978, %v5085, 0.0
        %v5140 = vsel %vm1979, %v5090, 0.0
        %v5141 = vsel %vm1980, %v5093, 0.0
        %v5142 = vsel %vm1981, %v5098, 0.0
        %v5143 = vsel %vm1982, %v5101, 0.0
        %v5144 = vadd.f32 %v4886, %v5112
        %v5145 = vadd.f32 %v4887, %v5113
        %v5146 = vadd.f32 %v4888, %v5114
        %v5147 = vadd.f32 %v4889, %v5115
        %v5148 = vadd.f32 %v4890, %v5116
        %v5149 = vadd.f32 %v4891, %v5117
        %v5150 = vadd.f32 %v4892, %v5118
        %v5151 = vadd.f32 %v4893, %v5119
        %v5152 = vadd.f32 %v4894, %v5120
        %v5153 = vadd.f32 %v4895, %v5121
        %v5154 = vadd.f32 %v4896, %v5122
        %v5155 = vadd.f32 %v4897, %v5123
        %v5156 = vadd.f32 %v4898, %v5124
        %v5157 = vadd.f32 %v4899, %v5125
        %v5158 = vadd.f32 %v4900, %v5126
        %v5159 = vadd.f32 %v4901, %v5127
        %v5160 = vadd.f32 %v4902, %v5128
        %v5161 = vadd.f32 %v4903, %v5129
        %v5162 = vadd.f32 %v4904, %v5130
        %v5163 = vadd.f32 %v4905, %v5131
        %v5164 = vadd.f32 %v4906, %v5132
        %v5165 = vadd.f32 %v4907, %v5133
        %v5166 = vadd.f32 %v4908, %v5134
        %v5167 = vadd.f32 %v4909, %v5135
        %v5168 = vadd.f32 %v4910, %v5136
        %v5169 = vadd.f32 %v4911, %v5137
        %v5170 = vadd.f32 %v4912, %v5138
        %v5171 = vadd.f32 %v4913, %v5139
        %v5172 = vadd.f32 %v4914, %v5140
        %v5173 = vadd.f32 %v4915, %v5141
        %v5174 = vadd.f32 %v4916, %v5142
        %v5175 = vadd.f32 %v4917, %v5143
        %s5176 = scalar_lea.vmem %s5, 64
        %v5177 = vld [vmem:[%s5176] sm:$0xf]
        %v5178 = vld [vmem:[%s5176 + $0x4] sm:$0xf]
        %v5179 = vld [vmem:[%s5176 + $0x8] sm:$0xf]
        %v5180 = vld [vmem:[%s5176 + $0xc] sm:$0xf]
        %v5181 = vld [vmem:[%s5176 + $0x10] sm:$0xf]
        %v5182 = vld [vmem:[%s5176 + $0x14] sm:$0xf]
        %v5183 = vld [vmem:[%s5176 + $0x18] sm:$0xf]
        %v5184 = vld [vmem:[%s5176 + $0x1c] sm:$0xf]
        %v5193 = vunpack.c.l.b16 %v5177
        %v5194 = vunpack.c.l.b16 %v5178
        %v5195 = vunpack.c.l.b16 %v5179
        %v5196 = vunpack.c.l.b16 %v5180
        %v5197 = vunpack.c.l.b16 %v5181
        %v5198 = vunpack.c.l.b16 %v5182
        %v5199 = vunpack.c.l.b16 %v5183
        %v5200 = vunpack.c.l.b16 %v5184
        %v5201 = vpack.c.b16 %v5194, %v5193
        %v5202 = vpack.c.b16 %v5196, %v5195
        %v5203 = vpack.c.b16 %v5198, %v5197
        %v5204 = vpack.c.b16 %v5200, %v5199
        %5209 = vmatprep.subr.bf16.mxu0 0
        %5210 = vmatpush1.bf16.msra.mxu0 %v5201
        %5211 = vmatprep.subr.bf16.mxu0 0
        %5212 = vmatpush1.bf16.msra.mxu0 %v5202
        %5213 = vmatprep.subr.bf16.mxu0 0
        %5214 = vmatpush1.bf16.msra.mxu0 %v5203
        %5215 = vmatprep.subr.bf16.mxu0 0
        %5216 = vmatpush1.bf16.msra.mxu0 %v5204
        %5217 = vmatprep.subr.bf16.mxu0 0
        %5218 = vmatpush1.bf16.msra.mxu0 0
        %5219 = vmatprep.subr.bf16.mxu0 0
        %5220 = vmatpush1.bf16.msra.mxu0 0
        %5221 = vmatprep.subr.bf16.mxu0 0
        %5222 = vmatpush1.bf16.msra.mxu0 0
        %5223 = vmatprep.subr.bf16.mxu0 0
        %5224 = vmatpush1.bf16.msra.mxu0 0
        %5225 = vmatprep.subr.bf16.mxu0 0
        %5226 = vmatpush1.bf16.msra.mxu0 0
        %5227 = vmatprep.subr.bf16.mxu0 0
        %5228 = vmatpush1.bf16.msra.mxu0 0
        %5229 = vmatprep.subr.bf16.mxu0 0
        %5230 = vmatpush1.bf16.msra.mxu0 0
        %5231 = vmatprep.subr.bf16.mxu0 0
        %5232 = vmatpush1.bf16.msra.mxu0 0
        %5233 = vmatprep.subr.bf16.mxu0 0
        %5234 = vmatpush1.bf16.msra.mxu0 0
        %5235 = vmatprep.subr.bf16.mxu0 0
        %5236 = vmatpush1.bf16.msra.mxu0 0
        %5237 = vmatprep.subr.bf16.mxu0 0
        %5238 = vmatpush1.bf16.msra.mxu0 0
        %5239 = vmatprep.subr.bf16.mxu0 0
        %5240 = vmatpush1.bf16.msra.mxu0 0
        %5241 = vmatprep.mubr.bf16.mxu0 0
        %5242 = vmatmul.mubr.bf16.gmra.mrb[0].mxu0 %v4389
        %v5243 = vpop.f32.mrb[0].mxu0
        %v5244 = vadd.f32 0.0, %v5243
        %v5245 = vpop.f32.mrb[0].mxu0
        %v5246 = vpop.f32.mrb[0].mxu0
        %v5247 = vadd.f32 0.0, %v5246
        %v5248 = vpop.f32.mrb[0].mxu0
        %5249 = vmatprep.mubr.bf16.mxu0 0
        %5250 = vmatmul.mubr.bf16.gmra.mrb[0].mxu0 %v4392
        %v5251 = vpop.f32.mrb[0].mxu0
        %v5252 = vadd.f32 0.0, %v5251
        %v5253 = vpop.f32.mrb[0].mxu0
        %v5254 = vpop.f32.mrb[0].mxu0
        %v5255 = vadd.f32 0.0, %v5254
        %v5256 = vpop.f32.mrb[0].mxu0
        %5257 = vmatprep.mubr.bf16.mxu0 0
        %5258 = vmatmul.mubr.bf16.gmra.mrb[0].mxu0 %v4395
        %v5259 = vpop.f32.mrb[0].mxu0
        %v5260 = vadd.f32 0.0, %v5259
        %v5261 = vpop.f32.mrb[0].mxu0
        %v5262 = vpop.f32.mrb[0].mxu0
        %v5263 = vadd.f32 0.0, %v5262
        %v5264 = vpop.f32.mrb[0].mxu0
        %5265 = vmatprep.mubr.bf16.mxu0 0
        %5266 = vmatmul.mubr.bf16.gmra.mrb[0].mxu0 %v4398
        %v5267 = vpop.f32.mrb[0].mxu0
        %v5268 = vadd.f32 0.0, %v5267
        %v5269 = vpop.f32.mrb[0].mxu0
        %v5270 = vpop.f32.mrb[0].mxu0
        %v5271 = vadd.f32 0.0, %v5270
        %v5272 = vpop.f32.mrb[0].mxu0
        %5273 = vmatprep.mubr.bf16.mxu0 0
        %5274 = vmatmul.mubr.bf16.gmra.mrb[0].mxu0 %v4401
        %v5275 = vpop.f32.mrb[0].mxu0
        %v5276 = vadd.f32 0.0, %v5275
        %v5277 = vpop.f32.mrb[0].mxu0
        %v5278 = vpop.f32.mrb[0].mxu0
        %v5279 = vadd.f32 0.0, %v5278
        %v5280 = vpop.f32.mrb[0].mxu0
        %5281 = vmatprep.mubr.bf16.mxu0 0
        %5282 = vmatmul.mubr.bf16.gmra.mrb[0].mxu0 %v4404
        %v5283 = vpop.f32.mrb[0].mxu0
        %v5284 = vadd.f32 0.0, %v5283
        %v5285 = vpop.f32.mrb[0].mxu0
        %v5286 = vpop.f32.mrb[0].mxu0
        %v5287 = vadd.f32 0.0, %v5286
        %v5288 = vpop.f32.mrb[0].mxu0
        %5289 = vmatprep.mubr.bf16.mxu0 0
        %5290 = vmatmul.mubr.bf16.gmra.mrb[0].mxu0 %v4407
        %v5291 = vpop.f32.mrb[0].mxu0
        %v5292 = vadd.f32 0.0, %v5291
        %v5293 = vpop.f32.mrb[0].mxu0
        %v5294 = vpop.f32.mrb[0].mxu0
        %v5295 = vadd.f32 0.0, %v5294
        %v5296 = vpop.f32.mrb[0].mxu0
        %5297 = vmatprep.mubr.bf16.mxu0 0
        %5298 = vmatmul.mubr.bf16.gmra.mrb[0].mxu0 %v4410
        %v5299 = vpop.f32.mrb[0].mxu0
        %v5300 = vadd.f32 0.0, %v5299
        %v5301 = vpop.f32.mrb[0].mxu0
        %v5302 = vpop.f32.mrb[0].mxu0
        %v5303 = vadd.f32 0.0, %v5302
        %v5304 = vpop.f32.mrb[0].mxu0
        %5305 = vmatprep.mubr.bf16.mxu0 0
        %5306 = vmatmul.mubr.bf16.gmra.mrb[0].mxu0 %v4413
        %v5307 = vpop.f32.mrb[0].mxu0
        %v5308 = vadd.f32 0.0, %v5307
        %v5309 = vpop.f32.mrb[0].mxu0
        %v5310 = vpop.f32.mrb[0].mxu0
        %v5311 = vadd.f32 0.0, %v5310
        %v5312 = vpop.f32.mrb[0].mxu0
        %5313 = vmatprep.mubr.bf16.mxu0 0
        %5314 = vmatmul.mubr.bf16.gmra.mrb[0].mxu0 %v4416
        %v5315 = vpop.f32.mrb[0].mxu0
        %v5316 = vadd.f32 0.0, %v5315
        %v5317 = vpop.f32.mrb[0].mxu0
        %v5318 = vpop.f32.mrb[0].mxu0
        %v5319 = vadd.f32 0.0, %v5318
        %v5320 = vpop.f32.mrb[0].mxu0
        %5321 = vmatprep.mubr.bf16.mxu0 0
        %5322 = vmatmul.mubr.bf16.gmra.mrb[0].mxu0 %v4419
        %v5323 = vpop.f32.mrb[0].mxu0
        %v5324 = vadd.f32 0.0, %v5323
        %v5325 = vpop.f32.mrb[0].mxu0
        %v5326 = vpop.f32.mrb[0].mxu0
        %v5327 = vadd.f32 0.0, %v5326
        %v5328 = vpop.f32.mrb[0].mxu0
        %5329 = vmatprep.mubr.bf16.mxu0 0
        %5330 = vmatmul.mubr.bf16.gmra.mrb[0].mxu0 %v4422
        %v5331 = vpop.f32.mrb[0].mxu0
        %v5332 = vadd.f32 0.0, %v5331
        %v5333 = vpop.f32.mrb[0].mxu0
        %v5334 = vpop.f32.mrb[0].mxu0
        %v5335 = vadd.f32 0.0, %v5334
        %v5336 = vpop.f32.mrb[0].mxu0
        %5337 = vmatprep.mubr.bf16.mxu0 0
        %5338 = vmatmul.mubr.bf16.gmra.mrb[0].mxu0 %v4425
        %v5339 = vpop.f32.mrb[0].mxu0
        %v5340 = vadd.f32 0.0, %v5339
        %v5341 = vpop.f32.mrb[0].mxu0
        %v5342 = vpop.f32.mrb[0].mxu0
        %v5343 = vadd.f32 0.0, %v5342
        %v5344 = vpop.f32.mrb[0].mxu0
        %5345 = vmatprep.mubr.bf16.mxu0 0
        %5346 = vmatmul.mubr.bf16.gmra.mrb[0].mxu0 %v4428
        %v5347 = vpop.f32.mrb[0].mxu0
        %v5348 = vadd.f32 0.0, %v5347
        %v5349 = vpop.f32.mrb[0].mxu0
        %v5350 = vpop.f32.mrb[0].mxu0
        %v5351 = vadd.f32 0.0, %v5350
        %v5352 = vpop.f32.mrb[0].mxu0
        %5353 = vmatprep.mubr.bf16.mxu0 0
        %5354 = vmatmul.mubr.bf16.gmra.mrb[0].mxu0 %v4431
        %v5355 = vpop.f32.mrb[0].mxu0
        %v5356 = vadd.f32 0.0, %v5355
        %v5357 = vpop.f32.mrb[0].mxu0
        %v5358 = vpop.f32.mrb[0].mxu0
        %v5359 = vadd.f32 0.0, %v5358
        %v5360 = vpop.f32.mrb[0].mxu0
        %5361 = vmatprep.mubr.bf16.mxu0 0
        %5362 = vmatmul.mubr.bf16.gmra.mrb[0].mxu0 %v4434
        %v5363 = vpop.f32.mrb[0].mxu0
        %v5364 = vadd.f32 0.0, %v5363
        %v5365 = vpop.f32.mrb[0].mxu0
        %v5366 = vpop.f32.mrb[0].mxu0
        %v5367 = vadd.f32 0.0, %v5366
        %v5368 = vpop.f32.mrb[0].mxu0
        %5369 = vdwg.mxu0
        %v5370 = vrot.slane %v5244, 1
        %v5371 = vrot.slane %v5247, 1
        %v5372 = vrot.slane %v5252, 1
        %v5373 = vrot.slane %v5255, 1
        %v5374 = vrot.slane %v5260, 1
        %v5375 = vrot.slane %v5263, 1
        %v5376 = vrot.slane %v5268, 1
        %v5377 = vrot.slane %v5271, 1
        %v5378 = vrot.slane %v5276, 1
        %v5379 = vrot.slane %v5279, 1
        %v5380 = vrot.slane %v5284, 1
        %v5381 = vrot.slane %v5287, 1
        %v5382 = vrot.slane %v5292, 1
        %v5383 = vrot.slane %v5295, 1
        %v5384 = vrot.slane %v5300, 1
        %v5385 = vrot.slane %v5303, 1
        %v5386 = vrot.slane %v5308, 1
        %v5387 = vrot.slane %v5311, 1
        %v5388 = vrot.slane %v5316, 1
        %v5389 = vrot.slane %v5319, 1
        %v5390 = vrot.slane %v5324, 1
        %v5391 = vrot.slane %v5327, 1
        %v5392 = vrot.slane %v5332, 1
        %v5393 = vrot.slane %v5335, 1
        %v5394 = vrot.slane %v5340, 1
        %v5395 = vrot.slane %v5343, 1
        %v5396 = vrot.slane %v5348, 1
        %v5397 = vrot.slane %v5351, 1
        %v5398 = vrot.slane %v5356, 1
        %v5399 = vrot.slane %v5359, 1
        %v5400 = vrot.slane %v5364, 1
        %v5401 = vrot.slane %v5367, 1
        %v5402 = vsel %vm2273, %v5400, %v5401
        %v5403 = vsel %vm2273, %v5399, %v5400
        %v5404 = vsel %vm2273, %v5398, %v5399
        %v5405 = vsel %vm2273, %v5397, %v5398
        %v5406 = vsel %vm2273, %v5396, %v5397
        %v5407 = vsel %vm2273, %v5395, %v5396
        %v5408 = vsel %vm2273, %v5394, %v5395
        %v5409 = vsel %vm2273, %v5393, %v5394
        %v5410 = vsel %vm2273, %v5392, %v5393
        %v5411 = vsel %vm2273, %v5391, %v5392
        %v5412 = vsel %vm2273, %v5390, %v5391
        %v5413 = vsel %vm2273, %v5389, %v5390
        %v5414 = vsel %vm2273, %v5388, %v5389
        %v5415 = vsel %vm2273, %v5387, %v5388
        %v5416 = vsel %vm2273, %v5386, %v5387
        %v5417 = vsel %vm2273, %v5385, %v5386
        %v5418 = vsel %vm2273, %v5384, %v5385
        %v5419 = vsel %vm2273, %v5383, %v5384
        %v5420 = vsel %vm2273, %v5382, %v5383
        %v5421 = vsel %vm2273, %v5381, %v5382
        %v5422 = vsel %vm2273, %v5380, %v5381
        %v5423 = vsel %vm2273, %v5379, %v5380
        %v5424 = vsel %vm2273, %v5378, %v5379
        %v5425 = vsel %vm2273, %v5377, %v5378
        %v5426 = vsel %vm2273, %v5376, %v5377
        %v5427 = vsel %vm2273, %v5375, %v5376
        %v5428 = vsel %vm2273, %v5374, %v5375
        %v5429 = vsel %vm2273, %v5373, %v5374
        %v5430 = vsel %vm2273, %v5372, %v5373
        %v5431 = vsel %vm2273, %v5371, %v5372
        %v5432 = vsel %vm2273, %v5370, %v5371
        %v5433 = vsel %vm2273, %v5401, %v5370
        %v5434 = vsel %vm2338, %v5402, 0.0
        %v5435 = vsel %vm2339, %v5433, 0.0
        %v5436 = vsel %vm2340, %v5432, 0.0
        %v5437 = vsel %vm2341, %v5431, 0.0
        %v5438 = vsel %vm2342, %v5430, 0.0
        %v5439 = vsel %vm2343, %v5429, 0.0
        %v5440 = vsel %vm2344, %v5428, 0.0
        %v5441 = vsel %vm2345, %v5427, 0.0
        %v5442 = vsel %vm2346, %v5426, 0.0
        %v5443 = vsel %vm2347, %v5425, 0.0
        %v5444 = vsel %vm2348, %v5424, 0.0
        %v5445 = vsel %vm2349, %v5423, 0.0
        %v5446 = vsel %vm2350, %v5422, 0.0
        %v5447 = vsel %vm2351, %v5421, 0.0
        %v5448 = vsel %vm2352, %v5420, 0.0
        %v5449 = vsel %vm2353, %v5419, 0.0
        %v5450 = vsel %vm2354, %v5418, 0.0
        %v5451 = vsel %vm2355, %v5417, 0.0
        %v5452 = vsel %vm2356, %v5416, 0.0
        %v5453 = vsel %vm2357, %v5415, 0.0
        %v5454 = vsel %vm2358, %v5414, 0.0
        %v5455 = vsel %vm2359, %v5413, 0.0
        %v5456 = vsel %vm2360, %v5412, 0.0
        %v5457 = vsel %vm2361, %v5411, 0.0
        %v5458 = vsel %vm2362, %v5410, 0.0
        %v5459 = vsel %vm2363, %v5409, 0.0
        %v5460 = vsel %vm2364, %v5408, 0.0
        %v5461 = vsel %vm2365, %v5407, 0.0
        %v5462 = vsel %vm2366, %v5406, 0.0
        %v5463 = vsel %vm2367, %v5405, 0.0
        %v5464 = vsel %vm2368, %v5404, 0.0
        %v5465 = vsel %vm2369, %v5403, 0.0
        %v5466 = vadd.f32 %v5144, %v5434
        %v5467 = vadd.f32 %v5145, %v5435
        %v5468 = vadd.f32 %v5146, %v5436
        %v5469 = vadd.f32 %v5147, %v5437
        %v5470 = vadd.f32 %v5148, %v5438
        %v5471 = vadd.f32 %v5149, %v5439
        %v5472 = vadd.f32 %v5150, %v5440
        %v5473 = vadd.f32 %v5151, %v5441
        %v5474 = vadd.f32 %v5152, %v5442
        %v5475 = vadd.f32 %v5153, %v5443
        %v5476 = vadd.f32 %v5154, %v5444
        %v5477 = vadd.f32 %v5155, %v5445
        %v5478 = vadd.f32 %v5156, %v5446
        %v5479 = vadd.f32 %v5157, %v5447
        %v5480 = vadd.f32 %v5158, %v5448
        %v5481 = vadd.f32 %v5159, %v5449
        %v5482 = vadd.f32 %v5160, %v5450
        %v5483 = vadd.f32 %v5161, %v5451
        %v5484 = vadd.f32 %v5162, %v5452
        %v5485 = vadd.f32 %v5163, %v5453
        %v5486 = vadd.f32 %v5164, %v5454
        %v5487 = vadd.f32 %v5165, %v5455
        %v5488 = vadd.f32 %v5166, %v5456
        %v5489 = vadd.f32 %v5167, %v5457
        %v5490 = vadd.f32 %v5168, %v5458
        %v5491 = vadd.f32 %v5169, %v5459
        %v5492 = vadd.f32 %v5170, %v5460
        %v5493 = vadd.f32 %v5171, %v5461
        %v5494 = vadd.f32 %v5172, %v5462
        %v5495 = vadd.f32 %v5173, %v5463
        %v5496 = vadd.f32 %v5174, %v5464
        %v5497 = vadd.f32 %v5175, %v5465
        %s5498 = scalar_lea.vmem %s5, 96
        %v5499 = vld [vmem:[%s5498] sm:$0xf]
        %v5500 = vld [vmem:[%s5498 + $0x4] sm:$0xf]
        %v5501 = vld [vmem:[%s5498 + $0x8] sm:$0xf]
        %v5502 = vld [vmem:[%s5498 + $0xc] sm:$0xf]
        %v5503 = vld [vmem:[%s5498 + $0x10] sm:$0xf]
        %v5504 = vld [vmem:[%s5498 + $0x14] sm:$0xf]
        %v5505 = vld [vmem:[%s5498 + $0x18] sm:$0xf]
        %v5506 = vld [vmem:[%s5498 + $0x1c] sm:$0xf]
        %v5515 = vunpack.c.l.b16 %v5499
        %v5516 = vunpack.c.l.b16 %v5500
        %v5517 = vunpack.c.l.b16 %v5501
        %v5518 = vunpack.c.l.b16 %v5502
        %v5519 = vunpack.c.l.b16 %v5503
        %v5520 = vunpack.c.l.b16 %v5504
        %v5521 = vunpack.c.l.b16 %v5505
        %v5522 = vunpack.c.l.b16 %v5506
        %v5523 = vpack.c.b16 %v5516, %v5515
        %v5524 = vpack.c.b16 %v5518, %v5517
        %v5525 = vpack.c.b16 %v5520, %v5519
        %v5526 = vpack.c.b16 %v5522, %v5521
        %5531 = vmatprep.subr.bf16.mxu0 0
        %5532 = vmatpush1.bf16.msra.mxu0 %v5523
        %5533 = vmatprep.subr.bf16.mxu0 0
        %5534 = vmatpush1.bf16.msra.mxu0 %v5524
        %5535 = vmatprep.subr.bf16.mxu0 0
        %5536 = vmatpush1.bf16.msra.mxu0 %v5525
        %5537 = vmatprep.subr.bf16.mxu0 0
        %5538 = vmatpush1.bf16.msra.mxu0 %v5526
        %5539 = vmatprep.subr.bf16.mxu0 0
        %5540 = vmatpush1.bf16.msra.mxu0 0
        %5541 = vmatprep.subr.bf16.mxu0 0
        %5542 = vmatpush1.bf16.msra.mxu0 0
        %5543 = vmatprep.subr.bf16.mxu0 0
        %5544 = vmatpush1.bf16.msra.mxu0 0
        %5545 = vmatprep.subr.bf16.mxu0 0
        %5546 = vmatpush1.bf16.msra.mxu0 0
        %5547 = vmatprep.subr.bf16.mxu0 0
        %5548 = vmatpush1.bf16.msra.mxu0 0
        %5549 = vmatprep.subr.bf16.mxu0 0
        %5550 = vmatpush1.bf16.msra.mxu0 0
        %5551 = vmatprep.subr.bf16.mxu0 0
        %5552 = vmatpush1.bf16.msra.mxu0 0
        %5553 = vmatprep.subr.bf16.mxu0 0
        %5554 = vmatpush1.bf16.msra.mxu0 0
        %5555 = vmatprep.subr.bf16.mxu0 0
        %5556 = vmatpush1.bf16.msra.mxu0 0
        %5557 = vmatprep.subr.bf16.mxu0 0
        %5558 = vmatpush1.bf16.msra.mxu0 0
        %5559 = vmatprep.subr.bf16.mxu0 0
        %5560 = vmatpush1.bf16.msra.mxu0 0
        %5561 = vmatprep.subr.bf16.mxu0 0
        %5562 = vmatpush1.bf16.msra.mxu0 0
        %5563 = vmatprep.mubr.bf16.mxu0 0
        %5564 = vmatmul.mubr.bf16.gmra.mrb[0].mxu0 %v4389
        %v5565 = vpop.f32.mrb[0].mxu0
        %v5566 = vadd.f32 0.0, %v5565
        %v5567 = vpop.f32.mrb[0].mxu0
        %v5568 = vpop.f32.mrb[0].mxu0
        %v5569 = vadd.f32 0.0, %v5568
        %v5570 = vpop.f32.mrb[0].mxu0
        %5571 = vmatprep.mubr.bf16.mxu0 0
        %5572 = vmatmul.mubr.bf16.gmra.mrb[0].mxu0 %v4392
        %v5573 = vpop.f32.mrb[0].mxu0
        %v5574 = vadd.f32 0.0, %v5573
        %v5575 = vpop.f32.mrb[0].mxu0
        %v5576 = vpop.f32.mrb[0].mxu0
        %v5577 = vadd.f32 0.0, %v5576
        %v5578 = vpop.f32.mrb[0].mxu0
        %5579 = vmatprep.mubr.bf16.mxu0 0
        %5580 = vmatmul.mubr.bf16.gmra.mrb[0].mxu0 %v4395
        %v5581 = vpop.f32.mrb[0].mxu0
        %v5582 = vadd.f32 0.0, %v5581
        %v5583 = vpop.f32.mrb[0].mxu0
        %v5584 = vpop.f32.mrb[0].mxu0
        %v5585 = vadd.f32 0.0, %v5584
        %v5586 = vpop.f32.mrb[0].mxu0
        %5587 = vmatprep.mubr.bf16.mxu0 0
        %5588 = vmatmul.mubr.bf16.gmra.mrb[0].mxu0 %v4398
        %v5589 = vpop.f32.mrb[0].mxu0
        %v5590 = vadd.f32 0.0, %v5589
        %v5591 = vpop.f32.mrb[0].mxu0
        %v5592 = vpop.f32.mrb[0].mxu0
        %v5593 = vadd.f32 0.0, %v5592
        %v5594 = vpop.f32.mrb[0].mxu0
        %5595 = vmatprep.mubr.bf16.mxu0 0
        %5596 = vmatmul.mubr.bf16.gmra.mrb[0].mxu0 %v4401
        %v5597 = vpop.f32.mrb[0].mxu0
        %v5598 = vadd.f32 0.0, %v5597
        %v5599 = vpop.f32.mrb[0].mxu0
        %v5600 = vpop.f32.mrb[0].mxu0
        %v5601 = vadd.f32 0.0, %v5600
        %v5602 = vpop.f32.mrb[0].mxu0
        %5603 = vmatprep.mubr.bf16.mxu0 0
        %5604 = vmatmul.mubr.bf16.gmra.mrb[0].mxu0 %v4404
        %v5605 = vpop.f32.mrb[0].mxu0
        %v5606 = vadd.f32 0.0, %v5605
        %v5607 = vpop.f32.mrb[0].mxu0
        %v5608 = vpop.f32.mrb[0].mxu0
        %v5609 = vadd.f32 0.0, %v5608
        %v5610 = vpop.f32.mrb[0].mxu0
        %5611 = vmatprep.mubr.bf16.mxu0 0
        %5612 = vmatmul.mubr.bf16.gmra.mrb[0].mxu0 %v4407
        %v5613 = vpop.f32.mrb[0].mxu0
        %v5614 = vadd.f32 0.0, %v5613
        %v5615 = vpop.f32.mrb[0].mxu0
        %v5616 = vpop.f32.mrb[0].mxu0
        %v5617 = vadd.f32 0.0, %v5616
        %v5618 = vpop.f32.mrb[0].mxu0
        %5619 = vmatprep.mubr.bf16.mxu0 0
        %5620 = vmatmul.mubr.bf16.gmra.mrb[0].mxu0 %v4410
        %v5621 = vpop.f32.mrb[0].mxu0
        %v5622 = vadd.f32 0.0, %v5621
        %v5623 = vpop.f32.mrb[0].mxu0
        %v5624 = vpop.f32.mrb[0].mxu0
        %v5625 = vadd.f32 0.0, %v5624
        %v5626 = vpop.f32.mrb[0].mxu0
        %5627 = vmatprep.mubr.bf16.mxu0 0
        %5628 = vmatmul.mubr.bf16.gmra.mrb[0].mxu0 %v4413
        %v5629 = vpop.f32.mrb[0].mxu0
        %v5630 = vadd.f32 0.0, %v5629
        %v5631 = vpop.f32.mrb[0].mxu0
        %v5632 = vpop.f32.mrb[0].mxu0
        %v5633 = vadd.f32 0.0, %v5632
        %v5634 = vpop.f32.mrb[0].mxu0
        %5635 = vmatprep.mubr.bf16.mxu0 0
        %5636 = vmatmul.mubr.bf16.gmra.mrb[0].mxu0 %v4416
        %v5637 = vpop.f32.mrb[0].mxu0
        %v5638 = vadd.f32 0.0, %v5637
        %v5639 = vpop.f32.mrb[0].mxu0
        %v5640 = vpop.f32.mrb[0].mxu0
        %v5641 = vadd.f32 0.0, %v5640
        %v5642 = vpop.f32.mrb[0].mxu0
        %5643 = vmatprep.mubr.bf16.mxu0 0
        %5644 = vmatmul.mubr.bf16.gmra.mrb[0].mxu0 %v4419
        %v5645 = vpop.f32.mrb[0].mxu0
        %v5646 = vadd.f32 0.0, %v5645
        %v5647 = vpop.f32.mrb[0].mxu0
        %v5648 = vpop.f32.mrb[0].mxu0
        %v5649 = vadd.f32 0.0, %v5648
        %v5650 = vpop.f32.mrb[0].mxu0
        %5651 = vmatprep.mubr.bf16.mxu0 0
        %5652 = vmatmul.mubr.bf16.gmra.mrb[0].mxu0 %v4422
        %v5653 = vpop.f32.mrb[0].mxu0
        %v5654 = vadd.f32 0.0, %v5653
        %v5655 = vpop.f32.mrb[0].mxu0
        %v5656 = vpop.f32.mrb[0].mxu0
        %v5657 = vadd.f32 0.0, %v5656
        %v5658 = vpop.f32.mrb[0].mxu0
        %5659 = vmatprep.mubr.bf16.mxu0 0
        %5660 = vmatmul.mubr.bf16.gmra.mrb[0].mxu0 %v4425
        %v5661 = vpop.f32.mrb[0].mxu0
        %v5662 = vadd.f32 0.0, %v5661
        %v5663 = vpop.f32.mrb[0].mxu0
        %v5664 = vpop.f32.mrb[0].mxu0
        %v5665 = vadd.f32 0.0, %v5664
        %v5666 = vpop.f32.mrb[0].mxu0
        %5667 = vmatprep.mubr.bf16.mxu0 0
        %5668 = vmatmul.mubr.bf16.gmra.mrb[0].mxu0 %v4428
        %v5669 = vpop.f32.mrb[0].mxu0
        %v5670 = vadd.f32 0.0, %v5669
        %v5671 = vpop.f32.mrb[0].mxu0
        %v5672 = vpop.f32.mrb[0].mxu0
        %v5673 = vadd.f32 0.0, %v5672
        %v5674 = vpop.f32.mrb[0].mxu0
        %5675 = vmatprep.mubr.bf16.mxu0 0
        %5676 = vmatmul.mubr.bf16.gmra.mrb[0].mxu0 %v4431
        %v5677 = vpop.f32.mrb[0].mxu0
        %v5678 = vadd.f32 0.0, %v5677
        %v5679 = vpop.f32.mrb[0].mxu0
        %v5680 = vpop.f32.mrb[0].mxu0
        %v5681 = vadd.f32 0.0, %v5680
        %v5682 = vpop.f32.mrb[0].mxu0
        %5683 = vmatprep.mubr.bf16.mxu0 0
        %5684 = vmatmul.mubr.bf16.gmra.mrb[0].mxu0 %v4434
        %v5685 = vpop.f32.mrb[0].mxu0
        %v5686 = vadd.f32 0.0, %v5685
        %v5687 = vpop.f32.mrb[0].mxu0
        %v5688 = vpop.f32.mrb[0].mxu0
        %v5689 = vadd.f32 0.0, %v5688
        %v5690 = vpop.f32.mrb[0].mxu0
        %5691 = vdwg.mxu0
        %v5692 = vrot.slane %v5566, 7
        %v5693 = vrot.slane %v5569, 7
        %v5694 = vrot.slane %v5574, 7
        %v5695 = vrot.slane %v5577, 7
        %v5696 = vrot.slane %v5582, 7
        %v5697 = vrot.slane %v5585, 7
        %v5698 = vrot.slane %v5590, 7
        %v5699 = vrot.slane %v5593, 7
        %v5700 = vrot.slane %v5598, 7
        %v5701 = vrot.slane %v5601, 7
        %v5702 = vrot.slane %v5606, 7
        %v5703 = vrot.slane %v5609, 7
        %v5704 = vrot.slane %v5614, 7
        %v5705 = vrot.slane %v5617, 7
        %v5706 = vrot.slane %v5622, 7
        %v5707 = vrot.slane %v5625, 7
        %v5708 = vrot.slane %v5630, 7
        %v5709 = vrot.slane %v5633, 7
        %v5710 = vrot.slane %v5638, 7
        %v5711 = vrot.slane %v5641, 7
        %v5712 = vrot.slane %v5646, 7
        %v5713 = vrot.slane %v5649, 7
        %v5714 = vrot.slane %v5654, 7
        %v5715 = vrot.slane %v5657, 7
        %v5716 = vrot.slane %v5662, 7
        %v5717 = vrot.slane %v5665, 7
        %v5718 = vrot.slane %v5670, 7
        %v5719 = vrot.slane %v5673, 7
        %v5720 = vrot.slane %v5678, 7
        %v5721 = vrot.slane %v5681, 7
        %v5722 = vrot.slane %v5686, 7
        %v5723 = vrot.slane %v5689, 7
        %v5724 = vsel %vm1564, %v5722, %v5723
        %v5725 = vsel %vm1564, %v5721, %v5722
        %v5726 = vsel %vm1564, %v5720, %v5721
        %v5727 = vsel %vm1564, %v5719, %v5720
        %v5728 = vsel %vm1564, %v5718, %v5719
        %v5729 = vsel %vm1564, %v5717, %v5718
        %v5730 = vsel %vm1564, %v5716, %v5717
        %v5731 = vsel %vm1564, %v5715, %v5716
        %v5732 = vsel %vm1564, %v5714, %v5715
        %v5733 = vsel %vm1564, %v5713, %v5714
        %v5734 = vsel %vm1564, %v5712, %v5713
        %v5735 = vsel %vm1564, %v5711, %v5712
        %v5736 = vsel %vm1564, %v5710, %v5711
        %v5737 = vsel %vm1564, %v5709, %v5710
        %v5738 = vsel %vm1564, %v5708, %v5709
        %v5739 = vsel %vm1564, %v5707, %v5708
        %v5740 = vsel %vm1564, %v5706, %v5707
        %v5741 = vsel %vm1564, %v5705, %v5706
        %v5742 = vsel %vm1564, %v5704, %v5705
        %v5743 = vsel %vm1564, %v5703, %v5704
        %v5744 = vsel %vm1564, %v5702, %v5703
        %v5745 = vsel %vm1564, %v5701, %v5702
        %v5746 = vsel %vm1564, %v5700, %v5701
        %v5747 = vsel %vm1564, %v5699, %v5700
        %v5748 = vsel %vm1564, %v5698, %v5699
        %v5749 = vsel %vm1564, %v5697, %v5698
        %v5750 = vsel %vm1564, %v5696, %v5697
        %v5751 = vsel %vm1564, %v5695, %v5696
        %v5752 = vsel %vm1564, %v5694, %v5695
        %v5753 = vsel %vm1564, %v5693, %v5694
        %v5754 = vsel %vm1564, %v5692, %v5693
        %v5755 = vsel %vm1564, %v5723, %v5692
        %v5756 = vsel %vm2724, %v5755, 0.0
        %v5757 = vsel %vm2725, %v5754, 0.0
        %v5758 = vsel %vm2726, %v5753, 0.0
        %v5759 = vsel %vm2727, %v5752, 0.0
        %v5760 = vsel %vm2728, %v5751, 0.0
        %v5761 = vsel %vm2729, %v5750, 0.0
        %v5762 = vsel %vm2730, %v5749, 0.0
        %v5763 = vsel %vm2731, %v5748, 0.0
        %v5764 = vsel %vm2732, %v5747, 0.0
        %v5765 = vsel %vm2733, %v5746, 0.0
        %v5766 = vsel %vm2734, %v5745, 0.0
        %v5767 = vsel %vm2735, %v5744, 0.0
        %v5768 = vsel %vm2736, %v5743, 0.0
        %v5769 = vsel %vm2737, %v5742, 0.0
        %v5770 = vsel %vm2738, %v5741, 0.0
        %v5771 = vsel %vm2739, %v5740, 0.0
        %v5772 = vsel %vm2740, %v5739, 0.0
        %v5773 = vsel %vm2741, %v5738, 0.0
        %v5774 = vsel %vm2742, %v5737, 0.0
        %v5775 = vsel %vm2743, %v5736, 0.0
        %v5776 = vsel %vm2744, %v5735, 0.0
        %v5777 = vsel %vm2745, %v5734, 0.0
        %v5778 = vsel %vm2746, %v5733, 0.0
        %v5779 = vsel %vm2747, %v5732, 0.0
        %v5780 = vsel %vm2748, %v5731, 0.0
        %v5781 = vsel %vm2749, %v5730, 0.0
        %v5782 = vsel %vm2750, %v5729, 0.0
        %v5783 = vsel %vm2751, %v5728, 0.0
        %v5784 = vsel %vm2752, %v5727, 0.0
        %v5785 = vsel %vm2753, %v5726, 0.0
        %v5786 = vsel %vm2754, %v5725, 0.0
        %v5787 = vsel %vm2755, %v5724, 0.0
        %v5788 = vadd.f32 %v5466, %v5756
        %v5789 = vadd.f32 %v5467, %v5757
        %v5790 = vadd.f32 %v5468, %v5758
        %v5791 = vadd.f32 %v5469, %v5759
        %v5792 = vadd.f32 %v5470, %v5760
        %v5793 = vadd.f32 %v5471, %v5761
        %v5794 = vadd.f32 %v5472, %v5762
        %v5795 = vadd.f32 %v5473, %v5763
        %v5796 = vadd.f32 %v5474, %v5764
        %v5797 = vadd.f32 %v5475, %v5765
        %v5798 = vadd.f32 %v5476, %v5766
        %v5799 = vadd.f32 %v5477, %v5767
        %v5800 = vadd.f32 %v5478, %v5768
        %v5801 = vadd.f32 %v5479, %v5769
        %v5802 = vadd.f32 %v5480, %v5770
        %v5803 = vadd.f32 %v5481, %v5771
        %v5804 = vadd.f32 %v5482, %v5772
        %v5805 = vadd.f32 %v5483, %v5773
        %v5806 = vadd.f32 %v5484, %v5774
        %v5807 = vadd.f32 %v5485, %v5775
        %v5808 = vadd.f32 %v5486, %v5776
        %v5809 = vadd.f32 %v5487, %v5777
        %v5810 = vadd.f32 %v5488, %v5778
        %v5811 = vadd.f32 %v5489, %v5779
        %v5812 = vadd.f32 %v5490, %v5780
        %v5813 = vadd.f32 %v5491, %v5781
        %v5814 = vadd.f32 %v5492, %v5782
        %v5815 = vadd.f32 %v5493, %v5783
        %v5816 = vadd.f32 %v5494, %v5784
        %v5817 = vadd.f32 %v5495, %v5785
        %v5818 = vadd.f32 %v5496, %v5786
        %v5819 = vadd.f32 %v5497, %v5787
        %s5820 = scalar_lea.vmem %s5, 160
        %v5821 = vld [vmem:[%s5820] sm:$0xf]
        %v5822 = vld [vmem:[%s5820 + $0x4] sm:$0xf]
        %v5823 = vld [vmem:[%s5820 + $0x8] sm:$0xf]
        %v5824 = vld [vmem:[%s5820 + $0xc] sm:$0xf]
        %v5825 = vld [vmem:[%s5820 + $0x10] sm:$0xf]
        %v5826 = vld [vmem:[%s5820 + $0x14] sm:$0xf]
        %v5827 = vld [vmem:[%s5820 + $0x18] sm:$0xf]
        %v5828 = vld [vmem:[%s5820 + $0x1c] sm:$0xf]
        %v5837 = vunpack.c.l.b16 %v5821
        %v5838 = vunpack.c.l.b16 %v5822
        %v5839 = vunpack.c.l.b16 %v5823
        %v5840 = vunpack.c.l.b16 %v5824
        %v5841 = vunpack.c.l.b16 %v5825
        %v5842 = vunpack.c.l.b16 %v5826
        %v5843 = vunpack.c.l.b16 %v5827
        %v5844 = vunpack.c.l.b16 %v5828
        %v5845 = vpack.c.b16 %v5838, %v5837
        %v5846 = vpack.c.b16 %v5840, %v5839
        %v5847 = vpack.c.b16 %v5842, %v5841
        %v5848 = vpack.c.b16 %v5844, %v5843
        %5853 = vmatprep.subr.bf16.mxu0 0
        %5854 = vmatpush1.bf16.msra.mxu0 %v5845
        %5855 = vmatprep.subr.bf16.mxu0 0
        %5856 = vmatpush1.bf16.msra.mxu0 %v5846
        %5857 = vmatprep.subr.bf16.mxu0 0
        %5858 = vmatpush1.bf16.msra.mxu0 %v5847
        %5859 = vmatprep.subr.bf16.mxu0 0
        %5860 = vmatpush1.bf16.msra.mxu0 %v5848
        %5861 = vmatprep.subr.bf16.mxu0 0
        %5862 = vmatpush1.bf16.msra.mxu0 0
        %5863 = vmatprep.subr.bf16.mxu0 0
        %5864 = vmatpush1.bf16.msra.mxu0 0
        %5865 = vmatprep.subr.bf16.mxu0 0
        %5866 = vmatpush1.bf16.msra.mxu0 0
        %5867 = vmatprep.subr.bf16.mxu0 0
        %5868 = vmatpush1.bf16.msra.mxu0 0
        %5869 = vmatprep.subr.bf16.mxu0 0
        %5870 = vmatpush1.bf16.msra.mxu0 0
        %5871 = vmatprep.subr.bf16.mxu0 0
        %5872 = vmatpush1.bf16.msra.mxu0 0
        %5873 = vmatprep.subr.bf16.mxu0 0
        %5874 = vmatpush1.bf16.msra.mxu0 0
        %5875 = vmatprep.subr.bf16.mxu0 0
        %5876 = vmatpush1.bf16.msra.mxu0 0
        %5877 = vmatprep.subr.bf16.mxu0 0
        %5878 = vmatpush1.bf16.msra.mxu0 0
        %5879 = vmatprep.subr.bf16.mxu0 0
        %5880 = vmatpush1.bf16.msra.mxu0 0
        %5881 = vmatprep.subr.bf16.mxu0 0
        %5882 = vmatpush1.bf16.msra.mxu0 0
        %5883 = vmatprep.subr.bf16.mxu0 0
        %5884 = vmatpush1.bf16.msra.mxu0 0
        %5885 = vmatprep.mubr.bf16.mxu0 0
        %5886 = vmatmul.mubr.bf16.gmra.mrb[0].mxu0 %v4389
        %v5887 = vpop.f32.mrb[0].mxu0
        %v5888 = vadd.f32 0.0, %v5887
        %v5889 = vpop.f32.mrb[0].mxu0
        %v5890 = vpop.f32.mrb[0].mxu0
        %v5891 = vadd.f32 0.0, %v5890
        %v5892 = vpop.f32.mrb[0].mxu0
        %5893 = vmatprep.mubr.bf16.mxu0 0
        %5894 = vmatmul.mubr.bf16.gmra.mrb[0].mxu0 %v4392
        %v5895 = vpop.f32.mrb[0].mxu0
        %v5896 = vadd.f32 0.0, %v5895
        %v5897 = vpop.f32.mrb[0].mxu0
        %v5898 = vpop.f32.mrb[0].mxu0
        %v5899 = vadd.f32 0.0, %v5898
        %v5900 = vpop.f32.mrb[0].mxu0
        %5901 = vmatprep.mubr.bf16.mxu0 0
        %5902 = vmatmul.mubr.bf16.gmra.mrb[0].mxu0 %v4395
        %v5903 = vpop.f32.mrb[0].mxu0
        %v5904 = vadd.f32 0.0, %v5903
        %v5905 = vpop.f32.mrb[0].mxu0
        %v5906 = vpop.f32.mrb[0].mxu0
        %v5907 = vadd.f32 0.0, %v5906
        %v5908 = vpop.f32.mrb[0].mxu0
        %5909 = vmatprep.mubr.bf16.mxu0 0
        %5910 = vmatmul.mubr.bf16.gmra.mrb[0].mxu0 %v4398
        %v5911 = vpop.f32.mrb[0].mxu0
        %v5912 = vadd.f32 0.0, %v5911
        %v5913 = vpop.f32.mrb[0].mxu0
        %v5914 = vpop.f32.mrb[0].mxu0
        %v5915 = vadd.f32 0.0, %v5914
        %v5916 = vpop.f32.mrb[0].mxu0
        %5917 = vmatprep.mubr.bf16.mxu0 0
        %5918 = vmatmul.mubr.bf16.gmra.mrb[0].mxu0 %v4401
        %v5919 = vpop.f32.mrb[0].mxu0
        %v5920 = vadd.f32 0.0, %v5919
        %v5921 = vpop.f32.mrb[0].mxu0
        %v5922 = vpop.f32.mrb[0].mxu0
        %v5923 = vadd.f32 0.0, %v5922
        %v5924 = vpop.f32.mrb[0].mxu0
        %5925 = vmatprep.mubr.bf16.mxu0 0
        %5926 = vmatmul.mubr.bf16.gmra.mrb[0].mxu0 %v4404
        %v5927 = vpop.f32.mrb[0].mxu0
        %v5928 = vadd.f32 0.0, %v5927
        %v5929 = vpop.f32.mrb[0].mxu0
        %v5930 = vpop.f32.mrb[0].mxu0
        %v5931 = vadd.f32 0.0, %v5930
        %v5932 = vpop.f32.mrb[0].mxu0
        %5933 = vmatprep.mubr.bf16.mxu0 0
        %5934 = vmatmul.mubr.bf16.gmra.mrb[0].mxu0 %v4407
        %v5935 = vpop.f32.mrb[0].mxu0
        %v5936 = vadd.f32 0.0, %v5935
        %v5937 = vpop.f32.mrb[0].mxu0
        %v5938 = vpop.f32.mrb[0].mxu0
        %v5939 = vadd.f32 0.0, %v5938
        %v5940 = vpop.f32.mrb[0].mxu0
        %5941 = vmatprep.mubr.bf16.mxu0 0
        %5942 = vmatmul.mubr.bf16.gmra.mrb[0].mxu0 %v4410
        %v5943 = vpop.f32.mrb[0].mxu0
        %v5944 = vadd.f32 0.0, %v5943
        %v5945 = vpop.f32.mrb[0].mxu0
        %v5946 = vpop.f32.mrb[0].mxu0
        %v5947 = vadd.f32 0.0, %v5946
        %v5948 = vpop.f32.mrb[0].mxu0
        %5949 = vmatprep.mubr.bf16.mxu0 0
        %5950 = vmatmul.mubr.bf16.gmra.mrb[0].mxu0 %v4413
        %v5951 = vpop.f32.mrb[0].mxu0
        %v5952 = vadd.f32 0.0, %v5951
        %v5953 = vpop.f32.mrb[0].mxu0
        %v5954 = vpop.f32.mrb[0].mxu0
        %v5955 = vadd.f32 0.0, %v5954
        %v5956 = vpop.f32.mrb[0].mxu0
        %5957 = vmatprep.mubr.bf16.mxu0 0
        %5958 = vmatmul.mubr.bf16.gmra.mrb[0].mxu0 %v4416
        %v5959 = vpop.f32.mrb[0].mxu0
        %v5960 = vadd.f32 0.0, %v5959
        %v5961 = vpop.f32.mrb[0].mxu0
        %v5962 = vpop.f32.mrb[0].mxu0
        %v5963 = vadd.f32 0.0, %v5962
        %v5964 = vpop.f32.mrb[0].mxu0
        %5965 = vmatprep.mubr.bf16.mxu0 0
        %5966 = vmatmul.mubr.bf16.gmra.mrb[0].mxu0 %v4419
        %v5967 = vpop.f32.mrb[0].mxu0
        %v5968 = vadd.f32 0.0, %v5967
        %v5969 = vpop.f32.mrb[0].mxu0
        %v5970 = vpop.f32.mrb[0].mxu0
        %v5971 = vadd.f32 0.0, %v5970
        %v5972 = vpop.f32.mrb[0].mxu0
        %5973 = vmatprep.mubr.bf16.mxu0 0
        %5974 = vmatmul.mubr.bf16.gmra.mrb[0].mxu0 %v4422
        %v5975 = vpop.f32.mrb[0].mxu0
        %v5976 = vadd.f32 0.0, %v5975
        %v5977 = vpop.f32.mrb[0].mxu0
        %v5978 = vpop.f32.mrb[0].mxu0
        %v5979 = vadd.f32 0.0, %v5978
        %v5980 = vpop.f32.mrb[0].mxu0
        %5981 = vmatprep.mubr.bf16.mxu0 0
        %5982 = vmatmul.mubr.bf16.gmra.mrb[0].mxu0 %v4425
        %v5983 = vpop.f32.mrb[0].mxu0
        %v5984 = vadd.f32 0.0, %v5983
        %v5985 = vpop.f32.mrb[0].mxu0
        %v5986 = vpop.f32.mrb[0].mxu0
        %v5987 = vadd.f32 0.0, %v5986
        %v5988 = vpop.f32.mrb[0].mxu0
        %5989 = vmatprep.mubr.bf16.mxu0 0
        %5990 = vmatmul.mubr.bf16.gmra.mrb[0].mxu0 %v4428
        %v5991 = vpop.f32.mrb[0].mxu0
        %v5992 = vadd.f32 0.0, %v5991
        %v5993 = vpop.f32.mrb[0].mxu0
        %v5994 = vpop.f32.mrb[0].mxu0
        %v5995 = vadd.f32 0.0, %v5994
        %v5996 = vpop.f32.mrb[0].mxu0
        %5997 = vmatprep.mubr.bf16.mxu0 0
        %5998 = vmatmul.mubr.bf16.gmra.mrb[0].mxu0 %v4431
        %v5999 = vpop.f32.mrb[0].mxu0
        %v6000 = vadd.f32 0.0, %v5999
        %v6001 = vpop.f32.mrb[0].mxu0
        %v6002 = vpop.f32.mrb[0].mxu0
        %v6003 = vadd.f32 0.0, %v6002
        %v6004 = vpop.f32.mrb[0].mxu0
        %6005 = vmatprep.mubr.bf16.mxu0 0
        %6006 = vmatmul.mubr.bf16.gmra.mrb[0].mxu0 %v4434
        %v6007 = vpop.f32.mrb[0].mxu0
        %v6008 = vadd.f32 0.0, %v6007
        %v6009 = vpop.f32.mrb[0].mxu0
        %v6010 = vpop.f32.mrb[0].mxu0
        %v6011 = vadd.f32 0.0, %v6010
        %v6012 = vpop.f32.mrb[0].mxu0
        %6013 = vdwg.mxu0
        %v6014 = vrot.slane %v5888, 1
        %v6015 = vrot.slane %v5891, 1
        %v6016 = vrot.slane %v5896, 1
        %v6017 = vrot.slane %v5899, 1
        %v6018 = vrot.slane %v5904, 1
        %v6019 = vrot.slane %v5907, 1
        %v6020 = vrot.slane %v5912, 1
        %v6021 = vrot.slane %v5915, 1
        %v6022 = vrot.slane %v5920, 1
        %v6023 = vrot.slane %v5923, 1
        %v6024 = vrot.slane %v5928, 1
        %v6025 = vrot.slane %v5931, 1
        %v6026 = vrot.slane %v5936, 1
        %v6027 = vrot.slane %v5939, 1
        %v6028 = vrot.slane %v5944, 1
        %v6029 = vrot.slane %v5947, 1
        %v6030 = vrot.slane %v5952, 1
        %v6031 = vrot.slane %v5955, 1
        %v6032 = vrot.slane %v5960, 1
        %v6033 = vrot.slane %v5963, 1
        %v6034 = vrot.slane %v5968, 1
        %v6035 = vrot.slane %v5971, 1
        %v6036 = vrot.slane %v5976, 1
        %v6037 = vrot.slane %v5979, 1
        %v6038 = vrot.slane %v5984, 1
        %v6039 = vrot.slane %v5987, 1
        %v6040 = vrot.slane %v5992, 1
        %v6041 = vrot.slane %v5995, 1
        %v6042 = vrot.slane %v6000, 1
        %v6043 = vrot.slane %v6003, 1
        %v6044 = vrot.slane %v6008, 1
        %v6045 = vrot.slane %v6011, 1
        %v6046 = vsel %vm2273, %v6044, %v6045
        %v6047 = vsel %vm2273, %v6043, %v6044
        %v6048 = vsel %vm2273, %v6042, %v6043
        %v6049 = vsel %vm2273, %v6041, %v6042
        %v6050 = vsel %vm2273, %v6040, %v6041
        %v6051 = vsel %vm2273, %v6039, %v6040
        %v6052 = vsel %vm2273, %v6038, %v6039
        %v6053 = vsel %vm2273, %v6037, %v6038
        %v6054 = vsel %vm2273, %v6036, %v6037
        %v6055 = vsel %vm2273, %v6035, %v6036
        %v6056 = vsel %vm2273, %v6034, %v6035
        %v6057 = vsel %vm2273, %v6033, %v6034
        %v6058 = vsel %vm2273, %v6032, %v6033
        %v6059 = vsel %vm2273, %v6031, %v6032
        %v6060 = vsel %vm2273, %v6030, %v6031
        %v6061 = vsel %vm2273, %v6029, %v6030
        %v6062 = vsel %vm2273, %v6028, %v6029
        %v6063 = vsel %vm2273, %v6027, %v6028
        %v6064 = vsel %vm2273, %v6026, %v6027
        %v6065 = vsel %vm2273, %v6025, %v6026
        %v6066 = vsel %vm2273, %v6024, %v6025
        %v6067 = vsel %vm2273, %v6023, %v6024
        %v6068 = vsel %vm2273, %v6022, %v6023
        %v6069 = vsel %vm2273, %v6021, %v6022
        %v6070 = vsel %vm2273, %v6020, %v6021
        %v6071 = vsel %vm2273, %v6019, %v6020
        %v6072 = vsel %vm2273, %v6018, %v6019
        %v6073 = vsel %vm2273, %v6017, %v6018
        %v6074 = vsel %vm2273, %v6016, %v6017
        %v6075 = vsel %vm2273, %v6015, %v6016
        %v6076 = vsel %vm2273, %v6014, %v6015
        %v6077 = vsel %vm2273, %v6045, %v6014
        %v6078 = vsel %vm3110, %v6076, 0.0
        %v6079 = vsel %vm3111, %v6075, 0.0
        %v6080 = vsel %vm3112, %v6074, 0.0
        %v6081 = vsel %vm3113, %v6073, 0.0
        %v6082 = vsel %vm3114, %v6072, 0.0
        %v6083 = vsel %vm3115, %v6071, 0.0
        %v6084 = vsel %vm3116, %v6070, 0.0
        %v6085 = vsel %vm3117, %v6069, 0.0
        %v6086 = vsel %vm3118, %v6068, 0.0
        %v6087 = vsel %vm3119, %v6067, 0.0
        %v6088 = vsel %vm3120, %v6066, 0.0
        %v6089 = vsel %vm3121, %v6065, 0.0
        %v6090 = vsel %vm3122, %v6064, 0.0
        %v6091 = vsel %vm3123, %v6063, 0.0
        %v6092 = vsel %vm3124, %v6062, 0.0
        %v6093 = vsel %vm3125, %v6061, 0.0
        %v6094 = vsel %vm3126, %v6060, 0.0
        %v6095 = vsel %vm3127, %v6059, 0.0
        %v6096 = vsel %vm3128, %v6058, 0.0
        %v6097 = vsel %vm3129, %v6057, 0.0
        %v6098 = vsel %vm3130, %v6056, 0.0
        %v6099 = vsel %vm3131, %v6055, 0.0
        %v6100 = vsel %vm3132, %v6054, 0.0
        %v6101 = vsel %vm3133, %v6053, 0.0
        %v6102 = vsel %vm3134, %v6052, 0.0
        %v6103 = vsel %vm3135, %v6051, 0.0
        %v6104 = vsel %vm3136, %v6050, 0.0
        %v6105 = vsel %vm3137, %v6049, 0.0
        %v6106 = vsel %vm3138, %v6048, 0.0
        %v6107 = vsel %vm3139, %v6047, 0.0
        %v6108 = vsel %vm3140, %v6046, 0.0
        %v6109 = vsel %vm3141, %v6077, 0.0
        %v6110 = vadd.f32 %v5788, %v6078
        %v6111 = vadd.f32 %v5789, %v6079
        %v6112 = vadd.f32 %v5790, %v6080
        %v6113 = vadd.f32 %v5791, %v6081
        %v6114 = vadd.f32 %v5792, %v6082
        %v6115 = vadd.f32 %v5793, %v6083
        %v6116 = vadd.f32 %v5794, %v6084
        %v6117 = vadd.f32 %v5795, %v6085
        %v6118 = vadd.f32 %v5796, %v6086
        %v6119 = vadd.f32 %v5797, %v6087
        %v6120 = vadd.f32 %v5798, %v6088
        %v6121 = vadd.f32 %v5799, %v6089
        %v6122 = vadd.f32 %v5800, %v6090
        %v6123 = vadd.f32 %v5801, %v6091
        %v6124 = vadd.f32 %v5802, %v6092
        %v6125 = vadd.f32 %v5803, %v6093
        %v6126 = vadd.f32 %v5804, %v6094
        %v6127 = vadd.f32 %v5805, %v6095
        %v6128 = vadd.f32 %v5806, %v6096
        %v6129 = vadd.f32 %v5807, %v6097
        %v6130 = vadd.f32 %v5808, %v6098
        %v6131 = vadd.f32 %v5809, %v6099
        %v6132 = vadd.f32 %v5810, %v6100
        %v6133 = vadd.f32 %v5811, %v6101
        %v6134 = vadd.f32 %v5812, %v6102
        %v6135 = vadd.f32 %v5813, %v6103
        %v6136 = vadd.f32 %v5814, %v6104
        %v6137 = vadd.f32 %v5815, %v6105
        %v6138 = vadd.f32 %v5816, %v6106
        %v6139 = vadd.f32 %v5817, %v6107
        %v6140 = vadd.f32 %v5818, %v6108
        %v6141 = vadd.f32 %v5819, %v6109
        %s6142 = scalar_lea.vmem %s5, 192
        %v6143 = vld [vmem:[%s6142] sm:$0xf]
        %v6144 = vld [vmem:[%s6142 + $0x4] sm:$0xf]
        %v6145 = vld [vmem:[%s6142 + $0x8] sm:$0xf]
        %v6146 = vld [vmem:[%s6142 + $0xc] sm:$0xf]
        %v6147 = vld [vmem:[%s6142 + $0x10] sm:$0xf]
        %v6148 = vld [vmem:[%s6142 + $0x14] sm:$0xf]
        %v6149 = vld [vmem:[%s6142 + $0x18] sm:$0xf]
        %v6150 = vld [vmem:[%s6142 + $0x1c] sm:$0xf]
        %v6159 = vunpack.c.l.b16 %v6143
        %v6160 = vunpack.c.l.b16 %v6144
        %v6161 = vunpack.c.l.b16 %v6145
        %v6162 = vunpack.c.l.b16 %v6146
        %v6163 = vunpack.c.l.b16 %v6147
        %v6164 = vunpack.c.l.b16 %v6148
        %v6165 = vunpack.c.l.b16 %v6149
        %v6166 = vunpack.c.l.b16 %v6150
        %v6167 = vpack.c.b16 %v6160, %v6159
        %v6168 = vpack.c.b16 %v6162, %v6161
        %v6169 = vpack.c.b16 %v6164, %v6163
        %v6170 = vpack.c.b16 %v6166, %v6165
        %6175 = vmatprep.subr.bf16.mxu0 0
        %6176 = vmatpush1.bf16.msra.mxu0 %v6167
        %6177 = vmatprep.subr.bf16.mxu0 0
        %6178 = vmatpush1.bf16.msra.mxu0 %v6168
        %6179 = vmatprep.subr.bf16.mxu0 0
        %6180 = vmatpush1.bf16.msra.mxu0 %v6169
        %6181 = vmatprep.subr.bf16.mxu0 0
        %6182 = vmatpush1.bf16.msra.mxu0 %v6170
        %6183 = vmatprep.subr.bf16.mxu0 0
        %6184 = vmatpush1.bf16.msra.mxu0 0
        %6185 = vmatprep.subr.bf16.mxu0 0
        %6186 = vmatpush1.bf16.msra.mxu0 0
        %6187 = vmatprep.subr.bf16.mxu0 0
        %6188 = vmatpush1.bf16.msra.mxu0 0
        %6189 = vmatprep.subr.bf16.mxu0 0
        %6190 = vmatpush1.bf16.msra.mxu0 0
        %6191 = vmatprep.subr.bf16.mxu0 0
        %6192 = vmatpush1.bf16.msra.mxu0 0
        %6193 = vmatprep.subr.bf16.mxu0 0
        %6194 = vmatpush1.bf16.msra.mxu0 0
        %6195 = vmatprep.subr.bf16.mxu0 0
        %6196 = vmatpush1.bf16.msra.mxu0 0
        %6197 = vmatprep.subr.bf16.mxu0 0
        %6198 = vmatpush1.bf16.msra.mxu0 0
        %6199 = vmatprep.subr.bf16.mxu0 0
        %6200 = vmatpush1.bf16.msra.mxu0 0
        %6201 = vmatprep.subr.bf16.mxu0 0
        %6202 = vmatpush1.bf16.msra.mxu0 0
        %6203 = vmatprep.subr.bf16.mxu0 0
        %6204 = vmatpush1.bf16.msra.mxu0 0
        %6205 = vmatprep.subr.bf16.mxu0 0
        %6206 = vmatpush1.bf16.msra.mxu0 0
        %6207 = vmatprep.mubr.bf16.mxu0 0
        %6208 = vmatmul.mubr.bf16.gmra.mrb[0].mxu0 %v4389
        %v6209 = vpop.f32.mrb[0].mxu0
        %v6210 = vadd.f32 0.0, %v6209
        %v6211 = vpop.f32.mrb[0].mxu0
        %v6212 = vpop.f32.mrb[0].mxu0
        %v6213 = vadd.f32 0.0, %v6212
        %v6214 = vpop.f32.mrb[0].mxu0
        %6215 = vmatprep.mubr.bf16.mxu0 0
        %6216 = vmatmul.mubr.bf16.gmra.mrb[0].mxu0 %v4392
        %v6217 = vpop.f32.mrb[0].mxu0
        %v6218 = vadd.f32 0.0, %v6217
        %v6219 = vpop.f32.mrb[0].mxu0
        %v6220 = vpop.f32.mrb[0].mxu0
        %v6221 = vadd.f32 0.0, %v6220
        %v6222 = vpop.f32.mrb[0].mxu0
        %6223 = vmatprep.mubr.bf16.mxu0 0
        %6224 = vmatmul.mubr.bf16.gmra.mrb[0].mxu0 %v4395
        %v6225 = vpop.f32.mrb[0].mxu0
        %v6226 = vadd.f32 0.0, %v6225
        %v6227 = vpop.f32.mrb[0].mxu0
        %v6228 = vpop.f32.mrb[0].mxu0
        %v6229 = vadd.f32 0.0, %v6228
        %v6230 = vpop.f32.mrb[0].mxu0
        %6231 = vmatprep.mubr.bf16.mxu0 0
        %6232 = vmatmul.mubr.bf16.gmra.mrb[0].mxu0 %v4398
        %v6233 = vpop.f32.mrb[0].mxu0
        %v6234 = vadd.f32 0.0, %v6233
        %v6235 = vpop.f32.mrb[0].mxu0
        %v6236 = vpop.f32.mrb[0].mxu0
        %v6237 = vadd.f32 0.0, %v6236
        %v6238 = vpop.f32.mrb[0].mxu0
        %6239 = vmatprep.mubr.bf16.mxu0 0
        %6240 = vmatmul.mubr.bf16.gmra.mrb[0].mxu0 %v4401
        %v6241 = vpop.f32.mrb[0].mxu0
        %v6242 = vadd.f32 0.0, %v6241
        %v6243 = vpop.f32.mrb[0].mxu0
        %v6244 = vpop.f32.mrb[0].mxu0
        %v6245 = vadd.f32 0.0, %v6244
        %v6246 = vpop.f32.mrb[0].mxu0
        %6247 = vmatprep.mubr.bf16.mxu0 0
        %6248 = vmatmul.mubr.bf16.gmra.mrb[0].mxu0 %v4404
        %v6249 = vpop.f32.mrb[0].mxu0
        %v6250 = vadd.f32 0.0, %v6249
        %v6251 = vpop.f32.mrb[0].mxu0
        %v6252 = vpop.f32.mrb[0].mxu0
        %v6253 = vadd.f32 0.0, %v6252
        %v6254 = vpop.f32.mrb[0].mxu0
        %6255 = vmatprep.mubr.bf16.mxu0 0
        %6256 = vmatmul.mubr.bf16.gmra.mrb[0].mxu0 %v4407
        %v6257 = vpop.f32.mrb[0].mxu0
        %v6258 = vadd.f32 0.0, %v6257
        %v6259 = vpop.f32.mrb[0].mxu0
        %v6260 = vpop.f32.mrb[0].mxu0
        %v6261 = vadd.f32 0.0, %v6260
        %v6262 = vpop.f32.mrb[0].mxu0
        %6263 = vmatprep.mubr.bf16.mxu0 0
        %6264 = vmatmul.mubr.bf16.gmra.mrb[0].mxu0 %v4410
        %v6265 = vpop.f32.mrb[0].mxu0
        %v6266 = vadd.f32 0.0, %v6265
        %v6267 = vpop.f32.mrb[0].mxu0
        %v6268 = vpop.f32.mrb[0].mxu0
        %v6269 = vadd.f32 0.0, %v6268
        %v6270 = vpop.f32.mrb[0].mxu0
        %6271 = vmatprep.mubr.bf16.mxu0 0
        %6272 = vmatmul.mubr.bf16.gmra.mrb[0].mxu0 %v4413
        %v6273 = vpop.f32.mrb[0].mxu0
        %v6274 = vadd.f32 0.0, %v6273
        %v6275 = vpop.f32.mrb[0].mxu0
        %v6276 = vpop.f32.mrb[0].mxu0
        %v6277 = vadd.f32 0.0, %v6276
        %v6278 = vpop.f32.mrb[0].mxu0
        %6279 = vmatprep.mubr.bf16.mxu0 0
        %6280 = vmatmul.mubr.bf16.gmra.mrb[0].mxu0 %v4416
        %v6281 = vpop.f32.mrb[0].mxu0
        %v6282 = vadd.f32 0.0, %v6281
        %v6283 = vpop.f32.mrb[0].mxu0
        %v6284 = vpop.f32.mrb[0].mxu0
        %v6285 = vadd.f32 0.0, %v6284
        %v6286 = vpop.f32.mrb[0].mxu0
        %6287 = vmatprep.mubr.bf16.mxu0 0
        %6288 = vmatmul.mubr.bf16.gmra.mrb[0].mxu0 %v4419
        %v6289 = vpop.f32.mrb[0].mxu0
        %v6290 = vadd.f32 0.0, %v6289
        %v6291 = vpop.f32.mrb[0].mxu0
        %v6292 = vpop.f32.mrb[0].mxu0
        %v6293 = vadd.f32 0.0, %v6292
        %v6294 = vpop.f32.mrb[0].mxu0
        %6295 = vmatprep.mubr.bf16.mxu0 0
        %6296 = vmatmul.mubr.bf16.gmra.mrb[0].mxu0 %v4422
        %v6297 = vpop.f32.mrb[0].mxu0
        %v6298 = vadd.f32 0.0, %v6297
        %v6299 = vpop.f32.mrb[0].mxu0
        %v6300 = vpop.f32.mrb[0].mxu0
        %v6301 = vadd.f32 0.0, %v6300
        %v6302 = vpop.f32.mrb[0].mxu0
        %6303 = vmatprep.mubr.bf16.mxu0 0
        %6304 = vmatmul.mubr.bf16.gmra.mrb[0].mxu0 %v4425
        %v6305 = vpop.f32.mrb[0].mxu0
        %v6306 = vadd.f32 0.0, %v6305
        %v6307 = vpop.f32.mrb[0].mxu0
        %v6308 = vpop.f32.mrb[0].mxu0
        %v6309 = vadd.f32 0.0, %v6308
        %v6310 = vpop.f32.mrb[0].mxu0
        %6311 = vmatprep.mubr.bf16.mxu0 0
        %6312 = vmatmul.mubr.bf16.gmra.mrb[0].mxu0 %v4428
        %v6313 = vpop.f32.mrb[0].mxu0
        %v6314 = vadd.f32 0.0, %v6313
        %v6315 = vpop.f32.mrb[0].mxu0
        %v6316 = vpop.f32.mrb[0].mxu0
        %v6317 = vadd.f32 0.0, %v6316
        %v6318 = vpop.f32.mrb[0].mxu0
        %6319 = vmatprep.mubr.bf16.mxu0 0
        %6320 = vmatmul.mubr.bf16.gmra.mrb[0].mxu0 %v4431
        %v6321 = vpop.f32.mrb[0].mxu0
        %v6322 = vadd.f32 0.0, %v6321
        %v6323 = vpop.f32.mrb[0].mxu0
        %v6324 = vpop.f32.mrb[0].mxu0
        %v6325 = vadd.f32 0.0, %v6324
        %v6326 = vpop.f32.mrb[0].mxu0
        %6327 = vmatprep.mubr.bf16.mxu0 0
        %6328 = vmatmul.mubr.bf16.gmra.mrb[0].mxu0 %v4434
        %v6329 = vpop.f32.mrb[0].mxu0
        %v6330 = vadd.f32 0.0, %v6329
        %v6331 = vpop.f32.mrb[0].mxu0
        %v6332 = vpop.f32.mrb[0].mxu0
        %v6333 = vadd.f32 0.0, %v6332
        %v6334 = vpop.f32.mrb[0].mxu0
        %6335 = vdwg.mxu0
        %v6336 = vrot.slane %v6210, 7
        %v6337 = vrot.slane %v6213, 7
        %v6338 = vrot.slane %v6218, 7
        %v6339 = vrot.slane %v6221, 7
        %v6340 = vrot.slane %v6226, 7
        %v6341 = vrot.slane %v6229, 7
        %v6342 = vrot.slane %v6234, 7
        %v6343 = vrot.slane %v6237, 7
        %v6344 = vrot.slane %v6242, 7
        %v6345 = vrot.slane %v6245, 7
        %v6346 = vrot.slane %v6250, 7
        %v6347 = vrot.slane %v6253, 7
        %v6348 = vrot.slane %v6258, 7
        %v6349 = vrot.slane %v6261, 7
        %v6350 = vrot.slane %v6266, 7
        %v6351 = vrot.slane %v6269, 7
        %v6352 = vrot.slane %v6274, 7
        %v6353 = vrot.slane %v6277, 7
        %v6354 = vrot.slane %v6282, 7
        %v6355 = vrot.slane %v6285, 7
        %v6356 = vrot.slane %v6290, 7
        %v6357 = vrot.slane %v6293, 7
        %v6358 = vrot.slane %v6298, 7
        %v6359 = vrot.slane %v6301, 7
        %v6360 = vrot.slane %v6306, 7
        %v6361 = vrot.slane %v6309, 7
        %v6362 = vrot.slane %v6314, 7
        %v6363 = vrot.slane %v6317, 7
        %v6364 = vrot.slane %v6322, 7
        %v6365 = vrot.slane %v6325, 7
        %v6366 = vrot.slane %v6330, 7
        %v6367 = vrot.slane %v6333, 7
        %v6368 = vsel %vm1564, %v6366, %v6367
        %v6369 = vsel %vm1564, %v6365, %v6366
        %v6370 = vsel %vm1564, %v6364, %v6365
        %v6371 = vsel %vm1564, %v6363, %v6364
        %v6372 = vsel %vm1564, %v6362, %v6363
        %v6373 = vsel %vm1564, %v6361, %v6362
        %v6374 = vsel %vm1564, %v6360, %v6361
        %v6375 = vsel %vm1564, %v6359, %v6360
        %v6376 = vsel %vm1564, %v6358, %v6359
        %v6377 = vsel %vm1564, %v6357, %v6358
        %v6378 = vsel %vm1564, %v6356, %v6357
        %v6379 = vsel %vm1564, %v6355, %v6356
        %v6380 = vsel %vm1564, %v6354, %v6355
        %v6381 = vsel %vm1564, %v6353, %v6354
        %v6382 = vsel %vm1564, %v6352, %v6353
        %v6383 = vsel %vm1564, %v6351, %v6352
        %v6384 = vsel %vm1564, %v6350, %v6351
        %v6385 = vsel %vm1564, %v6349, %v6350
        %v6386 = vsel %vm1564, %v6348, %v6349
        %v6387 = vsel %vm1564, %v6347, %v6348
        %v6388 = vsel %vm1564, %v6346, %v6347
        %v6389 = vsel %vm1564, %v6345, %v6346
        %v6390 = vsel %vm1564, %v6344, %v6345
        %v6391 = vsel %vm1564, %v6343, %v6344
        %v6392 = vsel %vm1564, %v6342, %v6343
        %v6393 = vsel %vm1564, %v6341, %v6342
        %v6394 = vsel %vm1564, %v6340, %v6341
        %v6395 = vsel %vm1564, %v6339, %v6340
        %v6396 = vsel %vm1564, %v6338, %v6339
        %v6397 = vsel %vm1564, %v6337, %v6338
        %v6398 = vsel %vm1564, %v6336, %v6337
        %v6399 = vsel %vm1564, %v6367, %v6336
        %v6400 = vsel %vm3496, %v6397, 0.0
        %v6401 = vsel %vm3497, %v6396, 0.0
        %v6402 = vsel %vm3498, %v6395, 0.0
        %v6403 = vsel %vm3499, %v6394, 0.0
        %v6404 = vsel %vm3500, %v6393, 0.0
        %v6405 = vsel %vm3501, %v6392, 0.0
        %v6406 = vsel %vm3502, %v6391, 0.0
        %v6407 = vsel %vm3503, %v6390, 0.0
        %v6408 = vsel %vm3504, %v6389, 0.0
        %v6409 = vsel %vm3505, %v6388, 0.0
        %v6410 = vsel %vm3506, %v6387, 0.0
        %v6411 = vsel %vm3507, %v6386, 0.0
        %v6412 = vsel %vm3508, %v6385, 0.0
        %v6413 = vsel %vm3509, %v6384, 0.0
        %v6414 = vsel %vm3510, %v6383, 0.0
        %v6415 = vsel %vm3511, %v6382, 0.0
        %v6416 = vsel %vm3512, %v6381, 0.0
        %v6417 = vsel %vm3513, %v6380, 0.0
        %v6418 = vsel %vm3514, %v6379, 0.0
        %v6419 = vsel %vm3515, %v6378, 0.0
        %v6420 = vsel %vm3516, %v6377, 0.0
        %v6421 = vsel %vm3517, %v6376, 0.0
        %v6422 = vsel %vm3518, %v6375, 0.0
        %v6423 = vsel %vm3519, %v6374, 0.0
        %v6424 = vsel %vm3520, %v6373, 0.0
        %v6425 = vsel %vm3521, %v6372, 0.0
        %v6426 = vsel %vm3522, %v6371, 0.0
        %v6427 = vsel %vm3523, %v6370, 0.0
        %v6428 = vsel %vm3524, %v6369, 0.0
        %v6429 = vsel %vm3525, %v6368, 0.0
        %v6430 = vsel %vm3526, %v6399, 0.0
        %v6431 = vsel %vm3527, %v6398, 0.0
        %v6432 = vadd.f32 %v6110, %v6400
        %v6433 = vadd.f32 %v6111, %v6401
        %v6434 = vadd.f32 %v6112, %v6402
        %v6435 = vadd.f32 %v6113, %v6403
        %v6436 = vadd.f32 %v6114, %v6404
        %v6437 = vadd.f32 %v6115, %v6405
        %v6438 = vadd.f32 %v6116, %v6406
        %v6439 = vadd.f32 %v6117, %v6407
        %v6440 = vadd.f32 %v6118, %v6408
        %v6441 = vadd.f32 %v6119, %v6409
        %v6442 = vadd.f32 %v6120, %v6410
        %v6443 = vadd.f32 %v6121, %v6411
        %v6444 = vadd.f32 %v6122, %v6412
        %v6445 = vadd.f32 %v6123, %v6413
        %v6446 = vadd.f32 %v6124, %v6414
        %v6447 = vadd.f32 %v6125, %v6415
        %v6448 = vadd.f32 %v6126, %v6416
        %v6449 = vadd.f32 %v6127, %v6417
        %v6450 = vadd.f32 %v6128, %v6418
        %v6451 = vadd.f32 %v6129, %v6419
        %v6452 = vadd.f32 %v6130, %v6420
        %v6453 = vadd.f32 %v6131, %v6421
        %v6454 = vadd.f32 %v6132, %v6422
        %v6455 = vadd.f32 %v6133, %v6423
        %v6456 = vadd.f32 %v6134, %v6424
        %v6457 = vadd.f32 %v6135, %v6425
        %v6458 = vadd.f32 %v6136, %v6426
        %v6459 = vadd.f32 %v6137, %v6427
        %v6460 = vadd.f32 %v6138, %v6428
        %v6461 = vadd.f32 %v6139, %v6429
        %v6462 = vadd.f32 %v6140, %v6430
        %v6463 = vadd.f32 %v6141, %v6431
        %s6464 = scalar_lea.vmem %s5, 224
        %v6465 = vld [vmem:[%s6464] sm:$0xf]
        %v6466 = vld [vmem:[%s6464 + $0x4] sm:$0xf]
        %v6467 = vld [vmem:[%s6464 + $0x8] sm:$0xf]
        %v6468 = vld [vmem:[%s6464 + $0xc] sm:$0xf]
        %v6469 = vld [vmem:[%s6464 + $0x10] sm:$0xf]
        %v6470 = vld [vmem:[%s6464 + $0x14] sm:$0xf]
        %v6471 = vld [vmem:[%s6464 + $0x18] sm:$0xf]
        %v6472 = vld [vmem:[%s6464 + $0x1c] sm:$0xf]
        %v6481 = vunpack.c.l.b16 %v6465
        %v6482 = vunpack.c.l.b16 %v6466
        %v6483 = vunpack.c.l.b16 %v6467
        %v6484 = vunpack.c.l.b16 %v6468
        %v6485 = vunpack.c.l.b16 %v6469
        %v6486 = vunpack.c.l.b16 %v6470
        %v6487 = vunpack.c.l.b16 %v6471
        %v6488 = vunpack.c.l.b16 %v6472
        %v6489 = vpack.c.b16 %v6482, %v6481
        %v6490 = vpack.c.b16 %v6484, %v6483
        %v6491 = vpack.c.b16 %v6486, %v6485
        %v6492 = vpack.c.b16 %v6488, %v6487
        %6497 = vmatprep.subr.bf16.mxu0 0
        %6498 = vmatpush1.bf16.msra.mxu0 %v6489
        %6499 = vmatprep.subr.bf16.mxu0 0
        %6500 = vmatpush1.bf16.msra.mxu0 %v6490
        %6501 = vmatprep.subr.bf16.mxu0 0
        %6502 = vmatpush1.bf16.msra.mxu0 %v6491
        %6503 = vmatprep.subr.bf16.mxu0 0
        %6504 = vmatpush1.bf16.msra.mxu0 %v6492
        %6505 = vmatprep.subr.bf16.mxu0 0
        %6506 = vmatpush1.bf16.msra.mxu0 0
        %6507 = vmatprep.subr.bf16.mxu0 0
        %6508 = vmatpush1.bf16.msra.mxu0 0
        %6509 = vmatprep.subr.bf16.mxu0 0
        %6510 = vmatpush1.bf16.msra.mxu0 0
        %6511 = vmatprep.subr.bf16.mxu0 0
        %6512 = vmatpush1.bf16.msra.mxu0 0
        %6513 = vmatprep.subr.bf16.mxu0 0
        %6514 = vmatpush1.bf16.msra.mxu0 0
        %6515 = vmatprep.subr.bf16.mxu0 0
        %6516 = vmatpush1.bf16.msra.mxu0 0
        %6517 = vmatprep.subr.bf16.mxu0 0
        %6518 = vmatpush1.bf16.msra.mxu0 0
        %6519 = vmatprep.subr.bf16.mxu0 0
        %6520 = vmatpush1.bf16.msra.mxu0 0
        %6521 = vmatprep.subr.bf16.mxu0 0
        %6522 = vmatpush1.bf16.msra.mxu0 0
        %6523 = vmatprep.subr.bf16.mxu0 0
        %6524 = vmatpush1.bf16.msra.mxu0 0
        %6525 = vmatprep.subr.bf16.mxu0 0
        %6526 = vmatpush1.bf16.msra.mxu0 0
        %6527 = vmatprep.subr.bf16.mxu0 0
        %6528 = vmatpush1.bf16.msra.mxu0 0
        %6529 = vmatprep.mubr.bf16.mxu0 0
        %6530 = vmatmul.mubr.bf16.gmra.mrb[0].mxu0 %v4389
        %v6531 = vpop.f32.mrb[0].mxu0
        %v6532 = vadd.f32 0.0, %v6531
        %v6533 = vpop.f32.mrb[0].mxu0
        %v6534 = vpop.f32.mrb[0].mxu0
        %v6535 = vadd.f32 0.0, %v6534
        %v6536 = vpop.f32.mrb[0].mxu0
        %6537 = vmatprep.mubr.bf16.mxu0 0
        %6538 = vmatmul.mubr.bf16.gmra.mrb[0].mxu0 %v4392
        %v6539 = vpop.f32.mrb[0].mxu0
        %v6540 = vadd.f32 0.0, %v6539
        %v6541 = vpop.f32.mrb[0].mxu0
        %v6542 = vpop.f32.mrb[0].mxu0
        %v6543 = vadd.f32 0.0, %v6542
        %v6544 = vpop.f32.mrb[0].mxu0
        %6545 = vmatprep.mubr.bf16.mxu0 0
        %6546 = vmatmul.mubr.bf16.gmra.mrb[0].mxu0 %v4395
        %v6547 = vpop.f32.mrb[0].mxu0
        %v6548 = vadd.f32 0.0, %v6547
        %v6549 = vpop.f32.mrb[0].mxu0
        %v6550 = vpop.f32.mrb[0].mxu0
        %v6551 = vadd.f32 0.0, %v6550
        %v6552 = vpop.f32.mrb[0].mxu0
        %6553 = vmatprep.mubr.bf16.mxu0 0
        %6554 = vmatmul.mubr.bf16.gmra.mrb[0].mxu0 %v4398
        %v6555 = vpop.f32.mrb[0].mxu0
        %v6556 = vadd.f32 0.0, %v6555
        %v6557 = vpop.f32.mrb[0].mxu0
        %v6558 = vpop.f32.mrb[0].mxu0
        %v6559 = vadd.f32 0.0, %v6558
        %v6560 = vpop.f32.mrb[0].mxu0
        %6561 = vmatprep.mubr.bf16.mxu0 0
        %6562 = vmatmul.mubr.bf16.gmra.mrb[0].mxu0 %v4401
        %v6563 = vpop.f32.mrb[0].mxu0
        %v6564 = vadd.f32 0.0, %v6563
        %v6565 = vpop.f32.mrb[0].mxu0
        %v6566 = vpop.f32.mrb[0].mxu0
        %v6567 = vadd.f32 0.0, %v6566
        %v6568 = vpop.f32.mrb[0].mxu0
        %6569 = vmatprep.mubr.bf16.mxu0 0
        %6570 = vmatmul.mubr.bf16.gmra.mrb[0].mxu0 %v4404
        %v6571 = vpop.f32.mrb[0].mxu0
        %v6572 = vadd.f32 0.0, %v6571
        %v6573 = vpop.f32.mrb[0].mxu0
        %v6574 = vpop.f32.mrb[0].mxu0
        %v6575 = vadd.f32 0.0, %v6574
        %v6576 = vpop.f32.mrb[0].mxu0
        %6577 = vmatprep.mubr.bf16.mxu0 0
        %6578 = vmatmul.mubr.bf16.gmra.mrb[0].mxu0 %v4407
        %v6579 = vpop.f32.mrb[0].mxu0
        %v6580 = vadd.f32 0.0, %v6579
        %v6581 = vpop.f32.mrb[0].mxu0
        %v6582 = vpop.f32.mrb[0].mxu0
        %v6583 = vadd.f32 0.0, %v6582
        %v6584 = vpop.f32.mrb[0].mxu0
        %6585 = vmatprep.mubr.bf16.mxu0 0
        %6586 = vmatmul.mubr.bf16.gmra.mrb[0].mxu0 %v4410
        %v6587 = vpop.f32.mrb[0].mxu0
        %v6588 = vadd.f32 0.0, %v6587
        %v6589 = vpop.f32.mrb[0].mxu0
        %v6590 = vpop.f32.mrb[0].mxu0
        %v6591 = vadd.f32 0.0, %v6590
        %v6592 = vpop.f32.mrb[0].mxu0
        %6593 = vmatprep.mubr.bf16.mxu0 0
        %6594 = vmatmul.mubr.bf16.gmra.mrb[0].mxu0 %v4413
        %v6595 = vpop.f32.mrb[0].mxu0
        %v6596 = vadd.f32 0.0, %v6595
        %v6597 = vpop.f32.mrb[0].mxu0
        %v6598 = vpop.f32.mrb[0].mxu0
        %v6599 = vadd.f32 0.0, %v6598
        %v6600 = vpop.f32.mrb[0].mxu0
        %6601 = vmatprep.mubr.bf16.mxu0 0
        %6602 = vmatmul.mubr.bf16.gmra.mrb[0].mxu0 %v4416
        %v6603 = vpop.f32.mrb[0].mxu0
        %v6604 = vadd.f32 0.0, %v6603
        %v6605 = vpop.f32.mrb[0].mxu0
        %v6606 = vpop.f32.mrb[0].mxu0
        %v6607 = vadd.f32 0.0, %v6606
        %v6608 = vpop.f32.mrb[0].mxu0
        %6609 = vmatprep.mubr.bf16.mxu0 0
        %6610 = vmatmul.mubr.bf16.gmra.mrb[0].mxu0 %v4419
        %v6611 = vpop.f32.mrb[0].mxu0
        %v6612 = vadd.f32 0.0, %v6611
        %v6613 = vpop.f32.mrb[0].mxu0
        %v6614 = vpop.f32.mrb[0].mxu0
        %v6615 = vadd.f32 0.0, %v6614
        %v6616 = vpop.f32.mrb[0].mxu0
        %6617 = vmatprep.mubr.bf16.mxu0 0
        %6618 = vmatmul.mubr.bf16.gmra.mrb[0].mxu0 %v4422
        %v6619 = vpop.f32.mrb[0].mxu0
        %v6620 = vadd.f32 0.0, %v6619
        %v6621 = vpop.f32.mrb[0].mxu0
        %v6622 = vpop.f32.mrb[0].mxu0
        %v6623 = vadd.f32 0.0, %v6622
        %v6624 = vpop.f32.mrb[0].mxu0
        %6625 = vmatprep.mubr.bf16.mxu0 0
        %6626 = vmatmul.mubr.bf16.gmra.mrb[0].mxu0 %v4425
        %v6627 = vpop.f32.mrb[0].mxu0
        %v6628 = vadd.f32 0.0, %v6627
        %v6629 = vpop.f32.mrb[0].mxu0
        %v6630 = vpop.f32.mrb[0].mxu0
        %v6631 = vadd.f32 0.0, %v6630
        %v6632 = vpop.f32.mrb[0].mxu0
        %6633 = vmatprep.mubr.bf16.mxu0 0
        %6634 = vmatmul.mubr.bf16.gmra.mrb[0].mxu0 %v4428
        %v6635 = vpop.f32.mrb[0].mxu0
        %v6636 = vadd.f32 0.0, %v6635
        %v6637 = vpop.f32.mrb[0].mxu0
        %v6638 = vpop.f32.mrb[0].mxu0
        %v6639 = vadd.f32 0.0, %v6638
        %v6640 = vpop.f32.mrb[0].mxu0
        %6641 = vmatprep.mubr.bf16.mxu0 0
        %6642 = vmatmul.mubr.bf16.gmra.mrb[0].mxu0 %v4431
        %v6643 = vpop.f32.mrb[0].mxu0
        %v6644 = vadd.f32 0.0, %v6643
        %v6645 = vpop.f32.mrb[0].mxu0
        %v6646 = vpop.f32.mrb[0].mxu0
        %v6647 = vadd.f32 0.0, %v6646
        %v6648 = vpop.f32.mrb[0].mxu0
        %6649 = vmatprep.mubr.bf16.mxu0 0
        %6650 = vmatmul.mubr.bf16.gmra.mrb[0].mxu0 %v4434
        %v6651 = vpop.f32.mrb[0].mxu0
        %v6652 = vadd.f32 0.0, %v6651
        %v6653 = vpop.f32.mrb[0].mxu0
        %v6654 = vpop.f32.mrb[0].mxu0
        %v6655 = vadd.f32 0.0, %v6654
        %v6656 = vpop.f32.mrb[0].mxu0
        %6657 = vdwg.mxu0
        %v6658 = vsel %vm3818, %v6540, 0.0
        %v6659 = vsel %vm3819, %v6543, 0.0
        %v6660 = vsel %vm3820, %v6548, 0.0
        %v6661 = vsel %vm3821, %v6551, 0.0
        %v6662 = vsel %vm3822, %v6556, 0.0
        %v6663 = vsel %vm3823, %v6559, 0.0
        %v6664 = vsel %vm3824, %v6564, 0.0
        %v6665 = vsel %vm3825, %v6567, 0.0
        %v6666 = vsel %vm3826, %v6572, 0.0
        %v6667 = vsel %vm3827, %v6575, 0.0
        %v6668 = vsel %vm3828, %v6580, 0.0
        %v6669 = vsel %vm3829, %v6583, 0.0
        %v6670 = vsel %vm3830, %v6588, 0.0
        %v6671 = vsel %vm3831, %v6591, 0.0
        %v6672 = vsel %vm3832, %v6596, 0.0
        %v6673 = vsel %vm3833, %v6599, 0.0
        %v6674 = vsel %vm3834, %v6604, 0.0
        %v6675 = vsel %vm3835, %v6607, 0.0
        %v6676 = vsel %vm3836, %v6612, 0.0
        %v6677 = vsel %vm3837, %v6615, 0.0
        %v6678 = vsel %vm3838, %v6620, 0.0
        %v6679 = vsel %vm3839, %v6623, 0.0
        %v6680 = vsel %vm3840, %v6628, 0.0
        %v6681 = vsel %vm3841, %v6631, 0.0
        %v6682 = vsel %vm3842, %v6636, 0.0
        %v6683 = vsel %vm3843, %v6639, 0.0
        %v6684 = vsel %vm3844, %v6644, 0.0
        %v6685 = vsel %vm3845, %v6647, 0.0
        %v6686 = vsel %vm3846, %v6652, 0.0
        %v6687 = vsel %vm3847, %v6655, 0.0
        %v6688 = vsel %vm3848, %v6532, 0.0
        %v6689 = vsel %vm3849, %v6535, 0.0
        %v6690 = vadd.f32 %v6432, %v6658
        %v6691 = vadd.f32 %v6433, %v6659
        %v6692 = vadd.f32 %v6434, %v6660
        %v6693 = vadd.f32 %v6435, %v6661
        %v6694 = vadd.f32 %v6436, %v6662
        %v6695 = vadd.f32 %v6437, %v6663
        %v6696 = vadd.f32 %v6438, %v6664
        %v6697 = vadd.f32 %v6439, %v6665
        %v6698 = vadd.f32 %v6440, %v6666
        %v6699 = vadd.f32 %v6441, %v6667
        %v6700 = vadd.f32 %v6442, %v6668
        %v6701 = vadd.f32 %v6443, %v6669
        %v6702 = vadd.f32 %v6444, %v6670
        %v6703 = vadd.f32 %v6445, %v6671
        %v6704 = vadd.f32 %v6446, %v6672
        %v6705 = vadd.f32 %v6447, %v6673
        %v6706 = vadd.f32 %v6448, %v6674
        %v6707 = vadd.f32 %v6449, %v6675
        %v6708 = vadd.f32 %v6450, %v6676
        %v6709 = vadd.f32 %v6451, %v6677
        %v6710 = vadd.f32 %v6452, %v6678
        %v6711 = vadd.f32 %v6453, %v6679
        %v6712 = vadd.f32 %v6454, %v6680
        %v6713 = vadd.f32 %v6455, %v6681
        %v6714 = vadd.f32 %v6456, %v6682
        %v6715 = vadd.f32 %v6457, %v6683
        %v6716 = vadd.f32 %v6458, %v6684
        %v6717 = vadd.f32 %v6459, %v6685
        %v6718 = vadd.f32 %v6460, %v6686
        %v6719 = vadd.f32 %v6461, %v6687
        %v6720 = vadd.f32 %v6462, %v6688
        %v6721 = vadd.f32 %v6463, %v6689
        %s6722 = scalar_lea.vmem %s5, 256
        %v6723 = vld [vmem:[%s6722] sm:$0xf]
        %v6724 = vld [vmem:[%s6722 + $0x4] sm:$0xf]
        %v6725 = vld [vmem:[%s6722 + $0x8] sm:$0xf]
        %v6726 = vld [vmem:[%s6722 + $0xc] sm:$0xf]
        %v6727 = vld [vmem:[%s6722 + $0x10] sm:$0xf]
        %v6728 = vld [vmem:[%s6722 + $0x14] sm:$0xf]
        %v6729 = vld [vmem:[%s6722 + $0x18] sm:$0xf]
        %v6730 = vld [vmem:[%s6722 + $0x1c] sm:$0xf]
        %v6739 = vunpack.c.l.b16 %v6723
        %v6740 = vunpack.c.l.b16 %v6724
        %v6741 = vunpack.c.l.b16 %v6725
        %v6742 = vunpack.c.l.b16 %v6726
        %v6743 = vunpack.c.l.b16 %v6727
        %v6744 = vunpack.c.l.b16 %v6728
        %v6745 = vunpack.c.l.b16 %v6729
        %v6746 = vunpack.c.l.b16 %v6730
        %v6747 = vpack.c.b16 %v6740, %v6739
        %v6748 = vpack.c.b16 %v6742, %v6741
        %v6749 = vpack.c.b16 %v6744, %v6743
        %v6750 = vpack.c.b16 %v6746, %v6745
        %6755 = vmatprep.subr.bf16.mxu0 0
        %6756 = vmatpush1.bf16.msra.mxu0 %v6747
        %6757 = vmatprep.subr.bf16.mxu0 0
        %6758 = vmatpush1.bf16.msra.mxu0 %v6748
        %6759 = vmatprep.subr.bf16.mxu0 0
        %6760 = vmatpush1.bf16.msra.mxu0 %v6749
        %6761 = vmatprep.subr.bf16.mxu0 0
        %6762 = vmatpush1.bf16.msra.mxu0 %v6750
        %6763 = vmatprep.subr.bf16.mxu0 0
        %6764 = vmatpush1.bf16.msra.mxu0 0
        %6765 = vmatprep.subr.bf16.mxu0 0
        %6766 = vmatpush1.bf16.msra.mxu0 0
        %6767 = vmatprep.subr.bf16.mxu0 0
        %6768 = vmatpush1.bf16.msra.mxu0 0
        %6769 = vmatprep.subr.bf16.mxu0 0
        %6770 = vmatpush1.bf16.msra.mxu0 0
        %6771 = vmatprep.subr.bf16.mxu0 0
        %6772 = vmatpush1.bf16.msra.mxu0 0
        %6773 = vmatprep.subr.bf16.mxu0 0
        %6774 = vmatpush1.bf16.msra.mxu0 0
        %6775 = vmatprep.subr.bf16.mxu0 0
        %6776 = vmatpush1.bf16.msra.mxu0 0
        %6777 = vmatprep.subr.bf16.mxu0 0
        %6778 = vmatpush1.bf16.msra.mxu0 0
        %6779 = vmatprep.subr.bf16.mxu0 0
        %6780 = vmatpush1.bf16.msra.mxu0 0
        %6781 = vmatprep.subr.bf16.mxu0 0
        %6782 = vmatpush1.bf16.msra.mxu0 0
        %6783 = vmatprep.subr.bf16.mxu0 0
        %6784 = vmatpush1.bf16.msra.mxu0 0
        %6785 = vmatprep.subr.bf16.mxu0 0
        %6786 = vmatpush1.bf16.msra.mxu0 0
        %6787 = vmatprep.mubr.bf16.mxu0 0
        %6788 = vmatmul.mubr.bf16.gmra.mrb[0].mxu0 %v4389
        %v6789 = vpop.f32.mrb[0].mxu0
        %v6790 = vadd.f32 0.0, %v6789
        %v6791 = vpop.f32.mrb[0].mxu0
        %v6792 = vpop.f32.mrb[0].mxu0
        %v6793 = vadd.f32 0.0, %v6792
        %v6794 = vpop.f32.mrb[0].mxu0
        %6795 = vmatprep.mubr.bf16.mxu0 0
        %6796 = vmatmul.mubr.bf16.gmra.mrb[0].mxu0 %v4392
        %v6797 = vpop.f32.mrb[0].mxu0
        %v6798 = vadd.f32 0.0, %v6797
        %v6799 = vpop.f32.mrb[0].mxu0
        %v6800 = vpop.f32.mrb[0].mxu0
        %v6801 = vadd.f32 0.0, %v6800
        %v6802 = vpop.f32.mrb[0].mxu0
        %6803 = vmatprep.mubr.bf16.mxu0 0
        %6804 = vmatmul.mubr.bf16.gmra.mrb[0].mxu0 %v4395
        %v6805 = vpop.f32.mrb[0].mxu0
        %v6806 = vadd.f32 0.0, %v6805
        %v6807 = vpop.f32.mrb[0].mxu0
        %v6808 = vpop.f32.mrb[0].mxu0
        %v6809 = vadd.f32 0.0, %v6808
        %v6810 = vpop.f32.mrb[0].mxu0
        %6811 = vmatprep.mubr.bf16.mxu0 0
        %6812 = vmatmul.mubr.bf16.gmra.mrb[0].mxu0 %v4398
        %v6813 = vpop.f32.mrb[0].mxu0
        %v6814 = vadd.f32 0.0, %v6813
        %v6815 = vpop.f32.mrb[0].mxu0
        %v6816 = vpop.f32.mrb[0].mxu0
        %v6817 = vadd.f32 0.0, %v6816
        %v6818 = vpop.f32.mrb[0].mxu0
        %6819 = vmatprep.mubr.bf16.mxu0 0
        %6820 = vmatmul.mubr.bf16.gmra.mrb[0].mxu0 %v4401
        %v6821 = vpop.f32.mrb[0].mxu0
        %v6822 = vadd.f32 0.0, %v6821
        %v6823 = vpop.f32.mrb[0].mxu0
        %v6824 = vpop.f32.mrb[0].mxu0
        %v6825 = vadd.f32 0.0, %v6824
        %v6826 = vpop.f32.mrb[0].mxu0
        %6827 = vmatprep.mubr.bf16.mxu0 0
        %6828 = vmatmul.mubr.bf16.gmra.mrb[0].mxu0 %v4404
        %v6829 = vpop.f32.mrb[0].mxu0
        %v6830 = vadd.f32 0.0, %v6829
        %v6831 = vpop.f32.mrb[0].mxu0
        %v6832 = vpop.f32.mrb[0].mxu0
        %v6833 = vadd.f32 0.0, %v6832
        %v6834 = vpop.f32.mrb[0].mxu0
        %6835 = vmatprep.mubr.bf16.mxu0 0
        %6836 = vmatmul.mubr.bf16.gmra.mrb[0].mxu0 %v4407
        %v6837 = vpop.f32.mrb[0].mxu0
        %v6838 = vadd.f32 0.0, %v6837
        %v6839 = vpop.f32.mrb[0].mxu0
        %v6840 = vpop.f32.mrb[0].mxu0
        %v6841 = vadd.f32 0.0, %v6840
        %v6842 = vpop.f32.mrb[0].mxu0
        %6843 = vmatprep.mubr.bf16.mxu0 0
        %6844 = vmatmul.mubr.bf16.gmra.mrb[0].mxu0 %v4410
        %v6845 = vpop.f32.mrb[0].mxu0
        %v6846 = vadd.f32 0.0, %v6845
        %v6847 = vpop.f32.mrb[0].mxu0
        %v6848 = vpop.f32.mrb[0].mxu0
        %v6849 = vadd.f32 0.0, %v6848
        %v6850 = vpop.f32.mrb[0].mxu0
        %6851 = vmatprep.mubr.bf16.mxu0 0
        %6852 = vmatmul.mubr.bf16.gmra.mrb[0].mxu0 %v4413
        %v6853 = vpop.f32.mrb[0].mxu0
        %v6854 = vadd.f32 0.0, %v6853
        %v6855 = vpop.f32.mrb[0].mxu0
        %v6856 = vpop.f32.mrb[0].mxu0
        %v6857 = vadd.f32 0.0, %v6856
        %v6858 = vpop.f32.mrb[0].mxu0
        %6859 = vmatprep.mubr.bf16.mxu0 0
        %6860 = vmatmul.mubr.bf16.gmra.mrb[0].mxu0 %v4416
        %v6861 = vpop.f32.mrb[0].mxu0
        %v6862 = vadd.f32 0.0, %v6861
        %v6863 = vpop.f32.mrb[0].mxu0
        %v6864 = vpop.f32.mrb[0].mxu0
        %v6865 = vadd.f32 0.0, %v6864
        %v6866 = vpop.f32.mrb[0].mxu0
        %6867 = vmatprep.mubr.bf16.mxu0 0
        %6868 = vmatmul.mubr.bf16.gmra.mrb[0].mxu0 %v4419
        %v6869 = vpop.f32.mrb[0].mxu0
        %v6870 = vadd.f32 0.0, %v6869
        %v6871 = vpop.f32.mrb[0].mxu0
        %v6872 = vpop.f32.mrb[0].mxu0
        %v6873 = vadd.f32 0.0, %v6872
        %v6874 = vpop.f32.mrb[0].mxu0
        %6875 = vmatprep.mubr.bf16.mxu0 0
        %6876 = vmatmul.mubr.bf16.gmra.mrb[0].mxu0 %v4422
        %v6877 = vpop.f32.mrb[0].mxu0
        %v6878 = vadd.f32 0.0, %v6877
        %v6879 = vpop.f32.mrb[0].mxu0
        %v6880 = vpop.f32.mrb[0].mxu0
        %v6881 = vadd.f32 0.0, %v6880
        %v6882 = vpop.f32.mrb[0].mxu0
        %6883 = vmatprep.mubr.bf16.mxu0 0
        %6884 = vmatmul.mubr.bf16.gmra.mrb[0].mxu0 %v4425
        %v6885 = vpop.f32.mrb[0].mxu0
        %v6886 = vadd.f32 0.0, %v6885
        %v6887 = vpop.f32.mrb[0].mxu0
        %v6888 = vpop.f32.mrb[0].mxu0
        %v6889 = vadd.f32 0.0, %v6888
        %v6890 = vpop.f32.mrb[0].mxu0
        %6891 = vmatprep.mubr.bf16.mxu0 0
        %6892 = vmatmul.mubr.bf16.gmra.mrb[0].mxu0 %v4428
        %v6893 = vpop.f32.mrb[0].mxu0
        %v6894 = vadd.f32 0.0, %v6893
        %v6895 = vpop.f32.mrb[0].mxu0
        %v6896 = vpop.f32.mrb[0].mxu0
        %v6897 = vadd.f32 0.0, %v6896
        %v6898 = vpop.f32.mrb[0].mxu0
        %6899 = vmatprep.mubr.bf16.mxu0 0
        %6900 = vmatmul.mubr.bf16.gmra.mrb[0].mxu0 %v4431
        %v6901 = vpop.f32.mrb[0].mxu0
        %v6902 = vadd.f32 0.0, %v6901
        %v6903 = vpop.f32.mrb[0].mxu0
        %v6904 = vpop.f32.mrb[0].mxu0
        %v6905 = vadd.f32 0.0, %v6904
        %v6906 = vpop.f32.mrb[0].mxu0
        %6907 = vmatprep.mubr.bf16.mxu0 0
        %6908 = vmatmul.mubr.bf16.gmra.mrb[0].mxu0 %v4434
        %v6909 = vpop.f32.mrb[0].mxu0
        %v6910 = vadd.f32 0.0, %v6909
        %v6911 = vpop.f32.mrb[0].mxu0
        %v6912 = vpop.f32.mrb[0].mxu0
        %v6913 = vadd.f32 0.0, %v6912
        %v6914 = vpop.f32.mrb[0].mxu0
        %6915 = vdwg.mxu0
        %v6916 = vrot.slane %v6790, 1
        %v6917 = vrot.slane %v6793, 1
        %v6918 = vrot.slane %v6798, 1
        %v6919 = vrot.slane %v6801, 1
        %v6920 = vrot.slane %v6806, 1
        %v6921 = vrot.slane %v6809, 1
        %v6922 = vrot.slane %v6814, 1
        %v6923 = vrot.slane %v6817, 1
        %v6924 = vrot.slane %v6822, 1
        %v6925 = vrot.slane %v6825, 1
        %v6926 = vrot.slane %v6830, 1
        %v6927 = vrot.slane %v6833, 1
        %v6928 = vrot.slane %v6838, 1
        %v6929 = vrot.slane %v6841, 1
        %v6930 = vrot.slane %v6846, 1
        %v6931 = vrot.slane %v6849, 1
        %v6932 = vrot.slane %v6854, 1
        %v6933 = vrot.slane %v6857, 1
        %v6934 = vrot.slane %v6862, 1
        %v6935 = vrot.slane %v6865, 1
        %v6936 = vrot.slane %v6870, 1
        %v6937 = vrot.slane %v6873, 1
        %v6938 = vrot.slane %v6878, 1
        %v6939 = vrot.slane %v6881, 1
        %v6940 = vrot.slane %v6886, 1
        %v6941 = vrot.slane %v6889, 1
        %v6942 = vrot.slane %v6894, 1
        %v6943 = vrot.slane %v6897, 1
        %v6944 = vrot.slane %v6902, 1
        %v6945 = vrot.slane %v6905, 1
        %v6946 = vrot.slane %v6910, 1
        %v6947 = vrot.slane %v6913, 1
        %v6948 = vsel %vm2273, %v6946, %v6947
        %v6949 = vsel %vm2273, %v6945, %v6946
        %v6950 = vsel %vm2273, %v6944, %v6945
        %v6951 = vsel %vm2273, %v6943, %v6944
        %v6952 = vsel %vm2273, %v6942, %v6943
        %v6953 = vsel %vm2273, %v6941, %v6942
        %v6954 = vsel %vm2273, %v6940, %v6941
        %v6955 = vsel %vm2273, %v6939, %v6940
        %v6956 = vsel %vm2273, %v6938, %v6939
        %v6957 = vsel %vm2273, %v6937, %v6938
        %v6958 = vsel %vm2273, %v6936, %v6937
        %v6959 = vsel %vm2273, %v6935, %v6936
        %v6960 = vsel %vm2273, %v6934, %v6935
        %v6961 = vsel %vm2273, %v6933, %v6934
        %v6962 = vsel %vm2273, %v6932, %v6933
        %v6963 = vsel %vm2273, %v6931, %v6932
        %v6964 = vsel %vm2273, %v6930, %v6931
        %v6965 = vsel %vm2273, %v6929, %v6930
        %v6966 = vsel %vm2273, %v6928, %v6929
        %v6967 = vsel %vm2273, %v6927, %v6928
        %v6968 = vsel %vm2273, %v6926, %v6927
        %v6969 = vsel %vm2273, %v6925, %v6926
        %v6970 = vsel %vm2273, %v6924, %v6925
        %v6971 = vsel %vm2273, %v6923, %v6924
        %v6972 = vsel %vm2273, %v6922, %v6923
        %v6973 = vsel %vm2273, %v6921, %v6922
        %v6974 = vsel %vm2273, %v6920, %v6921
        %v6975 = vsel %vm2273, %v6919, %v6920
        %v6976 = vsel %vm2273, %v6918, %v6919
        %v6977 = vsel %vm2273, %v6917, %v6918
        %v6978 = vsel %vm2273, %v6916, %v6917
        %v6979 = vsel %vm2273, %v6947, %v6916
        %v6980 = vsel %vm4204, %v6976, 0.0
        %v6981 = vsel %vm4205, %v6975, 0.0
        %v6982 = vsel %vm4206, %v6974, 0.0
        %v6983 = vsel %vm4207, %v6973, 0.0
        %v6984 = vsel %vm4208, %v6972, 0.0
        %v6985 = vsel %vm4209, %v6971, 0.0
        %v6986 = vsel %vm4210, %v6970, 0.0
        %v6987 = vsel %vm4211, %v6969, 0.0
        %v6988 = vsel %vm4212, %v6968, 0.0
        %v6989 = vsel %vm4213, %v6967, 0.0
        %v6990 = vsel %vm4214, %v6966, 0.0
        %v6991 = vsel %vm4215, %v6965, 0.0
        %v6992 = vsel %vm4216, %v6964, 0.0
        %v6993 = vsel %vm4217, %v6963, 0.0
        %v6994 = vsel %vm4218, %v6962, 0.0
        %v6995 = vsel %vm4219, %v6961, 0.0
        %v6996 = vsel %vm4220, %v6960, 0.0
        %v6997 = vsel %vm4221, %v6959, 0.0
        %v6998 = vsel %vm4222, %v6958, 0.0
        %v6999 = vsel %vm4223, %v6957, 0.0
        %v7000 = vsel %vm4224, %v6956, 0.0
        %v7001 = vsel %vm4225, %v6955, 0.0
        %v7002 = vsel %vm4226, %v6954, 0.0
        %v7003 = vsel %vm4227, %v6953, 0.0
        %v7004 = vsel %vm4228, %v6952, 0.0
        %v7005 = vsel %vm4229, %v6951, 0.0
        %v7006 = vsel %vm4230, %v6950, 0.0
        %v7007 = vsel %vm4231, %v6949, 0.0
        %v7008 = vsel %vm4232, %v6948, 0.0
        %v7009 = vsel %vm4233, %v6979, 0.0
        %v7010 = vsel %vm4234, %v6978, 0.0
        %v7011 = vsel %vm4235, %v6977, 0.0
        %v7012 = vadd.f32 %v6690, %v6980
        %v7013 = vadd.f32 %v6691, %v6981
        %v7014 = vadd.f32 %v6692, %v6982
        %v7015 = vadd.f32 %v6693, %v6983
        %v7016 = vadd.f32 %v6694, %v6984
        %v7017 = vadd.f32 %v6695, %v6985
        %v7018 = vadd.f32 %v6696, %v6986
        %v7019 = vadd.f32 %v6697, %v6987
        %v7020 = vadd.f32 %v6698, %v6988
        %v7021 = vadd.f32 %v6699, %v6989
        %v7022 = vadd.f32 %v6700, %v6990
        %v7023 = vadd.f32 %v6701, %v6991
        %v7024 = vadd.f32 %v6702, %v6992
        %v7025 = vadd.f32 %v6703, %v6993
        %v7026 = vadd.f32 %v6704, %v6994
        %v7027 = vadd.f32 %v6705, %v6995
        %v7028 = vadd.f32 %v6706, %v6996
        %v7029 = vadd.f32 %v6707, %v6997
        %v7030 = vadd.f32 %v6708, %v6998
        %v7031 = vadd.f32 %v6709, %v6999
        %v7032 = vadd.f32 %v6710, %v7000
        %v7033 = vadd.f32 %v6711, %v7001
        %v7034 = vadd.f32 %v6712, %v7002
        %v7035 = vadd.f32 %v6713, %v7003
        %v7036 = vadd.f32 %v6714, %v7004
        %v7037 = vadd.f32 %v6715, %v7005
        %v7038 = vadd.f32 %v6716, %v7006
        %v7039 = vadd.f32 %v6717, %v7007
        %v7040 = vadd.f32 %v6718, %v7008
        %v7041 = vadd.f32 %v6719, %v7009
        %v7042 = vadd.f32 %v6720, %v7010
        %v7043 = vadd.f32 %v6721, %v7011
        %s7044 = scalar_lea.vmem [#allocation2], 128
        %v7045 = vld [vmem:[%s7044] sm:$0xf]
        %v7046 = vld [vmem:[%s7044 + $0x4] sm:$0xf]
        %v7047 = vld [vmem:[%s7044 + $0x8] sm:$0xf]
        %v7048 = vld [vmem:[%s7044 + $0xc] sm:$0xf]
        %v7049 = vld [vmem:[%s7044 + $0x10] sm:$0xf]
        %v7050 = vld [vmem:[%s7044 + $0x14] sm:$0xf]
        %v7051 = vld [vmem:[%s7044 + $0x18] sm:$0xf]
        %v7052 = vld [vmem:[%s7044 + $0x1c] sm:$0xf]
        %v7053 = vld [vmem:[%s8] sm:$0x1]
        %v7055 = vlaneseq
        %v7056 = vshrl.u32 %v7055, 7
        %v7057 = vsub.s32 0, %v7056
        %v7058 = vrot.slane %v7053, %v7057
        %7076 = vrot.lane.b32.xlu0 %v1073, 64
        %v7077 = vpop.permute.xlu0 %7076
        %7078 = vrot.lane.b32.xlu0 %v1074, 64
        %v7079 = vpop.permute.xlu0 %7078
        %7080 = vrot.lane.b32.xlu0 %v1075, 64
        %v7081 = vpop.permute.xlu0 %7080
        %7082 = vrot.lane.b32.xlu0 %v1076, 64
        %v7083 = vpop.permute.xlu0 %7082
        %7084 = vrot.lane.b32.xlu0 %v1077, 64
        %v7085 = vpop.permute.xlu0 %7084
        %7086 = vrot.lane.b32.xlu0 %v1078, 64
        %v7087 = vpop.permute.xlu0 %7086
        %7088 = vrot.lane.b32.xlu0 %v1079, 64
        %v7089 = vpop.permute.xlu0 %7088
        %7090 = vrot.lane.b32.xlu0 %v1080, 64
        %v7091 = vpop.permute.xlu0 %7090
        %7092 = vrot.lane.b32.xlu0 %v1081, 64
        %v7093 = vpop.permute.xlu0 %7092
        %7094 = vrot.lane.b32.xlu0 %v1082, 64
        %v7095 = vpop.permute.xlu0 %7094
        %7096 = vrot.lane.b32.xlu0 %v1083, 64
        %v7097 = vpop.permute.xlu0 %7096
        %7098 = vrot.lane.b32.xlu0 %v1084, 64
        %v7099 = vpop.permute.xlu0 %7098
        %7100 = vrot.lane.b32.xlu0 %v1085, 64
        %v7101 = vpop.permute.xlu0 %7100
        %7102 = vrot.lane.b32.xlu0 %v1086, 64
        %v7103 = vpop.permute.xlu0 %7102
        %7104 = vrot.lane.b32.xlu0 %v1087, 64
        %v7105 = vpop.permute.xlu0 %7104
        %7106 = vrot.lane.b32.xlu0 %v1088, 64
        %v7107 = vpop.permute.xlu0 %7106
        %v7116 = vunpack.c.l.b16 %v7045
        %v7117 = vunpack.c.l.b16 %v7046
        %v7118 = vunpack.c.l.b16 %v7047
        %v7119 = vunpack.c.l.b16 %v7048
        %v7120 = vunpack.c.l.b16 %v7049
        %v7121 = vunpack.c.l.b16 %v7050
        %v7122 = vunpack.c.l.b16 %v7051
        %v7123 = vunpack.c.l.b16 %v7052
        %v7124 = vpack.c.b16 %v7117, %v7116
        %v7125 = vpack.c.b16 %v7119, %v7118
        %v7126 = vpack.c.b16 %v7121, %v7120
        %v7127 = vpack.c.b16 %v7123, %v7122
        %v7133 = vsel %vm1129, %v7077, 0
        %v7136 = vsel %vm1129, %v7079, 0
        %v7139 = vsel %vm1129, %v7081, 0
        %v7142 = vsel %vm1129, %v7083, 0
        %v7145 = vsel %vm1129, %v7085, 0
        %v7148 = vsel %vm1129, %v7087, 0
        %v7151 = vsel %vm1129, %v7089, 0
        %v7154 = vsel %vm1129, %v7091, 0
        %v7157 = vsel %vm1129, %v7093, 0
        %v7160 = vsel %vm1129, %v7095, 0
        %v7163 = vsel %vm1129, %v7097, 0
        %v7166 = vsel %vm1129, %v7099, 0
        %v7169 = vsel %vm1129, %v7101, 0
        %v7172 = vsel %vm1129, %v7103, 0
        %v7175 = vsel %vm1129, %v7105, 0
        %v7178 = vsel %vm1129, %v7107, 0
        %7180 = vmatprep.subr.bf16.mxu0 0
        %7181 = vmatpush1.bf16.msra.mxu0 %v7124
        %7182 = vmatprep.subr.bf16.mxu0 0
        %7183 = vmatpush1.bf16.msra.mxu0 %v7125
        %7184 = vmatprep.subr.bf16.mxu0 0
        %7185 = vmatpush1.bf16.msra.mxu0 %v7126
        %7186 = vmatprep.subr.bf16.mxu0 0
        %7187 = vmatpush1.bf16.msra.mxu0 %v7127
        %7188 = vmatprep.subr.bf16.mxu0 0
        %7189 = vmatpush1.bf16.msra.mxu0 0
        %7190 = vmatprep.subr.bf16.mxu0 0
        %7191 = vmatpush1.bf16.msra.mxu0 0
        %7192 = vmatprep.subr.bf16.mxu0 0
        %7193 = vmatpush1.bf16.msra.mxu0 0
        %7194 = vmatprep.subr.bf16.mxu0 0
        %7195 = vmatpush1.bf16.msra.mxu0 0
        %7196 = vmatprep.subr.bf16.mxu0 0
        %7197 = vmatpush1.bf16.msra.mxu0 0
        %7198 = vmatprep.subr.bf16.mxu0 0
        %7199 = vmatpush1.bf16.msra.mxu0 0
        %7200 = vmatprep.subr.bf16.mxu0 0
        %7201 = vmatpush1.bf16.msra.mxu0 0
        %7202 = vmatprep.subr.bf16.mxu0 0
        %7203 = vmatpush1.bf16.msra.mxu0 0
        %7204 = vmatprep.subr.bf16.mxu0 0
        %7205 = vmatpush1.bf16.msra.mxu0 0
        %7206 = vmatprep.subr.bf16.mxu0 0
        %7207 = vmatpush1.bf16.msra.mxu0 0
        %7208 = vmatprep.subr.bf16.mxu0 0
        %7209 = vmatpush1.bf16.msra.mxu0 0
        %7210 = vmatprep.subr.bf16.mxu0 0
        %7211 = vmatpush1.bf16.msra.mxu0 0
        %7212 = vmatprep.mubr.bf16.mxu0 0
        %7213 = vmatmul.mubr.bf16.gmra.mrb[0].mxu0 %v7133
        %v7214 = vpop.f32.mrb[0].mxu0
        %v7215 = vadd.f32 %v7058, %v7214
        %v7216 = vpop.f32.mrb[0].mxu0
        %v7217 = vpop.f32.mrb[0].mxu0
        %v7218 = vadd.f32 %v7058, %v7217
        %v7219 = vpop.f32.mrb[0].mxu0
        %7220 = vmatprep.mubr.bf16.mxu0 0
        %7221 = vmatmul.mubr.bf16.gmra.mrb[0].mxu0 %v7136
        %v7222 = vpop.f32.mrb[0].mxu0
        %v7223 = vadd.f32 %v7058, %v7222
        %v7224 = vpop.f32.mrb[0].mxu0
        %v7225 = vpop.f32.mrb[0].mxu0
        %v7226 = vadd.f32 %v7058, %v7225
        %v7227 = vpop.f32.mrb[0].mxu0
        %7228 = vmatprep.mubr.bf16.mxu0 0
        %7229 = vmatmul.mubr.bf16.gmra.mrb[0].mxu0 %v7139
        %v7230 = vpop.f32.mrb[0].mxu0
        %v7231 = vadd.f32 %v7058, %v7230
        %v7232 = vpop.f32.mrb[0].mxu0
        %v7233 = vpop.f32.mrb[0].mxu0
        %v7234 = vadd.f32 %v7058, %v7233
        %v7235 = vpop.f32.mrb[0].mxu0
        %7236 = vmatprep.mubr.bf16.mxu0 0
        %7237 = vmatmul.mubr.bf16.gmra.mrb[0].mxu0 %v7142
        %v7238 = vpop.f32.mrb[0].mxu0
        %v7239 = vadd.f32 %v7058, %v7238
        %v7240 = vpop.f32.mrb[0].mxu0
        %v7241 = vpop.f32.mrb[0].mxu0
        %v7242 = vadd.f32 %v7058, %v7241
        %v7243 = vpop.f32.mrb[0].mxu0
        %7244 = vmatprep.mubr.bf16.mxu0 0
        %7245 = vmatmul.mubr.bf16.gmra.mrb[0].mxu0 %v7145
        %v7246 = vpop.f32.mrb[0].mxu0
        %v7247 = vadd.f32 %v7058, %v7246
        %v7248 = vpop.f32.mrb[0].mxu0
        %v7249 = vpop.f32.mrb[0].mxu0
        %v7250 = vadd.f32 %v7058, %v7249
        %v7251 = vpop.f32.mrb[0].mxu0
        %7252 = vmatprep.mubr.bf16.mxu0 0
        %7253 = vmatmul.mubr.bf16.gmra.mrb[0].mxu0 %v7148
        %v7254 = vpop.f32.mrb[0].mxu0
        %v7255 = vadd.f32 %v7058, %v7254
        %v7256 = vpop.f32.mrb[0].mxu0
        %v7257 = vpop.f32.mrb[0].mxu0
        %v7258 = vadd.f32 %v7058, %v7257
        %v7259 = vpop.f32.mrb[0].mxu0
        %7260 = vmatprep.mubr.bf16.mxu0 0
        %7261 = vmatmul.mubr.bf16.gmra.mrb[0].mxu0 %v7151
        %v7262 = vpop.f32.mrb[0].mxu0
        %v7263 = vadd.f32 %v7058, %v7262
        %v7264 = vpop.f32.mrb[0].mxu0
        %v7265 = vpop.f32.mrb[0].mxu0
        %v7266 = vadd.f32 %v7058, %v7265
        %v7267 = vpop.f32.mrb[0].mxu0
        %7268 = vmatprep.mubr.bf16.mxu0 0
        %7269 = vmatmul.mubr.bf16.gmra.mrb[0].mxu0 %v7154
        %v7270 = vpop.f32.mrb[0].mxu0
        %v7271 = vadd.f32 %v7058, %v7270
        %v7272 = vpop.f32.mrb[0].mxu0
        %v7273 = vpop.f32.mrb[0].mxu0
        %v7274 = vadd.f32 %v7058, %v7273
        %v7275 = vpop.f32.mrb[0].mxu0
        %7276 = vmatprep.mubr.bf16.mxu0 0
        %7277 = vmatmul.mubr.bf16.gmra.mrb[0].mxu0 %v7157
        %v7278 = vpop.f32.mrb[0].mxu0
        %v7279 = vadd.f32 %v7058, %v7278
        %v7280 = vpop.f32.mrb[0].mxu0
        %v7281 = vpop.f32.mrb[0].mxu0
        %v7282 = vadd.f32 %v7058, %v7281
        %v7283 = vpop.f32.mrb[0].mxu0
        %7284 = vmatprep.mubr.bf16.mxu0 0
        %7285 = vmatmul.mubr.bf16.gmra.mrb[0].mxu0 %v7160
        %v7286 = vpop.f32.mrb[0].mxu0
        %v7287 = vadd.f32 %v7058, %v7286
        %v7288 = vpop.f32.mrb[0].mxu0
        %v7289 = vpop.f32.mrb[0].mxu0
        %v7290 = vadd.f32 %v7058, %v7289
        %v7291 = vpop.f32.mrb[0].mxu0
        %7292 = vmatprep.mubr.bf16.mxu0 0
        %7293 = vmatmul.mubr.bf16.gmra.mrb[0].mxu0 %v7163
        %v7294 = vpop.f32.mrb[0].mxu0
        %v7295 = vadd.f32 %v7058, %v7294
        %v7296 = vpop.f32.mrb[0].mxu0
        %v7297 = vpop.f32.mrb[0].mxu0
        %v7298 = vadd.f32 %v7058, %v7297
        %v7299 = vpop.f32.mrb[0].mxu0
        %7300 = vmatprep.mubr.bf16.mxu0 0
        %7301 = vmatmul.mubr.bf16.gmra.mrb[0].mxu0 %v7166
        %v7302 = vpop.f32.mrb[0].mxu0
        %v7303 = vadd.f32 %v7058, %v7302
        %v7304 = vpop.f32.mrb[0].mxu0
        %v7305 = vpop.f32.mrb[0].mxu0
        %v7306 = vadd.f32 %v7058, %v7305
        %v7307 = vpop.f32.mrb[0].mxu0
        %7308 = vmatprep.mubr.bf16.mxu0 0
        %7309 = vmatmul.mubr.bf16.gmra.mrb[0].mxu0 %v7169
        %v7310 = vpop.f32.mrb[0].mxu0
        %v7311 = vadd.f32 %v7058, %v7310
        %v7312 = vpop.f32.mrb[0].mxu0
        %v7313 = vpop.f32.mrb[0].mxu0
        %v7314 = vadd.f32 %v7058, %v7313
        %v7315 = vpop.f32.mrb[0].mxu0
        %7316 = vmatprep.mubr.bf16.mxu0 0
        %7317 = vmatmul.mubr.bf16.gmra.mrb[0].mxu0 %v7172
        %v7318 = vpop.f32.mrb[0].mxu0
        %v7319 = vadd.f32 %v7058, %v7318
        %v7320 = vpop.f32.mrb[0].mxu0
        %v7321 = vpop.f32.mrb[0].mxu0
        %v7322 = vadd.f32 %v7058, %v7321
        %v7323 = vpop.f32.mrb[0].mxu0
        %7324 = vmatprep.mubr.bf16.mxu0 0
        %7325 = vmatmul.mubr.bf16.gmra.mrb[0].mxu0 %v7175
        %v7326 = vpop.f32.mrb[0].mxu0
        %v7327 = vadd.f32 %v7058, %v7326
        %v7328 = vpop.f32.mrb[0].mxu0
        %v7329 = vpop.f32.mrb[0].mxu0
        %v7330 = vadd.f32 %v7058, %v7329
        %v7331 = vpop.f32.mrb[0].mxu0
        %7332 = vmatprep.mubr.bf16.mxu0 0
        %7333 = vmatmul.mubr.bf16.gmra.mrb[0].mxu0 %v7178
        %v7334 = vpop.f32.mrb[0].mxu0
        %v7335 = vadd.f32 %v7058, %v7334
        %v7336 = vpop.f32.mrb[0].mxu0
        %v7337 = vpop.f32.mrb[0].mxu0
        %v7338 = vadd.f32 %v7058, %v7337
        %v7339 = vpop.f32.mrb[0].mxu0
        %7340 = vdwg.mxu0
        %v7341 = vld [vmem:[#allocation2] sm:$0xf]
        %v7342 = vld [vmem:[#allocation2 + $0x4] sm:$0xf]
        %v7343 = vld [vmem:[#allocation2 + $0x8] sm:$0xf]
        %v7344 = vld [vmem:[#allocation2 + $0xc] sm:$0xf]
        %v7345 = vld [vmem:[#allocation2 + $0x10] sm:$0xf]
        %v7346 = vld [vmem:[#allocation2 + $0x14] sm:$0xf]
        %v7347 = vld [vmem:[#allocation2 + $0x18] sm:$0xf]
        %v7348 = vld [vmem:[#allocation2 + $0x1c] sm:$0xf]
        %v7357 = vunpack.c.l.b16 %v7341
        %v7358 = vunpack.c.l.b16 %v7342
        %v7359 = vunpack.c.l.b16 %v7343
        %v7360 = vunpack.c.l.b16 %v7344
        %v7361 = vunpack.c.l.b16 %v7345
        %v7362 = vunpack.c.l.b16 %v7346
        %v7363 = vunpack.c.l.b16 %v7347
        %v7364 = vunpack.c.l.b16 %v7348
        %v7365 = vpack.c.b16 %v7358, %v7357
        %v7366 = vpack.c.b16 %v7360, %v7359
        %v7367 = vpack.c.b16 %v7362, %v7361
        %v7368 = vpack.c.b16 %v7364, %v7363
        %7373 = vmatprep.subr.bf16.mxu0 0
        %7374 = vmatpush1.bf16.msra.mxu0 %v7365
        %7375 = vmatprep.subr.bf16.mxu0 0
        %7376 = vmatpush1.bf16.msra.mxu0 %v7366
        %7377 = vmatprep.subr.bf16.mxu0 0
        %7378 = vmatpush1.bf16.msra.mxu0 %v7367
        %7379 = vmatprep.subr.bf16.mxu0 0
        %7380 = vmatpush1.bf16.msra.mxu0 %v7368
        %7381 = vmatprep.subr.bf16.mxu0 0
        %7382 = vmatpush1.bf16.msra.mxu0 0
        %7383 = vmatprep.subr.bf16.mxu0 0
        %7384 = vmatpush1.bf16.msra.mxu0 0
        %7385 = vmatprep.subr.bf16.mxu0 0
        %7386 = vmatpush1.bf16.msra.mxu0 0
        %7387 = vmatprep.subr.bf16.mxu0 0
        %7388 = vmatpush1.bf16.msra.mxu0 0
        %7389 = vmatprep.subr.bf16.mxu0 0
        %7390 = vmatpush1.bf16.msra.mxu0 0
        %7391 = vmatprep.subr.bf16.mxu0 0
        %7392 = vmatpush1.bf16.msra.mxu0 0
        %7393 = vmatprep.subr.bf16.mxu0 0
        %7394 = vmatpush1.bf16.msra.mxu0 0
        %7395 = vmatprep.subr.bf16.mxu0 0
        %7396 = vmatpush1.bf16.msra.mxu0 0
        %7397 = vmatprep.subr.bf16.mxu0 0
        %7398 = vmatpush1.bf16.msra.mxu0 0
        %7399 = vmatprep.subr.bf16.mxu0 0
        %7400 = vmatpush1.bf16.msra.mxu0 0
        %7401 = vmatprep.subr.bf16.mxu0 0
        %7402 = vmatpush1.bf16.msra.mxu0 0
        %7403 = vmatprep.subr.bf16.mxu0 0
        %7404 = vmatpush1.bf16.msra.mxu0 0
        %7405 = vmatprep.mubr.bf16.mxu0 0
        %7406 = vmatmul.mubr.bf16.gmra.mrb[0].mxu0 %v7133
        %v7407 = vpop.f32.mrb[0].mxu0
        %v7408 = vadd.f32 0.0, %v7407
        %v7409 = vpop.f32.mrb[0].mxu0
        %v7410 = vpop.f32.mrb[0].mxu0
        %v7411 = vadd.f32 0.0, %v7410
        %v7412 = vpop.f32.mrb[0].mxu0
        %7413 = vmatprep.mubr.bf16.mxu0 0
        %7414 = vmatmul.mubr.bf16.gmra.mrb[0].mxu0 %v7136
        %v7415 = vpop.f32.mrb[0].mxu0
        %v7416 = vadd.f32 0.0, %v7415
        %v7417 = vpop.f32.mrb[0].mxu0
        %v7418 = vpop.f32.mrb[0].mxu0
        %v7419 = vadd.f32 0.0, %v7418
        %v7420 = vpop.f32.mrb[0].mxu0
        %7421 = vmatprep.mubr.bf16.mxu0 0
        %7422 = vmatmul.mubr.bf16.gmra.mrb[0].mxu0 %v7139
        %v7423 = vpop.f32.mrb[0].mxu0
        %v7424 = vadd.f32 0.0, %v7423
        %v7425 = vpop.f32.mrb[0].mxu0
        %v7426 = vpop.f32.mrb[0].mxu0
        %v7427 = vadd.f32 0.0, %v7426
        %v7428 = vpop.f32.mrb[0].mxu0
        %7429 = vmatprep.mubr.bf16.mxu0 0
        %7430 = vmatmul.mubr.bf16.gmra.mrb[0].mxu0 %v7142
        %v7431 = vpop.f32.mrb[0].mxu0
        %v7432 = vadd.f32 0.0, %v7431
        %v7433 = vpop.f32.mrb[0].mxu0
        %v7434 = vpop.f32.mrb[0].mxu0
        %v7435 = vadd.f32 0.0, %v7434
        %v7436 = vpop.f32.mrb[0].mxu0
        %7437 = vmatprep.mubr.bf16.mxu0 0
        %7438 = vmatmul.mubr.bf16.gmra.mrb[0].mxu0 %v7145
        %v7439 = vpop.f32.mrb[0].mxu0
        %v7440 = vadd.f32 0.0, %v7439
        %v7441 = vpop.f32.mrb[0].mxu0
        %v7442 = vpop.f32.mrb[0].mxu0
        %v7443 = vadd.f32 0.0, %v7442
        %v7444 = vpop.f32.mrb[0].mxu0
        %7445 = vmatprep.mubr.bf16.mxu0 0
        %7446 = vmatmul.mubr.bf16.gmra.mrb[0].mxu0 %v7148
        %v7447 = vpop.f32.mrb[0].mxu0
        %v7448 = vadd.f32 0.0, %v7447
        %v7449 = vpop.f32.mrb[0].mxu0
        %v7450 = vpop.f32.mrb[0].mxu0
        %v7451 = vadd.f32 0.0, %v7450
        %v7452 = vpop.f32.mrb[0].mxu0
        %7453 = vmatprep.mubr.bf16.mxu0 0
        %7454 = vmatmul.mubr.bf16.gmra.mrb[0].mxu0 %v7151
        %v7455 = vpop.f32.mrb[0].mxu0
        %v7456 = vadd.f32 0.0, %v7455
        %v7457 = vpop.f32.mrb[0].mxu0
        %v7458 = vpop.f32.mrb[0].mxu0
        %v7459 = vadd.f32 0.0, %v7458
        %v7460 = vpop.f32.mrb[0].mxu0
        %7461 = vmatprep.mubr.bf16.mxu0 0
        %7462 = vmatmul.mubr.bf16.gmra.mrb[0].mxu0 %v7154
        %v7463 = vpop.f32.mrb[0].mxu0
        %v7464 = vadd.f32 0.0, %v7463
        %v7465 = vpop.f32.mrb[0].mxu0
        %v7466 = vpop.f32.mrb[0].mxu0
        %v7467 = vadd.f32 0.0, %v7466
        %v7468 = vpop.f32.mrb[0].mxu0
        %7469 = vmatprep.mubr.bf16.mxu0 0
        %7470 = vmatmul.mubr.bf16.gmra.mrb[0].mxu0 %v7157
        %v7471 = vpop.f32.mrb[0].mxu0
        %v7472 = vadd.f32 0.0, %v7471
        %v7473 = vpop.f32.mrb[0].mxu0
        %v7474 = vpop.f32.mrb[0].mxu0
        %v7475 = vadd.f32 0.0, %v7474
        %v7476 = vpop.f32.mrb[0].mxu0
        %7477 = vmatprep.mubr.bf16.mxu0 0
        %7478 = vmatmul.mubr.bf16.gmra.mrb[0].mxu0 %v7160
        %v7479 = vpop.f32.mrb[0].mxu0
        %v7480 = vadd.f32 0.0, %v7479
        %v7481 = vpop.f32.mrb[0].mxu0
        %v7482 = vpop.f32.mrb[0].mxu0
        %v7483 = vadd.f32 0.0, %v7482
        %v7484 = vpop.f32.mrb[0].mxu0
        %7485 = vmatprep.mubr.bf16.mxu0 0
        %7486 = vmatmul.mubr.bf16.gmra.mrb[0].mxu0 %v7163
        %v7487 = vpop.f32.mrb[0].mxu0
        %v7488 = vadd.f32 0.0, %v7487
        %v7489 = vpop.f32.mrb[0].mxu0
        %v7490 = vpop.f32.mrb[0].mxu0
        %v7491 = vadd.f32 0.0, %v7490
        %v7492 = vpop.f32.mrb[0].mxu0
        %7493 = vmatprep.mubr.bf16.mxu0 0
        %7494 = vmatmul.mubr.bf16.gmra.mrb[0].mxu0 %v7166
        %v7495 = vpop.f32.mrb[0].mxu0
        %v7496 = vadd.f32 0.0, %v7495
        %v7497 = vpop.f32.mrb[0].mxu0
        %v7498 = vpop.f32.mrb[0].mxu0
        %v7499 = vadd.f32 0.0, %v7498
        %v7500 = vpop.f32.mrb[0].mxu0
        %7501 = vmatprep.mubr.bf16.mxu0 0
        %7502 = vmatmul.mubr.bf16.gmra.mrb[0].mxu0 %v7169
        %v7503 = vpop.f32.mrb[0].mxu0
        %v7504 = vadd.f32 0.0, %v7503
        %v7505 = vpop.f32.mrb[0].mxu0
        %v7506 = vpop.f32.mrb[0].mxu0
        %v7507 = vadd.f32 0.0, %v7506
        %v7508 = vpop.f32.mrb[0].mxu0
        %7509 = vmatprep.mubr.bf16.mxu0 0
        %7510 = vmatmul.mubr.bf16.gmra.mrb[0].mxu0 %v7172
        %v7511 = vpop.f32.mrb[0].mxu0
        %v7512 = vadd.f32 0.0, %v7511
        %v7513 = vpop.f32.mrb[0].mxu0
        %v7514 = vpop.f32.mrb[0].mxu0
        %v7515 = vadd.f32 0.0, %v7514
        %v7516 = vpop.f32.mrb[0].mxu0
        %7517 = vmatprep.mubr.bf16.mxu0 0
        %7518 = vmatmul.mubr.bf16.gmra.mrb[0].mxu0 %v7175
        %v7519 = vpop.f32.mrb[0].mxu0
        %v7520 = vadd.f32 0.0, %v7519
        %v7521 = vpop.f32.mrb[0].mxu0
        %v7522 = vpop.f32.mrb[0].mxu0
        %v7523 = vadd.f32 0.0, %v7522
        %v7524 = vpop.f32.mrb[0].mxu0
        %7525 = vmatprep.mubr.bf16.mxu0 0
        %7526 = vmatmul.mubr.bf16.gmra.mrb[0].mxu0 %v7178
        %v7527 = vpop.f32.mrb[0].mxu0
        %v7528 = vadd.f32 0.0, %v7527
        %v7529 = vpop.f32.mrb[0].mxu0
        %v7530 = vpop.f32.mrb[0].mxu0
        %v7531 = vadd.f32 0.0, %v7530
        %v7532 = vpop.f32.mrb[0].mxu0
        %7533 = vdwg.mxu0
        %v7534 = vrot.slane %v7408, 7
        %v7535 = vrot.slane %v7411, 7
        %v7536 = vrot.slane %v7416, 7
        %v7537 = vrot.slane %v7419, 7
        %v7538 = vrot.slane %v7424, 7
        %v7539 = vrot.slane %v7427, 7
        %v7540 = vrot.slane %v7432, 7
        %v7541 = vrot.slane %v7435, 7
        %v7542 = vrot.slane %v7440, 7
        %v7543 = vrot.slane %v7443, 7
        %v7544 = vrot.slane %v7448, 7
        %v7545 = vrot.slane %v7451, 7
        %v7546 = vrot.slane %v7456, 7
        %v7547 = vrot.slane %v7459, 7
        %v7548 = vrot.slane %v7464, 7
        %v7549 = vrot.slane %v7467, 7
        %v7550 = vrot.slane %v7472, 7
        %v7551 = vrot.slane %v7475, 7
        %v7552 = vrot.slane %v7480, 7
        %v7553 = vrot.slane %v7483, 7
        %v7554 = vrot.slane %v7488, 7
        %v7555 = vrot.slane %v7491, 7
        %v7556 = vrot.slane %v7496, 7
        %v7557 = vrot.slane %v7499, 7
        %v7558 = vrot.slane %v7504, 7
        %v7559 = vrot.slane %v7507, 7
        %v7560 = vrot.slane %v7512, 7
        %v7561 = vrot.slane %v7515, 7
        %v7562 = vrot.slane %v7520, 7
        %v7563 = vrot.slane %v7523, 7
        %v7564 = vrot.slane %v7528, 7
        %v7565 = vrot.slane %v7531, 7
        %v7566 = vsel %vm1564, %v7564, %v7565
        %v7567 = vsel %vm1564, %v7563, %v7564
        %v7568 = vsel %vm1564, %v7562, %v7563
        %v7569 = vsel %vm1564, %v7561, %v7562
        %v7570 = vsel %vm1564, %v7560, %v7561
        %v7571 = vsel %vm1564, %v7559, %v7560
        %v7572 = vsel %vm1564, %v7558, %v7559
        %v7573 = vsel %vm1564, %v7557, %v7558
        %v7574 = vsel %vm1564, %v7556, %v7557
        %v7575 = vsel %vm1564, %v7555, %v7556
        %v7576 = vsel %vm1564, %v7554, %v7555
        %v7577 = vsel %vm1564, %v7553, %v7554
        %v7578 = vsel %vm1564, %v7552, %v7553
        %v7579 = vsel %vm1564, %v7551, %v7552
        %v7580 = vsel %vm1564, %v7550, %v7551
        %v7581 = vsel %vm1564, %v7549, %v7550
        %v7582 = vsel %vm1564, %v7548, %v7549
        %v7583 = vsel %vm1564, %v7547, %v7548
        %v7584 = vsel %vm1564, %v7546, %v7547
        %v7585 = vsel %vm1564, %v7545, %v7546
        %v7586 = vsel %vm1564, %v7544, %v7545
        %v7587 = vsel %vm1564, %v7543, %v7544
        %v7588 = vsel %vm1564, %v7542, %v7543
        %v7589 = vsel %vm1564, %v7541, %v7542
        %v7590 = vsel %vm1564, %v7540, %v7541
        %v7591 = vsel %vm1564, %v7539, %v7540
        %v7592 = vsel %vm1564, %v7538, %v7539
        %v7593 = vsel %vm1564, %v7537, %v7538
        %v7594 = vsel %vm1564, %v7536, %v7537
        %v7595 = vsel %vm1564, %v7535, %v7536
        %v7596 = vsel %vm1564, %v7534, %v7535
        %v7597 = vsel %vm1564, %v7565, %v7534
        %v7598 = vsel %vm1629, %v7567, 0.0
        %v7599 = vsel %vm1630, %v7566, 0.0
        %v7600 = vsel %vm1631, %v7597, 0.0
        %v7601 = vsel %vm1632, %v7596, 0.0
        %v7602 = vsel %vm1633, %v7595, 0.0
        %v7603 = vsel %vm1634, %v7594, 0.0
        %v7604 = vsel %vm1635, %v7593, 0.0
        %v7605 = vsel %vm1636, %v7592, 0.0
        %v7606 = vsel %vm1637, %v7591, 0.0
        %v7607 = vsel %vm1638, %v7590, 0.0
        %v7608 = vsel %vm1639, %v7589, 0.0
        %v7609 = vsel %vm1640, %v7588, 0.0
        %v7610 = vsel %vm1641, %v7587, 0.0
        %v7611 = vsel %vm1642, %v7586, 0.0
        %v7612 = vsel %vm1643, %v7585, 0.0
        %v7613 = vsel %vm1644, %v7584, 0.0
        %v7614 = vsel %vm1645, %v7583, 0.0
        %v7615 = vsel %vm1646, %v7582, 0.0
        %v7616 = vsel %vm1647, %v7581, 0.0
        %v7617 = vsel %vm1648, %v7580, 0.0
        %v7618 = vsel %vm1649, %v7579, 0.0
        %v7619 = vsel %vm1650, %v7578, 0.0
        %v7620 = vsel %vm1651, %v7577, 0.0
        %v7621 = vsel %vm1652, %v7576, 0.0
        %v7622 = vsel %vm1653, %v7575, 0.0
        %v7623 = vsel %vm1654, %v7574, 0.0
        %v7624 = vsel %vm1655, %v7573, 0.0
        %v7625 = vsel %vm1656, %v7572, 0.0
        %v7626 = vsel %vm1657, %v7571, 0.0
        %v7627 = vsel %vm1658, %v7570, 0.0
        %v7628 = vsel %vm1659, %v7569, 0.0
        %v7629 = vsel %vm1660, %v7568, 0.0
        %v7630 = vadd.f32 %v7215, %v7598
        %v7631 = vadd.f32 %v7218, %v7599
        %v7632 = vadd.f32 %v7223, %v7600
        %v7633 = vadd.f32 %v7226, %v7601
        %v7634 = vadd.f32 %v7231, %v7602
        %v7635 = vadd.f32 %v7234, %v7603
        %v7636 = vadd.f32 %v7239, %v7604
        %v7637 = vadd.f32 %v7242, %v7605
        %v7638 = vadd.f32 %v7247, %v7606
        %v7639 = vadd.f32 %v7250, %v7607
        %v7640 = vadd.f32 %v7255, %v7608
        %v7641 = vadd.f32 %v7258, %v7609
        %v7642 = vadd.f32 %v7263, %v7610
        %v7643 = vadd.f32 %v7266, %v7611
        %v7644 = vadd.f32 %v7271, %v7612
        %v7645 = vadd.f32 %v7274, %v7613
        %v7646 = vadd.f32 %v7279, %v7614
        %v7647 = vadd.f32 %v7282, %v7615
        %v7648 = vadd.f32 %v7287, %v7616
        %v7649 = vadd.f32 %v7290, %v7617
        %v7650 = vadd.f32 %v7295, %v7618
        %v7651 = vadd.f32 %v7298, %v7619
        %v7652 = vadd.f32 %v7303, %v7620
        %v7653 = vadd.f32 %v7306, %v7621
        %v7654 = vadd.f32 %v7311, %v7622
        %v7655 = vadd.f32 %v7314, %v7623
        %v7656 = vadd.f32 %v7319, %v7624
        %v7657 = vadd.f32 %v7322, %v7625
        %v7658 = vadd.f32 %v7327, %v7626
        %v7659 = vadd.f32 %v7330, %v7627
        %v7660 = vadd.f32 %v7335, %v7628
        %v7661 = vadd.f32 %v7338, %v7629
        %s7662 = scalar_lea.vmem [#allocation2], 32
        %v7663 = vld [vmem:[%s7662] sm:$0xf]
        %v7664 = vld [vmem:[%s7662 + $0x4] sm:$0xf]
        %v7665 = vld [vmem:[%s7662 + $0x8] sm:$0xf]
        %v7666 = vld [vmem:[%s7662 + $0xc] sm:$0xf]
        %v7667 = vld [vmem:[%s7662 + $0x10] sm:$0xf]
        %v7668 = vld [vmem:[%s7662 + $0x14] sm:$0xf]
        %v7669 = vld [vmem:[%s7662 + $0x18] sm:$0xf]
        %v7670 = vld [vmem:[%s7662 + $0x1c] sm:$0xf]
        %v7679 = vunpack.c.l.b16 %v7663
        %v7680 = vunpack.c.l.b16 %v7664
        %v7681 = vunpack.c.l.b16 %v7665
        %v7682 = vunpack.c.l.b16 %v7666
        %v7683 = vunpack.c.l.b16 %v7667
        %v7684 = vunpack.c.l.b16 %v7668
        %v7685 = vunpack.c.l.b16 %v7669
        %v7686 = vunpack.c.l.b16 %v7670
        %v7687 = vpack.c.b16 %v7680, %v7679
        %v7688 = vpack.c.b16 %v7682, %v7681
        %v7689 = vpack.c.b16 %v7684, %v7683
        %v7690 = vpack.c.b16 %v7686, %v7685
        %7695 = vmatprep.subr.bf16.mxu0 0
        %7696 = vmatpush1.bf16.msra.mxu0 %v7687
        %7697 = vmatprep.subr.bf16.mxu0 0
        %7698 = vmatpush1.bf16.msra.mxu0 %v7688
        %7699 = vmatprep.subr.bf16.mxu0 0
        %7700 = vmatpush1.bf16.msra.mxu0 %v7689
        %7701 = vmatprep.subr.bf16.mxu0 0
        %7702 = vmatpush1.bf16.msra.mxu0 %v7690
        %7703 = vmatprep.subr.bf16.mxu0 0
        %7704 = vmatpush1.bf16.msra.mxu0 0
        %7705 = vmatprep.subr.bf16.mxu0 0
        %7706 = vmatpush1.bf16.msra.mxu0 0
        %7707 = vmatprep.subr.bf16.mxu0 0
        %7708 = vmatpush1.bf16.msra.mxu0 0
        %7709 = vmatprep.subr.bf16.mxu0 0
        %7710 = vmatpush1.bf16.msra.mxu0 0
        %7711 = vmatprep.subr.bf16.mxu0 0
        %7712 = vmatpush1.bf16.msra.mxu0 0
        %7713 = vmatprep.subr.bf16.mxu0 0
        %7714 = vmatpush1.bf16.msra.mxu0 0
        %7715 = vmatprep.subr.bf16.mxu0 0
        %7716 = vmatpush1.bf16.msra.mxu0 0
        %7717 = vmatprep.subr.bf16.mxu0 0
        %7718 = vmatpush1.bf16.msra.mxu0 0
        %7719 = vmatprep.subr.bf16.mxu0 0
        %7720 = vmatpush1.bf16.msra.mxu0 0
        %7721 = vmatprep.subr.bf16.mxu0 0
        %7722 = vmatpush1.bf16.msra.mxu0 0
        %7723 = vmatprep.subr.bf16.mxu0 0
        %7724 = vmatpush1.bf16.msra.mxu0 0
        %7725 = vmatprep.subr.bf16.mxu0 0
        %7726 = vmatpush1.bf16.msra.mxu0 0
        %7727 = vmatprep.mubr.bf16.mxu0 0
        %7728 = vmatmul.mubr.bf16.gmra.mrb[0].mxu0 %v7133
        %v7729 = vpop.f32.mrb[0].mxu0
        %v7730 = vadd.f32 0.0, %v7729
        %v7731 = vpop.f32.mrb[0].mxu0
        %v7732 = vpop.f32.mrb[0].mxu0
        %v7733 = vadd.f32 0.0, %v7732
        %v7734 = vpop.f32.mrb[0].mxu0
        %7735 = vmatprep.mubr.bf16.mxu0 0
        %7736 = vmatmul.mubr.bf16.gmra.mrb[0].mxu0 %v7136
        %v7737 = vpop.f32.mrb[0].mxu0
        %v7738 = vadd.f32 0.0, %v7737
        %v7739 = vpop.f32.mrb[0].mxu0
        %v7740 = vpop.f32.mrb[0].mxu0
        %v7741 = vadd.f32 0.0, %v7740
        %v7742 = vpop.f32.mrb[0].mxu0
        %7743 = vmatprep.mubr.bf16.mxu0 0
        %7744 = vmatmul.mubr.bf16.gmra.mrb[0].mxu0 %v7139
        %v7745 = vpop.f32.mrb[0].mxu0
        %v7746 = vadd.f32 0.0, %v7745
        %v7747 = vpop.f32.mrb[0].mxu0
        %v7748 = vpop.f32.mrb[0].mxu0
        %v7749 = vadd.f32 0.0, %v7748
        %v7750 = vpop.f32.mrb[0].mxu0
        %7751 = vmatprep.mubr.bf16.mxu0 0
        %7752 = vmatmul.mubr.bf16.gmra.mrb[0].mxu0 %v7142
        %v7753 = vpop.f32.mrb[0].mxu0
        %v7754 = vadd.f32 0.0, %v7753
        %v7755 = vpop.f32.mrb[0].mxu0
        %v7756 = vpop.f32.mrb[0].mxu0
        %v7757 = vadd.f32 0.0, %v7756
        %v7758 = vpop.f32.mrb[0].mxu0
        %7759 = vmatprep.mubr.bf16.mxu0 0
        %7760 = vmatmul.mubr.bf16.gmra.mrb[0].mxu0 %v7145
        %v7761 = vpop.f32.mrb[0].mxu0
        %v7762 = vadd.f32 0.0, %v7761
        %v7763 = vpop.f32.mrb[0].mxu0
        %v7764 = vpop.f32.mrb[0].mxu0
        %v7765 = vadd.f32 0.0, %v7764
        %v7766 = vpop.f32.mrb[0].mxu0
        %7767 = vmatprep.mubr.bf16.mxu0 0
        %7768 = vmatmul.mubr.bf16.gmra.mrb[0].mxu0 %v7148
        %v7769 = vpop.f32.mrb[0].mxu0
        %v7770 = vadd.f32 0.0, %v7769
        %v7771 = vpop.f32.mrb[0].mxu0
        %v7772 = vpop.f32.mrb[0].mxu0
        %v7773 = vadd.f32 0.0, %v7772
        %v7774 = vpop.f32.mrb[0].mxu0
        %7775 = vmatprep.mubr.bf16.mxu0 0
        %7776 = vmatmul.mubr.bf16.gmra.mrb[0].mxu0 %v7151
        %v7777 = vpop.f32.mrb[0].mxu0
        %v7778 = vadd.f32 0.0, %v7777
        %v7779 = vpop.f32.mrb[0].mxu0
        %v7780 = vpop.f32.mrb[0].mxu0
        %v7781 = vadd.f32 0.0, %v7780
        %v7782 = vpop.f32.mrb[0].mxu0
        %7783 = vmatprep.mubr.bf16.mxu0 0
        %7784 = vmatmul.mubr.bf16.gmra.mrb[0].mxu0 %v7154
        %v7785 = vpop.f32.mrb[0].mxu0
        %v7786 = vadd.f32 0.0, %v7785
        %v7787 = vpop.f32.mrb[0].mxu0
        %v7788 = vpop.f32.mrb[0].mxu0
        %v7789 = vadd.f32 0.0, %v7788
        %v7790 = vpop.f32.mrb[0].mxu0
        %7791 = vmatprep.mubr.bf16.mxu0 0
        %7792 = vmatmul.mubr.bf16.gmra.mrb[0].mxu0 %v7157
        %v7793 = vpop.f32.mrb[0].mxu0
        %v7794 = vadd.f32 0.0, %v7793
        %v7795 = vpop.f32.mrb[0].mxu0
        %v7796 = vpop.f32.mrb[0].mxu0
        %v7797 = vadd.f32 0.0, %v7796
        %v7798 = vpop.f32.mrb[0].mxu0
        %7799 = vmatprep.mubr.bf16.mxu0 0
        %7800 = vmatmul.mubr.bf16.gmra.mrb[0].mxu0 %v7160
        %v7801 = vpop.f32.mrb[0].mxu0
        %v7802 = vadd.f32 0.0, %v7801
        %v7803 = vpop.f32.mrb[0].mxu0
        %v7804 = vpop.f32.mrb[0].mxu0
        %v7805 = vadd.f32 0.0, %v7804
        %v7806 = vpop.f32.mrb[0].mxu0
        %7807 = vmatprep.mubr.bf16.mxu0 0
        %7808 = vmatmul.mubr.bf16.gmra.mrb[0].mxu0 %v7163
        %v7809 = vpop.f32.mrb[0].mxu0
        %v7810 = vadd.f32 0.0, %v7809
        %v7811 = vpop.f32.mrb[0].mxu0
        %v7812 = vpop.f32.mrb[0].mxu0
        %v7813 = vadd.f32 0.0, %v7812
        %v7814 = vpop.f32.mrb[0].mxu0
        %7815 = vmatprep.mubr.bf16.mxu0 0
        %7816 = vmatmul.mubr.bf16.gmra.mrb[0].mxu0 %v7166
        %v7817 = vpop.f32.mrb[0].mxu0
        %v7818 = vadd.f32 0.0, %v7817
        %v7819 = vpop.f32.mrb[0].mxu0
        %v7820 = vpop.f32.mrb[0].mxu0
        %v7821 = vadd.f32 0.0, %v7820
        %v7822 = vpop.f32.mrb[0].mxu0
        %7823 = vmatprep.mubr.bf16.mxu0 0
        %7824 = vmatmul.mubr.bf16.gmra.mrb[0].mxu0 %v7169
        %v7825 = vpop.f32.mrb[0].mxu0
        %v7826 = vadd.f32 0.0, %v7825
        %v7827 = vpop.f32.mrb[0].mxu0
        %v7828 = vpop.f32.mrb[0].mxu0
        %v7829 = vadd.f32 0.0, %v7828
        %v7830 = vpop.f32.mrb[0].mxu0
        %7831 = vmatprep.mubr.bf16.mxu0 0
        %7832 = vmatmul.mubr.bf16.gmra.mrb[0].mxu0 %v7172
        %v7833 = vpop.f32.mrb[0].mxu0
        %v7834 = vadd.f32 0.0, %v7833
        %v7835 = vpop.f32.mrb[0].mxu0
        %v7836 = vpop.f32.mrb[0].mxu0
        %v7837 = vadd.f32 0.0, %v7836
        %v7838 = vpop.f32.mrb[0].mxu0
        %7839 = vmatprep.mubr.bf16.mxu0 0
        %7840 = vmatmul.mubr.bf16.gmra.mrb[0].mxu0 %v7175
        %v7841 = vpop.f32.mrb[0].mxu0
        %v7842 = vadd.f32 0.0, %v7841
        %v7843 = vpop.f32.mrb[0].mxu0
        %v7844 = vpop.f32.mrb[0].mxu0
        %v7845 = vadd.f32 0.0, %v7844
        %v7846 = vpop.f32.mrb[0].mxu0
        %7847 = vmatprep.mubr.bf16.mxu0 0
        %7848 = vmatmul.mubr.bf16.gmra.mrb[0].mxu0 %v7178
        %v7849 = vpop.f32.mrb[0].mxu0
        %v7850 = vadd.f32 0.0, %v7849
        %v7851 = vpop.f32.mrb[0].mxu0
        %v7852 = vpop.f32.mrb[0].mxu0
        %v7853 = vadd.f32 0.0, %v7852
        %v7854 = vpop.f32.mrb[0].mxu0
        %7855 = vdwg.mxu0
        %v7856 = vsel %vm1951, %v7850, 0.0
        %v7857 = vsel %vm1952, %v7853, 0.0
        %v7858 = vsel %vm1953, %v7730, 0.0
        %v7859 = vsel %vm1954, %v7733, 0.0
        %v7860 = vsel %vm1955, %v7738, 0.0
        %v7861 = vsel %vm1956, %v7741, 0.0
        %v7862 = vsel %vm1957, %v7746, 0.0
        %v7863 = vsel %vm1958, %v7749, 0.0
        %v7864 = vsel %vm1959, %v7754, 0.0
        %v7865 = vsel %vm1960, %v7757, 0.0
        %v7866 = vsel %vm1961, %v7762, 0.0
        %v7867 = vsel %vm1962, %v7765, 0.0
        %v7868 = vsel %vm1963, %v7770, 0.0
        %v7869 = vsel %vm1964, %v7773, 0.0
        %v7870 = vsel %vm1965, %v7778, 0.0
        %v7871 = vsel %vm1966, %v7781, 0.0
        %v7872 = vsel %vm1967, %v7786, 0.0
        %v7873 = vsel %vm1968, %v7789, 0.0
        %v7874 = vsel %vm1969, %v7794, 0.0
        %v7875 = vsel %vm1970, %v7797, 0.0
        %v7876 = vsel %vm1971, %v7802, 0.0
        %v7877 = vsel %vm1972, %v7805, 0.0
        %v7878 = vsel %vm1973, %v7810, 0.0
        %v7879 = vsel %vm1974, %v7813, 0.0
        %v7880 = vsel %vm1975, %v7818, 0.0
        %v7881 = vsel %vm1976, %v7821, 0.0
        %v7882 = vsel %vm1977, %v7826, 0.0
        %v7883 = vsel %vm1978, %v7829, 0.0
        %v7884 = vsel %vm1979, %v7834, 0.0
        %v7885 = vsel %vm1980, %v7837, 0.0
        %v7886 = vsel %vm1981, %v7842, 0.0
        %v7887 = vsel %vm1982, %v7845, 0.0
        %v7888 = vadd.f32 %v7630, %v7856
        %v7889 = vadd.f32 %v7631, %v7857
        %v7890 = vadd.f32 %v7632, %v7858
        %v7891 = vadd.f32 %v7633, %v7859
        %v7892 = vadd.f32 %v7634, %v7860
        %v7893 = vadd.f32 %v7635, %v7861
        %v7894 = vadd.f32 %v7636, %v7862
        %v7895 = vadd.f32 %v7637, %v7863
        %v7896 = vadd.f32 %v7638, %v7864
        %v7897 = vadd.f32 %v7639, %v7865
        %v7898 = vadd.f32 %v7640, %v7866
        %v7899 = vadd.f32 %v7641, %v7867
        %v7900 = vadd.f32 %v7642, %v7868
        %v7901 = vadd.f32 %v7643, %v7869
        %v7902 = vadd.f32 %v7644, %v7870
        %v7903 = vadd.f32 %v7645, %v7871
        %v7904 = vadd.f32 %v7646, %v7872
        %v7905 = vadd.f32 %v7647, %v7873
        %v7906 = vadd.f32 %v7648, %v7874
        %v7907 = vadd.f32 %v7649, %v7875
        %v7908 = vadd.f32 %v7650, %v7876
        %v7909 = vadd.f32 %v7651, %v7877
        %v7910 = vadd.f32 %v7652, %v7878
        %v7911 = vadd.f32 %v7653, %v7879
        %v7912 = vadd.f32 %v7654, %v7880
        %v7913 = vadd.f32 %v7655, %v7881
        %v7914 = vadd.f32 %v7656, %v7882
        %v7915 = vadd.f32 %v7657, %v7883
        %v7916 = vadd.f32 %v7658, %v7884
        %v7917 = vadd.f32 %v7659, %v7885
        %v7918 = vadd.f32 %v7660, %v7886
        %v7919 = vadd.f32 %v7661, %v7887
        %s7920 = scalar_lea.vmem [#allocation2], 64
        %v7921 = vld [vmem:[%s7920] sm:$0xf]
        %v7922 = vld [vmem:[%s7920 + $0x4] sm:$0xf]
        %v7923 = vld [vmem:[%s7920 + $0x8] sm:$0xf]
        %v7924 = vld [vmem:[%s7920 + $0xc] sm:$0xf]
        %v7925 = vld [vmem:[%s7920 + $0x10] sm:$0xf]
        %v7926 = vld [vmem:[%s7920 + $0x14] sm:$0xf]
        %v7927 = vld [vmem:[%s7920 + $0x18] sm:$0xf]
        %v7928 = vld [vmem:[%s7920 + $0x1c] sm:$0xf]
        %v7937 = vunpack.c.l.b16 %v7921
        %v7938 = vunpack.c.l.b16 %v7922
        %v7939 = vunpack.c.l.b16 %v7923
        %v7940 = vunpack.c.l.b16 %v7924
        %v7941 = vunpack.c.l.b16 %v7925
        %v7942 = vunpack.c.l.b16 %v7926
        %v7943 = vunpack.c.l.b16 %v7927
        %v7944 = vunpack.c.l.b16 %v7928
        %v7945 = vpack.c.b16 %v7938, %v7937
        %v7946 = vpack.c.b16 %v7940, %v7939
        %v7947 = vpack.c.b16 %v7942, %v7941
        %v7948 = vpack.c.b16 %v7944, %v7943
        %7953 = vmatprep.subr.bf16.mxu0 0
        %7954 = vmatpush1.bf16.msra.mxu0 %v7945
        %7955 = vmatprep.subr.bf16.mxu0 0
        %7956 = vmatpush1.bf16.msra.mxu0 %v7946
        %7957 = vmatprep.subr.bf16.mxu0 0
        %7958 = vmatpush1.bf16.msra.mxu0 %v7947
        %7959 = vmatprep.subr.bf16.mxu0 0
        %7960 = vmatpush1.bf16.msra.mxu0 %v7948
        %7961 = vmatprep.subr.bf16.mxu0 0
        %7962 = vmatpush1.bf16.msra.mxu0 0
        %7963 = vmatprep.subr.bf16.mxu0 0
        %7964 = vmatpush1.bf16.msra.mxu0 0
        %7965 = vmatprep.subr.bf16.mxu0 0
        %7966 = vmatpush1.bf16.msra.mxu0 0
        %7967 = vmatprep.subr.bf16.mxu0 0
        %7968 = vmatpush1.bf16.msra.mxu0 0
        %7969 = vmatprep.subr.bf16.mxu0 0
        %7970 = vmatpush1.bf16.msra.mxu0 0
        %7971 = vmatprep.subr.bf16.mxu0 0
        %7972 = vmatpush1.bf16.msra.mxu0 0
        %7973 = vmatprep.subr.bf16.mxu0 0
        %7974 = vmatpush1.bf16.msra.mxu0 0
        %7975 = vmatprep.subr.bf16.mxu0 0
        %7976 = vmatpush1.bf16.msra.mxu0 0
        %7977 = vmatprep.subr.bf16.mxu0 0
        %7978 = vmatpush1.bf16.msra.mxu0 0
        %7979 = vmatprep.subr.bf16.mxu0 0
        %7980 = vmatpush1.bf16.msra.mxu0 0
        %7981 = vmatprep.subr.bf16.mxu0 0
        %7982 = vmatpush1.bf16.msra.mxu0 0
        %7983 = vmatprep.subr.bf16.mxu0 0
        %7984 = vmatpush1.bf16.msra.mxu0 0
        %7985 = vmatprep.mubr.bf16.mxu0 0
        %7986 = vmatmul.mubr.bf16.gmra.mrb[0].mxu0 %v7133
        %v7987 = vpop.f32.mrb[0].mxu0
        %v7988 = vadd.f32 0.0, %v7987
        %v7989 = vpop.f32.mrb[0].mxu0
        %v7990 = vpop.f32.mrb[0].mxu0
        %v7991 = vadd.f32 0.0, %v7990
        %v7992 = vpop.f32.mrb[0].mxu0
        %7993 = vmatprep.mubr.bf16.mxu0 0
        %7994 = vmatmul.mubr.bf16.gmra.mrb[0].mxu0 %v7136
        %v7995 = vpop.f32.mrb[0].mxu0
        %v7996 = vadd.f32 0.0, %v7995
        %v7997 = vpop.f32.mrb[0].mxu0
        %v7998 = vpop.f32.mrb[0].mxu0
        %v7999 = vadd.f32 0.0, %v7998
        %v8000 = vpop.f32.mrb[0].mxu0
        %8001 = vmatprep.mubr.bf16.mxu0 0
        %8002 = vmatmul.mubr.bf16.gmra.mrb[0].mxu0 %v7139
        %v8003 = vpop.f32.mrb[0].mxu0
        %v8004 = vadd.f32 0.0, %v8003
        %v8005 = vpop.f32.mrb[0].mxu0
        %v8006 = vpop.f32.mrb[0].mxu0
        %v8007 = vadd.f32 0.0, %v8006
        %v8008 = vpop.f32.mrb[0].mxu0
        %8009 = vmatprep.mubr.bf16.mxu0 0
        %8010 = vmatmul.mubr.bf16.gmra.mrb[0].mxu0 %v7142
        %v8011 = vpop.f32.mrb[0].mxu0
        %v8012 = vadd.f32 0.0, %v8011
        %v8013 = vpop.f32.mrb[0].mxu0
        %v8014 = vpop.f32.mrb[0].mxu0
        %v8015 = vadd.f32 0.0, %v8014
        %v8016 = vpop.f32.mrb[0].mxu0
        %8017 = vmatprep.mubr.bf16.mxu0 0
        %8018 = vmatmul.mubr.bf16.gmra.mrb[0].mxu0 %v7145
        %v8019 = vpop.f32.mrb[0].mxu0
        %v8020 = vadd.f32 0.0, %v8019
        %v8021 = vpop.f32.mrb[0].mxu0
        %v8022 = vpop.f32.mrb[0].mxu0
        %v8023 = vadd.f32 0.0, %v8022
        %v8024 = vpop.f32.mrb[0].mxu0
        %8025 = vmatprep.mubr.bf16.mxu0 0
        %8026 = vmatmul.mubr.bf16.gmra.mrb[0].mxu0 %v7148
        %v8027 = vpop.f32.mrb[0].mxu0
        %v8028 = vadd.f32 0.0, %v8027
        %v8029 = vpop.f32.mrb[0].mxu0
        %v8030 = vpop.f32.mrb[0].mxu0
        %v8031 = vadd.f32 0.0, %v8030
        %v8032 = vpop.f32.mrb[0].mxu0
        %8033 = vmatprep.mubr.bf16.mxu0 0
        %8034 = vmatmul.mubr.bf16.gmra.mrb[0].mxu0 %v7151
        %v8035 = vpop.f32.mrb[0].mxu0
        %v8036 = vadd.f32 0.0, %v8035
        %v8037 = vpop.f32.mrb[0].mxu0
        %v8038 = vpop.f32.mrb[0].mxu0
        %v8039 = vadd.f32 0.0, %v8038
        %v8040 = vpop.f32.mrb[0].mxu0
        %8041 = vmatprep.mubr.bf16.mxu0 0
        %8042 = vmatmul.mubr.bf16.gmra.mrb[0].mxu0 %v7154
        %v8043 = vpop.f32.mrb[0].mxu0
        %v8044 = vadd.f32 0.0, %v8043
        %v8045 = vpop.f32.mrb[0].mxu0
        %v8046 = vpop.f32.mrb[0].mxu0
        %v8047 = vadd.f32 0.0, %v8046
        %v8048 = vpop.f32.mrb[0].mxu0
        %8049 = vmatprep.mubr.bf16.mxu0 0
        %8050 = vmatmul.mubr.bf16.gmra.mrb[0].mxu0 %v7157
        %v8051 = vpop.f32.mrb[0].mxu0
        %v8052 = vadd.f32 0.0, %v8051
        %v8053 = vpop.f32.mrb[0].mxu0
        %v8054 = vpop.f32.mrb[0].mxu0
        %v8055 = vadd.f32 0.0, %v8054
        %v8056 = vpop.f32.mrb[0].mxu0
        %8057 = vmatprep.mubr.bf16.mxu0 0
        %8058 = vmatmul.mubr.bf16.gmra.mrb[0].mxu0 %v7160
        %v8059 = vpop.f32.mrb[0].mxu0
        %v8060 = vadd.f32 0.0, %v8059
        %v8061 = vpop.f32.mrb[0].mxu0
        %v8062 = vpop.f32.mrb[0].mxu0
        %v8063 = vadd.f32 0.0, %v8062
        %v8064 = vpop.f32.mrb[0].mxu0
        %8065 = vmatprep.mubr.bf16.mxu0 0
        %8066 = vmatmul.mubr.bf16.gmra.mrb[0].mxu0 %v7163
        %v8067 = vpop.f32.mrb[0].mxu0
        %v8068 = vadd.f32 0.0, %v8067
        %v8069 = vpop.f32.mrb[0].mxu0
        %v8070 = vpop.f32.mrb[0].mxu0
        %v8071 = vadd.f32 0.0, %v8070
        %v8072 = vpop.f32.mrb[0].mxu0
        %8073 = vmatprep.mubr.bf16.mxu0 0
        %8074 = vmatmul.mubr.bf16.gmra.mrb[0].mxu0 %v7166
        %v8075 = vpop.f32.mrb[0].mxu0
        %v8076 = vadd.f32 0.0, %v8075
        %v8077 = vpop.f32.mrb[0].mxu0
        %v8078 = vpop.f32.mrb[0].mxu0
        %v8079 = vadd.f32 0.0, %v8078
        %v8080 = vpop.f32.mrb[0].mxu0
        %8081 = vmatprep.mubr.bf16.mxu0 0
        %8082 = vmatmul.mubr.bf16.gmra.mrb[0].mxu0 %v7169
        %v8083 = vpop.f32.mrb[0].mxu0
        %v8084 = vadd.f32 0.0, %v8083
        %v8085 = vpop.f32.mrb[0].mxu0
        %v8086 = vpop.f32.mrb[0].mxu0
        %v8087 = vadd.f32 0.0, %v8086
        %v8088 = vpop.f32.mrb[0].mxu0
        %8089 = vmatprep.mubr.bf16.mxu0 0
        %8090 = vmatmul.mubr.bf16.gmra.mrb[0].mxu0 %v7172
        %v8091 = vpop.f32.mrb[0].mxu0
        %v8092 = vadd.f32 0.0, %v8091
        %v8093 = vpop.f32.mrb[0].mxu0
        %v8094 = vpop.f32.mrb[0].mxu0
        %v8095 = vadd.f32 0.0, %v8094
        %v8096 = vpop.f32.mrb[0].mxu0
        %8097 = vmatprep.mubr.bf16.mxu0 0
        %8098 = vmatmul.mubr.bf16.gmra.mrb[0].mxu0 %v7175
        %v8099 = vpop.f32.mrb[0].mxu0
        %v8100 = vadd.f32 0.0, %v8099
        %v8101 = vpop.f32.mrb[0].mxu0
        %v8102 = vpop.f32.mrb[0].mxu0
        %v8103 = vadd.f32 0.0, %v8102
        %v8104 = vpop.f32.mrb[0].mxu0
        %8105 = vmatprep.mubr.bf16.mxu0 0
        %8106 = vmatmul.mubr.bf16.gmra.mrb[0].mxu0 %v7178
        %v8107 = vpop.f32.mrb[0].mxu0
        %v8108 = vadd.f32 0.0, %v8107
        %v8109 = vpop.f32.mrb[0].mxu0
        %v8110 = vpop.f32.mrb[0].mxu0
        %v8111 = vadd.f32 0.0, %v8110
        %v8112 = vpop.f32.mrb[0].mxu0
        %8113 = vdwg.mxu0
        %v8114 = vrot.slane %v7988, 1
        %v8115 = vrot.slane %v7991, 1
        %v8116 = vrot.slane %v7996, 1
        %v8117 = vrot.slane %v7999, 1
        %v8118 = vrot.slane %v8004, 1
        %v8119 = vrot.slane %v8007, 1
        %v8120 = vrot.slane %v8012, 1
        %v8121 = vrot.slane %v8015, 1
        %v8122 = vrot.slane %v8020, 1
        %v8123 = vrot.slane %v8023, 1
        %v8124 = vrot.slane %v8028, 1
        %v8125 = vrot.slane %v8031, 1
        %v8126 = vrot.slane %v8036, 1
        %v8127 = vrot.slane %v8039, 1
        %v8128 = vrot.slane %v8044, 1
        %v8129 = vrot.slane %v8047, 1
        %v8130 = vrot.slane %v8052, 1
        %v8131 = vrot.slane %v8055, 1
        %v8132 = vrot.slane %v8060, 1
        %v8133 = vrot.slane %v8063, 1
        %v8134 = vrot.slane %v8068, 1
        %v8135 = vrot.slane %v8071, 1
        %v8136 = vrot.slane %v8076, 1
        %v8137 = vrot.slane %v8079, 1
        %v8138 = vrot.slane %v8084, 1
        %v8139 = vrot.slane %v8087, 1
        %v8140 = vrot.slane %v8092, 1
        %v8141 = vrot.slane %v8095, 1
        %v8142 = vrot.slane %v8100, 1
        %v8143 = vrot.slane %v8103, 1
        %v8144 = vrot.slane %v8108, 1
        %v8145 = vrot.slane %v8111, 1
        %v8146 = vsel %vm2273, %v8144, %v8145
        %v8147 = vsel %vm2273, %v8143, %v8144
        %v8148 = vsel %vm2273, %v8142, %v8143
        %v8149 = vsel %vm2273, %v8141, %v8142
        %v8150 = vsel %vm2273, %v8140, %v8141
        %v8151 = vsel %vm2273, %v8139, %v8140
        %v8152 = vsel %vm2273, %v8138, %v8139
        %v8153 = vsel %vm2273, %v8137, %v8138
        %v8154 = vsel %vm2273, %v8136, %v8137
        %v8155 = vsel %vm2273, %v8135, %v8136
        %v8156 = vsel %vm2273, %v8134, %v8135
        %v8157 = vsel %vm2273, %v8133, %v8134
        %v8158 = vsel %vm2273, %v8132, %v8133
        %v8159 = vsel %vm2273, %v8131, %v8132
        %v8160 = vsel %vm2273, %v8130, %v8131
        %v8161 = vsel %vm2273, %v8129, %v8130
        %v8162 = vsel %vm2273, %v8128, %v8129
        %v8163 = vsel %vm2273, %v8127, %v8128
        %v8164 = vsel %vm2273, %v8126, %v8127
        %v8165 = vsel %vm2273, %v8125, %v8126
        %v8166 = vsel %vm2273, %v8124, %v8125
        %v8167 = vsel %vm2273, %v8123, %v8124
        %v8168 = vsel %vm2273, %v8122, %v8123
        %v8169 = vsel %vm2273, %v8121, %v8122
        %v8170 = vsel %vm2273, %v8120, %v8121
        %v8171 = vsel %vm2273, %v8119, %v8120
        %v8172 = vsel %vm2273, %v8118, %v8119
        %v8173 = vsel %vm2273, %v8117, %v8118
        %v8174 = vsel %vm2273, %v8116, %v8117
        %v8175 = vsel %vm2273, %v8115, %v8116
        %v8176 = vsel %vm2273, %v8114, %v8115
        %v8177 = vsel %vm2273, %v8145, %v8114
        %v8178 = vsel %vm2338, %v8146, 0.0
        %v8179 = vsel %vm2339, %v8177, 0.0
        %v8180 = vsel %vm2340, %v8176, 0.0
        %v8181 = vsel %vm2341, %v8175, 0.0
        %v8182 = vsel %vm2342, %v8174, 0.0
        %v8183 = vsel %vm2343, %v8173, 0.0
        %v8184 = vsel %vm2344, %v8172, 0.0
        %v8185 = vsel %vm2345, %v8171, 0.0
        %v8186 = vsel %vm2346, %v8170, 0.0
        %v8187 = vsel %vm2347, %v8169, 0.0
        %v8188 = vsel %vm2348, %v8168, 0.0
        %v8189 = vsel %vm2349, %v8167, 0.0
        %v8190 = vsel %vm2350, %v8166, 0.0
        %v8191 = vsel %vm2351, %v8165, 0.0
        %v8192 = vsel %vm2352, %v8164, 0.0
        %v8193 = vsel %vm2353, %v8163, 0.0
        %v8194 = vsel %vm2354, %v8162, 0.0
        %v8195 = vsel %vm2355, %v8161, 0.0
        %v8196 = vsel %vm2356, %v8160, 0.0
        %v8197 = vsel %vm2357, %v8159, 0.0
        %v8198 = vsel %vm2358, %v8158, 0.0
        %v8199 = vsel %vm2359, %v8157, 0.0
        %v8200 = vsel %vm2360, %v8156, 0.0
        %v8201 = vsel %vm2361, %v8155, 0.0
        %v8202 = vsel %vm2362, %v8154, 0.0
        %v8203 = vsel %vm2363, %v8153, 0.0
        %v8204 = vsel %vm2364, %v8152, 0.0
        %v8205 = vsel %vm2365, %v8151, 0.0
        %v8206 = vsel %vm2366, %v8150, 0.0
        %v8207 = vsel %vm2367, %v8149, 0.0
        %v8208 = vsel %vm2368, %v8148, 0.0
        %v8209 = vsel %vm2369, %v8147, 0.0
        %v8210 = vadd.f32 %v7888, %v8178
        %v8211 = vadd.f32 %v7889, %v8179
        %v8212 = vadd.f32 %v7890, %v8180
        %v8213 = vadd.f32 %v7891, %v8181
        %v8214 = vadd.f32 %v7892, %v8182
        %v8215 = vadd.f32 %v7893, %v8183
        %v8216 = vadd.f32 %v7894, %v8184
        %v8217 = vadd.f32 %v7895, %v8185
        %v8218 = vadd.f32 %v7896, %v8186
        %v8219 = vadd.f32 %v7897, %v8187
        %v8220 = vadd.f32 %v7898, %v8188
        %v8221 = vadd.f32 %v7899, %v8189
        %v8222 = vadd.f32 %v7900, %v8190
        %v8223 = vadd.f32 %v7901, %v8191
        %v8224 = vadd.f32 %v7902, %v8192
        %v8225 = vadd.f32 %v7903, %v8193
        %v8226 = vadd.f32 %v7904, %v8194
        %v8227 = vadd.f32 %v7905, %v8195
        %v8228 = vadd.f32 %v7906, %v8196
        %v8229 = vadd.f32 %v7907, %v8197
        %v8230 = vadd.f32 %v7908, %v8198
        %v8231 = vadd.f32 %v7909, %v8199
        %v8232 = vadd.f32 %v7910, %v8200
        %v8233 = vadd.f32 %v7911, %v8201
        %v8234 = vadd.f32 %v7912, %v8202
        %v8235 = vadd.f32 %v7913, %v8203
        %v8236 = vadd.f32 %v7914, %v8204
        %v8237 = vadd.f32 %v7915, %v8205
        %v8238 = vadd.f32 %v7916, %v8206
        %v8239 = vadd.f32 %v7917, %v8207
        %v8240 = vadd.f32 %v7918, %v8208
        %v8241 = vadd.f32 %v7919, %v8209
        %s8242 = scalar_lea.vmem [#allocation2], 96
        %v8243 = vld [vmem:[%s8242] sm:$0xf]
        %v8244 = vld [vmem:[%s8242 + $0x4] sm:$0xf]
        %v8245 = vld [vmem:[%s8242 + $0x8] sm:$0xf]
        %v8246 = vld [vmem:[%s8242 + $0xc] sm:$0xf]
        %v8247 = vld [vmem:[%s8242 + $0x10] sm:$0xf]
        %v8248 = vld [vmem:[%s8242 + $0x14] sm:$0xf]
        %v8249 = vld [vmem:[%s8242 + $0x18] sm:$0xf]
        %v8250 = vld [vmem:[%s8242 + $0x1c] sm:$0xf]
        %v8259 = vunpack.c.l.b16 %v8243
        %v8260 = vunpack.c.l.b16 %v8244
        %v8261 = vunpack.c.l.b16 %v8245
        %v8262 = vunpack.c.l.b16 %v8246
        %v8263 = vunpack.c.l.b16 %v8247
        %v8264 = vunpack.c.l.b16 %v8248
        %v8265 = vunpack.c.l.b16 %v8249
        %v8266 = vunpack.c.l.b16 %v8250
        %v8267 = vpack.c.b16 %v8260, %v8259
        %v8268 = vpack.c.b16 %v8262, %v8261
        %v8269 = vpack.c.b16 %v8264, %v8263
        %v8270 = vpack.c.b16 %v8266, %v8265
        %8275 = vmatprep.subr.bf16.mxu0 0
        %8276 = vmatpush1.bf16.msra.mxu0 %v8267
        %8277 = vmatprep.subr.bf16.mxu0 0
        %8278 = vmatpush1.bf16.msra.mxu0 %v8268
        %8279 = vmatprep.subr.bf16.mxu0 0
        %8280 = vmatpush1.bf16.msra.mxu0 %v8269
        %8281 = vmatprep.subr.bf16.mxu0 0
        %8282 = vmatpush1.bf16.msra.mxu0 %v8270
        %8283 = vmatprep.subr.bf16.mxu0 0
        %8284 = vmatpush1.bf16.msra.mxu0 0
        %8285 = vmatprep.subr.bf16.mxu0 0
        %8286 = vmatpush1.bf16.msra.mxu0 0
        %8287 = vmatprep.subr.bf16.mxu0 0
        %8288 = vmatpush1.bf16.msra.mxu0 0
        %8289 = vmatprep.subr.bf16.mxu0 0
        %8290 = vmatpush1.bf16.msra.mxu0 0
        %8291 = vmatprep.subr.bf16.mxu0 0
        %8292 = vmatpush1.bf16.msra.mxu0 0
        %8293 = vmatprep.subr.bf16.mxu0 0
        %8294 = vmatpush1.bf16.msra.mxu0 0
        %8295 = vmatprep.subr.bf16.mxu0 0
        %8296 = vmatpush1.bf16.msra.mxu0 0
        %8297 = vmatprep.subr.bf16.mxu0 0
        %8298 = vmatpush1.bf16.msra.mxu0 0
        %8299 = vmatprep.subr.bf16.mxu0 0
        %8300 = vmatpush1.bf16.msra.mxu0 0
        %8301 = vmatprep.subr.bf16.mxu0 0
        %8302 = vmatpush1.bf16.msra.mxu0 0
        %8303 = vmatprep.subr.bf16.mxu0 0
        %8304 = vmatpush1.bf16.msra.mxu0 0
        %8305 = vmatprep.subr.bf16.mxu0 0
        %8306 = vmatpush1.bf16.msra.mxu0 0
        %8307 = vmatprep.mubr.bf16.mxu0 0
        %8308 = vmatmul.mubr.bf16.gmra.mrb[0].mxu0 %v7133
        %v8309 = vpop.f32.mrb[0].mxu0
        %v8310 = vadd.f32 0.0, %v8309
        %v8311 = vpop.f32.mrb[0].mxu0
        %v8312 = vpop.f32.mrb[0].mxu0
        %v8313 = vadd.f32 0.0, %v8312
        %v8314 = vpop.f32.mrb[0].mxu0
        %8315 = vmatprep.mubr.bf16.mxu0 0
        %8316 = vmatmul.mubr.bf16.gmra.mrb[0].mxu0 %v7136
        %v8317 = vpop.f32.mrb[0].mxu0
        %v8318 = vadd.f32 0.0, %v8317
        %v8319 = vpop.f32.mrb[0].mxu0
        %v8320 = vpop.f32.mrb[0].mxu0
        %v8321 = vadd.f32 0.0, %v8320
        %v8322 = vpop.f32.mrb[0].mxu0
        %8323 = vmatprep.mubr.bf16.mxu0 0
        %8324 = vmatmul.mubr.bf16.gmra.mrb[0].mxu0 %v7139
        %v8325 = vpop.f32.mrb[0].mxu0
        %v8326 = vadd.f32 0.0, %v8325
        %v8327 = vpop.f32.mrb[0].mxu0
        %v8328 = vpop.f32.mrb[0].mxu0
        %v8329 = vadd.f32 0.0, %v8328
        %v8330 = vpop.f32.mrb[0].mxu0
        %8331 = vmatprep.mubr.bf16.mxu0 0
        %8332 = vmatmul.mubr.bf16.gmra.mrb[0].mxu0 %v7142
        %v8333 = vpop.f32.mrb[0].mxu0
        %v8334 = vadd.f32 0.0, %v8333
        %v8335 = vpop.f32.mrb[0].mxu0
        %v8336 = vpop.f32.mrb[0].mxu0
        %v8337 = vadd.f32 0.0, %v8336
        %v8338 = vpop.f32.mrb[0].mxu0
        %8339 = vmatprep.mubr.bf16.mxu0 0
        %8340 = vmatmul.mubr.bf16.gmra.mrb[0].mxu0 %v7145
        %v8341 = vpop.f32.mrb[0].mxu0
        %v8342 = vadd.f32 0.0, %v8341
        %v8343 = vpop.f32.mrb[0].mxu0
        %v8344 = vpop.f32.mrb[0].mxu0
        %v8345 = vadd.f32 0.0, %v8344
        %v8346 = vpop.f32.mrb[0].mxu0
        %8347 = vmatprep.mubr.bf16.mxu0 0
        %8348 = vmatmul.mubr.bf16.gmra.mrb[0].mxu0 %v7148
        %v8349 = vpop.f32.mrb[0].mxu0
        %v8350 = vadd.f32 0.0, %v8349
        %v8351 = vpop.f32.mrb[0].mxu0
        %v8352 = vpop.f32.mrb[0].mxu0
        %v8353 = vadd.f32 0.0, %v8352
        %v8354 = vpop.f32.mrb[0].mxu0
        %8355 = vmatprep.mubr.bf16.mxu0 0
        %8356 = vmatmul.mubr.bf16.gmra.mrb[0].mxu0 %v7151
        %v8357 = vpop.f32.mrb[0].mxu0
        %v8358 = vadd.f32 0.0, %v8357
        %v8359 = vpop.f32.mrb[0].mxu0
        %v8360 = vpop.f32.mrb[0].mxu0
        %v8361 = vadd.f32 0.0, %v8360
        %v8362 = vpop.f32.mrb[0].mxu0
        %8363 = vmatprep.mubr.bf16.mxu0 0
        %8364 = vmatmul.mubr.bf16.gmra.mrb[0].mxu0 %v7154
        %v8365 = vpop.f32.mrb[0].mxu0
        %v8366 = vadd.f32 0.0, %v8365
        %v8367 = vpop.f32.mrb[0].mxu0
        %v8368 = vpop.f32.mrb[0].mxu0
        %v8369 = vadd.f32 0.0, %v8368
        %v8370 = vpop.f32.mrb[0].mxu0
        %8371 = vmatprep.mubr.bf16.mxu0 0
        %8372 = vmatmul.mubr.bf16.gmra.mrb[0].mxu0 %v7157
        %v8373 = vpop.f32.mrb[0].mxu0
        %v8374 = vadd.f32 0.0, %v8373
        %v8375 = vpop.f32.mrb[0].mxu0
        %v8376 = vpop.f32.mrb[0].mxu0
        %v8377 = vadd.f32 0.0, %v8376
        %v8378 = vpop.f32.mrb[0].mxu0
        %8379 = vmatprep.mubr.bf16.mxu0 0
        %8380 = vmatmul.mubr.bf16.gmra.mrb[0].mxu0 %v7160
        %v8381 = vpop.f32.mrb[0].mxu0
        %v8382 = vadd.f32 0.0, %v8381
        %v8383 = vpop.f32.mrb[0].mxu0
        %v8384 = vpop.f32.mrb[0].mxu0
        %v8385 = vadd.f32 0.0, %v8384
        %v8386 = vpop.f32.mrb[0].mxu0
        %8387 = vmatprep.mubr.bf16.mxu0 0
        %8388 = vmatmul.mubr.bf16.gmra.mrb[0].mxu0 %v7163
        %v8389 = vpop.f32.mrb[0].mxu0
        %v8390 = vadd.f32 0.0, %v8389
        %v8391 = vpop.f32.mrb[0].mxu0
        %v8392 = vpop.f32.mrb[0].mxu0
        %v8393 = vadd.f32 0.0, %v8392
        %v8394 = vpop.f32.mrb[0].mxu0
        %8395 = vmatprep.mubr.bf16.mxu0 0
        %8396 = vmatmul.mubr.bf16.gmra.mrb[0].mxu0 %v7166
        %v8397 = vpop.f32.mrb[0].mxu0
        %v8398 = vadd.f32 0.0, %v8397
        %v8399 = vpop.f32.mrb[0].mxu0
        %v8400 = vpop.f32.mrb[0].mxu0
        %v8401 = vadd.f32 0.0, %v8400
        %v8402 = vpop.f32.mrb[0].mxu0
        %8403 = vmatprep.mubr.bf16.mxu0 0
        %8404 = vmatmul.mubr.bf16.gmra.mrb[0].mxu0 %v7169
        %v8405 = vpop.f32.mrb[0].mxu0
        %v8406 = vadd.f32 0.0, %v8405
        %v8407 = vpop.f32.mrb[0].mxu0
        %v8408 = vpop.f32.mrb[0].mxu0
        %v8409 = vadd.f32 0.0, %v8408
        %v8410 = vpop.f32.mrb[0].mxu0
        %8411 = vmatprep.mubr.bf16.mxu0 0
        %8412 = vmatmul.mubr.bf16.gmra.mrb[0].mxu0 %v7172
        %v8413 = vpop.f32.mrb[0].mxu0
        %v8414 = vadd.f32 0.0, %v8413
        %v8415 = vpop.f32.mrb[0].mxu0
        %v8416 = vpop.f32.mrb[0].mxu0
        %v8417 = vadd.f32 0.0, %v8416
        %v8418 = vpop.f32.mrb[0].mxu0
        %8419 = vmatprep.mubr.bf16.mxu0 0
        %8420 = vmatmul.mubr.bf16.gmra.mrb[0].mxu0 %v7175
        %v8421 = vpop.f32.mrb[0].mxu0
        %v8422 = vadd.f32 0.0, %v8421
        %v8423 = vpop.f32.mrb[0].mxu0
        %v8424 = vpop.f32.mrb[0].mxu0
        %v8425 = vadd.f32 0.0, %v8424
        %v8426 = vpop.f32.mrb[0].mxu0
        %8427 = vmatprep.mubr.bf16.mxu0 0
        %8428 = vmatmul.mubr.bf16.gmra.mrb[0].mxu0 %v7178
        %v8429 = vpop.f32.mrb[0].mxu0
        %v8430 = vadd.f32 0.0, %v8429
        %v8431 = vpop.f32.mrb[0].mxu0
        %v8432 = vpop.f32.mrb[0].mxu0
        %v8433 = vadd.f32 0.0, %v8432
        %v8434 = vpop.f32.mrb[0].mxu0
        %8435 = vdwg.mxu0
        %v8436 = vrot.slane %v8310, 7
        %v8437 = vrot.slane %v8313, 7
        %v8438 = vrot.slane %v8318, 7
        %v8439 = vrot.slane %v8321, 7
        %v8440 = vrot.slane %v8326, 7
        %v8441 = vrot.slane %v8329, 7
        %v8442 = vrot.slane %v8334, 7
        %v8443 = vrot.slane %v8337, 7
        %v8444 = vrot.slane %v8342, 7
        %v8445 = vrot.slane %v8345, 7
        %v8446 = vrot.slane %v8350, 7
        %v8447 = vrot.slane %v8353, 7
        %v8448 = vrot.slane %v8358, 7
        %v8449 = vrot.slane %v8361, 7
        %v8450 = vrot.slane %v8366, 7
        %v8451 = vrot.slane %v8369, 7
        %v8452 = vrot.slane %v8374, 7
        %v8453 = vrot.slane %v8377, 7
        %v8454 = vrot.slane %v8382, 7
        %v8455 = vrot.slane %v8385, 7
        %v8456 = vrot.slane %v8390, 7
        %v8457 = vrot.slane %v8393, 7
        %v8458 = vrot.slane %v8398, 7
        %v8459 = vrot.slane %v8401, 7
        %v8460 = vrot.slane %v8406, 7
        %v8461 = vrot.slane %v8409, 7
        %v8462 = vrot.slane %v8414, 7
        %v8463 = vrot.slane %v8417, 7
        %v8464 = vrot.slane %v8422, 7
        %v8465 = vrot.slane %v8425, 7
        %v8466 = vrot.slane %v8430, 7
        %v8467 = vrot.slane %v8433, 7
        %v8468 = vsel %vm1564, %v8466, %v8467
        %v8469 = vsel %vm1564, %v8465, %v8466
        %v8470 = vsel %vm1564, %v8464, %v8465
        %v8471 = vsel %vm1564, %v8463, %v8464
        %v8472 = vsel %vm1564, %v8462, %v8463
        %v8473 = vsel %vm1564, %v8461, %v8462
        %v8474 = vsel %vm1564, %v8460, %v8461
        %v8475 = vsel %vm1564, %v8459, %v8460
        %v8476 = vsel %vm1564, %v8458, %v8459
        %v8477 = vsel %vm1564, %v8457, %v8458
        %v8478 = vsel %vm1564, %v8456, %v8457
        %v8479 = vsel %vm1564, %v8455, %v8456
        %v8480 = vsel %vm1564, %v8454, %v8455
        %v8481 = vsel %vm1564, %v8453, %v8454
        %v8482 = vsel %vm1564, %v8452, %v8453
        %v8483 = vsel %vm1564, %v8451, %v8452
        %v8484 = vsel %vm1564, %v8450, %v8451
        %v8485 = vsel %vm1564, %v8449, %v8450
        %v8486 = vsel %vm1564, %v8448, %v8449
        %v8487 = vsel %vm1564, %v8447, %v8448
        %v8488 = vsel %vm1564, %v8446, %v8447
        %v8489 = vsel %vm1564, %v8445, %v8446
        %v8490 = vsel %vm1564, %v8444, %v8445
        %v8491 = vsel %vm1564, %v8443, %v8444
        %v8492 = vsel %vm1564, %v8442, %v8443
        %v8493 = vsel %vm1564, %v8441, %v8442
        %v8494 = vsel %vm1564, %v8440, %v8441
        %v8495 = vsel %vm1564, %v8439, %v8440
        %v8496 = vsel %vm1564, %v8438, %v8439
        %v8497 = vsel %vm1564, %v8437, %v8438
        %v8498 = vsel %vm1564, %v8436, %v8437
        %v8499 = vsel %vm1564, %v8467, %v8436
        %v8500 = vsel %vm2724, %v8499, 0.0
        %v8501 = vsel %vm2725, %v8498, 0.0
        %v8502 = vsel %vm2726, %v8497, 0.0
        %v8503 = vsel %vm2727, %v8496, 0.0
        %v8504 = vsel %vm2728, %v8495, 0.0
        %v8505 = vsel %vm2729, %v8494, 0.0
        %v8506 = vsel %vm2730, %v8493, 0.0
        %v8507 = vsel %vm2731, %v8492, 0.0
        %v8508 = vsel %vm2732, %v8491, 0.0
        %v8509 = vsel %vm2733, %v8490, 0.0
        %v8510 = vsel %vm2734, %v8489, 0.0
        %v8511 = vsel %vm2735, %v8488, 0.0
        %v8512 = vsel %vm2736, %v8487, 0.0
        %v8513 = vsel %vm2737, %v8486, 0.0
        %v8514 = vsel %vm2738, %v8485, 0.0
        %v8515 = vsel %vm2739, %v8484, 0.0
        %v8516 = vsel %vm2740, %v8483, 0.0
        %v8517 = vsel %vm2741, %v8482, 0.0
        %v8518 = vsel %vm2742, %v8481, 0.0
        %v8519 = vsel %vm2743, %v8480, 0.0
        %v8520 = vsel %vm2744, %v8479, 0.0
        %v8521 = vsel %vm2745, %v8478, 0.0
        %v8522 = vsel %vm2746, %v8477, 0.0
        %v8523 = vsel %vm2747, %v8476, 0.0
        %v8524 = vsel %vm2748, %v8475, 0.0
        %v8525 = vsel %vm2749, %v8474, 0.0
        %v8526 = vsel %vm2750, %v8473, 0.0
        %v8527 = vsel %vm2751, %v8472, 0.0
        %v8528 = vsel %vm2752, %v8471, 0.0
        %v8529 = vsel %vm2753, %v8470, 0.0
        %v8530 = vsel %vm2754, %v8469, 0.0
        %v8531 = vsel %vm2755, %v8468, 0.0
        %v8532 = vadd.f32 %v8210, %v8500
        %v8533 = vadd.f32 %v8211, %v8501
        %v8534 = vadd.f32 %v8212, %v8502
        %v8535 = vadd.f32 %v8213, %v8503
        %v8536 = vadd.f32 %v8214, %v8504
        %v8537 = vadd.f32 %v8215, %v8505
        %v8538 = vadd.f32 %v8216, %v8506
        %v8539 = vadd.f32 %v8217, %v8507
        %v8540 = vadd.f32 %v8218, %v8508
        %v8541 = vadd.f32 %v8219, %v8509
        %v8542 = vadd.f32 %v8220, %v8510
        %v8543 = vadd.f32 %v8221, %v8511
        %v8544 = vadd.f32 %v8222, %v8512
        %v8545 = vadd.f32 %v8223, %v8513
        %v8546 = vadd.f32 %v8224, %v8514
        %v8547 = vadd.f32 %v8225, %v8515
        %v8548 = vadd.f32 %v8226, %v8516
        %v8549 = vadd.f32 %v8227, %v8517
        %v8550 = vadd.f32 %v8228, %v8518
        %v8551 = vadd.f32 %v8229, %v8519
        %v8552 = vadd.f32 %v8230, %v8520
        %v8553 = vadd.f32 %v8231, %v8521
        %v8554 = vadd.f32 %v8232, %v8522
        %v8555 = vadd.f32 %v8233, %v8523
        %v8556 = vadd.f32 %v8234, %v8524
        %v8557 = vadd.f32 %v8235, %v8525
        %v8558 = vadd.f32 %v8236, %v8526
        %v8559 = vadd.f32 %v8237, %v8527
        %v8560 = vadd.f32 %v8238, %v8528
        %v8561 = vadd.f32 %v8239, %v8529
        %v8562 = vadd.f32 %v8240, %v8530
        %v8563 = vadd.f32 %v8241, %v8531
        %s8564 = scalar_lea.vmem [#allocation2], 160
        %v8565 = vld [vmem:[%s8564] sm:$0xf]
        %v8566 = vld [vmem:[%s8564 + $0x4] sm:$0xf]
        %v8567 = vld [vmem:[%s8564 + $0x8] sm:$0xf]
        %v8568 = vld [vmem:[%s8564 + $0xc] sm:$0xf]
        %v8569 = vld [vmem:[%s8564 + $0x10] sm:$0xf]
        %v8570 = vld [vmem:[%s8564 + $0x14] sm:$0xf]
        %v8571 = vld [vmem:[%s8564 + $0x18] sm:$0xf]
        %v8572 = vld [vmem:[%s8564 + $0x1c] sm:$0xf]
        %v8581 = vunpack.c.l.b16 %v8565
        %v8582 = vunpack.c.l.b16 %v8566
        %v8583 = vunpack.c.l.b16 %v8567
        %v8584 = vunpack.c.l.b16 %v8568
        %v8585 = vunpack.c.l.b16 %v8569
        %v8586 = vunpack.c.l.b16 %v8570
        %v8587 = vunpack.c.l.b16 %v8571
        %v8588 = vunpack.c.l.b16 %v8572
        %v8589 = vpack.c.b16 %v8582, %v8581
        %v8590 = vpack.c.b16 %v8584, %v8583
        %v8591 = vpack.c.b16 %v8586, %v8585
        %v8592 = vpack.c.b16 %v8588, %v8587
        %8597 = vmatprep.subr.bf16.mxu0 0
        %8598 = vmatpush1.bf16.msra.mxu0 %v8589
        %8599 = vmatprep.subr.bf16.mxu0 0
        %8600 = vmatpush1.bf16.msra.mxu0 %v8590
        %8601 = vmatprep.subr.bf16.mxu0 0
        %8602 = vmatpush1.bf16.msra.mxu0 %v8591
        %8603 = vmatprep.subr.bf16.mxu0 0
        %8604 = vmatpush1.bf16.msra.mxu0 %v8592
        %8605 = vmatprep.subr.bf16.mxu0 0
        %8606 = vmatpush1.bf16.msra.mxu0 0
        %8607 = vmatprep.subr.bf16.mxu0 0
        %8608 = vmatpush1.bf16.msra.mxu0 0
        %8609 = vmatprep.subr.bf16.mxu0 0
        %8610 = vmatpush1.bf16.msra.mxu0 0
        %8611 = vmatprep.subr.bf16.mxu0 0
        %8612 = vmatpush1.bf16.msra.mxu0 0
        %8613 = vmatprep.subr.bf16.mxu0 0
        %8614 = vmatpush1.bf16.msra.mxu0 0
        %8615 = vmatprep.subr.bf16.mxu0 0
        %8616 = vmatpush1.bf16.msra.mxu0 0
        %8617 = vmatprep.subr.bf16.mxu0 0
        %8618 = vmatpush1.bf16.msra.mxu0 0
        %8619 = vmatprep.subr.bf16.mxu0 0
        %8620 = vmatpush1.bf16.msra.mxu0 0
        %8621 = vmatprep.subr.bf16.mxu0 0
        %8622 = vmatpush1.bf16.msra.mxu0 0
        %8623 = vmatprep.subr.bf16.mxu0 0
        %8624 = vmatpush1.bf16.msra.mxu0 0
        %8625 = vmatprep.subr.bf16.mxu0 0
        %8626 = vmatpush1.bf16.msra.mxu0 0
        %8627 = vmatprep.subr.bf16.mxu0 0
        %8628 = vmatpush1.bf16.msra.mxu0 0
        %8629 = vmatprep.mubr.bf16.mxu0 0
        %8630 = vmatmul.mubr.bf16.gmra.mrb[0].mxu0 %v7133
        %v8631 = vpop.f32.mrb[0].mxu0
        %v8632 = vadd.f32 0.0, %v8631
        %v8633 = vpop.f32.mrb[0].mxu0
        %v8634 = vpop.f32.mrb[0].mxu0
        %v8635 = vadd.f32 0.0, %v8634
        %v8636 = vpop.f32.mrb[0].mxu0
        %8637 = vmatprep.mubr.bf16.mxu0 0
        %8638 = vmatmul.mubr.bf16.gmra.mrb[0].mxu0 %v7136
        %v8639 = vpop.f32.mrb[0].mxu0
        %v8640 = vadd.f32 0.0, %v8639
        %v8641 = vpop.f32.mrb[0].mxu0
        %v8642 = vpop.f32.mrb[0].mxu0
        %v8643 = vadd.f32 0.0, %v8642
        %v8644 = vpop.f32.mrb[0].mxu0
        %8645 = vmatprep.mubr.bf16.mxu0 0
        %8646 = vmatmul.mubr.bf16.gmra.mrb[0].mxu0 %v7139
        %v8647 = vpop.f32.mrb[0].mxu0
        %v8648 = vadd.f32 0.0, %v8647
        %v8649 = vpop.f32.mrb[0].mxu0
        %v8650 = vpop.f32.mrb[0].mxu0
        %v8651 = vadd.f32 0.0, %v8650
        %v8652 = vpop.f32.mrb[0].mxu0
        %8653 = vmatprep.mubr.bf16.mxu0 0
        %8654 = vmatmul.mubr.bf16.gmra.mrb[0].mxu0 %v7142
        %v8655 = vpop.f32.mrb[0].mxu0
        %v8656 = vadd.f32 0.0, %v8655
        %v8657 = vpop.f32.mrb[0].mxu0
        %v8658 = vpop.f32.mrb[0].mxu0
        %v8659 = vadd.f32 0.0, %v8658
        %v8660 = vpop.f32.mrb[0].mxu0
        %8661 = vmatprep.mubr.bf16.mxu0 0
        %8662 = vmatmul.mubr.bf16.gmra.mrb[0].mxu0 %v7145
        %v8663 = vpop.f32.mrb[0].mxu0
        %v8664 = vadd.f32 0.0, %v8663
        %v8665 = vpop.f32.mrb[0].mxu0
        %v8666 = vpop.f32.mrb[0].mxu0
        %v8667 = vadd.f32 0.0, %v8666
        %v8668 = vpop.f32.mrb[0].mxu0
        %8669 = vmatprep.mubr.bf16.mxu0 0
        %8670 = vmatmul.mubr.bf16.gmra.mrb[0].mxu0 %v7148
        %v8671 = vpop.f32.mrb[0].mxu0
        %v8672 = vadd.f32 0.0, %v8671
        %v8673 = vpop.f32.mrb[0].mxu0
        %v8674 = vpop.f32.mrb[0].mxu0
        %v8675 = vadd.f32 0.0, %v8674
        %v8676 = vpop.f32.mrb[0].mxu0
        %8677 = vmatprep.mubr.bf16.mxu0 0
        %8678 = vmatmul.mubr.bf16.gmra.mrb[0].mxu0 %v7151
        %v8679 = vpop.f32.mrb[0].mxu0
        %v8680 = vadd.f32 0.0, %v8679
        %v8681 = vpop.f32.mrb[0].mxu0
        %v8682 = vpop.f32.mrb[0].mxu0
        %v8683 = vadd.f32 0.0, %v8682
        %v8684 = vpop.f32.mrb[0].mxu0
        %8685 = vmatprep.mubr.bf16.mxu0 0
        %8686 = vmatmul.mubr.bf16.gmra.mrb[0].mxu0 %v7154
        %v8687 = vpop.f32.mrb[0].mxu0
        %v8688 = vadd.f32 0.0, %v8687
        %v8689 = vpop.f32.mrb[0].mxu0
        %v8690 = vpop.f32.mrb[0].mxu0
        %v8691 = vadd.f32 0.0, %v8690
        %v8692 = vpop.f32.mrb[0].mxu0
        %8693 = vmatprep.mubr.bf16.mxu0 0
        %8694 = vmatmul.mubr.bf16.gmra.mrb[0].mxu0 %v7157
        %v8695 = vpop.f32.mrb[0].mxu0
        %v8696 = vadd.f32 0.0, %v8695
        %v8697 = vpop.f32.mrb[0].mxu0
        %v8698 = vpop.f32.mrb[0].mxu0
        %v8699 = vadd.f32 0.0, %v8698
        %v8700 = vpop.f32.mrb[0].mxu0
        %8701 = vmatprep.mubr.bf16.mxu0 0
        %8702 = vmatmul.mubr.bf16.gmra.mrb[0].mxu0 %v7160
        %v8703 = vpop.f32.mrb[0].mxu0
        %v8704 = vadd.f32 0.0, %v8703
        %v8705 = vpop.f32.mrb[0].mxu0
        %v8706 = vpop.f32.mrb[0].mxu0
        %v8707 = vadd.f32 0.0, %v8706
        %v8708 = vpop.f32.mrb[0].mxu0
        %8709 = vmatprep.mubr.bf16.mxu0 0
        %8710 = vmatmul.mubr.bf16.gmra.mrb[0].mxu0 %v7163
        %v8711 = vpop.f32.mrb[0].mxu0
        %v8712 = vadd.f32 0.0, %v8711
        %v8713 = vpop.f32.mrb[0].mxu0
        %v8714 = vpop.f32.mrb[0].mxu0
        %v8715 = vadd.f32 0.0, %v8714
        %v8716 = vpop.f32.mrb[0].mxu0
        %8717 = vmatprep.mubr.bf16.mxu0 0
        %8718 = vmatmul.mubr.bf16.gmra.mrb[0].mxu0 %v7166
        %v8719 = vpop.f32.mrb[0].mxu0
        %v8720 = vadd.f32 0.0, %v8719
        %v8721 = vpop.f32.mrb[0].mxu0
        %v8722 = vpop.f32.mrb[0].mxu0
        %v8723 = vadd.f32 0.0, %v8722
        %v8724 = vpop.f32.mrb[0].mxu0
        %8725 = vmatprep.mubr.bf16.mxu0 0
        %8726 = vmatmul.mubr.bf16.gmra.mrb[0].mxu0 %v7169
        %v8727 = vpop.f32.mrb[0].mxu0
        %v8728 = vadd.f32 0.0, %v8727
        %v8729 = vpop.f32.mrb[0].mxu0
        %v8730 = vpop.f32.mrb[0].mxu0
        %v8731 = vadd.f32 0.0, %v8730
        %v8732 = vpop.f32.mrb[0].mxu0
        %8733 = vmatprep.mubr.bf16.mxu0 0
        %8734 = vmatmul.mubr.bf16.gmra.mrb[0].mxu0 %v7172
        %v8735 = vpop.f32.mrb[0].mxu0
        %v8736 = vadd.f32 0.0, %v8735
        %v8737 = vpop.f32.mrb[0].mxu0
        %v8738 = vpop.f32.mrb[0].mxu0
        %v8739 = vadd.f32 0.0, %v8738
        %v8740 = vpop.f32.mrb[0].mxu0
        %8741 = vmatprep.mubr.bf16.mxu0 0
        %8742 = vmatmul.mubr.bf16.gmra.mrb[0].mxu0 %v7175
        %v8743 = vpop.f32.mrb[0].mxu0
        %v8744 = vadd.f32 0.0, %v8743
        %v8745 = vpop.f32.mrb[0].mxu0
        %v8746 = vpop.f32.mrb[0].mxu0
        %v8747 = vadd.f32 0.0, %v8746
        %v8748 = vpop.f32.mrb[0].mxu0
        %8749 = vmatprep.mubr.bf16.mxu0 0
        %8750 = vmatmul.mubr.bf16.gmra.mrb[0].mxu0 %v7178
        %v8751 = vpop.f32.mrb[0].mxu0
        %v8752 = vadd.f32 0.0, %v8751
        %v8753 = vpop.f32.mrb[0].mxu0
        %v8754 = vpop.f32.mrb[0].mxu0
        %v8755 = vadd.f32 0.0, %v8754
        %v8756 = vpop.f32.mrb[0].mxu0
        %8757 = vdwg.mxu0
        %v8758 = vrot.slane %v8632, 1
        %v8759 = vrot.slane %v8635, 1
        %v8760 = vrot.slane %v8640, 1
        %v8761 = vrot.slane %v8643, 1
        %v8762 = vrot.slane %v8648, 1
        %v8763 = vrot.slane %v8651, 1
        %v8764 = vrot.slane %v8656, 1
        %v8765 = vrot.slane %v8659, 1
        %v8766 = vrot.slane %v8664, 1
        %v8767 = vrot.slane %v8667, 1
        %v8768 = vrot.slane %v8672, 1
        %v8769 = vrot.slane %v8675, 1
        %v8770 = vrot.slane %v8680, 1
        %v8771 = vrot.slane %v8683, 1
        %v8772 = vrot.slane %v8688, 1
        %v8773 = vrot.slane %v8691, 1
        %v8774 = vrot.slane %v8696, 1
        %v8775 = vrot.slane %v8699, 1
        %v8776 = vrot.slane %v8704, 1
        %v8777 = vrot.slane %v8707, 1
        %v8778 = vrot.slane %v8712, 1
        %v8779 = vrot.slane %v8715, 1
        %v8780 = vrot.slane %v8720, 1
        %v8781 = vrot.slane %v8723, 1
        %v8782 = vrot.slane %v8728, 1
        %v8783 = vrot.slane %v8731, 1
        %v8784 = vrot.slane %v8736, 1
        %v8785 = vrot.slane %v8739, 1
        %v8786 = vrot.slane %v8744, 1
        %v8787 = vrot.slane %v8747, 1
        %v8788 = vrot.slane %v8752, 1
        %v8789 = vrot.slane %v8755, 1
        %v8790 = vsel %vm2273, %v8788, %v8789
        %v8791 = vsel %vm2273, %v8787, %v8788
        %v8792 = vsel %vm2273, %v8786, %v8787
        %v8793 = vsel %vm2273, %v8785, %v8786
        %v8794 = vsel %vm2273, %v8784, %v8785
        %v8795 = vsel %vm2273, %v8783, %v8784
        %v8796 = vsel %vm2273, %v8782, %v8783
        %v8797 = vsel %vm2273, %v8781, %v8782
        %v8798 = vsel %vm2273, %v8780, %v8781
        %v8799 = vsel %vm2273, %v8779, %v8780
        %v8800 = vsel %vm2273, %v8778, %v8779
        %v8801 = vsel %vm2273, %v8777, %v8778
        %v8802 = vsel %vm2273, %v8776, %v8777
        %v8803 = vsel %vm2273, %v8775, %v8776
        %v8804 = vsel %vm2273, %v8774, %v8775
        %v8805 = vsel %vm2273, %v8773, %v8774
        %v8806 = vsel %vm2273, %v8772, %v8773
        %v8807 = vsel %vm2273, %v8771, %v8772
        %v8808 = vsel %vm2273, %v8770, %v8771
        %v8809 = vsel %vm2273, %v8769, %v8770
        %v8810 = vsel %vm2273, %v8768, %v8769
        %v8811 = vsel %vm2273, %v8767, %v8768
        %v8812 = vsel %vm2273, %v8766, %v8767
        %v8813 = vsel %vm2273, %v8765, %v8766
        %v8814 = vsel %vm2273, %v8764, %v8765
        %v8815 = vsel %vm2273, %v8763, %v8764
        %v8816 = vsel %vm2273, %v8762, %v8763
        %v8817 = vsel %vm2273, %v8761, %v8762
        %v8818 = vsel %vm2273, %v8760, %v8761
        %v8819 = vsel %vm2273, %v8759, %v8760
        %v8820 = vsel %vm2273, %v8758, %v8759
        %v8821 = vsel %vm2273, %v8789, %v8758
        %v8822 = vsel %vm3110, %v8820, 0.0
        %v8823 = vsel %vm3111, %v8819, 0.0
        %v8824 = vsel %vm3112, %v8818, 0.0
        %v8825 = vsel %vm3113, %v8817, 0.0
        %v8826 = vsel %vm3114, %v8816, 0.0
        %v8827 = vsel %vm3115, %v8815, 0.0
        %v8828 = vsel %vm3116, %v8814, 0.0
        %v8829 = vsel %vm3117, %v8813, 0.0
        %v8830 = vsel %vm3118, %v8812, 0.0
        %v8831 = vsel %vm3119, %v8811, 0.0
        %v8832 = vsel %vm3120, %v8810, 0.0
        %v8833 = vsel %vm3121, %v8809, 0.0
        %v8834 = vsel %vm3122, %v8808, 0.0
        %v8835 = vsel %vm3123, %v8807, 0.0
        %v8836 = vsel %vm3124, %v8806, 0.0
        %v8837 = vsel %vm3125, %v8805, 0.0
        %v8838 = vsel %vm3126, %v8804, 0.0
        %v8839 = vsel %vm3127, %v8803, 0.0
        %v8840 = vsel %vm3128, %v8802, 0.0
        %v8841 = vsel %vm3129, %v8801, 0.0
        %v8842 = vsel %vm3130, %v8800, 0.0
        %v8843 = vsel %vm3131, %v8799, 0.0
        %v8844 = vsel %vm3132, %v8798, 0.0
        %v8845 = vsel %vm3133, %v8797, 0.0
        %v8846 = vsel %vm3134, %v8796, 0.0
        %v8847 = vsel %vm3135, %v8795, 0.0
        %v8848 = vsel %vm3136, %v8794, 0.0
        %v8849 = vsel %vm3137, %v8793, 0.0
        %v8850 = vsel %vm3138, %v8792, 0.0
        %v8851 = vsel %vm3139, %v8791, 0.0
        %v8852 = vsel %vm3140, %v8790, 0.0
        %v8853 = vsel %vm3141, %v8821, 0.0
        %v8854 = vadd.f32 %v8532, %v8822
        %v8855 = vadd.f32 %v8533, %v8823
        %v8856 = vadd.f32 %v8534, %v8824
        %v8857 = vadd.f32 %v8535, %v8825
        %v8858 = vadd.f32 %v8536, %v8826
        %v8859 = vadd.f32 %v8537, %v8827
        %v8860 = vadd.f32 %v8538, %v8828
        %v8861 = vadd.f32 %v8539, %v8829
        %v8862 = vadd.f32 %v8540, %v8830
        %v8863 = vadd.f32 %v8541, %v8831
        %v8864 = vadd.f32 %v8542, %v8832
        %v8865 = vadd.f32 %v8543, %v8833
        %v8866 = vadd.f32 %v8544, %v8834
        %v8867 = vadd.f32 %v8545, %v8835
        %v8868 = vadd.f32 %v8546, %v8836
        %v8869 = vadd.f32 %v8547, %v8837
        %v8870 = vadd.f32 %v8548, %v8838
        %v8871 = vadd.f32 %v8549, %v8839
        %v8872 = vadd.f32 %v8550, %v8840
        %v8873 = vadd.f32 %v8551, %v8841
        %v8874 = vadd.f32 %v8552, %v8842
        %v8875 = vadd.f32 %v8553, %v8843
        %v8876 = vadd.f32 %v8554, %v8844
        %v8877 = vadd.f32 %v8555, %v8845
        %v8878 = vadd.f32 %v8556, %v8846
        %v8879 = vadd.f32 %v8557, %v8847
        %v8880 = vadd.f32 %v8558, %v8848
        %v8881 = vadd.f32 %v8559, %v8849
        %v8882 = vadd.f32 %v8560, %v8850
        %v8883 = vadd.f32 %v8561, %v8851
        %v8884 = vadd.f32 %v8562, %v8852
        %v8885 = vadd.f32 %v8563, %v8853
        %s8886 = scalar_lea.vmem [#allocation2], 192
        %v8887 = vld [vmem:[%s8886] sm:$0xf]
        %v8888 = vld [vmem:[%s8886 + $0x4] sm:$0xf]
        %v8889 = vld [vmem:[%s8886 + $0x8] sm:$0xf]
        %v8890 = vld [vmem:[%s8886 + $0xc] sm:$0xf]
        %v8891 = vld [vmem:[%s8886 + $0x10] sm:$0xf]
        %v8892 = vld [vmem:[%s8886 + $0x14] sm:$0xf]
        %v8893 = vld [vmem:[%s8886 + $0x18] sm:$0xf]
        %v8894 = vld [vmem:[%s8886 + $0x1c] sm:$0xf]
        %v8903 = vunpack.c.l.b16 %v8887
        %v8904 = vunpack.c.l.b16 %v8888
        %v8905 = vunpack.c.l.b16 %v8889
        %v8906 = vunpack.c.l.b16 %v8890
        %v8907 = vunpack.c.l.b16 %v8891
        %v8908 = vunpack.c.l.b16 %v8892
        %v8909 = vunpack.c.l.b16 %v8893
        %v8910 = vunpack.c.l.b16 %v8894
        %v8911 = vpack.c.b16 %v8904, %v8903
        %v8912 = vpack.c.b16 %v8906, %v8905
        %v8913 = vpack.c.b16 %v8908, %v8907
        %v8914 = vpack.c.b16 %v8910, %v8909
        %8919 = vmatprep.subr.bf16.mxu0 0
        %8920 = vmatpush1.bf16.msra.mxu0 %v8911
        %8921 = vmatprep.subr.bf16.mxu0 0
        %8922 = vmatpush1.bf16.msra.mxu0 %v8912
        %8923 = vmatprep.subr.bf16.mxu0 0
        %8924 = vmatpush1.bf16.msra.mxu0 %v8913
        %8925 = vmatprep.subr.bf16.mxu0 0
        %8926 = vmatpush1.bf16.msra.mxu0 %v8914
        %8927 = vmatprep.subr.bf16.mxu0 0
        %8928 = vmatpush1.bf16.msra.mxu0 0
        %8929 = vmatprep.subr.bf16.mxu0 0
        %8930 = vmatpush1.bf16.msra.mxu0 0
        %8931 = vmatprep.subr.bf16.mxu0 0
        %8932 = vmatpush1.bf16.msra.mxu0 0
        %8933 = vmatprep.subr.bf16.mxu0 0
        %8934 = vmatpush1.bf16.msra.mxu0 0
        %8935 = vmatprep.subr.bf16.mxu0 0
        %8936 = vmatpush1.bf16.msra.mxu0 0
        %8937 = vmatprep.subr.bf16.mxu0 0
        %8938 = vmatpush1.bf16.msra.mxu0 0
        %8939 = vmatprep.subr.bf16.mxu0 0
        %8940 = vmatpush1.bf16.msra.mxu0 0
        %8941 = vmatprep.subr.bf16.mxu0 0
        %8942 = vmatpush1.bf16.msra.mxu0 0
        %8943 = vmatprep.subr.bf16.mxu0 0
        %8944 = vmatpush1.bf16.msra.mxu0 0
        %8945 = vmatprep.subr.bf16.mxu0 0
        %8946 = vmatpush1.bf16.msra.mxu0 0
        %8947 = vmatprep.subr.bf16.mxu0 0
        %8948 = vmatpush1.bf16.msra.mxu0 0
        %8949 = vmatprep.subr.bf16.mxu0 0
        %8950 = vmatpush1.bf16.msra.mxu0 0
        %8951 = vmatprep.mubr.bf16.mxu0 0
        %8952 = vmatmul.mubr.bf16.gmra.mrb[0].mxu0 %v7133
        %v8953 = vpop.f32.mrb[0].mxu0
        %v8954 = vadd.f32 0.0, %v8953
        %v8955 = vpop.f32.mrb[0].mxu0
        %v8956 = vpop.f32.mrb[0].mxu0
        %v8957 = vadd.f32 0.0, %v8956
        %v8958 = vpop.f32.mrb[0].mxu0
        %8959 = vmatprep.mubr.bf16.mxu0 0
        %8960 = vmatmul.mubr.bf16.gmra.mrb[0].mxu0 %v7136
        %v8961 = vpop.f32.mrb[0].mxu0
        %v8962 = vadd.f32 0.0, %v8961
        %v8963 = vpop.f32.mrb[0].mxu0
        %v8964 = vpop.f32.mrb[0].mxu0
        %v8965 = vadd.f32 0.0, %v8964
        %v8966 = vpop.f32.mrb[0].mxu0
        %8967 = vmatprep.mubr.bf16.mxu0 0
        %8968 = vmatmul.mubr.bf16.gmra.mrb[0].mxu0 %v7139
        %v8969 = vpop.f32.mrb[0].mxu0
        %v8970 = vadd.f32 0.0, %v8969
        %v8971 = vpop.f32.mrb[0].mxu0
        %v8972 = vpop.f32.mrb[0].mxu0
        %v8973 = vadd.f32 0.0, %v8972
        %v8974 = vpop.f32.mrb[0].mxu0
        %8975 = vmatprep.mubr.bf16.mxu0 0
        %8976 = vmatmul.mubr.bf16.gmra.mrb[0].mxu0 %v7142
        %v8977 = vpop.f32.mrb[0].mxu0
        %v8978 = vadd.f32 0.0, %v8977
        %v8979 = vpop.f32.mrb[0].mxu0
        %v8980 = vpop.f32.mrb[0].mxu0
        %v8981 = vadd.f32 0.0, %v8980
        %v8982 = vpop.f32.mrb[0].mxu0
        %8983 = vmatprep.mubr.bf16.mxu0 0
        %8984 = vmatmul.mubr.bf16.gmra.mrb[0].mxu0 %v7145
        %v8985 = vpop.f32.mrb[0].mxu0
        %v8986 = vadd.f32 0.0, %v8985
        %v8987 = vpop.f32.mrb[0].mxu0
        %v8988 = vpop.f32.mrb[0].mxu0
        %v8989 = vadd.f32 0.0, %v8988
        %v8990 = vpop.f32.mrb[0].mxu0
        %8991 = vmatprep.mubr.bf16.mxu0 0
        %8992 = vmatmul.mubr.bf16.gmra.mrb[0].mxu0 %v7148
        %v8993 = vpop.f32.mrb[0].mxu0
        %v8994 = vadd.f32 0.0, %v8993
        %v8995 = vpop.f32.mrb[0].mxu0
        %v8996 = vpop.f32.mrb[0].mxu0
        %v8997 = vadd.f32 0.0, %v8996
        %v8998 = vpop.f32.mrb[0].mxu0
        %8999 = vmatprep.mubr.bf16.mxu0 0
        %9000 = vmatmul.mubr.bf16.gmra.mrb[0].mxu0 %v7151
        %v9001 = vpop.f32.mrb[0].mxu0
        %v9002 = vadd.f32 0.0, %v9001
        %v9003 = vpop.f32.mrb[0].mxu0
        %v9004 = vpop.f32.mrb[0].mxu0
        %v9005 = vadd.f32 0.0, %v9004
        %v9006 = vpop.f32.mrb[0].mxu0
        %9007 = vmatprep.mubr.bf16.mxu0 0
        %9008 = vmatmul.mubr.bf16.gmra.mrb[0].mxu0 %v7154
        %v9009 = vpop.f32.mrb[0].mxu0
        %v9010 = vadd.f32 0.0, %v9009
        %v9011 = vpop.f32.mrb[0].mxu0
        %v9012 = vpop.f32.mrb[0].mxu0
        %v9013 = vadd.f32 0.0, %v9012
        %v9014 = vpop.f32.mrb[0].mxu0
        %9015 = vmatprep.mubr.bf16.mxu0 0
        %9016 = vmatmul.mubr.bf16.gmra.mrb[0].mxu0 %v7157
        %v9017 = vpop.f32.mrb[0].mxu0
        %v9018 = vadd.f32 0.0, %v9017
        %v9019 = vpop.f32.mrb[0].mxu0
        %v9020 = vpop.f32.mrb[0].mxu0
        %v9021 = vadd.f32 0.0, %v9020
        %v9022 = vpop.f32.mrb[0].mxu0
        %9023 = vmatprep.mubr.bf16.mxu0 0
        %9024 = vmatmul.mubr.bf16.gmra.mrb[0].mxu0 %v7160
        %v9025 = vpop.f32.mrb[0].mxu0
        %v9026 = vadd.f32 0.0, %v9025
        %v9027 = vpop.f32.mrb[0].mxu0
        %v9028 = vpop.f32.mrb[0].mxu0
        %v9029 = vadd.f32 0.0, %v9028
        %v9030 = vpop.f32.mrb[0].mxu0
        %9031 = vmatprep.mubr.bf16.mxu0 0
        %9032 = vmatmul.mubr.bf16.gmra.mrb[0].mxu0 %v7163
        %v9033 = vpop.f32.mrb[0].mxu0
        %v9034 = vadd.f32 0.0, %v9033
        %v9035 = vpop.f32.mrb[0].mxu0
        %v9036 = vpop.f32.mrb[0].mxu0
        %v9037 = vadd.f32 0.0, %v9036
        %v9038 = vpop.f32.mrb[0].mxu0
        %9039 = vmatprep.mubr.bf16.mxu0 0
        %9040 = vmatmul.mubr.bf16.gmra.mrb[0].mxu0 %v7166
        %v9041 = vpop.f32.mrb[0].mxu0
        %v9042 = vadd.f32 0.0, %v9041
        %v9043 = vpop.f32.mrb[0].mxu0
        %v9044 = vpop.f32.mrb[0].mxu0
        %v9045 = vadd.f32 0.0, %v9044
        %v9046 = vpop.f32.mrb[0].mxu0
        %9047 = vmatprep.mubr.bf16.mxu0 0
        %9048 = vmatmul.mubr.bf16.gmra.mrb[0].mxu0 %v7169
        %v9049 = vpop.f32.mrb[0].mxu0
        %v9050 = vadd.f32 0.0, %v9049
        %v9051 = vpop.f32.mrb[0].mxu0
        %v9052 = vpop.f32.mrb[0].mxu0
        %v9053 = vadd.f32 0.0, %v9052
        %v9054 = vpop.f32.mrb[0].mxu0
        %9055 = vmatprep.mubr.bf16.mxu0 0
        %9056 = vmatmul.mubr.bf16.gmra.mrb[0].mxu0 %v7172
        %v9057 = vpop.f32.mrb[0].mxu0
        %v9058 = vadd.f32 0.0, %v9057
        %v9059 = vpop.f32.mrb[0].mxu0
        %v9060 = vpop.f32.mrb[0].mxu0
        %v9061 = vadd.f32 0.0, %v9060
        %v9062 = vpop.f32.mrb[0].mxu0
        %9063 = vmatprep.mubr.bf16.mxu0 0
        %9064 = vmatmul.mubr.bf16.gmra.mrb[0].mxu0 %v7175
        %v9065 = vpop.f32.mrb[0].mxu0
        %v9066 = vadd.f32 0.0, %v9065
        %v9067 = vpop.f32.mrb[0].mxu0
        %v9068 = vpop.f32.mrb[0].mxu0
        %v9069 = vadd.f32 0.0, %v9068
        %v9070 = vpop.f32.mrb[0].mxu0
        %9071 = vmatprep.mubr.bf16.mxu0 0
        %9072 = vmatmul.mubr.bf16.gmra.mrb[0].mxu0 %v7178
        %v9073 = vpop.f32.mrb[0].mxu0
        %v9074 = vadd.f32 0.0, %v9073
        %v9075 = vpop.f32.mrb[0].mxu0
        %v9076 = vpop.f32.mrb[0].mxu0
        %v9077 = vadd.f32 0.0, %v9076
        %v9078 = vpop.f32.mrb[0].mxu0
        %9079 = vdwg.mxu0
        %v9080 = vrot.slane %v8954, 7
        %v9081 = vrot.slane %v8957, 7
        %v9082 = vrot.slane %v8962, 7
        %v9083 = vrot.slane %v8965, 7
        %v9084 = vrot.slane %v8970, 7
        %v9085 = vrot.slane %v8973, 7
        %v9086 = vrot.slane %v8978, 7
        %v9087 = vrot.slane %v8981, 7
        %v9088 = vrot.slane %v8986, 7
        %v9089 = vrot.slane %v8989, 7
        %v9090 = vrot.slane %v8994, 7
        %v9091 = vrot.slane %v8997, 7
        %v9092 = vrot.slane %v9002, 7
        %v9093 = vrot.slane %v9005, 7
        %v9094 = vrot.slane %v9010, 7
        %v9095 = vrot.slane %v9013, 7
        %v9096 = vrot.slane %v9018, 7
        %v9097 = vrot.slane %v9021, 7
        %v9098 = vrot.slane %v9026, 7
        %v9099 = vrot.slane %v9029, 7
        %v9100 = vrot.slane %v9034, 7
        %v9101 = vrot.slane %v9037, 7
        %v9102 = vrot.slane %v9042, 7
        %v9103 = vrot.slane %v9045, 7
        %v9104 = vrot.slane %v9050, 7
        %v9105 = vrot.slane %v9053, 7
        %v9106 = vrot.slane %v9058, 7
        %v9107 = vrot.slane %v9061, 7
        %v9108 = vrot.slane %v9066, 7
        %v9109 = vrot.slane %v9069, 7
        %v9110 = vrot.slane %v9074, 7
        %v9111 = vrot.slane %v9077, 7
        %v9112 = vsel %vm1564, %v9110, %v9111
        %v9113 = vsel %vm1564, %v9109, %v9110
        %v9114 = vsel %vm1564, %v9108, %v9109
        %v9115 = vsel %vm1564, %v9107, %v9108
        %v9116 = vsel %vm1564, %v9106, %v9107
        %v9117 = vsel %vm1564, %v9105, %v9106
        %v9118 = vsel %vm1564, %v9104, %v9105
        %v9119 = vsel %vm1564, %v9103, %v9104
        %v9120 = vsel %vm1564, %v9102, %v9103
        %v9121 = vsel %vm1564, %v9101, %v9102
        %v9122 = vsel %vm1564, %v9100, %v9101
        %v9123 = vsel %vm1564, %v9099, %v9100
        %v9124 = vsel %vm1564, %v9098, %v9099
        %v9125 = vsel %vm1564, %v9097, %v9098
        %v9126 = vsel %vm1564, %v9096, %v9097
        %v9127 = vsel %vm1564, %v9095, %v9096
        %v9128 = vsel %vm1564, %v9094, %v9095
        %v9129 = vsel %vm1564, %v9093, %v9094
        %v9130 = vsel %vm1564, %v9092, %v9093
        %v9131 = vsel %vm1564, %v9091, %v9092
        %v9132 = vsel %vm1564, %v9090, %v9091
        %v9133 = vsel %vm1564, %v9089, %v9090
        %v9134 = vsel %vm1564, %v9088, %v9089
        %v9135 = vsel %vm1564, %v9087, %v9088
        %v9136 = vsel %vm1564, %v9086, %v9087
        %v9137 = vsel %vm1564, %v9085, %v9086
        %v9138 = vsel %vm1564, %v9084, %v9085
        %v9139 = vsel %vm1564, %v9083, %v9084
        %v9140 = vsel %vm1564, %v9082, %v9083
        %v9141 = vsel %vm1564, %v9081, %v9082
        %v9142 = vsel %vm1564, %v9080, %v9081
        %v9143 = vsel %vm1564, %v9111, %v9080
        %v9144 = vsel %vm3496, %v9141, 0.0
        %v9145 = vsel %vm3497, %v9140, 0.0
        %v9146 = vsel %vm3498, %v9139, 0.0
        %v9147 = vsel %vm3499, %v9138, 0.0
        %v9148 = vsel %vm3500, %v9137, 0.0
        %v9149 = vsel %vm3501, %v9136, 0.0
        %v9150 = vsel %vm3502, %v9135, 0.0
        %v9151 = vsel %vm3503, %v9134, 0.0
        %v9152 = vsel %vm3504, %v9133, 0.0
        %v9153 = vsel %vm3505, %v9132, 0.0
        %v9154 = vsel %vm3506, %v9131, 0.0
        %v9155 = vsel %vm3507, %v9130, 0.0
        %v9156 = vsel %vm3508, %v9129, 0.0
        %v9157 = vsel %vm3509, %v9128, 0.0
        %v9158 = vsel %vm3510, %v9127, 0.0
        %v9159 = vsel %vm3511, %v9126, 0.0
        %v9160 = vsel %vm3512, %v9125, 0.0
        %v9161 = vsel %vm3513, %v9124, 0.0
        %v9162 = vsel %vm3514, %v9123, 0.0
        %v9163 = vsel %vm3515, %v9122, 0.0
        %v9164 = vsel %vm3516, %v9121, 0.0
        %v9165 = vsel %vm3517, %v9120, 0.0
        %v9166 = vsel %vm3518, %v9119, 0.0
        %v9167 = vsel %vm3519, %v9118, 0.0
        %v9168 = vsel %vm3520, %v9117, 0.0
        %v9169 = vsel %vm3521, %v9116, 0.0
        %v9170 = vsel %vm3522, %v9115, 0.0
        %v9171 = vsel %vm3523, %v9114, 0.0
        %v9172 = vsel %vm3524, %v9113, 0.0
        %v9173 = vsel %vm3525, %v9112, 0.0
        %v9174 = vsel %vm3526, %v9143, 0.0
        %v9175 = vsel %vm3527, %v9142, 0.0
        %v9176 = vadd.f32 %v8854, %v9144
        %v9177 = vadd.f32 %v8855, %v9145
        %v9178 = vadd.f32 %v8856, %v9146
        %v9179 = vadd.f32 %v8857, %v9147
        %v9180 = vadd.f32 %v8858, %v9148
        %v9181 = vadd.f32 %v8859, %v9149
        %v9182 = vadd.f32 %v8860, %v9150
        %v9183 = vadd.f32 %v8861, %v9151
        %v9184 = vadd.f32 %v8862, %v9152
        %v9185 = vadd.f32 %v8863, %v9153
        %v9186 = vadd.f32 %v8864, %v9154
        %v9187 = vadd.f32 %v8865, %v9155
        %v9188 = vadd.f32 %v8866, %v9156
        %v9189 = vadd.f32 %v8867, %v9157
        %v9190 = vadd.f32 %v8868, %v9158
        %v9191 = vadd.f32 %v8869, %v9159
        %v9192 = vadd.f32 %v8870, %v9160
        %v9193 = vadd.f32 %v8871, %v9161
        %v9194 = vadd.f32 %v8872, %v9162
        %v9195 = vadd.f32 %v8873, %v9163
        %v9196 = vadd.f32 %v8874, %v9164
        %v9197 = vadd.f32 %v8875, %v9165
        %v9198 = vadd.f32 %v8876, %v9166
        %v9199 = vadd.f32 %v8877, %v9167
        %v9200 = vadd.f32 %v8878, %v9168
        %v9201 = vadd.f32 %v8879, %v9169
        %v9202 = vadd.f32 %v8880, %v9170
        %v9203 = vadd.f32 %v8881, %v9171
        %v9204 = vadd.f32 %v8882, %v9172
        %v9205 = vadd.f32 %v8883, %v9173
        %v9206 = vadd.f32 %v8884, %v9174
        %v9207 = vadd.f32 %v8885, %v9175
        %s9208 = scalar_lea.vmem [#allocation2], 224
        %v9209 = vld [vmem:[%s9208] sm:$0xf]
        %v9210 = vld [vmem:[%s9208 + $0x4] sm:$0xf]
        %v9211 = vld [vmem:[%s9208 + $0x8] sm:$0xf]
        %v9212 = vld [vmem:[%s9208 + $0xc] sm:$0xf]
        %v9213 = vld [vmem:[%s9208 + $0x10] sm:$0xf]
        %v9214 = vld [vmem:[%s9208 + $0x14] sm:$0xf]
        %v9215 = vld [vmem:[%s9208 + $0x18] sm:$0xf]
        %v9216 = vld [vmem:[%s9208 + $0x1c] sm:$0xf]
        %v9225 = vunpack.c.l.b16 %v9209
        %v9226 = vunpack.c.l.b16 %v9210
        %v9227 = vunpack.c.l.b16 %v9211
        %v9228 = vunpack.c.l.b16 %v9212
        %v9229 = vunpack.c.l.b16 %v9213
        %v9230 = vunpack.c.l.b16 %v9214
        %v9231 = vunpack.c.l.b16 %v9215
        %v9232 = vunpack.c.l.b16 %v9216
        %v9233 = vpack.c.b16 %v9226, %v9225
        %v9234 = vpack.c.b16 %v9228, %v9227
        %v9235 = vpack.c.b16 %v9230, %v9229
        %v9236 = vpack.c.b16 %v9232, %v9231
        %9241 = vmatprep.subr.bf16.mxu0 0
        %9242 = vmatpush1.bf16.msra.mxu0 %v9233
        %9243 = vmatprep.subr.bf16.mxu0 0
        %9244 = vmatpush1.bf16.msra.mxu0 %v9234
        %9245 = vmatprep.subr.bf16.mxu0 0
        %9246 = vmatpush1.bf16.msra.mxu0 %v9235
        %9247 = vmatprep.subr.bf16.mxu0 0
        %9248 = vmatpush1.bf16.msra.mxu0 %v9236
        %9249 = vmatprep.subr.bf16.mxu0 0
        %9250 = vmatpush1.bf16.msra.mxu0 0
        %9251 = vmatprep.subr.bf16.mxu0 0
        %9252 = vmatpush1.bf16.msra.mxu0 0
        %9253 = vmatprep.subr.bf16.mxu0 0
        %9254 = vmatpush1.bf16.msra.mxu0 0
        %9255 = vmatprep.subr.bf16.mxu0 0
        %9256 = vmatpush1.bf16.msra.mxu0 0
        %9257 = vmatprep.subr.bf16.mxu0 0
        %9258 = vmatpush1.bf16.msra.mxu0 0
        %9259 = vmatprep.subr.bf16.mxu0 0
        %9260 = vmatpush1.bf16.msra.mxu0 0
        %9261 = vmatprep.subr.bf16.mxu0 0
        %9262 = vmatpush1.bf16.msra.mxu0 0
        %9263 = vmatprep.subr.bf16.mxu0 0
        %9264 = vmatpush1.bf16.msra.mxu0 0
        %9265 = vmatprep.subr.bf16.mxu0 0
        %9266 = vmatpush1.bf16.msra.mxu0 0
        %9267 = vmatprep.subr.bf16.mxu0 0
        %9268 = vmatpush1.bf16.msra.mxu0 0
        %9269 = vmatprep.subr.bf16.mxu0 0
        %9270 = vmatpush1.bf16.msra.mxu0 0
        %9271 = vmatprep.subr.bf16.mxu0 0
        %9272 = vmatpush1.bf16.msra.mxu0 0
        %9273 = vmatprep.mubr.bf16.mxu0 0
        %9274 = vmatmul.mubr.bf16.gmra.mrb[0].mxu0 %v7133
        %v9275 = vpop.f32.mrb[0].mxu0
        %v9276 = vadd.f32 0.0, %v9275
        %v9277 = vpop.f32.mrb[0].mxu0
        %v9278 = vpop.f32.mrb[0].mxu0
        %v9279 = vadd.f32 0.0, %v9278
        %v9280 = vpop.f32.mrb[0].mxu0
        %9281 = vmatprep.mubr.bf16.mxu0 0
        %9282 = vmatmul.mubr.bf16.gmra.mrb[0].mxu0 %v7136
        %v9283 = vpop.f32.mrb[0].mxu0
        %v9284 = vadd.f32 0.0, %v9283
        %v9285 = vpop.f32.mrb[0].mxu0
        %v9286 = vpop.f32.mrb[0].mxu0
        %v9287 = vadd.f32 0.0, %v9286
        %v9288 = vpop.f32.mrb[0].mxu0
        %9289 = vmatprep.mubr.bf16.mxu0 0
        %9290 = vmatmul.mubr.bf16.gmra.mrb[0].mxu0 %v7139
        %v9291 = vpop.f32.mrb[0].mxu0
        %v9292 = vadd.f32 0.0, %v9291
        %v9293 = vpop.f32.mrb[0].mxu0
        %v9294 = vpop.f32.mrb[0].mxu0
        %v9295 = vadd.f32 0.0, %v9294
        %v9296 = vpop.f32.mrb[0].mxu0
        %9297 = vmatprep.mubr.bf16.mxu0 0
        %9298 = vmatmul.mubr.bf16.gmra.mrb[0].mxu0 %v7142
        %v9299 = vpop.f32.mrb[0].mxu0
        %v9300 = vadd.f32 0.0, %v9299
        %v9301 = vpop.f32.mrb[0].mxu0
        %v9302 = vpop.f32.mrb[0].mxu0
        %v9303 = vadd.f32 0.0, %v9302
        %v9304 = vpop.f32.mrb[0].mxu0
        %9305 = vmatprep.mubr.bf16.mxu0 0
        %9306 = vmatmul.mubr.bf16.gmra.mrb[0].mxu0 %v7145
        %v9307 = vpop.f32.mrb[0].mxu0
        %v9308 = vadd.f32 0.0, %v9307
        %v9309 = vpop.f32.mrb[0].mxu0
        %v9310 = vpop.f32.mrb[0].mxu0
        %v9311 = vadd.f32 0.0, %v9310
        %v9312 = vpop.f32.mrb[0].mxu0
        %9313 = vmatprep.mubr.bf16.mxu0 0
        %9314 = vmatmul.mubr.bf16.gmra.mrb[0].mxu0 %v7148
        %v9315 = vpop.f32.mrb[0].mxu0
        %v9316 = vadd.f32 0.0, %v9315
        %v9317 = vpop.f32.mrb[0].mxu0
        %v9318 = vpop.f32.mrb[0].mxu0
        %v9319 = vadd.f32 0.0, %v9318
        %v9320 = vpop.f32.mrb[0].mxu0
        %9321 = vmatprep.mubr.bf16.mxu0 0
        %9322 = vmatmul.mubr.bf16.gmra.mrb[0].mxu0 %v7151
        %v9323 = vpop.f32.mrb[0].mxu0
        %v9324 = vadd.f32 0.0, %v9323
        %v9325 = vpop.f32.mrb[0].mxu0
        %v9326 = vpop.f32.mrb[0].mxu0
        %v9327 = vadd.f32 0.0, %v9326
        %v9328 = vpop.f32.mrb[0].mxu0
        %9329 = vmatprep.mubr.bf16.mxu0 0
        %9330 = vmatmul.mubr.bf16.gmra.mrb[0].mxu0 %v7154
        %v9331 = vpop.f32.mrb[0].mxu0
        %v9332 = vadd.f32 0.0, %v9331
        %v9333 = vpop.f32.mrb[0].mxu0
        %v9334 = vpop.f32.mrb[0].mxu0
        %v9335 = vadd.f32 0.0, %v9334
        %v9336 = vpop.f32.mrb[0].mxu0
        %9337 = vmatprep.mubr.bf16.mxu0 0
        %9338 = vmatmul.mubr.bf16.gmra.mrb[0].mxu0 %v7157
        %v9339 = vpop.f32.mrb[0].mxu0
        %v9340 = vadd.f32 0.0, %v9339
        %v9341 = vpop.f32.mrb[0].mxu0
        %v9342 = vpop.f32.mrb[0].mxu0
        %v9343 = vadd.f32 0.0, %v9342
        %v9344 = vpop.f32.mrb[0].mxu0
        %9345 = vmatprep.mubr.bf16.mxu0 0
        %9346 = vmatmul.mubr.bf16.gmra.mrb[0].mxu0 %v7160
        %v9347 = vpop.f32.mrb[0].mxu0
        %v9348 = vadd.f32 0.0, %v9347
        %v9349 = vpop.f32.mrb[0].mxu0
        %v9350 = vpop.f32.mrb[0].mxu0
        %v9351 = vadd.f32 0.0, %v9350
        %v9352 = vpop.f32.mrb[0].mxu0
        %9353 = vmatprep.mubr.bf16.mxu0 0
        %9354 = vmatmul.mubr.bf16.gmra.mrb[0].mxu0 %v7163
        %v9355 = vpop.f32.mrb[0].mxu0
        %v9356 = vadd.f32 0.0, %v9355
        %v9357 = vpop.f32.mrb[0].mxu0
        %v9358 = vpop.f32.mrb[0].mxu0
        %v9359 = vadd.f32 0.0, %v9358
        %v9360 = vpop.f32.mrb[0].mxu0
        %9361 = vmatprep.mubr.bf16.mxu0 0
        %9362 = vmatmul.mubr.bf16.gmra.mrb[0].mxu0 %v7166
        %v9363 = vpop.f32.mrb[0].mxu0
        %v9364 = vadd.f32 0.0, %v9363
        %v9365 = vpop.f32.mrb[0].mxu0
        %v9366 = vpop.f32.mrb[0].mxu0
        %v9367 = vadd.f32 0.0, %v9366
        %v9368 = vpop.f32.mrb[0].mxu0
        %9369 = vmatprep.mubr.bf16.mxu0 0
        %9370 = vmatmul.mubr.bf16.gmra.mrb[0].mxu0 %v7169
        %v9371 = vpop.f32.mrb[0].mxu0
        %v9372 = vadd.f32 0.0, %v9371
        %v9373 = vpop.f32.mrb[0].mxu0
        %v9374 = vpop.f32.mrb[0].mxu0
        %v9375 = vadd.f32 0.0, %v9374
        %v9376 = vpop.f32.mrb[0].mxu0
        %9377 = vmatprep.mubr.bf16.mxu0 0
        %9378 = vmatmul.mubr.bf16.gmra.mrb[0].mxu0 %v7172
        %v9379 = vpop.f32.mrb[0].mxu0
        %v9380 = vadd.f32 0.0, %v9379
        %v9381 = vpop.f32.mrb[0].mxu0
        %v9382 = vpop.f32.mrb[0].mxu0
        %v9383 = vadd.f32 0.0, %v9382
        %v9384 = vpop.f32.mrb[0].mxu0
        %9385 = vmatprep.mubr.bf16.mxu0 0
        %9386 = vmatmul.mubr.bf16.gmra.mrb[0].mxu0 %v7175
        %v9387 = vpop.f32.mrb[0].mxu0
        %v9388 = vadd.f32 0.0, %v9387
        %v9389 = vpop.f32.mrb[0].mxu0
        %v9390 = vpop.f32.mrb[0].mxu0
        %v9391 = vadd.f32 0.0, %v9390
        %v9392 = vpop.f32.mrb[0].mxu0
        %9393 = vmatprep.mubr.bf16.mxu0 0
        %9394 = vmatmul.mubr.bf16.gmra.mrb[0].mxu0 %v7178
        %v9395 = vpop.f32.mrb[0].mxu0
        %v9396 = vadd.f32 0.0, %v9395
        %v9397 = vpop.f32.mrb[0].mxu0
        %v9398 = vpop.f32.mrb[0].mxu0
        %v9399 = vadd.f32 0.0, %v9398
        %v9400 = vpop.f32.mrb[0].mxu0
        %9401 = vdwg.mxu0
        %v9402 = vsel %vm3818, %v9284, 0.0
        %v9403 = vsel %vm3819, %v9287, 0.0
        %v9404 = vsel %vm3820, %v9292, 0.0
        %v9405 = vsel %vm3821, %v9295, 0.0
        %v9406 = vsel %vm3822, %v9300, 0.0
        %v9407 = vsel %vm3823, %v9303, 0.0
        %v9408 = vsel %vm3824, %v9308, 0.0
        %v9409 = vsel %vm3825, %v9311, 0.0
        %v9410 = vsel %vm3826, %v9316, 0.0
        %v9411 = vsel %vm3827, %v9319, 0.0
        %v9412 = vsel %vm3828, %v9324, 0.0
        %v9413 = vsel %vm3829, %v9327, 0.0
        %v9414 = vsel %vm3830, %v9332, 0.0
        %v9415 = vsel %vm3831, %v9335, 0.0
        %v9416 = vsel %vm3832, %v9340, 0.0
        %v9417 = vsel %vm3833, %v9343, 0.0
        %v9418 = vsel %vm3834, %v9348, 0.0
        %v9419 = vsel %vm3835, %v9351, 0.0
        %v9420 = vsel %vm3836, %v9356, 0.0
        %v9421 = vsel %vm3837, %v9359, 0.0
        %v9422 = vsel %vm3838, %v9364, 0.0
        %v9423 = vsel %vm3839, %v9367, 0.0
        %v9424 = vsel %vm3840, %v9372, 0.0
        %v9425 = vsel %vm3841, %v9375, 0.0
        %v9426 = vsel %vm3842, %v9380, 0.0
        %v9427 = vsel %vm3843, %v9383, 0.0
        %v9428 = vsel %vm3844, %v9388, 0.0
        %v9429 = vsel %vm3845, %v9391, 0.0
        %v9430 = vsel %vm3846, %v9396, 0.0
        %v9431 = vsel %vm3847, %v9399, 0.0
        %v9432 = vsel %vm3848, %v9276, 0.0
        %v9433 = vsel %vm3849, %v9279, 0.0
        %v9434 = vadd.f32 %v9176, %v9402
        %v9435 = vadd.f32 %v9177, %v9403
        %v9436 = vadd.f32 %v9178, %v9404
        %v9437 = vadd.f32 %v9179, %v9405
        %v9438 = vadd.f32 %v9180, %v9406
        %v9439 = vadd.f32 %v9181, %v9407
        %v9440 = vadd.f32 %v9182, %v9408
        %v9441 = vadd.f32 %v9183, %v9409
        %v9442 = vadd.f32 %v9184, %v9410
        %v9443 = vadd.f32 %v9185, %v9411
        %v9444 = vadd.f32 %v9186, %v9412
        %v9445 = vadd.f32 %v9187, %v9413
        %v9446 = vadd.f32 %v9188, %v9414
        %v9447 = vadd.f32 %v9189, %v9415
        %v9448 = vadd.f32 %v9190, %v9416
        %v9449 = vadd.f32 %v9191, %v9417
        %v9450 = vadd.f32 %v9192, %v9418
        %v9451 = vadd.f32 %v9193, %v9419
        %v9452 = vadd.f32 %v9194, %v9420
        %v9453 = vadd.f32 %v9195, %v9421
        %v9454 = vadd.f32 %v9196, %v9422
        %v9455 = vadd.f32 %v9197, %v9423
        %v9456 = vadd.f32 %v9198, %v9424
        %v9457 = vadd.f32 %v9199, %v9425
        %v9458 = vadd.f32 %v9200, %v9426
        %v9459 = vadd.f32 %v9201, %v9427
        %v9460 = vadd.f32 %v9202, %v9428
        %v9461 = vadd.f32 %v9203, %v9429
        %v9462 = vadd.f32 %v9204, %v9430
        %v9463 = vadd.f32 %v9205, %v9431
        %v9464 = vadd.f32 %v9206, %v9432
        %v9465 = vadd.f32 %v9207, %v9433
        %s9466 = scalar_lea.vmem [#allocation2], 256
        %v9467 = vld [vmem:[%s9466] sm:$0xf]
        %v9468 = vld [vmem:[%s9466 + $0x4] sm:$0xf]
        %v9469 = vld [vmem:[%s9466 + $0x8] sm:$0xf]
        %v9470 = vld [vmem:[%s9466 + $0xc] sm:$0xf]
        %v9471 = vld [vmem:[%s9466 + $0x10] sm:$0xf]
        %v9472 = vld [vmem:[%s9466 + $0x14] sm:$0xf]
        %v9473 = vld [vmem:[%s9466 + $0x18] sm:$0xf]
        %v9474 = vld [vmem:[%s9466 + $0x1c] sm:$0xf]
        %v9483 = vunpack.c.l.b16 %v9467
        %v9484 = vunpack.c.l.b16 %v9468
        %v9485 = vunpack.c.l.b16 %v9469
        %v9486 = vunpack.c.l.b16 %v9470
        %v9487 = vunpack.c.l.b16 %v9471
        %v9488 = vunpack.c.l.b16 %v9472
        %v9489 = vunpack.c.l.b16 %v9473
        %v9490 = vunpack.c.l.b16 %v9474
        %v9491 = vpack.c.b16 %v9484, %v9483
        %v9492 = vpack.c.b16 %v9486, %v9485
        %v9493 = vpack.c.b16 %v9488, %v9487
        %v9494 = vpack.c.b16 %v9490, %v9489
        %9499 = vmatprep.subr.bf16.mxu0 0
        %9500 = vmatpush1.bf16.msra.mxu0 %v9491
        %9501 = vmatprep.subr.bf16.mxu0 0
        %9502 = vmatpush1.bf16.msra.mxu0 %v9492
        %9503 = vmatprep.subr.bf16.mxu0 0
        %9504 = vmatpush1.bf16.msra.mxu0 %v9493
        %9505 = vmatprep.subr.bf16.mxu0 0
        %9506 = vmatpush1.bf16.msra.mxu0 %v9494
        %9507 = vmatprep.subr.bf16.mxu0 0
        %9508 = vmatpush1.bf16.msra.mxu0 0
        %9509 = vmatprep.subr.bf16.mxu0 0
        %9510 = vmatpush1.bf16.msra.mxu0 0
        %9511 = vmatprep.subr.bf16.mxu0 0
        %9512 = vmatpush1.bf16.msra.mxu0 0
        %9513 = vmatprep.subr.bf16.mxu0 0
        %9514 = vmatpush1.bf16.msra.mxu0 0
        %9515 = vmatprep.subr.bf16.mxu0 0
        %9516 = vmatpush1.bf16.msra.mxu0 0
        %9517 = vmatprep.subr.bf16.mxu0 0
        %9518 = vmatpush1.bf16.msra.mxu0 0
        %9519 = vmatprep.subr.bf16.mxu0 0
        %9520 = vmatpush1.bf16.msra.mxu0 0
        %9521 = vmatprep.subr.bf16.mxu0 0
        %9522 = vmatpush1.bf16.msra.mxu0 0
        %9523 = vmatprep.subr.bf16.mxu0 0
        %9524 = vmatpush1.bf16.msra.mxu0 0
        %9525 = vmatprep.subr.bf16.mxu0 0
        %9526 = vmatpush1.bf16.msra.mxu0 0
        %9527 = vmatprep.subr.bf16.mxu0 0
        %9528 = vmatpush1.bf16.msra.mxu0 0
        %9529 = vmatprep.subr.bf16.mxu0 0
        %9530 = vmatpush1.bf16.msra.mxu0 0
        %9531 = vmatprep.mubr.bf16.mxu0 0
        %9532 = vmatmul.mubr.bf16.gmra.mrb[0].mxu0 %v7133
        %v9533 = vpop.f32.mrb[0].mxu0
        %v9534 = vadd.f32 0.0, %v9533
        %v9535 = vpop.f32.mrb[0].mxu0
        %v9536 = vpop.f32.mrb[0].mxu0
        %v9537 = vadd.f32 0.0, %v9536
        %v9538 = vpop.f32.mrb[0].mxu0
        %9539 = vmatprep.mubr.bf16.mxu0 0
        %9540 = vmatmul.mubr.bf16.gmra.mrb[0].mxu0 %v7136
        %v9541 = vpop.f32.mrb[0].mxu0
        %v9542 = vadd.f32 0.0, %v9541
        %v9543 = vpop.f32.mrb[0].mxu0
        %v9544 = vpop.f32.mrb[0].mxu0
        %v9545 = vadd.f32 0.0, %v9544
        %v9546 = vpop.f32.mrb[0].mxu0
        %9547 = vmatprep.mubr.bf16.mxu0 0
        %9548 = vmatmul.mubr.bf16.gmra.mrb[0].mxu0 %v7139
        %v9549 = vpop.f32.mrb[0].mxu0
        %v9550 = vadd.f32 0.0, %v9549
        %v9551 = vpop.f32.mrb[0].mxu0
        %v9552 = vpop.f32.mrb[0].mxu0
        %v9553 = vadd.f32 0.0, %v9552
        %v9554 = vpop.f32.mrb[0].mxu0
        %9555 = vmatprep.mubr.bf16.mxu0 0
        %9556 = vmatmul.mubr.bf16.gmra.mrb[0].mxu0 %v7142
        %v9557 = vpop.f32.mrb[0].mxu0
        %v9558 = vadd.f32 0.0, %v9557
        %v9559 = vpop.f32.mrb[0].mxu0
        %v9560 = vpop.f32.mrb[0].mxu0
        %v9561 = vadd.f32 0.0, %v9560
        %v9562 = vpop.f32.mrb[0].mxu0
        %9563 = vmatprep.mubr.bf16.mxu0 0
        %9564 = vmatmul.mubr.bf16.gmra.mrb[0].mxu0 %v7145
        %v9565 = vpop.f32.mrb[0].mxu0
        %v9566 = vadd.f32 0.0, %v9565
        %v9567 = vpop.f32.mrb[0].mxu0
        %v9568 = vpop.f32.mrb[0].mxu0
        %v9569 = vadd.f32 0.0, %v9568
        %v9570 = vpop.f32.mrb[0].mxu0
        %9571 = vmatprep.mubr.bf16.mxu0 0
        %9572 = vmatmul.mubr.bf16.gmra.mrb[0].mxu0 %v7148
        %v9573 = vpop.f32.mrb[0].mxu0
        %v9574 = vadd.f32 0.0, %v9573
        %v9575 = vpop.f32.mrb[0].mxu0
        %v9576 = vpop.f32.mrb[0].mxu0
        %v9577 = vadd.f32 0.0, %v9576
        %v9578 = vpop.f32.mrb[0].mxu0
        %9579 = vmatprep.mubr.bf16.mxu0 0
        %9580 = vmatmul.mubr.bf16.gmra.mrb[0].mxu0 %v7151
        %v9581 = vpop.f32.mrb[0].mxu0
        %v9582 = vadd.f32 0.0, %v9581
        %v9583 = vpop.f32.mrb[0].mxu0
        %v9584 = vpop.f32.mrb[0].mxu0
        %v9585 = vadd.f32 0.0, %v9584
        %v9586 = vpop.f32.mrb[0].mxu0
        %9587 = vmatprep.mubr.bf16.mxu0 0
        %9588 = vmatmul.mubr.bf16.gmra.mrb[0].mxu0 %v7154
        %v9589 = vpop.f32.mrb[0].mxu0
        %v9590 = vadd.f32 0.0, %v9589
        %v9591 = vpop.f32.mrb[0].mxu0
        %v9592 = vpop.f32.mrb[0].mxu0
        %v9593 = vadd.f32 0.0, %v9592
        %v9594 = vpop.f32.mrb[0].mxu0
        %9595 = vmatprep.mubr.bf16.mxu0 0
        %9596 = vmatmul.mubr.bf16.gmra.mrb[0].mxu0 %v7157
        %v9597 = vpop.f32.mrb[0].mxu0
        %v9598 = vadd.f32 0.0, %v9597
        %v9599 = vpop.f32.mrb[0].mxu0
        %v9600 = vpop.f32.mrb[0].mxu0
        %v9601 = vadd.f32 0.0, %v9600
        %v9602 = vpop.f32.mrb[0].mxu0
        %9603 = vmatprep.mubr.bf16.mxu0 0
        %9604 = vmatmul.mubr.bf16.gmra.mrb[0].mxu0 %v7160
        %v9605 = vpop.f32.mrb[0].mxu0
        %v9606 = vadd.f32 0.0, %v9605
        %v9607 = vpop.f32.mrb[0].mxu0
        %v9608 = vpop.f32.mrb[0].mxu0
        %v9609 = vadd.f32 0.0, %v9608
        %v9610 = vpop.f32.mrb[0].mxu0
        %9611 = vmatprep.mubr.bf16.mxu0 0
        %9612 = vmatmul.mubr.bf16.gmra.mrb[0].mxu0 %v7163
        %v9613 = vpop.f32.mrb[0].mxu0
        %v9614 = vadd.f32 0.0, %v9613
        %v9615 = vpop.f32.mrb[0].mxu0
        %v9616 = vpop.f32.mrb[0].mxu0
        %v9617 = vadd.f32 0.0, %v9616
        %v9618 = vpop.f32.mrb[0].mxu0
        %9619 = vmatprep.mubr.bf16.mxu0 0
        %9620 = vmatmul.mubr.bf16.gmra.mrb[0].mxu0 %v7166
        %v9621 = vpop.f32.mrb[0].mxu0
        %v9622 = vadd.f32 0.0, %v9621
        %v9623 = vpop.f32.mrb[0].mxu0
        %v9624 = vpop.f32.mrb[0].mxu0
        %v9625 = vadd.f32 0.0, %v9624
        %v9626 = vpop.f32.mrb[0].mxu0
        %9627 = vmatprep.mubr.bf16.mxu0 0
        %9628 = vmatmul.mubr.bf16.gmra.mrb[0].mxu0 %v7169
        %v9629 = vpop.f32.mrb[0].mxu0
        %v9630 = vadd.f32 0.0, %v9629
        %v9631 = vpop.f32.mrb[0].mxu0
        %v9632 = vpop.f32.mrb[0].mxu0
        %v9633 = vadd.f32 0.0, %v9632
        %v9634 = vpop.f32.mrb[0].mxu0
        %9635 = vmatprep.mubr.bf16.mxu0 0
        %9636 = vmatmul.mubr.bf16.gmra.mrb[0].mxu0 %v7172
        %v9637 = vpop.f32.mrb[0].mxu0
        %v9638 = vadd.f32 0.0, %v9637
        %v9639 = vpop.f32.mrb[0].mxu0
        %v9640 = vpop.f32.mrb[0].mxu0
        %v9641 = vadd.f32 0.0, %v9640
        %v9642 = vpop.f32.mrb[0].mxu0
        %9643 = vmatprep.mubr.bf16.mxu0 0
        %9644 = vmatmul.mubr.bf16.gmra.mrb[0].mxu0 %v7175
        %v9645 = vpop.f32.mrb[0].mxu0
        %v9646 = vadd.f32 0.0, %v9645
        %v9647 = vpop.f32.mrb[0].mxu0
        %v9648 = vpop.f32.mrb[0].mxu0
        %v9649 = vadd.f32 0.0, %v9648
        %v9650 = vpop.f32.mrb[0].mxu0
        %9651 = vmatprep.mubr.bf16.mxu0 0
        %9652 = vmatmul.mubr.bf16.gmra.mrb[0].mxu0 %v7178
        %v9653 = vpop.f32.mrb[0].mxu0
        %v9654 = vadd.f32 0.0, %v9653
        %v9655 = vpop.f32.mrb[0].mxu0
        %v9656 = vpop.f32.mrb[0].mxu0
        %v9657 = vadd.f32 0.0, %v9656
        %v9658 = vpop.f32.mrb[0].mxu0
        %9659 = vdwg.mxu0
        %v9660 = vrot.slane %v9534, 1
        %v9661 = vrot.slane %v9537, 1
        %v9662 = vrot.slane %v9542, 1
        %v9663 = vrot.slane %v9545, 1
        %v9664 = vrot.slane %v9550, 1
        %v9665 = vrot.slane %v9553, 1
        %v9666 = vrot.slane %v9558, 1
        %v9667 = vrot.slane %v9561, 1
        %v9668 = vrot.slane %v9566, 1
        %v9669 = vrot.slane %v9569, 1
        %v9670 = vrot.slane %v9574, 1
        %v9671 = vrot.slane %v9577, 1
        %v9672 = vrot.slane %v9582, 1
        %v9673 = vrot.slane %v9585, 1
        %v9674 = vrot.slane %v9590, 1
        %v9675 = vrot.slane %v9593, 1
        %v9676 = vrot.slane %v9598, 1
        %v9677 = vrot.slane %v9601, 1
        %v9678 = vrot.slane %v9606, 1
        %v9679 = vrot.slane %v9609, 1
        %v9680 = vrot.slane %v9614, 1
        %v9681 = vrot.slane %v9617, 1
        %v9682 = vrot.slane %v9622, 1
        %v9683 = vrot.slane %v9625, 1
        %v9684 = vrot.slane %v9630, 1
        %v9685 = vrot.slane %v9633, 1
        %v9686 = vrot.slane %v9638, 1
        %v9687 = vrot.slane %v9641, 1
        %v9688 = vrot.slane %v9646, 1
        %v9689 = vrot.slane %v9649, 1
        %v9690 = vrot.slane %v9654, 1
        %v9691 = vrot.slane %v9657, 1
        %v9692 = vsel %vm2273, %v9690, %v9691
        %v9693 = vsel %vm2273, %v9689, %v9690
        %v9694 = vsel %vm2273, %v9688, %v9689
        %v9695 = vsel %vm2273, %v9687, %v9688
        %v9696 = vsel %vm2273, %v9686, %v9687
        %v9697 = vsel %vm2273, %v9685, %v9686
        %v9698 = vsel %vm2273, %v9684, %v9685
        %v9699 = vsel %vm2273, %v9683, %v9684
        %v9700 = vsel %vm2273, %v9682, %v9683
        %v9701 = vsel %vm2273, %v9681, %v9682
        %v9702 = vsel %vm2273, %v9680, %v9681
        %v9703 = vsel %vm2273, %v9679, %v9680
        %v9704 = vsel %vm2273, %v9678, %v9679
        %v9705 = vsel %vm2273, %v9677, %v9678
        %v9706 = vsel %vm2273, %v9676, %v9677
        %v9707 = vsel %vm2273, %v9675, %v9676
        %v9708 = vsel %vm2273, %v9674, %v9675
        %v9709 = vsel %vm2273, %v9673, %v9674
        %v9710 = vsel %vm2273, %v9672, %v9673
        %v9711 = vsel %vm2273, %v9671, %v9672
        %v9712 = vsel %vm2273, %v9670, %v9671
        %v9713 = vsel %vm2273, %v9669, %v9670
        %v9714 = vsel %vm2273, %v9668, %v9669
        %v9715 = vsel %vm2273, %v9667, %v9668
        %v9716 = vsel %vm2273, %v9666, %v9667
        %v9717 = vsel %vm2273, %v9665, %v9666
        %v9718 = vsel %vm2273, %v9664, %v9665
        %v9719 = vsel %vm2273, %v9663, %v9664
        %v9720 = vsel %vm2273, %v9662, %v9663
        %v9721 = vsel %vm2273, %v9661, %v9662
        %v9722 = vsel %vm2273, %v9660, %v9661
        %v9723 = vsel %vm2273, %v9691, %v9660
        %v9724 = vsel %vm4204, %v9720, 0.0
        %v9725 = vsel %vm4205, %v9719, 0.0
        %v9726 = vsel %vm4206, %v9718, 0.0
        %v9727 = vsel %vm4207, %v9717, 0.0
        %v9728 = vsel %vm4208, %v9716, 0.0
        %v9729 = vsel %vm4209, %v9715, 0.0
        %v9730 = vsel %vm4210, %v9714, 0.0
        %v9731 = vsel %vm4211, %v9713, 0.0
        %v9732 = vsel %vm4212, %v9712, 0.0
        %v9733 = vsel %vm4213, %v9711, 0.0
        %v9734 = vsel %vm4214, %v9710, 0.0
        %v9735 = vsel %vm4215, %v9709, 0.0
        %v9736 = vsel %vm4216, %v9708, 0.0
        %v9737 = vsel %vm4217, %v9707, 0.0
        %v9738 = vsel %vm4218, %v9706, 0.0
        %v9739 = vsel %vm4219, %v9705, 0.0
        %v9740 = vsel %vm4220, %v9704, 0.0
        %v9741 = vsel %vm4221, %v9703, 0.0
        %v9742 = vsel %vm4222, %v9702, 0.0
        %v9743 = vsel %vm4223, %v9701, 0.0
        %v9744 = vsel %vm4224, %v9700, 0.0
        %v9745 = vsel %vm4225, %v9699, 0.0
        %v9746 = vsel %vm4226, %v9698, 0.0
        %v9747 = vsel %vm4227, %v9697, 0.0
        %v9748 = vsel %vm4228, %v9696, 0.0
        %v9749 = vsel %vm4229, %v9695, 0.0
        %v9750 = vsel %vm4230, %v9694, 0.0
        %v9751 = vsel %vm4231, %v9693, 0.0
        %v9752 = vsel %vm4232, %v9692, 0.0
        %v9753 = vsel %vm4233, %v9723, 0.0
        %v9754 = vsel %vm4234, %v9722, 0.0
        %v9755 = vsel %vm4235, %v9721, 0.0
        %v9756 = vadd.f32 %v9434, %v9724
        %v9757 = vadd.f32 %v9435, %v9725
        %v9758 = vadd.f32 %v9436, %v9726
        %v9759 = vadd.f32 %v9437, %v9727
        %v9760 = vadd.f32 %v9438, %v9728
        %v9761 = vadd.f32 %v9439, %v9729
        %v9762 = vadd.f32 %v9440, %v9730
        %v9763 = vadd.f32 %v9441, %v9731
        %v9764 = vadd.f32 %v9442, %v9732
        %v9765 = vadd.f32 %v9443, %v9733
        %v9766 = vadd.f32 %v9444, %v9734
        %v9767 = vadd.f32 %v9445, %v9735
        %v9768 = vadd.f32 %v9446, %v9736
        %v9769 = vadd.f32 %v9447, %v9737
        %v9770 = vadd.f32 %v9448, %v9738
        %v9771 = vadd.f32 %v9449, %v9739
        %v9772 = vadd.f32 %v9450, %v9740
        %v9773 = vadd.f32 %v9451, %v9741
        %v9774 = vadd.f32 %v9452, %v9742
        %v9775 = vadd.f32 %v9453, %v9743
        %v9776 = vadd.f32 %v9454, %v9744
        %v9777 = vadd.f32 %v9455, %v9745
        %v9778 = vadd.f32 %v9456, %v9746
        %v9779 = vadd.f32 %v9457, %v9747
        %v9780 = vadd.f32 %v9458, %v9748
        %v9781 = vadd.f32 %v9459, %v9749
        %v9782 = vadd.f32 %v9460, %v9750
        %v9783 = vadd.f32 %v9461, %v9751
        %v9784 = vadd.f32 %v9462, %v9752
        %v9785 = vadd.f32 %v9463, %v9753
        %v9786 = vadd.f32 %v9464, %v9754
        %v9787 = vadd.f32 %v9465, %v9755
        %v9788 = vrot.slane %v401, 1
        %v9789 = vrot.slane %v402, 1
        %v9790 = vrot.slane %v403, 1
        %v9791 = vrot.slane %v404, 1
        %v9792 = vrot.slane %v405, 1
        %v9793 = vrot.slane %v406, 1
        %v9794 = vrot.slane %v407, 1
        %v9795 = vrot.slane %v408, 1
        %v9796 = vrot.slane %v409, 1
        %v9797 = vrot.slane %v410, 1
        %v9798 = vrot.slane %v411, 1
        %v9799 = vrot.slane %v412, 1
        %v9800 = vrot.slane %v413, 1
        %v9801 = vrot.slane %v414, 1
        %v9802 = vrot.slane %v415, 1
        %v9803 = vrot.slane %v416, 1
        %v9804 = vrot.slane %v417, 1
        %v9805 = vrot.slane %v418, 1
        %v9806 = vrot.slane %v419, 1
        %v9807 = vrot.slane %v420, 1
        %v9808 = vrot.slane %v421, 1
        %v9809 = vrot.slane %v422, 1
        %v9810 = vrot.slane %v423, 1
        %v9811 = vrot.slane %v424, 1
        %v9812 = vrot.slane %v425, 1
        %v9813 = vrot.slane %v426, 1
        %v9814 = vrot.slane %v427, 1
        %v9815 = vrot.slane %v428, 1
        %v9816 = vrot.slane %v429, 1
        %v9817 = vrot.slane %v430, 1
        %v9818 = vrot.slane %v431, 1
        %v9819 = vrot.slane %v432, 1
        %v9820 = vsel %vm2273, %v9818, %v9819
        %v9821 = vsel %vm2273, %v9817, %v9818
        %v9822 = vsel %vm2273, %v9816, %v9817
        %v9823 = vsel %vm2273, %v9815, %v9816
        %v9824 = vsel %vm2273, %v9814, %v9815
        %v9825 = vsel %vm2273, %v9813, %v9814
        %v9826 = vsel %vm2273, %v9812, %v9813
        %v9827 = vsel %vm2273, %v9811, %v9812
        %v9828 = vsel %vm2273, %v9810, %v9811
        %v9829 = vsel %vm2273, %v9809, %v9810
        %v9830 = vsel %vm2273, %v9808, %v9809
        %v9831 = vsel %vm2273, %v9807, %v9808
        %v9832 = vsel %vm2273, %v9806, %v9807
        %v9833 = vsel %vm2273, %v9805, %v9806
        %v9834 = vsel %vm2273, %v9804, %v9805
        %v9835 = vsel %vm2273, %v9803, %v9804
        %v9836 = vsel %vm2273, %v9802, %v9803
        %v9837 = vsel %vm2273, %v9801, %v9802
        %v9838 = vsel %vm2273, %v9800, %v9801
        %v9839 = vsel %vm2273, %v9799, %v9800
        %v9840 = vsel %vm2273, %v9798, %v9799
        %v9841 = vsel %vm2273, %v9797, %v9798
        %v9842 = vsel %vm2273, %v9796, %v9797
        %v9843 = vsel %vm2273, %v9795, %v9796
        %v9844 = vsel %vm2273, %v9794, %v9795
        %v9845 = vsel %vm2273, %v9793, %v9794
        %v9846 = vsel %vm2273, %v9792, %v9793
        %v9847 = vsel %vm2273, %v9791, %v9792
        %v9848 = vsel %vm2273, %v9790, %v9791
        %v9849 = vsel %vm2273, %v9789, %v9790
        %v9850 = vsel %vm2273, %v9788, %v9789
        %v9851 = vsel %vm2273, %v9819, %v9788
        %v9852 = vsel %vm3110, %v9850, -3e+38
        %v9853 = vsel %vm3111, %v9849, -3e+38
        %v9854 = vsel %vm3112, %v9848, -3e+38
        %v9855 = vsel %vm3113, %v9847, -3e+38
        %v9856 = vsel %vm3114, %v9846, -3e+38
        %v9857 = vsel %vm3115, %v9845, -3e+38
        %v9858 = vsel %vm3116, %v9844, -3e+38
        %v9859 = vsel %vm3117, %v9843, -3e+38
        %v9860 = vsel %vm3118, %v9842, -3e+38
        %v9861 = vsel %vm3119, %v9841, -3e+38
        %v9862 = vsel %vm3120, %v9840, -3e+38
        %v9863 = vsel %vm3121, %v9839, -3e+38
        %v9864 = vsel %vm3122, %v9838, -3e+38
        %v9865 = vsel %vm3123, %v9837, -3e+38
        %v9866 = vsel %vm3124, %v9836, -3e+38
        %v9867 = vsel %vm3125, %v9835, -3e+38
        %v9868 = vsel %vm3126, %v9834, -3e+38
        %v9869 = vsel %vm3127, %v9833, -3e+38
        %v9870 = vsel %vm3128, %v9832, -3e+38
        %v9871 = vsel %vm3129, %v9831, -3e+38
        %v9872 = vsel %vm3130, %v9830, -3e+38
        %v9873 = vsel %vm3131, %v9829, -3e+38
        %v9874 = vsel %vm3132, %v9828, -3e+38
        %v9875 = vsel %vm3133, %v9827, -3e+38
        %v9876 = vsel %vm3134, %v9826, -3e+38
        %v9877 = vsel %vm3135, %v9825, -3e+38
        %v9878 = vsel %vm3136, %v9824, -3e+38
        %v9879 = vsel %vm3137, %v9823, -3e+38
        %v9880 = vsel %vm3138, %v9822, -3e+38
        %v9881 = vsel %vm3139, %v9821, -3e+38
        %v9882 = vsel %vm3140, %v9820, -3e+38
        %v9883 = vsel %vm3141, %v9851, -3e+38
        %v9884 = vrot.slane %v401, 7
        %v9885 = vrot.slane %v402, 7
        %v9886 = vrot.slane %v403, 7
        %v9887 = vrot.slane %v404, 7
        %v9888 = vrot.slane %v405, 7
        %v9889 = vrot.slane %v406, 7
        %v9890 = vrot.slane %v407, 7
        %v9891 = vrot.slane %v408, 7
        %v9892 = vrot.slane %v409, 7
        %v9893 = vrot.slane %v410, 7
        %v9894 = vrot.slane %v411, 7
        %v9895 = vrot.slane %v412, 7
        %v9896 = vrot.slane %v413, 7
        %v9897 = vrot.slane %v414, 7
        %v9898 = vrot.slane %v415, 7
        %v9899 = vrot.slane %v416, 7
        %v9900 = vrot.slane %v417, 7
        %v9901 = vrot.slane %v418, 7
        %v9902 = vrot.slane %v419, 7
        %v9903 = vrot.slane %v420, 7
        %v9904 = vrot.slane %v421, 7
        %v9905 = vrot.slane %v422, 7
        %v9906 = vrot.slane %v423, 7
        %v9907 = vrot.slane %v424, 7
        %v9908 = vrot.slane %v425, 7
        %v9909 = vrot.slane %v426, 7
        %v9910 = vrot.slane %v427, 7
        %v9911 = vrot.slane %v428, 7
        %v9912 = vrot.slane %v429, 7
        %v9913 = vrot.slane %v430, 7
        %v9914 = vrot.slane %v431, 7
        %v9915 = vrot.slane %v432, 7
        %v9916 = vsel %vm1564, %v9914, %v9915
        %v9917 = vsel %vm1564, %v9913, %v9914
        %v9918 = vsel %vm1564, %v9912, %v9913
        %v9919 = vsel %vm1564, %v9911, %v9912
        %v9920 = vsel %vm1564, %v9910, %v9911
        %v9921 = vsel %vm1564, %v9909, %v9910
        %v9922 = vsel %vm1564, %v9908, %v9909
        %v9923 = vsel %vm1564, %v9907, %v9908
        %v9924 = vsel %vm1564, %v9906, %v9907
        %v9925 = vsel %vm1564, %v9905, %v9906
        %v9926 = vsel %vm1564, %v9904, %v9905
        %v9927 = vsel %vm1564, %v9903, %v9904
        %v9928 = vsel %vm1564, %v9902, %v9903
        %v9929 = vsel %vm1564, %v9901, %v9902
        %v9930 = vsel %vm1564, %v9900, %v9901
        %v9931 = vsel %vm1564, %v9899, %v9900
        %v9932 = vsel %vm1564, %v9898, %v9899
        %v9933 = vsel %vm1564, %v9897, %v9898
        %v9934 = vsel %vm1564, %v9896, %v9897
        %v9935 = vsel %vm1564, %v9895, %v9896
        %v9936 = vsel %vm1564, %v9894, %v9895
        %v9937 = vsel %vm1564, %v9893, %v9894
        %v9938 = vsel %vm1564, %v9892, %v9893
        %v9939 = vsel %vm1564, %v9891, %v9892
        %v9940 = vsel %vm1564, %v9890, %v9891
        %v9941 = vsel %vm1564, %v9889, %v9890
        %v9942 = vsel %vm1564, %v9888, %v9889
        %v9943 = vsel %vm1564, %v9887, %v9888
        %v9944 = vsel %vm1564, %v9886, %v9887
        %v9945 = vsel %vm1564, %v9885, %v9886
        %v9946 = vsel %vm1564, %v9884, %v9885
        %v9947 = vsel %vm1564, %v9915, %v9884
        %v9948 = vsel %vm2724, %v9947, -3e+38
        %v9949 = vsel %vm2725, %v9946, -3e+38
        %v9950 = vsel %vm2726, %v9945, -3e+38
        %v9951 = vsel %vm2727, %v9944, -3e+38
        %v9952 = vsel %vm2728, %v9943, -3e+38
        %v9953 = vsel %vm2729, %v9942, -3e+38
        %v9954 = vsel %vm2730, %v9941, -3e+38
        %v9955 = vsel %vm2731, %v9940, -3e+38
        %v9956 = vsel %vm2732, %v9939, -3e+38
        %v9957 = vsel %vm2733, %v9938, -3e+38
        %v9958 = vsel %vm2734, %v9937, -3e+38
        %v9959 = vsel %vm2735, %v9936, -3e+38
        %v9960 = vsel %vm2736, %v9935, -3e+38
        %v9961 = vsel %vm2737, %v9934, -3e+38
        %v9962 = vsel %vm2738, %v9933, -3e+38
        %v9963 = vsel %vm2739, %v9932, -3e+38
        %v9964 = vsel %vm2740, %v9931, -3e+38
        %v9965 = vsel %vm2741, %v9930, -3e+38
        %v9966 = vsel %vm2742, %v9929, -3e+38
        %v9967 = vsel %vm2743, %v9928, -3e+38
        %v9968 = vsel %vm2744, %v9927, -3e+38
        %v9969 = vsel %vm2745, %v9926, -3e+38
        %v9970 = vsel %vm2746, %v9925, -3e+38
        %v9971 = vsel %vm2747, %v9924, -3e+38
        %v9972 = vsel %vm2748, %v9923, -3e+38
        %v9973 = vsel %vm2749, %v9922, -3e+38
        %v9974 = vsel %vm2750, %v9921, -3e+38
        %v9975 = vsel %vm2751, %v9920, -3e+38
        %v9976 = vsel %vm2752, %v9919, -3e+38
        %v9977 = vsel %vm2753, %v9918, -3e+38
        %v9978 = vsel %vm2754, %v9917, -3e+38
        %v9979 = vsel %vm2755, %v9916, -3e+38
        %v9980 = vmax.f32 %v9852, %v9948
        %v9981 = vmax.f32 %v9853, %v9949
        %v9982 = vmax.f32 %v9854, %v9950
        %v9983 = vmax.f32 %v9855, %v9951
        %v9984 = vmax.f32 %v9856, %v9952
        %v9985 = vmax.f32 %v9857, %v9953
        %v9986 = vmax.f32 %v9858, %v9954
        %v9987 = vmax.f32 %v9859, %v9955
        %v9988 = vmax.f32 %v9860, %v9956
        %v9989 = vmax.f32 %v9861, %v9957
        %v9990 = vmax.f32 %v9862, %v9958
        %v9991 = vmax.f32 %v9863, %v9959
        %v9992 = vmax.f32 %v9864, %v9960
        %v9993 = vmax.f32 %v9865, %v9961
        %v9994 = vmax.f32 %v9866, %v9962
        %v9995 = vmax.f32 %v9867, %v9963
        %v9996 = vmax.f32 %v9868, %v9964
        %v9997 = vmax.f32 %v9869, %v9965
        %v9998 = vmax.f32 %v9870, %v9966
        %v9999 = vmax.f32 %v9871, %v9967
        %v10000 = vmax.f32 %v9872, %v9968
        %v10001 = vmax.f32 %v9873, %v9969
        %v10002 = vmax.f32 %v9874, %v9970
        %v10003 = vmax.f32 %v9875, %v9971
        %v10004 = vmax.f32 %v9876, %v9972
        %v10005 = vmax.f32 %v9877, %v9973
        %v10006 = vmax.f32 %v9878, %v9974
        %v10007 = vmax.f32 %v9879, %v9975
        %v10008 = vmax.f32 %v9880, %v9976
        %v10009 = vmax.f32 %v9881, %v9977
        %v10010 = vmax.f32 %v9882, %v9978
        %v10011 = vmax.f32 %v9883, %v9979
        %v10012 = vmax.f32 %v401, %v9980
        %v10013 = vmax.f32 %v402, %v9981
        %v10014 = vmax.f32 %v403, %v9982
        %v10015 = vmax.f32 %v404, %v9983
        %v10016 = vmax.f32 %v405, %v9984
        %v10017 = vmax.f32 %v406, %v9985
        %v10018 = vmax.f32 %v407, %v9986
        %v10019 = vmax.f32 %v408, %v9987
        %v10020 = vmax.f32 %v409, %v9988
        %v10021 = vmax.f32 %v410, %v9989
        %v10022 = vmax.f32 %v411, %v9990
        %v10023 = vmax.f32 %v412, %v9991
        %v10024 = vmax.f32 %v413, %v9992
        %v10025 = vmax.f32 %v414, %v9993
        %v10026 = vmax.f32 %v415, %v9994
        %v10027 = vmax.f32 %v416, %v9995
        %v10028 = vmax.f32 %v417, %v9996
        %v10029 = vmax.f32 %v418, %v9997
        %v10030 = vmax.f32 %v419, %v9998
        %v10031 = vmax.f32 %v420, %v9999
        %v10032 = vmax.f32 %v421, %v10000
        %v10033 = vmax.f32 %v422, %v10001
        %v10034 = vmax.f32 %v423, %v10002
        %v10035 = vmax.f32 %v424, %v10003
        %v10036 = vmax.f32 %v425, %v10004
        %v10037 = vmax.f32 %v426, %v10005
        %v10038 = vmax.f32 %v427, %v10006
        %v10039 = vmax.f32 %v428, %v10007
        %v10040 = vmax.f32 %v429, %v10008
        %v10041 = vmax.f32 %v430, %v10009
        %v10042 = vmax.f32 %v431, %v10010
        %v10043 = vmax.f32 %v432, %v10011
        %v10044 = vsel %vm3818, %v10014, -3e+38
        %v10045 = vsel %vm3819, %v10015, -3e+38
        %v10046 = vsel %vm3820, %v10016, -3e+38
        %v10047 = vsel %vm3821, %v10017, -3e+38
        %v10048 = vsel %vm3822, %v10018, -3e+38
        %v10049 = vsel %vm3823, %v10019, -3e+38
        %v10050 = vsel %vm3824, %v10020, -3e+38
        %v10051 = vsel %vm3825, %v10021, -3e+38
        %v10052 = vsel %vm3826, %v10022, -3e+38
        %v10053 = vsel %vm3827, %v10023, -3e+38
        %v10054 = vsel %vm3828, %v10024, -3e+38
        %v10055 = vsel %vm3829, %v10025, -3e+38
        %v10056 = vsel %vm3830, %v10026, -3e+38
        %v10057 = vsel %vm3831, %v10027, -3e+38
        %v10058 = vsel %vm3832, %v10028, -3e+38
        %v10059 = vsel %vm3833, %v10029, -3e+38
        %v10060 = vsel %vm3834, %v10030, -3e+38
        %v10061 = vsel %vm3835, %v10031, -3e+38
        %v10062 = vsel %vm3836, %v10032, -3e+38
        %v10063 = vsel %vm3837, %v10033, -3e+38
        %v10064 = vsel %vm3838, %v10034, -3e+38
        %v10065 = vsel %vm3839, %v10035, -3e+38
        %v10066 = vsel %vm3840, %v10036, -3e+38
        %v10067 = vsel %vm3841, %v10037, -3e+38
        %v10068 = vsel %vm3842, %v10038, -3e+38
        %v10069 = vsel %vm3843, %v10039, -3e+38
        %v10070 = vsel %vm3844, %v10040, -3e+38
        %v10071 = vsel %vm3845, %v10041, -3e+38
        %v10072 = vsel %vm3846, %v10042, -3e+38
        %v10073 = vsel %vm3847, %v10043, -3e+38
        %v10074 = vsel %vm3848, %v10012, -3e+38
        %v10075 = vsel %vm3849, %v10013, -3e+38
        %v10076 = vsel %vm1951, %v10042, -3e+38
        %v10077 = vsel %vm1952, %v10043, -3e+38
        %v10078 = vsel %vm1953, %v10012, -3e+38
        %v10079 = vsel %vm1954, %v10013, -3e+38
        %v10080 = vsel %vm1955, %v10014, -3e+38
        %v10081 = vsel %vm1956, %v10015, -3e+38
        %v10082 = vsel %vm1957, %v10016, -3e+38
        %v10083 = vsel %vm1958, %v10017, -3e+38
        %v10084 = vsel %vm1959, %v10018, -3e+38
        %v10085 = vsel %vm1960, %v10019, -3e+38
        %v10086 = vsel %vm1961, %v10020, -3e+38
        %v10087 = vsel %vm1962, %v10021, -3e+38
        %v10088 = vsel %vm1963, %v10022, -3e+38
        %v10089 = vsel %vm1964, %v10023, -3e+38
        %v10090 = vsel %vm1965, %v10024, -3e+38
        %v10091 = vsel %vm1966, %v10025, -3e+38
        %v10092 = vsel %vm1967, %v10026, -3e+38
        %v10093 = vsel %vm1968, %v10027, -3e+38
        %v10094 = vsel %vm1969, %v10028, -3e+38
        %v10095 = vsel %vm1970, %v10029, -3e+38
        %v10096 = vsel %vm1971, %v10030, -3e+38
        %v10097 = vsel %vm1972, %v10031, -3e+38
        %v10098 = vsel %vm1973, %v10032, -3e+38
        %v10099 = vsel %vm1974, %v10033, -3e+38
        %v10100 = vsel %vm1975, %v10034, -3e+38
        %v10101 = vsel %vm1976, %v10035, -3e+38
        %v10102 = vsel %vm1977, %v10036, -3e+38
        %v10103 = vsel %vm1978, %v10037, -3e+38
        %v10104 = vsel %vm1979, %v10038, -3e+38
        %v10105 = vsel %vm1980, %v10039, -3e+38
        %v10106 = vsel %vm1981, %v10040, -3e+38
        %v10107 = vsel %vm1982, %v10041, -3e+38
        %v10108 = vmax.f32 %v10044, %v10076
        %v10109 = vmax.f32 %v10045, %v10077
        %v10110 = vmax.f32 %v10046, %v10078
        %v10111 = vmax.f32 %v10047, %v10079
        %v10112 = vmax.f32 %v10048, %v10080
        %v10113 = vmax.f32 %v10049, %v10081
        %v10114 = vmax.f32 %v10050, %v10082
        %v10115 = vmax.f32 %v10051, %v10083
        %v10116 = vmax.f32 %v10052, %v10084
        %v10117 = vmax.f32 %v10053, %v10085
        %v10118 = vmax.f32 %v10054, %v10086
        %v10119 = vmax.f32 %v10055, %v10087
        %v10120 = vmax.f32 %v10056, %v10088
        %v10121 = vmax.f32 %v10057, %v10089
        %v10122 = vmax.f32 %v10058, %v10090
        %v10123 = vmax.f32 %v10059, %v10091
        %v10124 = vmax.f32 %v10060, %v10092
        %v10125 = vmax.f32 %v10061, %v10093
        %v10126 = vmax.f32 %v10062, %v10094
        %v10127 = vmax.f32 %v10063, %v10095
        %v10128 = vmax.f32 %v10064, %v10096
        %v10129 = vmax.f32 %v10065, %v10097
        %v10130 = vmax.f32 %v10066, %v10098
        %v10131 = vmax.f32 %v10067, %v10099
        %v10132 = vmax.f32 %v10068, %v10100
        %v10133 = vmax.f32 %v10069, %v10101
        %v10134 = vmax.f32 %v10070, %v10102
        %v10135 = vmax.f32 %v10071, %v10103
        %v10136 = vmax.f32 %v10072, %v10104
        %v10137 = vmax.f32 %v10073, %v10105
        %v10138 = vmax.f32 %v10074, %v10106
        %v10139 = vmax.f32 %v10075, %v10107
        %v10140 = vmax.f32 %v10012, %v10108
        %v10141 = vmax.f32 %v10013, %v10109
        %v10142 = vmax.f32 %v10014, %v10110
        %v10143 = vmax.f32 %v10015, %v10111
        %v10144 = vmax.f32 %v10016, %v10112
        %v10145 = vmax.f32 %v10017, %v10113
        %v10146 = vmax.f32 %v10018, %v10114
        %v10147 = vmax.f32 %v10019, %v10115
        %v10148 = vmax.f32 %v10020, %v10116
        %v10149 = vmax.f32 %v10021, %v10117
        %v10150 = vmax.f32 %v10022, %v10118
        %v10151 = vmax.f32 %v10023, %v10119
        %v10152 = vmax.f32 %v10024, %v10120
        %v10153 = vmax.f32 %v10025, %v10121
        %v10154 = vmax.f32 %v10026, %v10122
        %v10155 = vmax.f32 %v10027, %v10123
        %v10156 = vmax.f32 %v10028, %v10124
        %v10157 = vmax.f32 %v10029, %v10125
        %v10158 = vmax.f32 %v10030, %v10126
        %v10159 = vmax.f32 %v10031, %v10127
        %v10160 = vmax.f32 %v10032, %v10128
        %v10161 = vmax.f32 %v10033, %v10129
        %v10162 = vmax.f32 %v10034, %v10130
        %v10163 = vmax.f32 %v10035, %v10131
        %v10164 = vmax.f32 %v10036, %v10132
        %v10165 = vmax.f32 %v10037, %v10133
        %v10166 = vmax.f32 %v10038, %v10134
        %v10167 = vmax.f32 %v10039, %v10135
        %v10168 = vmax.f32 %v10040, %v10136
        %v10169 = vmax.f32 %v10041, %v10137
        %v10170 = vmax.f32 %v10042, %v10138
        %v10171 = vmax.f32 %v10043, %v10139
        %v10172 = vpack.c.bf16 %v10141, %v10140
        %v10173 = vpack.c.bf16 %v10143, %v10142
        %v10174 = vpack.c.bf16 %v10145, %v10144
        %v10175 = vpack.c.bf16 %v10147, %v10146
        %v10176 = vpack.c.bf16 %v10149, %v10148
        %v10177 = vpack.c.bf16 %v10151, %v10150
        %v10178 = vpack.c.bf16 %v10153, %v10152
        %v10179 = vpack.c.bf16 %v10155, %v10154
        %v10180 = vpack.c.bf16 %v10157, %v10156
        %v10181 = vpack.c.bf16 %v10159, %v10158
        %v10182 = vpack.c.bf16 %v10161, %v10160
        %v10183 = vpack.c.bf16 %v10163, %v10162
        %v10184 = vpack.c.bf16 %v10165, %v10164
        %v10185 = vpack.c.bf16 %v10167, %v10166
        %v10186 = vpack.c.bf16 %v10169, %v10168
        %v10187 = vpack.c.bf16 %v10171, %v10170
        %v10188 = vld [vmem:[%s9] sm:$0x3]
        %v10189 = vld [vmem:[%s10] sm:$0x1]
        %v10191 = vlaneseq
        %v10192 = vshrl.u32 %v10191, 7
        %v10193 = vsub.s32 0, %v10192
        %v10194 = vrot.slane %v10189, %v10193
        %v10197 = vsel %vm792, %v10172, 0
        %v10200 = vsel %vm792, %v10173, 0
        %v10203 = vsel %vm792, %v10174, 0
        %v10206 = vsel %vm792, %v10175, 0
        %v10209 = vsel %vm792, %v10176, 0
        %v10212 = vsel %vm792, %v10177, 0
        %v10215 = vsel %vm792, %v10178, 0
        %v10218 = vsel %vm792, %v10179, 0
        %v10221 = vsel %vm792, %v10180, 0
        %v10224 = vsel %vm792, %v10181, 0
        %v10227 = vsel %vm792, %v10182, 0
        %v10230 = vsel %vm792, %v10183, 0
        %v10233 = vsel %vm792, %v10184, 0
        %v10236 = vsel %vm792, %v10185, 0
        %v10239 = vsel %vm792, %v10186, 0
        %v10242 = vsel %vm792, %v10187, 0
        %v10245 = vsel %vm841, %v10188, 0
        %10247 = vmatprep.subr.bf16.mxu0 0
        %10248 = vmatpush1.bf16.msra.mxu0 %v10245
        %10249 = vmatprep.subr.bf16.mxu0 0
        %10250 = vmatpush1.bf16.msra.mxu0 0
        %10251 = vmatprep.subr.bf16.mxu0 0
        %10252 = vmatpush1.bf16.msra.mxu0 0
        %10253 = vmatprep.subr.bf16.mxu0 0
        %10254 = vmatpush1.bf16.msra.mxu0 0
        %10255 = vmatprep.subr.bf16.mxu0 0
        %10256 = vmatpush1.bf16.msra.mxu0 0
        %10257 = vmatprep.subr.bf16.mxu0 0
        %10258 = vmatpush1.bf16.msra.mxu0 0
        %10259 = vmatprep.subr.bf16.mxu0 0
        %10260 = vmatpush1.bf16.msra.mxu0 0
        %10261 = vmatprep.subr.bf16.mxu0 0
        %10262 = vmatpush1.bf16.msra.mxu0 0
        %10263 = vmatprep.subr.bf16.mxu0 0
        %10264 = vmatpush1.bf16.msra.mxu0 0
        %10265 = vmatprep.subr.bf16.mxu0 0
        %10266 = vmatpush1.bf16.msra.mxu0 0
        %10267 = vmatprep.subr.bf16.mxu0 0
        %10268 = vmatpush1.bf16.msra.mxu0 0
        %10269 = vmatprep.subr.bf16.mxu0 0
        %10270 = vmatpush1.bf16.msra.mxu0 0
        %10271 = vmatprep.subr.bf16.mxu0 0
        %10272 = vmatpush1.bf16.msra.mxu0 0
        %10273 = vmatprep.subr.bf16.mxu0 0
        %10274 = vmatpush1.bf16.msra.mxu0 0
        %10275 = vmatprep.subr.bf16.mxu0 0
        %10276 = vmatpush1.bf16.msra.mxu0 0
        %10277 = vmatprep.subr.bf16.mxu0 0
        %10278 = vmatpush1.bf16.msra.mxu0 0
        %10279 = vmatprep.mubr.bf16.mxu0 0
        %10280 = vmatmul.mubr.bf16.gmra.mrb[0].mxu0 %v10197
        %v10281 = vpop.f32.mrb[0].mxu0
        %v10282 = vadd.f32 %v10194, %v10281
        %v10283 = vpop.f32.mrb[0].mxu0
        %v10284 = vpop.f32.mrb[0].mxu0
        %v10285 = vadd.f32 %v10194, %v10284
        %v10286 = vpop.f32.mrb[0].mxu0
        %10287 = vmatprep.mubr.bf16.mxu0 0
        %10288 = vmatmul.mubr.bf16.gmra.mrb[0].mxu0 %v10200
        %v10289 = vpop.f32.mrb[0].mxu0
        %v10290 = vadd.f32 %v10194, %v10289
        %v10291 = vpop.f32.mrb[0].mxu0
        %v10292 = vpop.f32.mrb[0].mxu0
        %v10293 = vadd.f32 %v10194, %v10292
        %v10294 = vpop.f32.mrb[0].mxu0
        %10295 = vmatprep.mubr.bf16.mxu0 0
        %10296 = vmatmul.mubr.bf16.gmra.mrb[0].mxu0 %v10203
        %v10297 = vpop.f32.mrb[0].mxu0
        %v10298 = vadd.f32 %v10194, %v10297
        %v10299 = vpop.f32.mrb[0].mxu0
        %v10300 = vpop.f32.mrb[0].mxu0
        %v10301 = vadd.f32 %v10194, %v10300
        %v10302 = vpop.f32.mrb[0].mxu0
        %10303 = vmatprep.mubr.bf16.mxu0 0
        %10304 = vmatmul.mubr.bf16.gmra.mrb[0].mxu0 %v10206
        %v10305 = vpop.f32.mrb[0].mxu0
        %v10306 = vadd.f32 %v10194, %v10305
        %v10307 = vpop.f32.mrb[0].mxu0
        %v10308 = vpop.f32.mrb[0].mxu0
        %v10309 = vadd.f32 %v10194, %v10308
        %v10310 = vpop.f32.mrb[0].mxu0
        %10311 = vmatprep.mubr.bf16.mxu0 0
        %10312 = vmatmul.mubr.bf16.gmra.mrb[0].mxu0 %v10209
        %v10313 = vpop.f32.mrb[0].mxu0
        %v10314 = vadd.f32 %v10194, %v10313
        %v10315 = vpop.f32.mrb[0].mxu0
        %v10316 = vpop.f32.mrb[0].mxu0
        %v10317 = vadd.f32 %v10194, %v10316
        %v10318 = vpop.f32.mrb[0].mxu0
        %10319 = vmatprep.mubr.bf16.mxu0 0
        %10320 = vmatmul.mubr.bf16.gmra.mrb[0].mxu0 %v10212
        %v10321 = vpop.f32.mrb[0].mxu0
        %v10322 = vadd.f32 %v10194, %v10321
        %v10323 = vpop.f32.mrb[0].mxu0
        %v10324 = vpop.f32.mrb[0].mxu0
        %v10325 = vadd.f32 %v10194, %v10324
        %v10326 = vpop.f32.mrb[0].mxu0
        %10327 = vmatprep.mubr.bf16.mxu0 0
        %10328 = vmatmul.mubr.bf16.gmra.mrb[0].mxu0 %v10215
        %v10329 = vpop.f32.mrb[0].mxu0
        %v10330 = vadd.f32 %v10194, %v10329
        %v10331 = vpop.f32.mrb[0].mxu0
        %v10332 = vpop.f32.mrb[0].mxu0
        %v10333 = vadd.f32 %v10194, %v10332
        %v10334 = vpop.f32.mrb[0].mxu0
        %10335 = vmatprep.mubr.bf16.mxu0 0
        %10336 = vmatmul.mubr.bf16.gmra.mrb[0].mxu0 %v10218
        %v10337 = vpop.f32.mrb[0].mxu0
        %v10338 = vadd.f32 %v10194, %v10337
        %v10339 = vpop.f32.mrb[0].mxu0
        %v10340 = vpop.f32.mrb[0].mxu0
        %v10341 = vadd.f32 %v10194, %v10340
        %v10342 = vpop.f32.mrb[0].mxu0
        %10343 = vmatprep.mubr.bf16.mxu0 0
        %10344 = vmatmul.mubr.bf16.gmra.mrb[0].mxu0 %v10221
        %v10345 = vpop.f32.mrb[0].mxu0
        %v10346 = vadd.f32 %v10194, %v10345
        %v10347 = vpop.f32.mrb[0].mxu0
        %v10348 = vpop.f32.mrb[0].mxu0
        %v10349 = vadd.f32 %v10194, %v10348
        %v10350 = vpop.f32.mrb[0].mxu0
        %10351 = vmatprep.mubr.bf16.mxu0 0
        %10352 = vmatmul.mubr.bf16.gmra.mrb[0].mxu0 %v10224
        %v10353 = vpop.f32.mrb[0].mxu0
        %v10354 = vadd.f32 %v10194, %v10353
        %v10355 = vpop.f32.mrb[0].mxu0
        %v10356 = vpop.f32.mrb[0].mxu0
        %v10357 = vadd.f32 %v10194, %v10356
        %v10358 = vpop.f32.mrb[0].mxu0
        %10359 = vmatprep.mubr.bf16.mxu0 0
        %10360 = vmatmul.mubr.bf16.gmra.mrb[0].mxu0 %v10227
        %v10361 = vpop.f32.mrb[0].mxu0
        %v10362 = vadd.f32 %v10194, %v10361
        %v10363 = vpop.f32.mrb[0].mxu0
        %v10364 = vpop.f32.mrb[0].mxu0
        %v10365 = vadd.f32 %v10194, %v10364
        %v10366 = vpop.f32.mrb[0].mxu0
        %10367 = vmatprep.mubr.bf16.mxu0 0
        %10368 = vmatmul.mubr.bf16.gmra.mrb[0].mxu0 %v10230
        %v10369 = vpop.f32.mrb[0].mxu0
        %v10370 = vadd.f32 %v10194, %v10369
        %v10371 = vpop.f32.mrb[0].mxu0
        %v10372 = vpop.f32.mrb[0].mxu0
        %v10373 = vadd.f32 %v10194, %v10372
        %v10374 = vpop.f32.mrb[0].mxu0
        %10375 = vmatprep.mubr.bf16.mxu0 0
        %10376 = vmatmul.mubr.bf16.gmra.mrb[0].mxu0 %v10233
        %v10377 = vpop.f32.mrb[0].mxu0
        %v10378 = vadd.f32 %v10194, %v10377
        %v10379 = vpop.f32.mrb[0].mxu0
        %v10380 = vpop.f32.mrb[0].mxu0
        %v10381 = vadd.f32 %v10194, %v10380
        %v10382 = vpop.f32.mrb[0].mxu0
        %10383 = vmatprep.mubr.bf16.mxu0 0
        %10384 = vmatmul.mubr.bf16.gmra.mrb[0].mxu0 %v10236
        %v10385 = vpop.f32.mrb[0].mxu0
        %v10386 = vadd.f32 %v10194, %v10385
        %v10387 = vpop.f32.mrb[0].mxu0
        %v10388 = vpop.f32.mrb[0].mxu0
        %v10389 = vadd.f32 %v10194, %v10388
        %v10390 = vpop.f32.mrb[0].mxu0
        %10391 = vmatprep.mubr.bf16.mxu0 0
        %10392 = vmatmul.mubr.bf16.gmra.mrb[0].mxu0 %v10239
        %v10393 = vpop.f32.mrb[0].mxu0
        %v10394 = vadd.f32 %v10194, %v10393
        %v10395 = vpop.f32.mrb[0].mxu0
        %v10396 = vpop.f32.mrb[0].mxu0
        %v10397 = vadd.f32 %v10194, %v10396
        %v10398 = vpop.f32.mrb[0].mxu0
        %10399 = vmatprep.mubr.bf16.mxu0 0
        %10400 = vmatmul.mubr.bf16.gmra.mrb[0].mxu0 %v10242
        %v10401 = vpop.f32.mrb[0].mxu0
        %v10402 = vadd.f32 %v10194, %v10401
        %v10403 = vpop.f32.mrb[0].mxu0
        %v10404 = vpop.f32.mrb[0].mxu0
        %v10405 = vadd.f32 %v10194, %v10404
        %v10406 = vpop.f32.mrb[0].mxu0
        %10407 = vdwg.mxu0
        %10408 = vst.msk [vmem:[%s394] sm:$0xff] %vm1129, %v7012
        %10409 = vst.msk [vmem:[%s394 + $0x10] sm:$0xff] %vm1129, %v7013
        %10410 = vst.msk [vmem:[%s394 + $0x20] sm:$0xff] %vm1129, %v7014
        %10411 = vst.msk [vmem:[%s394 + $0x30] sm:$0xff] %vm1129, %v7015
        %10412 = vst.msk [vmem:[%s394 + $0x40] sm:$0xff] %vm1129, %v7016
        %10413 = vst.msk [vmem:[%s394 + $0x50] sm:$0xff] %vm1129, %v7017
        %10414 = vst.msk [vmem:[%s394 + $0x60] sm:$0xff] %vm1129, %v7018
        %10415 = vst.msk [vmem:[%s394 + $0x70] sm:$0xff] %vm1129, %v7019
        %10416 = vst.msk [vmem:[%s394 + $0x80] sm:$0xff] %vm1129, %v7020
        %10417 = vst.msk [vmem:[%s394 + $0x90] sm:$0xff] %vm1129, %v7021
        %10418 = vst.msk [vmem:[%s394 + $0xa0] sm:$0xff] %vm1129, %v7022
        %10419 = vst.msk [vmem:[%s394 + $0xb0] sm:$0xff] %vm1129, %v7023
        %10420 = vst.msk [vmem:[%s394 + $0xc0] sm:$0xff] %vm1129, %v7024
        %10421 = vst.msk [vmem:[%s394 + $0xd0] sm:$0xff] %vm1129, %v7025
        %10422 = vst.msk [vmem:[%s394 + $0xe0] sm:$0xff] %vm1129, %v7026
        %10423 = vst.msk [vmem:[%s394 + $0xf0] sm:$0xff] %vm1129, %v7027
        %10424 = vst.msk [vmem:[%s394 + $0x100] sm:$0xff] %vm1129, %v7028
        %10425 = vst.msk [vmem:[%s394 + $0x110] sm:$0xff] %vm1129, %v7029
        %10426 = vst.msk [vmem:[%s394 + $0x120] sm:$0xff] %vm1129, %v7030
        %10427 = vst.msk [vmem:[%s394 + $0x130] sm:$0xff] %vm1129, %v7031
        %10428 = vst.msk [vmem:[%s394 + $0x140] sm:$0xff] %vm1129, %v7032
        %10429 = vst.msk [vmem:[%s394 + $0x150] sm:$0xff] %vm1129, %v7033
        %10430 = vst.msk [vmem:[%s394 + $0x160] sm:$0xff] %vm1129, %v7034
        %10431 = vst.msk [vmem:[%s394 + $0x170] sm:$0xff] %vm1129, %v7035
        %10432 = vst.msk [vmem:[%s394 + $0x180] sm:$0xff] %vm1129, %v7036
        %10433 = vst.msk [vmem:[%s394 + $0x190] sm:$0xff] %vm1129, %v7037
        %10434 = vst.msk [vmem:[%s394 + $0x1a0] sm:$0xff] %vm1129, %v7038
        %10435 = vst.msk [vmem:[%s394 + $0x1b0] sm:$0xff] %vm1129, %v7039
        %10436 = vst.msk [vmem:[%s394 + $0x1c0] sm:$0xff] %vm1129, %v7040
        %10437 = vst.msk [vmem:[%s394 + $0x1d0] sm:$0xff] %vm1129, %v7041
        %10438 = vst.msk [vmem:[%s394 + $0x1e0] sm:$0xff] %vm1129, %v7042
        %10439 = vst.msk [vmem:[%s394 + $0x1f0] sm:$0xff] %vm1129, %v7043
        %10472 = vrot.lane.b32.xlu0 %v9756, 64
        %v10473 = vpop.permute.xlu0 %10472
        %10474 = vrot.lane.b32.xlu0 %v9757, 64
        %v10475 = vpop.permute.xlu0 %10474
        %10476 = vrot.lane.b32.xlu0 %v9758, 64
        %v10477 = vpop.permute.xlu0 %10476
        %10478 = vrot.lane.b32.xlu0 %v9759, 64
        %v10479 = vpop.permute.xlu0 %10478
        %10480 = vrot.lane.b32.xlu0 %v9760, 64
        %v10481 = vpop.permute.xlu0 %10480
        %10482 = vrot.lane.b32.xlu0 %v9761, 64
        %v10483 = vpop.permute.xlu0 %10482
        %10484 = vrot.lane.b32.xlu0 %v9762, 64
        %v10485 = vpop.permute.xlu0 %10484
        %10486 = vrot.lane.b32.xlu0 %v9763, 64
        %v10487 = vpop.permute.xlu0 %10486
        %10488 = vrot.lane.b32.xlu0 %v9764, 64
        %v10489 = vpop.permute.xlu0 %10488
        %10490 = vrot.lane.b32.xlu0 %v9765, 64
        %v10491 = vpop.permute.xlu0 %10490
        %10492 = vrot.lane.b32.xlu0 %v9766, 64
        %v10493 = vpop.permute.xlu0 %10492
        %10494 = vrot.lane.b32.xlu0 %v9767, 64
        %v10495 = vpop.permute.xlu0 %10494
        %10496 = vrot.lane.b32.xlu0 %v9768, 64
        %v10497 = vpop.permute.xlu0 %10496
        %10498 = vrot.lane.b32.xlu0 %v9769, 64
        %v10499 = vpop.permute.xlu0 %10498
        %10500 = vrot.lane.b32.xlu0 %v9770, 64
        %v10501 = vpop.permute.xlu0 %10500
        %10502 = vrot.lane.b32.xlu0 %v9771, 64
        %v10503 = vpop.permute.xlu0 %10502
        %10504 = vrot.lane.b32.xlu0 %v9772, 64
        %v10505 = vpop.permute.xlu0 %10504
        %10506 = vrot.lane.b32.xlu0 %v9773, 64
        %v10507 = vpop.permute.xlu0 %10506
        %10508 = vrot.lane.b32.xlu0 %v9774, 64
        %v10509 = vpop.permute.xlu0 %10508
        %10510 = vrot.lane.b32.xlu0 %v9775, 64
        %v10511 = vpop.permute.xlu0 %10510
        %10512 = vrot.lane.b32.xlu0 %v9776, 64
        %v10513 = vpop.permute.xlu0 %10512
        %10514 = vrot.lane.b32.xlu0 %v9777, 64
        %v10515 = vpop.permute.xlu0 %10514
        %10516 = vrot.lane.b32.xlu0 %v9778, 64
        %v10517 = vpop.permute.xlu0 %10516
        %10518 = vrot.lane.b32.xlu0 %v9779, 64
        %v10519 = vpop.permute.xlu0 %10518
        %10520 = vrot.lane.b32.xlu0 %v9780, 64
        %v10521 = vpop.permute.xlu0 %10520
        %10522 = vrot.lane.b32.xlu0 %v9781, 64
        %v10523 = vpop.permute.xlu0 %10522
        %10524 = vrot.lane.b32.xlu0 %v9782, 64
        %v10525 = vpop.permute.xlu0 %10524
        %10526 = vrot.lane.b32.xlu0 %v9783, 64
        %v10527 = vpop.permute.xlu0 %10526
        %10528 = vrot.lane.b32.xlu0 %v9784, 64
        %v10529 = vpop.permute.xlu0 %10528
        %10530 = vrot.lane.b32.xlu0 %v9785, 64
        %v10531 = vpop.permute.xlu0 %10530
        %10532 = vrot.lane.b32.xlu0 %v9786, 64
        %v10533 = vpop.permute.xlu0 %10532
        %10534 = vrot.lane.b32.xlu0 %v9787, 64
        %v10535 = vpop.permute.xlu0 %10534
        %vm10568 = vcmask 1048064
        %10569 = vst.msk [vmem:[%s394] sm:$0xff] %vm10568, %v10473
        %10570 = vst.msk [vmem:[%s394 + $0x10] sm:$0xff] %vm10568, %v10475
        %10571 = vst.msk [vmem:[%s394 + $0x20] sm:$0xff] %vm10568, %v10477
        %10572 = vst.msk [vmem:[%s394 + $0x30] sm:$0xff] %vm10568, %v10479
        %10573 = vst.msk [vmem:[%s394 + $0x40] sm:$0xff] %vm10568, %v10481
        %10574 = vst.msk [vmem:[%s394 + $0x50] sm:$0xff] %vm10568, %v10483
        %10575 = vst.msk [vmem:[%s394 + $0x60] sm:$0xff] %vm10568, %v10485
        %10576 = vst.msk [vmem:[%s394 + $0x70] sm:$0xff] %vm10568, %v10487
        %10577 = vst.msk [vmem:[%s394 + $0x80] sm:$0xff] %vm10568, %v10489
        %10578 = vst.msk [vmem:[%s394 + $0x90] sm:$0xff] %vm10568, %v10491
        %10579 = vst.msk [vmem:[%s394 + $0xa0] sm:$0xff] %vm10568, %v10493
        %10580 = vst.msk [vmem:[%s394 + $0xb0] sm:$0xff] %vm10568, %v10495
        %10581 = vst.msk [vmem:[%s394 + $0xc0] sm:$0xff] %vm10568, %v10497
        %10582 = vst.msk [vmem:[%s394 + $0xd0] sm:$0xff] %vm10568, %v10499
        %10583 = vst.msk [vmem:[%s394 + $0xe0] sm:$0xff] %vm10568, %v10501
        %10584 = vst.msk [vmem:[%s394 + $0xf0] sm:$0xff] %vm10568, %v10503
        %10585 = vst.msk [vmem:[%s394 + $0x100] sm:$0xff] %vm10568, %v10505
        %10586 = vst.msk [vmem:[%s394 + $0x110] sm:$0xff] %vm10568, %v10507
        %10587 = vst.msk [vmem:[%s394 + $0x120] sm:$0xff] %vm10568, %v10509
        %10588 = vst.msk [vmem:[%s394 + $0x130] sm:$0xff] %vm10568, %v10511
        %10589 = vst.msk [vmem:[%s394 + $0x140] sm:$0xff] %vm10568, %v10513
        %10590 = vst.msk [vmem:[%s394 + $0x150] sm:$0xff] %vm10568, %v10515
        %10591 = vst.msk [vmem:[%s394 + $0x160] sm:$0xff] %vm10568, %v10517
        %10592 = vst.msk [vmem:[%s394 + $0x170] sm:$0xff] %vm10568, %v10519
        %10593 = vst.msk [vmem:[%s394 + $0x180] sm:$0xff] %vm10568, %v10521
        %10594 = vst.msk [vmem:[%s394 + $0x190] sm:$0xff] %vm10568, %v10523
        %10595 = vst.msk [vmem:[%s394 + $0x1a0] sm:$0xff] %vm10568, %v10525
        %10596 = vst.msk [vmem:[%s394 + $0x1b0] sm:$0xff] %vm10568, %v10527
        %10597 = vst.msk [vmem:[%s394 + $0x1c0] sm:$0xff] %vm10568, %v10529
        %10598 = vst.msk [vmem:[%s394 + $0x1d0] sm:$0xff] %vm10568, %v10531
        %10599 = vst.msk [vmem:[%s394 + $0x1e0] sm:$0xff] %vm10568, %v10533
        %10600 = vst.msk [vmem:[%s394 + $0x1f0] sm:$0xff] %vm10568, %v10535
        %10601 = vst.msk [vmem:[%s394 + $0x8] sm:$0xff] %vm1129, %v10282
        %10602 = vst.msk [vmem:[%s394 + $0x18] sm:$0xff] %vm1129, %v10285
        %10603 = vst.msk [vmem:[%s394 + $0x28] sm:$0xff] %vm1129, %v10290
        %10604 = vst.msk [vmem:[%s394 + $0x38] sm:$0xff] %vm1129, %v10293
        %10605 = vst.msk [vmem:[%s394 + $0x48] sm:$0xff] %vm1129, %v10298
        %10606 = vst.msk [vmem:[%s394 + $0x58] sm:$0xff] %vm1129, %v10301
        %10607 = vst.msk [vmem:[%s394 + $0x68] sm:$0xff] %vm1129, %v10306
        %10608 = vst.msk [vmem:[%s394 + $0x78] sm:$0xff] %vm1129, %v10309
        %10609 = vst.msk [vmem:[%s394 + $0x88] sm:$0xff] %vm1129, %v10314
        %10610 = vst.msk [vmem:[%s394 + $0x98] sm:$0xff] %vm1129, %v10317
        %10611 = vst.msk [vmem:[%s394 + $0xa8] sm:$0xff] %vm1129, %v10322
        %10612 = vst.msk [vmem:[%s394 + $0xb8] sm:$0xff] %vm1129, %v10325
        %10613 = vst.msk [vmem:[%s394 + $0xc8] sm:$0xff] %vm1129, %v10330
        %10614 = vst.msk [vmem:[%s394 + $0xd8] sm:$0xff] %vm1129, %v10333
        %10615 = vst.msk [vmem:[%s394 + $0xe8] sm:$0xff] %vm1129, %v10338
        %10616 = vst.msk [vmem:[%s394 + $0xf8] sm:$0xff] %vm1129, %v10341
        %10617 = vst.msk [vmem:[%s394 + $0x108] sm:$0xff] %vm1129, %v10346
        %10618 = vst.msk [vmem:[%s394 + $0x118] sm:$0xff] %vm1129, %v10349
        %10619 = vst.msk [vmem:[%s394 + $0x128] sm:$0xff] %vm1129, %v10354
        %10620 = vst.msk [vmem:[%s394 + $0x138] sm:$0xff] %vm1129, %v10357
        %10621 = vst.msk [vmem:[%s394 + $0x148] sm:$0xff] %vm1129, %v10362
        %10622 = vst.msk [vmem:[%s394 + $0x158] sm:$0xff] %vm1129, %v10365
        %10623 = vst.msk [vmem:[%s394 + $0x168] sm:$0xff] %vm1129, %v10370
        %10624 = vst.msk [vmem:[%s394 + $0x178] sm:$0xff] %vm1129, %v10373
        %10625 = vst.msk [vmem:[%s394 + $0x188] sm:$0xff] %vm1129, %v10378
        %10626 = vst.msk [vmem:[%s394 + $0x198] sm:$0xff] %vm1129, %v10381
        %10627 = vst.msk [vmem:[%s394 + $0x1a8] sm:$0xff] %vm1129, %v10386
        %10628 = vst.msk [vmem:[%s394 + $0x1b8] sm:$0xff] %vm1129, %v10389
        %10629 = vst.msk [vmem:[%s394 + $0x1c8] sm:$0xff] %vm1129, %v10394
        %10630 = vst.msk [vmem:[%s394 + $0x1d8] sm:$0xff] %vm1129, %v10397
        %10631 = vst.msk [vmem:[%s394 + $0x1e8] sm:$0xff] %vm1129, %v10402
        %10632 = vst.msk [vmem:[%s394 + $0x1f8] sm:$0xff] %vm1129, %v10405
        %10665 = vrot.lane.b32.xlu0 %v885, 64
        %v10666 = vpop.permute.xlu0 %10665
        %10667 = vrot.lane.b32.xlu0 %v889, 64
        %v10668 = vpop.permute.xlu0 %10667
        %10669 = vrot.lane.b32.xlu0 %v895, 64
        %v10670 = vpop.permute.xlu0 %10669
        %10671 = vrot.lane.b32.xlu0 %v899, 64
        %v10672 = vpop.permute.xlu0 %10671
        %10673 = vrot.lane.b32.xlu0 %v905, 64
        %v10674 = vpop.permute.xlu0 %10673
        %10675 = vrot.lane.b32.xlu0 %v909, 64
        %v10676 = vpop.permute.xlu0 %10675
        %10677 = vrot.lane.b32.xlu0 %v915, 64
        %v10678 = vpop.permute.xlu0 %10677
        %10679 = vrot.lane.b32.xlu0 %v919, 64
        %v10680 = vpop.permute.xlu0 %10679
        %10681 = vrot.lane.b32.xlu0 %v925, 64
        %v10682 = vpop.permute.xlu0 %10681
        %10683 = vrot.lane.b32.xlu0 %v929, 64
        %v10684 = vpop.permute.xlu0 %10683
        %10685 = vrot.lane.b32.xlu0 %v935, 64
        %v10686 = vpop.permute.xlu0 %10685
        %10687 = vrot.lane.b32.xlu0 %v939, 64
        %v10688 = vpop.permute.xlu0 %10687
        %10689 = vrot.lane.b32.xlu0 %v945, 64
        %v10690 = vpop.permute.xlu0 %10689
        %10691 = vrot.lane.b32.xlu0 %v949, 64
        %v10692 = vpop.permute.xlu0 %10691
        %10693 = vrot.lane.b32.xlu0 %v955, 64
        %v10694 = vpop.permute.xlu0 %10693
        %10695 = vrot.lane.b32.xlu0 %v959, 64
        %v10696 = vpop.permute.xlu0 %10695
        %10697 = vrot.lane.b32.xlu0 %v965, 64
        %v10698 = vpop.permute.xlu0 %10697
        %10699 = vrot.lane.b32.xlu0 %v969, 64
        %v10700 = vpop.permute.xlu0 %10699
        %10701 = vrot.lane.b32.xlu0 %v975, 64
        %v10702 = vpop.permute.xlu0 %10701
        %10703 = vrot.lane.b32.xlu0 %v979, 64
        %v10704 = vpop.permute.xlu0 %10703
        %10705 = vrot.lane.b32.xlu0 %v985, 64
        %v10706 = vpop.permute.xlu0 %10705
        %10707 = vrot.lane.b32.xlu0 %v989, 64
        %v10708 = vpop.permute.xlu0 %10707
        %10709 = vrot.lane.b32.xlu0 %v995, 64
        %v10710 = vpop.permute.xlu0 %10709
        %10711 = vrot.lane.b32.xlu0 %v999, 64
        %v10712 = vpop.permute.xlu0 %10711
        %10713 = vrot.lane.b32.xlu0 %v1005, 64
        %v10714 = vpop.permute.xlu0 %10713
        %10715 = vrot.lane.b32.xlu0 %v1009, 64
        %v10716 = vpop.permute.xlu0 %10715
        %10717 = vrot.lane.b32.xlu0 %v1015, 64
        %v10718 = vpop.permute.xlu0 %10717
        %10719 = vrot.lane.b32.xlu0 %v1019, 64
        %v10720 = vpop.permute.xlu0 %10719
        %10721 = vrot.lane.b32.xlu0 %v1025, 64
        %v10722 = vpop.permute.xlu0 %10721
        %10723 = vrot.lane.b32.xlu0 %v1029, 64
        %v10724 = vpop.permute.xlu0 %10723
        %10725 = vrot.lane.b32.xlu0 %v1035, 64
        %v10726 = vpop.permute.xlu0 %10725
        %10727 = vrot.lane.b32.xlu0 %v1039, 64
        %v10728 = vpop.permute.xlu0 %10727
        %10761 = vst.msk [vmem:[%s394 + $0x8] sm:$0xff] %vm10568, %v10666
        %10762 = vst.msk [vmem:[%s394 + $0x18] sm:$0xff] %vm10568, %v10668
        %10763 = vst.msk [vmem:[%s394 + $0x28] sm:$0xff] %vm10568, %v10670
        %10764 = vst.msk [vmem:[%s394 + $0x38] sm:$0xff] %vm10568, %v10672
        %10765 = vst.msk [vmem:[%s394 + $0x48] sm:$0xff] %vm10568, %v10674
        %10766 = vst.msk [vmem:[%s394 + $0x58] sm:$0xff] %vm10568, %v10676
        %10767 = vst.msk [vmem:[%s394 + $0x68] sm:$0xff] %vm10568, %v10678
        %10768 = vst.msk [vmem:[%s394 + $0x78] sm:$0xff] %vm10568, %v10680
        %10769 = vst.msk [vmem:[%s394 + $0x88] sm:$0xff] %vm10568, %v10682
        %10770 = vst.msk [vmem:[%s394 + $0x98] sm:$0xff] %vm10568, %v10684
        %10771 = vst.msk [vmem:[%s394 + $0xa8] sm:$0xff] %vm10568, %v10686
        %10772 = vst.msk [vmem:[%s394 + $0xb8] sm:$0xff] %vm10568, %v10688
        %10773 = vst.msk [vmem:[%s394 + $0xc8] sm:$0xff] %vm10568, %v10690
        %10774 = vst.msk [vmem:[%s394 + $0xd8] sm:$0xff] %vm10568, %v10692
        %10775 = vst.msk [vmem:[%s394 + $0xe8] sm:$0xff] %vm10568, %v10694
        %10776 = vst.msk [vmem:[%s394 + $0xf8] sm:$0xff] %vm10568, %v10696
        %10777 = vst.msk [vmem:[%s394 + $0x108] sm:$0xff] %vm10568, %v10698
        %10778 = vst.msk [vmem:[%s394 + $0x118] sm:$0xff] %vm10568, %v10700
        %10779 = vst.msk [vmem:[%s394 + $0x128] sm:$0xff] %vm10568, %v10702
        %10780 = vst.msk [vmem:[%s394 + $0x138] sm:$0xff] %vm10568, %v10704
        %10781 = vst.msk [vmem:[%s394 + $0x148] sm:$0xff] %vm10568, %v10706
        %10782 = vst.msk [vmem:[%s394 + $0x158] sm:$0xff] %vm10568, %v10708
        %10783 = vst.msk [vmem:[%s394 + $0x168] sm:$0xff] %vm10568, %v10710
        %10784 = vst.msk [vmem:[%s394 + $0x178] sm:$0xff] %vm10568, %v10712
        %10785 = vst.msk [vmem:[%s394 + $0x188] sm:$0xff] %vm10568, %v10714
        %10786 = vst.msk [vmem:[%s394 + $0x198] sm:$0xff] %vm10568, %v10716
        %10787 = vst.msk [vmem:[%s394 + $0x1a8] sm:$0xff] %vm10568, %v10718
        %10788 = vst.msk [vmem:[%s394 + $0x1b8] sm:$0xff] %vm10568, %v10720
        %10789 = vst.msk [vmem:[%s394 + $0x1c8] sm:$0xff] %vm10568, %v10722
        %10790 = vst.msk [vmem:[%s394 + $0x1d8] sm:$0xff] %vm10568, %v10724
        %10791 = vst.msk [vmem:[%s394 + $0x1e8] sm:$0xff] %vm10568, %v10726
        %10792 = vst.msk [vmem:[%s394 + $0x1f8] sm:$0xff] %vm10568, %v10728
        %s10793 = sand.u32 %s270, 1
        %s10794 = scalar_lea.sflag [#allocation4], %s10793
        %s10795 = sand.u32 %s270, 1
        %s10796 = smul.addr %s10795, 512
        %s10797 = scalar_lea.vmem [#allocation5], %s10796
        // Predicated region
        $region69: #{tpu_custom_call.1} parent=63 // pred_check
          %p10798 = pneg %p280
        $region70: #{tpu_custom_call.1} parent=63 // pred_check_branch
          %10800 = sbr.rel (%p10798) target = $region72
        $region71: #{tpu_custom_call.1} parent=63 // pred_region
          %s10802 = ssub.s32 8192, 8192
          %10803 = vsyncadd %s10794, %s10802
          %s10804 = smul.addr %s26, 64
          %s10805 = smul.addr %s10804, 128
          %s10806 = scalar_lea.hbm %s11, %s10805
          %s10807 = sshll.u32 %s10797, 4
          %s10808 = int_to_ptr.vmem [resolvable:$true] %s10807
          %10813 = dma.vmem_to_hbm [thread:$0]  %s10808, 8192, %s10806, %s10794, 256, 256, 16
        $region72: #{tpu_custom_call.1} parent=63 // pred_fallthru
          _
      $region64: #{tpu_custom_call.1} parent=5 // pred_fallthru
        _
      %p10814 = scmp.le.s32.totalorder 2, %s21
      // Predicated region
      $region73: #{tpu_custom_call.1} parent=5 // pred_check
        %p10815 = pneg %p10814
      $region74: #{tpu_custom_call.1} parent=5 // pred_check_branch
        %10817 = sbr.rel (%p10815) target = $region76
      $region75: #{tpu_custom_call.1} parent=5 // pred_region
        %s10818 = ssub.s32 %s21, 2
        // Predicated region
        $region77: #{tpu_custom_call.1} parent=75 // pred_check
          %p10819 = pneg %p286
        $region78: #{tpu_custom_call.1} parent=75 // pred_check_branch
          %10821 = sbr.rel (%p10819) target = $region80
        $region79: #{tpu_custom_call.1} parent=75 // pred_region
          %s10822 = sand.u32 %s271, 1
          %s10823 = scalar_lea.sflag [#allocation4], %s10822
          %s10824 = sand.u32 %s271, 1
          %s10825 = smul.addr %s10824, 512
          %s10826 = scalar_lea.vmem [#allocation5], %s10825
          %10827 = dma.done %s10823, 8192
        $region80: #{tpu_custom_call.1} parent=75 // pred_fallthru
          _
      $region76: #{tpu_custom_call.1} parent=5 // pred_fallthru
        _
    $region6: #{tpu_custom_call.1} parent=1 // loop_footer
      %s25 = sadd.s32 1, %s21
    $region7: #{tpu_custom_call.1} parent=1 // loop_footer_branch
      %20 = sbr.rel target = $region3
    $region8: #{tpu_custom_call.1} parent=1 // loop_exit
      _
    %10828 = vsyncpa [#allocation3], 1
    %s10829 = scalar_lea.sflag [#allocation3], 1
    %10830 = vsyncpa %s10829, 1
    %10831 = vsyncpa [#allocation4], 1
    %s10832 = scalar_lea.sflag [#allocation4], 1
    %10833 = vsyncpa %s10832, 1

</llo_original>
